<compile_context>
chip_gen: v7x
topology: tpu7x:2x2x1
jax: 0.10.0
libtpu: 0.0.40
codegen_flags: <defaults>
</compile_context>

<pallas_src>
import jax
import jax.numpy as jnp
from jax import lax
from jax.experimental import pallas as pl
from jax.experimental.pallas import tpu as pltpu


# ----------------------------- config (mirrors `args`) -----------------------------
class Args:
    pass


args = Args()
args.FP = False              # atom_dim = 10 * 6 = 60
args.edge_bias = True
args.rel_pos_bias = False    # rel_pos encoder / linear_rel_pos unused in this config
args.in_degree_bias = True
args.lap_pos_enc = True
args.n_out_feature = 32      # C
args.edge_dim = 32           # E
args.head_size = 4           # H
args.pos_enc_dim = 8
args.n_graph_layer = 2
args.dropout_rate = 0.0      # eval mode -> dropout is identity

# static sizes
N = 16                       # nodes per (padded) graph
KA = 6                       # atom-feature indices per node
KE = 3                       # edge-attr indices per edge
B = 8                        # graphs per batch
C = args.n_out_feature       # 32
E = args.edge_dim            # 32
H = args.head_size           # 4
D = C // H                   # 8
FF = 4 * C                   # 128
L = args.n_graph_layer       # 2
HN = H * N                   # 64

# packed-weight lane offsets (bf16 per-layer slab, [C, 384])
W_QKV0, W_QKV1 = 0, 3 * C                      # fused Wq|Wk|Wv
W_O0, W_O1 = 3 * C, 4 * C                      # Wo
W_F10, W_F11 = 4 * C, 4 * C + FF               # FFN W1
W_F20, W_F21 = 4 * C + FF, 4 * C + 2 * FF      # FFN W2^T (stored transposed)
W_SLAB = W_F21                                 # 384

# readout slab lane offsets (f32, [48, 128]; row 32 = biases, row 40 = mlp_w3^T)
RD_W1 = 1
RD_W2 = RD_W1 + C // 2                         # 17
RD_W3 = RD_W2 + C // 4                         # 25


# ----------------------------- fused Pallas kernel -----------------------------
def _equiscore_kernel(h_ref, v_ref, mask_ref, bias_ref,
                      wslab_ref, lvec_ref, rd_ref, p_ref, o_ref):
    """L transformer layers + WeightAndSum readout + MLP head for one row group."""
    f32 = jnp.float32
    bf16 = jnp.bfloat16
    h = h_ref[...]                              # [R, C] f32 (R = rows in this grid step)
    mask = mask_ref[0]                          # [R, R] additive 0 / -1e9 (block-diag)
    reps = h.shape[0] // N                      # graphs in this step
    scale = 1.0 / (D ** 0.5)

    def layer_norm(x, g, b):
        # single-pass LN: E[x] and E[x^2] in one sweep
        m1 = jnp.mean(x, axis=-1, keepdims=True)
        m2 = jnp.mean(x * x, axis=-1, keepdims=True)
        var = m2 - m1 * m1
        return (x - m1) * lax.rsqrt(var + 1e-5) * g + b

    def bdot(x, w):                             # MXU dot: bf16 operands, f32 accumulate
        return jnp.dot(x.astype(bf16), w, preferred_element_type=f32)

    for l in range(L):                          # statically unrolled (L = 2)
        w = wslab_ref[l]                        # [C, 384] bf16 packed weights
        lv = lvec_ref[l]                        # [8, FF]  f32 packed LN / bias vectors
        ln1_g, ln1_b = lv[0:1, 0:C], lv[1:2, 0:C]
        ln2_g, ln2_b = lv[2:3, 0:C], lv[3:4, 0:C]
        ffn_b1, ffn_b2 = lv[4:5, 0:FF], lv[5:6, 0:C]
        bias_l = bias_ref[l]                    # [R, H*N] per-head edge-bias rows (f32)

        # ---- pre-LN multi-head attention with edge bias + graph mask, residual ----
        hn = layer_norm(h, ln1_g, ln1_b)
        qkv = bdot(hn, w[:, W_QKV0:W_QKV1])     # [R, 3C] f32
        o_heads = []
        for hd in range(H):                     # static unroll, static lane slices only
            qh = qkv[:, hd * D:(hd + 1) * D].astype(bf16)
            kh = qkv[:, C + hd * D:C + (hd + 1) * D].astype(bf16)
            vh = qkv[:, 2 * C + hd * D:2 * C + (hd + 1) * D].astype(bf16)
            s = lax.dot_general(qh, kh, (((1,), (1,)), ((), ())),
                                preferred_element_type=f32) * scale       # [R, R]
            # per-graph [R, N] bias tiled along lanes; off-diagonal-graph entries are
            # wrong but the -1e9 block-diagonal mask zeroes them after softmax.
            bh = bias_l[:, hd * N:(hd + 1) * N]
            s = s + jnp.concatenate([bh] * reps, axis=-1) + mask
            s = s - jnp.max(s, axis=-1, keepdims=True)                    # full-lane reduce
            p = jnp.exp(s)
            p = p * pl.reciprocal(jnp.sum(p, axis=-1, keepdims=True), approx=True)
            o_heads.append(jnp.dot(p.astype(bf16), vh, preferred_element_type=f32))
        o_cat = jnp.concatenate(o_heads, axis=-1)                         # [R, C]
        h = h + bdot(o_cat, w[:, W_O0:W_O1])

        # ---- pre-LN feed-forward, residual ----
        hn2 = layer_norm(h, ln2_g, ln2_b)
        z = jnp.maximum(bdot(hn2, w[:, W_F10:W_F11]) + ffn_b1, 0.0)       # [R, FF]
        # FFN W2 is stored transposed -> contract both operands on their last dim
        h = h + lax.dot_general(z.astype(bf16), w[:, W_F20:W_F21],
                                (((1,), (1,)), ((), ())),
                                preferred_element_type=f32) + ffn_b2

    # ---- h * V, WeightAndSum readout, 3-layer MLP head (tiny, kept in f32) ----
    rd = rd_ref[...]                            # [48, 128] f32 packed readout slab
    ws_w = rd[0:C, 0:1]                         # WeightAndSum atom weighting
    w1 = rd[0:C, RD_W1:RD_W2]                   # MLP W1 [C, C/2]
    w2 = rd[0:C // 2, RD_W2:RD_W3]              # MLP W2 [C/2, C/4]
    w3t = rd[40:41, 0:C // 4]                   # MLP W3^T [1, C/4]
    bias_row = rd[32:33, :]
    ws_b = bias_row[:, 0:1]
    mb1 = bias_row[:, RD_W1:RD_W2]
    mb2 = bias_row[:, RD_W2:RD_W3]
    mb3 = bias_row[:, RD_W3:RD_W3 + 1]

    hv = h * v_ref[...]                                                   # [R, C]
    wz = jnp.dot(hv, ws_w, preferred_element_type=f32) + ws_b             # [R, 1]
    # numerically stable sigmoid: exp(-|x|) + EUP approximate reciprocal
    ez = jnp.exp(-jnp.abs(wz))
    rec = pl.reciprocal(1.0 + ez, approx=True)
    wgt = jnp.where(wz >= 0.0, rec, ez * rec)
    # per-graph pooling as one one-hot matmul: [GPS, R] @ [R, C] -> [GPS, C]
    hg = jnp.dot(p_ref[...], wgt * hv, preferred_element_type=f32)
    z1 = jnp.maximum(jnp.dot(hg, w1, preferred_element_type=f32) + mb1, 0.0)
    z2 = jnp.maximum(jnp.dot(z1, w2, preferred_element_type=f32) + mb2, 0.0)
    # one lane-contiguous [1, GPS] output store per grid step: w3t @ z2^T
    logits = lax.dot_general(w3t, z2, (((1,), (1,)), ((), ())),
                             preferred_element_type=f32) + mb3            # [1, GPS]
    o_ref[0] = logits


# ----------------------------- parameters -----------------------------
def _dense(key, shape, scale=0.02):
    return (scale * jax.random.normal(key, shape)).astype(jnp.float32)


def init_params(key):
    atom_dim = 16 * 12 if args.FP else 10 * 6
    ks = iter(jax.random.split(key, 16 + 16 * L))
    p = {}
    p['atom_emb'] = _dense(next(ks), (atom_dim + 1, C)).at[0].set(0.0)    # padding_idx=0
    p['edge_emb'] = _dense(next(ks), (36 * 5 + 1, E)).at[0].set(0.0)      # padding_idx=0
    p['indeg_emb'] = _dense(next(ks), (10, C)).at[0].set(0.0)             # padding_idx=0
    p['lap_w'] = _dense(next(ks), (args.pos_enc_dim, C))
    p['lap_b'] = jnp.zeros((1, C), jnp.float32)
    layers = []
    for _ in range(L):
        lp = {
            'ln1_g': jnp.ones((1, C), jnp.float32), 'ln1_b': jnp.zeros((1, C), jnp.float32),
            'wq': _dense(next(ks), (C, C)), 'wk': _dense(next(ks), (C, C)),
            'wv': _dense(next(ks), (C, C)), 'wo': _dense(next(ks), (C, C)),
            'w_ebias': _dense(next(ks), (E, H)),
            'ln2_g': jnp.ones((1, C), jnp.float32), 'ln2_b': jnp.zeros((1, C), jnp.float32),
            'ffn_w1': _dense(next(ks), (C, FF)), 'ffn_b1': jnp.zeros((1, FF), jnp.float32),
            'ffn_w2': _dense(next(ks), (FF, C)), 'ffn_b2': jnp.zeros((1, C), jnp.float32),
            'edge_w': _dense(next(ks), (E, E)), 'edge_b': jnp.zeros((1, E), jnp.float32),
        }
        layers.append(lp)
    p['layers'] = layers
    p['ws_w'] = _dense(next(ks), (C, 1)); p['ws_b'] = jnp.zeros((1, 1), jnp.float32)
    p['mlp_w1'] = _dense(next(ks), (C, C // 2)); p['mlp_b1'] = jnp.zeros((1, C // 2), jnp.float32)
    p['mlp_w2'] = _dense(next(ks), (C // 2, C // 4)); p['mlp_b2'] = jnp.zeros((1, C // 4), jnp.float32)
    p['mlp_w3'] = _dense(next(ks), (C // 4, 1)); p['mlp_b3'] = jnp.zeros((1, 1), jnp.float32)
    return p


def prepare_params(p):
    """Pack raw parameters into kernel-ready slabs (done once, off the hot path)."""
    slabs, lvecs, w_ebias, edge_w, edge_b = [], [], [], [], []
    for lp in p['layers']:
        wqkv = jnp.concatenate([lp['wq'], lp['wk'], lp['wv']], axis=1)            # [C, 3C]
        # bf16 weight slab [C, 384]: Wqkv | Wo | FFN W1 | FFN W2^T
        slab = jnp.concatenate([wqkv, lp['wo'], lp['ffn_w1'], lp['ffn_w2'].T], axis=1)
        slabs.append(slab.astype(jnp.bfloat16))
        lv = jnp.zeros((8, FF), jnp.float32)
        lv = lv.at[0, 0:C].set(lp['ln1_g'][0])
        lv = lv.at[1, 0:C].set(lp['ln1_b'][0])
        lv = lv.at[2, 0:C].set(lp['ln2_g'][0])
        lv = lv.at[3, 0:C].set(lp['ln2_b'][0])
        lv = lv.at[4, 0:FF].set(lp['ffn_b1'][0])
        lv = lv.at[5, 0:C].set(lp['ffn_b2'][0])
        lvecs.append(lv)
        w_ebias.append(lp['w_ebias'])
        edge_w.append(lp['edge_w'])
        edge_b.append(lp['edge_b'])
    # f32 readout slab [48, 128]
    rd = jnp.zeros((48, 128), jnp.float32)
    rd = rd.at[0:C, 0:1].set(p['ws_w'])
    rd = rd.at[0:C, RD_W1:RD_W2].set(p['mlp_w1'])
    rd = rd.at[0:C // 2, RD_W2:RD_W3].set(p['mlp_w2'])
    rd = rd.at[32, 0].set(p['ws_b'][0, 0])
    rd = rd.at[32, RD_W1:RD_W2].set(p['mlp_b1'][0])
    rd = rd.at[32, RD_W2:RD_W3].set(p['mlp_b2'][0])
    rd = rd.at[32, RD_W3].set(p['mlp_b3'][0, 0])
    rd = rd.at[40, 0:C // 4].set(p['mlp_w3'][:, 0])                               # W3^T row
    return {
        'atom_emb': p['atom_emb'], 'edge_emb': p['edge_emb'], 'indeg_emb': p['indeg_emb'],
        'lap_w': p['lap_w'], 'lap_b': p['lap_b'],
        'w_ebias': jnp.stack(w_ebias),   # [L, E, H]  edge -> per-head bias (XLA glue)
        'edge_w': jnp.stack(edge_w),     # [L, E, E]  edge feed-forward (XLA glue)
        'edge_b': jnp.stack(edge_b),     # [L, 1, E]
        'wslab': jnp.stack(slabs),       # [L, C, 384] bf16
        'lvec': jnp.stack(lvecs),        # [L, 8, FF]  f32
        'rdslab': rd,                    # [48, 128]   f32
    }


# ----------------------------- forward -----------------------------
def _default_num_steps():
    """One grid step per TensorCore: 2 on v7x, 1 elsewhere (v5e/v6e are single-TC)."""
    try:
        kind = jax.devices()[0].device_kind.lower()
    except Exception:
        return 1
    return 2 if ("v7" in kind or "7x" in kind) else 1


def equiscore_forward(pp, x_idx, lap_pos_enc, in_degree, V, edge_attr, adj, num_steps=None):
    Bq = x_idx.shape[0]
    if num_steps is None:
        num_steps = _default_num_steps()
    if Bq % num_steps != 0 or ((Bq * N) // num_steps) % 8 != 0:
        num_steps = 1
    R = (Bq * N) // num_steps          # node rows per grid step
    GPS = Bq // num_steps              # graphs per grid step

    # ----- node encoder (embedding gathers; XLA glue) -----
    h = jnp.take(pp['atom_emb'], x_idx, axis=0).mean(-2)                          # [B, N, C]
    if args.lap_pos_enc:
        h = h + lap_pos_enc.astype(jnp.float32) @ pp['lap_w'] + pp['lap_b']
    if args.in_degree_bias:
        h = h + jnp.take(pp['indeg_emb'], in_degree, axis=0)
    h = h.reshape(Bq * N, C).astype(jnp.float32)                                  # batch-fused

    # ----- edge encoder + h-independent edge feed-forward chain + bias projection -----
    # e_{l+1} = e_l + relu(e_l W_e + b_e) never reads h, so it (and the per-layer [E,H]
    # bias projection) runs here as tiny dense XLA matmuls; this replaces the former
    # in-kernel kron(I_N, W_edge) [512,512] weight entirely.
    # TODO(synk): audit this gather+mean (~3 MiB) end-to-end; if it dominates wall time,
    # move it into the kernel via scalar-prefetched index tables (PrefetchScalarGridSpec).
    e = jnp.take(pp['edge_emb'], edge_attr, axis=0).mean(-2)                      # [B, N, N, E]
    bias_list = []
    for l in range(L):
        bl = jnp.einsum('bijc,ch->bihj', e, pp['w_ebias'][l])                     # [B, N, H, N]
        bias_list.append(bl.reshape(Bq * N, HN))
        if l + 1 < L:   # the last layer's edge update is never consumed downstream
            e = e + jnp.maximum(e @ pp['edge_w'][l] + pp['edge_b'][l], 0.0)
    bias_all = jnp.stack(bias_list).astype(jnp.float32)                           # [L, B*N, H*N]

    # ----- block-diagonal additive attention mask, sliced per grid step -----
    adjf = adj.astype(jnp.float32)
    full_adj = (jnp.eye(Bq, dtype=jnp.float32)[:, None, :, None]
                * adjf[:, :, None, :]).reshape(Bq * N, Bq * N)
    full_mask = (full_adj - 1.0) * 1e9                                            # 0 / -1e9
    fm = full_mask.reshape(num_steps, R, num_steps, R)
    mask_steps = jnp.stack([fm[s, :, s, :] for s in range(num_steps)])            # [S, R, R]

    # one-hot pooling matrix (graphs-per-step x rows-per-step), identical every step
    pool = (jnp.arange(R)[None, :] // N == jnp.arange(GPS)[:, None]).astype(jnp.float32)

    v_flat = V.reshape(Bq * N, 1).astype(jnp.float32)

    rep2 = lambda shape: pl.BlockSpec(shape, lambda s: (0, 0))
    rep3 = lambda shape: pl.BlockSpec(shape, lambda s: (0, 0, 0))
    grid_spec = pltpu.PrefetchScalarGridSpec(
        num_scalar_prefetch=0,
        grid=(num_steps,),
        in_specs=[
            pl.BlockSpec((R, C), lambda s: (s, 0)),           # h rows for this step
            pl.BlockSpec((R, 1), lambda s: (s, 0)),           # V rows
            pl.BlockSpec((1, R, R), lambda s: (s, 0, 0)),     # block-diag additive mask
            pl.BlockSpec((L, R, HN), lambda s: (0, s, 0)),    # per-layer edge-bias rows
            rep3((L, C, W_SLAB)),                             # bf16 weight slab
            rep3((L, 8, FF)),                                 # f32 LN / bias vectors
            rep2((48, 128)),                                  # f32 readout slab
            rep2((GPS, R)),                                   # one-hot pooling matrix
        ],
        out_specs=pl.BlockSpec((1, 1, GPS), lambda s: (s, 0, 0)),
    )
    out = pl.pallas_call(
        _equiscore_kernel,
        out_shape=jax.ShapeDtypeStruct((num_steps, 1, GPS), jnp.float32),
        grid_spec=grid_spec,
        compiler_params=pltpu.CompilerParams(dimension_semantics=("parallel",)),
    )(h, v_flat, mask_steps, bias_all,
      pp['wslab'], pp['lvec'], pp['rdslab'], pool)
    return out.reshape(Bq, 1)                                                     # [B, 1] logits


# ----------------------------- main -----------------------------
if __name__ == "__main__":
    key = jax.random.PRNGKey(0)
    kp, k1, k2, k3, k4, k5, k6 = jax.random.split(key, 7)

    params = init_params(kp)
    packed = prepare_params(params)

    atom_dim = 16 * 12 if args.FP else 10 * 6
    x_idx = jax.random.randint(k1, (B, N, KA), 1, atom_dim + 1)                   # [B, N, 6]
    lap_pos_enc = jax.random.normal(k2, (B, N, args.pos_enc_dim), jnp.float32)
    in_degree = jax.random.randint(k3, (B, N), 1, 10)
    V = (jax.random.uniform(k4, (B, N, 1)) > 0.5).astype(jnp.float32)
    edge_attr = jax.random.randint(k5, (B, N, N, KE), 0, 36 * 5 + 1)
    adj = jnp.logical_or(jax.random.uniform(k6, (B, N, N)) > 0.5,
                         jnp.eye(N, dtype=bool)[None]).astype(jnp.float32)

    fwd = jax.jit(equiscore_forward)
    out = fwd(packed, x_idx, lap_pos_enc, in_degree, V, edge_attr, adj)
    jax.block_until_ready(out)
    assert out.shape == (B, 1) and out.dtype == jnp.float32
    print("KERNEL_OK")
</pallas_src>

<mosaic_0001>
module attributes {stable_mosaic.version = 11 : i64} {
  func.func @_equiscore_kernel(%arg0: i32, %arg1: memref<128x32xf32, #tpu.memory_space<vmem>>, %arg2: memref<128x1xf32, #tpu.memory_space<vmem>>, %arg3: memref<1x128x128xf32, #tpu.memory_space<vmem>>, %arg4: memref<2x128x64xf32, #tpu.memory_space<vmem>>, %arg5: memref<2x32x384xbf16, #tpu.memory_space<vmem>>, %arg6: memref<2x8x128xf32, #tpu.memory_space<vmem>>, %arg7: memref<48x128xf32, #tpu.memory_space<vmem>>, %arg8: memref<8x128xf32, #tpu.memory_space<vmem>>, %arg9: memref<1x1x8xf32, #tpu.memory_space<vmem>>) attributes {dimension_semantics = [#tpu.dimension_semantics<parallel>], iteration_bounds = array<i64: 1>, scalar_prefetch = 0 : i64, scratch_operands = 0 : i64, tpu.core_type = #tpu.core_type<tc>, window_params = [{transform_indices = @transform_0, window_bounds = array<i64: 128, 32>}, {transform_indices = @transform_1, window_bounds = array<i64: 128, 1>}, {transform_indices = @transform_2, window_bounds = array<i64: 1, 128, 128>}, {transform_indices = @transform_3, window_bounds = array<i64: 2, 128, 64>}, {pipeline_mode = #tpu.pipeline_mode<synchronous>, transform_indices = @transform_4, window_bounds = array<i64: 2, 32, 384>}, {pipeline_mode = #tpu.pipeline_mode<synchronous>, transform_indices = @transform_5, window_bounds = array<i64: 2, 8, 128>}, {pipeline_mode = #tpu.pipeline_mode<synchronous>, transform_indices = @transform_6, window_bounds = array<i64: 48, 128>}, {pipeline_mode = #tpu.pipeline_mode<synchronous>, transform_indices = @transform_7, window_bounds = array<i64: 8, 128>}, {transform_indices = @transform_8, window_bounds = array<i64: 1, 1, 8>}]} {
    %c0 = arith.constant 0 : index
    %c0_0 = arith.constant 0 : index
    %0 = vector.load %arg1[%c0, %c0_0] : memref<128x32xf32, #tpu.memory_space<vmem>>, vector<128x32xf32>
    %c0_1 = arith.constant 0 : index
    %c0_2 = arith.constant 0 : index
    %c0_3 = arith.constant 0 : index
    %1 = vector.load %arg3[%c0_1, %c0_2, %c0_3] : memref<1x128x128xf32, #tpu.memory_space<vmem>>, vector<1x128x128xf32>
    %2 = vector.shape_cast %1 : vector<1x128x128xf32> to vector<128x128xf32>
    %c0_4 = arith.constant 0 : index
    %c0_5 = arith.constant 0 : index
    %c0_6 = arith.constant 0 : index
    %3 = vector.load %arg5[%c0_4, %c0_5, %c0_6] : memref<2x32x384xbf16, #tpu.memory_space<vmem>>, vector<1x32x384xbf16>
    %4 = vector.shape_cast %3 : vector<1x32x384xbf16> to vector<32x384xbf16>
    %c0_7 = arith.constant 0 : index
    %c0_8 = arith.constant 0 : index
    %c0_9 = arith.constant 0 : index
    %5 = vector.load %arg6[%c0_7, %c0_8, %c0_9] : memref<2x8x128xf32, #tpu.memory_space<vmem>>, vector<1x8x128xf32>
    %6 = vector.shape_cast %5 : vector<1x8x128xf32> to vector<8x128xf32>
    %7 = vector.extract_strided_slice %6 {offsets = [0, 0], sizes = [1, 32], strides = [1, 1]} : vector<8x128xf32> to vector<1x32xf32>
    %8 = vector.extract_strided_slice %6 {offsets = [1, 0], sizes = [1, 32], strides = [1, 1]} : vector<8x128xf32> to vector<1x32xf32>
    %9 = vector.extract_strided_slice %6 {offsets = [2, 0], sizes = [1, 32], strides = [1, 1]} : vector<8x128xf32> to vector<1x32xf32>
    %10 = vector.extract_strided_slice %6 {offsets = [3, 0], sizes = [1, 32], strides = [1, 1]} : vector<8x128xf32> to vector<1x32xf32>
    %11 = vector.extract_strided_slice %6 {offsets = [4, 0], sizes = [1, 128], strides = [1, 1]} : vector<8x128xf32> to vector<1x128xf32>
    %12 = vector.extract_strided_slice %6 {offsets = [5, 0], sizes = [1, 32], strides = [1, 1]} : vector<8x128xf32> to vector<1x32xf32>
    %c0_10 = arith.constant 0 : index
    %c0_11 = arith.constant 0 : index
    %c0_12 = arith.constant 0 : index
    %13 = vector.load %arg4[%c0_10, %c0_11, %c0_12] : memref<2x128x64xf32, #tpu.memory_space<vmem>>, vector<1x128x64xf32>
    %14 = vector.shape_cast %13 : vector<1x128x64xf32> to vector<128x64xf32>
    %cst = arith.constant dense<0.000000e+00> : vector<128xf32>
    %15 = vector.multi_reduction <add>, %0, %cst [1] : vector<128x32xf32> to vector<128xf32>
    %16 = vector.shape_cast %15 : vector<128xf32> to vector<128x1xf32>
    %cst_13 = arith.constant 3.200000e+01 : f32
    %17 = vector.broadcast %cst_13 : f32 to vector<128x1xf32>
    %18 = arith.divf %16, %17 : vector<128x1xf32>
    %19 = arith.mulf %0, %0 : vector<128x32xf32>
    %cst_14 = arith.constant dense<0.000000e+00> : vector<128xf32>
    %20 = vector.multi_reduction <add>, %19, %cst_14 [1] : vector<128x32xf32> to vector<128xf32>
    %21 = vector.shape_cast %20 : vector<128xf32> to vector<128x1xf32>
    %cst_15 = arith.constant 3.200000e+01 : f32
    %22 = vector.broadcast %cst_15 : f32 to vector<128x1xf32>
    %23 = arith.divf %21, %22 : vector<128x1xf32>
    %24 = arith.mulf %18, %18 : vector<128x1xf32>
    %25 = arith.subf %23, %24 : vector<128x1xf32>
    %26 = vector.broadcast %18 : vector<128x1xf32> to vector<128x32xf32>
    %27 = arith.subf %0, %26 : vector<128x32xf32>
    %cst_16 = arith.constant 9.99999974E-6 : f32
    %28 = vector.broadcast %cst_16 : f32 to vector<128x1xf32>
    %29 = arith.addf %25, %28 : vector<128x1xf32>
    %30 = math.rsqrt %29 : vector<128x1xf32>
    %31 = vector.broadcast %30 : vector<128x1xf32> to vector<128x32xf32>
    %32 = arith.mulf %27, %31 : vector<128x32xf32>
    %33 = vector.broadcast %7 : vector<1x32xf32> to vector<128x32xf32>
    %34 = arith.mulf %32, %33 : vector<128x32xf32>
    %35 = vector.broadcast %8 : vector<1x32xf32> to vector<128x32xf32>
    %36 = arith.addf %34, %35 : vector<128x32xf32>
    %37 = vector.extract_strided_slice %4 {offsets = [0, 0], sizes = [32, 96], strides = [1, 1]} : vector<32x384xbf16> to vector<32x96xbf16>
    %38 = arith.truncf %36 : vector<128x32xf32> to vector<128x32xbf16>
    %cst_17 = arith.constant dense<0.000000e+00> : vector<128x96xf32>
    %39 = tpu.matmul %38, %37, %cst_17 {dimension_numbers = #tpu.dot_dimension_numbers<[1], [0], [0], [1], [0, 0, 1, 1], [], []>} : vector<128x32xbf16>, vector<32x96xbf16>, vector<128x96xf32> -> vector<128x96xf32>
    %40 = vector.extract_strided_slice %39 {offsets = [0, 0], sizes = [128, 8], strides = [1, 1]} : vector<128x96xf32> to vector<128x8xf32>
    %41 = arith.truncf %40 : vector<128x8xf32> to vector<128x8xbf16>
    %42 = vector.extract_strided_slice %39 {offsets = [0, 32], sizes = [128, 8], strides = [1, 1]} : vector<128x96xf32> to vector<128x8xf32>
    %43 = arith.truncf %42 : vector<128x8xf32> to vector<128x8xbf16>
    %44 = vector.extract_strided_slice %39 {offsets = [0, 64], sizes = [128, 8], strides = [1, 1]} : vector<128x96xf32> to vector<128x8xf32>
    %45 = arith.truncf %44 : vector<128x8xf32> to vector<128x8xbf16>
    %cst_18 = arith.constant dense<0.000000e+00> : vector<128x128xf32>
    %46 = tpu.matmul %41, %43, %cst_18 {dimension_numbers = #tpu.dot_dimension_numbers<[1], [1], [0], [0], [0, 0, 1, 0], [], []>} : vector<128x8xbf16>, vector<128x8xbf16>, vector<128x128xf32> -> vector<128x128xf32>
    %cst_19 = arith.constant 0.353553385 : f32
    %47 = vector.broadcast %cst_19 : f32 to vector<128x128xf32>
    %48 = arith.mulf %46, %47 : vector<128x128xf32>
    %49 = vector.extract_strided_slice %14 {offsets = [0, 0], sizes = [128, 16], strides = [1, 1]} : vector<128x64xf32> to vector<128x16xf32>
    %50 = tpu.concatenate %49, %49, %49, %49, %49, %49, %49, %49 in 1 : vector<128x16xf32>, vector<128x16xf32>, vector<128x16xf32>, vector<128x16xf32>, vector<128x16xf32>, vector<128x16xf32>, vector<128x16xf32>, vector<128x16xf32> -> vector<128x128xf32>
    %51 = arith.addf %48, %50 : vector<128x128xf32>
    %52 = arith.addf %51, %2 : vector<128x128xf32>
    %cst_20 = arith.constant dense<0xFF800000> : vector<128xf32>
    %53 = vector.multi_reduction <maximumf>, %52, %cst_20 [1] : vector<128x128xf32> to vector<128xf32>
    %54 = vector.shape_cast %53 : vector<128xf32> to vector<128x1xf32>
    %55 = vector.broadcast %54 : vector<128x1xf32> to vector<128x128xf32>
    %56 = arith.subf %52, %55 : vector<128x128xf32>
    %57 = math.exp %56 : vector<128x128xf32>
    %cst_21 = arith.constant dense<0.000000e+00> : vector<128xf32>
    %58 = vector.multi_reduction <add>, %57, %cst_21 [1] : vector<128x128xf32> to vector<128xf32>
    %59 = vector.shape_cast %58 : vector<128xf32> to vector<128x1xf32>
    %60 = tpu.reciprocal %59 {approx = true} : vector<128x1xf32> -> vector<128x1xf32>
    %61 = vector.broadcast %60 : vector<128x1xf32> to vector<128x128xf32>
    %62 = arith.mulf %57, %61 : vector<128x128xf32>
    %63 = arith.truncf %62 : vector<128x128xf32> to vector<128x128xbf16>
    %cst_22 = arith.constant dense<0.000000e+00> : vector<128x8xf32>
    %64 = tpu.matmul %63, %45, %cst_22 {dimension_numbers = #tpu.dot_dimension_numbers<[1], [0], [0], [1], [0, 0, 1, 1], [], []>} : vector<128x128xbf16>, vector<128x8xbf16>, vector<128x8xf32> -> vector<128x8xf32>
    %65 = vector.extract_strided_slice %39 {offsets = [0, 8], sizes = [128, 8], strides = [1, 1]} : vector<128x96xf32> to vector<128x8xf32>
    %66 = arith.truncf %65 : vector<128x8xf32> to vector<128x8xbf16>
    %67 = vector.extract_strided_slice %39 {offsets = [0, 40], sizes = [128, 8], strides = [1, 1]} : vector<128x96xf32> to vector<128x8xf32>
    %68 = arith.truncf %67 : vector<128x8xf32> to vector<128x8xbf16>
    %69 = vector.extract_strided_slice %39 {offsets = [0, 72], sizes = [128, 8], strides = [1, 1]} : vector<128x96xf32> to vector<128x8xf32>
    %70 = arith.truncf %69 : vector<128x8xf32> to vector<128x8xbf16>
    %cst_23 = arith.constant dense<0.000000e+00> : vector<128x128xf32>
    %71 = tpu.matmul %66, %68, %cst_23 {dimension_numbers = #tpu.dot_dimension_numbers<[1], [1], [0], [0], [0, 0, 1, 0], [], []>} : vector<128x8xbf16>, vector<128x8xbf16>, vector<128x128xf32> -> vector<128x128xf32>
    %cst_24 = arith.constant 0.353553385 : f32
    %72 = vector.broadcast %cst_24 : f32 to vector<128x128xf32>
    %73 = arith.mulf %71, %72 : vector<128x128xf32>
    %74 = vector.extract_strided_slice %14 {offsets = [0, 16], sizes = [128, 16], strides = [1, 1]} : vector<128x64xf32> to vector<128x16xf32>
    %75 = tpu.concatenate %74, %74, %74, %74, %74, %74, %74, %74 in 1 : vector<128x16xf32>, vector<128x16xf32>, vector<128x16xf32>, vector<128x16xf32>, vector<128x16xf32>, vector<128x16xf32>, vector<128x16xf32>, vector<128x16xf32> -> vector<128x128xf32>
    %76 = arith.addf %73, %75 : vector<128x128xf32>
    %77 = arith.addf %76, %2 : vector<128x128xf32>
    %cst_25 = arith.constant dense<0xFF800000> : vector<128xf32>
    %78 = vector.multi_reduction <maximumf>, %77, %cst_25 [1] : vector<128x128xf32> to vector<128xf32>
    %79 = vector.shape_cast %78 : vector<128xf32> to vector<128x1xf32>
    %80 = vector.broadcast %79 : vector<128x1xf32> to vector<128x128xf32>
    %81 = arith.subf %77, %80 : vector<128x128xf32>
    %82 = math.exp %81 : vector<128x128xf32>
    %cst_26 = arith.constant dense<0.000000e+00> : vector<128xf32>
    %83 = vector.multi_reduction <add>, %82, %cst_26 [1] : vector<128x128xf32> to vector<128xf32>
    %84 = vector.shape_cast %83 : vector<128xf32> to vector<128x1xf32>
    %85 = tpu.reciprocal %84 {approx = true} : vector<128x1xf32> -> vector<128x1xf32>
    %86 = vector.broadcast %85 : vector<128x1xf32> to vector<128x128xf32>
    %87 = arith.mulf %82, %86 : vector<128x128xf32>
    %88 = arith.truncf %87 : vector<128x128xf32> to vector<128x128xbf16>
    %cst_27 = arith.constant dense<0.000000e+00> : vector<128x8xf32>
    %89 = tpu.matmul %88, %70, %cst_27 {dimension_numbers = #tpu.dot_dimension_numbers<[1], [0], [0], [1], [0, 0, 1, 1], [], []>} : vector<128x128xbf16>, vector<128x8xbf16>, vector<128x8xf32> -> vector<128x8xf32>
    %90 = vector.extract_strided_slice %39 {offsets = [0, 16], sizes = [128, 8], strides = [1, 1]} : vector<128x96xf32> to vector<128x8xf32>
    %91 = arith.truncf %90 : vector<128x8xf32> to vector<128x8xbf16>
    %92 = vector.extract_strided_slice %39 {offsets = [0, 48], sizes = [128, 8], strides = [1, 1]} : vector<128x96xf32> to vector<128x8xf32>
    %93 = arith.truncf %92 : vector<128x8xf32> to vector<128x8xbf16>
    %94 = vector.extract_strided_slice %39 {offsets = [0, 80], sizes = [128, 8], strides = [1, 1]} : vector<128x96xf32> to vector<128x8xf32>
    %95 = arith.truncf %94 : vector<128x8xf32> to vector<128x8xbf16>
    %cst_28 = arith.constant dense<0.000000e+00> : vector<128x128xf32>
    %96 = tpu.matmul %91, %93, %cst_28 {dimension_numbers = #tpu.dot_dimension_numbers<[1], [1], [0], [0], [0, 0, 1, 0], [], []>} : vector<128x8xbf16>, vector<128x8xbf16>, vector<128x128xf32> -> vector<128x128xf32>
    %cst_29 = arith.constant 0.353553385 : f32
    %97 = vector.broadcast %cst_29 : f32 to vector<128x128xf32>
    %98 = arith.mulf %96, %97 : vector<128x128xf32>
    %99 = vector.extract_strided_slice %14 {offsets = [0, 32], sizes = [128, 16], strides = [1, 1]} : vector<128x64xf32> to vector<128x16xf32>
    %100 = tpu.concatenate %99, %99, %99, %99, %99, %99, %99, %99 in 1 : vector<128x16xf32>, vector<128x16xf32>, vector<128x16xf32>, vector<128x16xf32>, vector<128x16xf32>, vector<128x16xf32>, vector<128x16xf32>, vector<128x16xf32> -> vector<128x128xf32>
    %101 = arith.addf %98, %100 : vector<128x128xf32>
    %102 = arith.addf %101, %2 : vector<128x128xf32>
    %cst_30 = arith.constant dense<0xFF800000> : vector<128xf32>
    %103 = vector.multi_reduction <maximumf>, %102, %cst_30 [1] : vector<128x128xf32> to vector<128xf32>
    %104 = vector.shape_cast %103 : vector<128xf32> to vector<128x1xf32>
    %105 = vector.broadcast %104 : vector<128x1xf32> to vector<128x128xf32>
    %106 = arith.subf %102, %105 : vector<128x128xf32>
    %107 = math.exp %106 : vector<128x128xf32>
    %cst_31 = arith.constant dense<0.000000e+00> : vector<128xf32>
    %108 = vector.multi_reduction <add>, %107, %cst_31 [1] : vector<128x128xf32> to vector<128xf32>
    %109 = vector.shape_cast %108 : vector<128xf32> to vector<128x1xf32>
    %110 = tpu.reciprocal %109 {approx = true} : vector<128x1xf32> -> vector<128x1xf32>
    %111 = vector.broadcast %110 : vector<128x1xf32> to vector<128x128xf32>
    %112 = arith.mulf %107, %111 : vector<128x128xf32>
    %113 = arith.truncf %112 : vector<128x128xf32> to vector<128x128xbf16>
    %cst_32 = arith.constant dense<0.000000e+00> : vector<128x8xf32>
    %114 = tpu.matmul %113, %95, %cst_32 {dimension_numbers = #tpu.dot_dimension_numbers<[1], [0], [0], [1], [0, 0, 1, 1], [], []>} : vector<128x128xbf16>, vector<128x8xbf16>, vector<128x8xf32> -> vector<128x8xf32>
    %115 = vector.extract_strided_slice %39 {offsets = [0, 24], sizes = [128, 8], strides = [1, 1]} : vector<128x96xf32> to vector<128x8xf32>
    %116 = arith.truncf %115 : vector<128x8xf32> to vector<128x8xbf16>
    %117 = vector.extract_strided_slice %39 {offsets = [0, 56], sizes = [128, 8], strides = [1, 1]} : vector<128x96xf32> to vector<128x8xf32>
    %118 = arith.truncf %117 : vector<128x8xf32> to vector<128x8xbf16>
    %119 = vector.extract_strided_slice %39 {offsets = [0, 88], sizes = [128, 8], strides = [1, 1]} : vector<128x96xf32> to vector<128x8xf32>
    %120 = arith.truncf %119 : vector<128x8xf32> to vector<128x8xbf16>
    %cst_33 = arith.constant dense<0.000000e+00> : vector<128x128xf32>
    %121 = tpu.matmul %116, %118, %cst_33 {dimension_numbers = #tpu.dot_dimension_numbers<[1], [1], [0], [0], [0, 0, 1, 0], [], []>} : vector<128x8xbf16>, vector<128x8xbf16>, vector<128x128xf32> -> vector<128x128xf32>
    %cst_34 = arith.constant 0.353553385 : f32
    %122 = vector.broadcast %cst_34 : f32 to vector<128x128xf32>
    %123 = arith.mulf %121, %122 : vector<128x128xf32>
    %124 = vector.extract_strided_slice %14 {offsets = [0, 48], sizes = [128, 16], strides = [1, 1]} : vector<128x64xf32> to vector<128x16xf32>
    %125 = tpu.concatenate %124, %124, %124, %124, %124, %124, %124, %124 in 1 : vector<128x16xf32>, vector<128x16xf32>, vector<128x16xf32>, vector<128x16xf32>, vector<128x16xf32>, vector<128x16xf32>, vector<128x16xf32>, vector<128x16xf32> -> vector<128x128xf32>
    %126 = arith.addf %123, %125 : vector<128x128xf32>
    %127 = arith.addf %126, %2 : vector<128x128xf32>
    %cst_35 = arith.constant dense<0xFF800000> : vector<128xf32>
    %128 = vector.multi_reduction <maximumf>, %127, %cst_35 [1] : vector<128x128xf32> to vector<128xf32>
    %129 = vector.shape_cast %128 : vector<128xf32> to vector<128x1xf32>
    %130 = vector.broadcast %129 : vector<128x1xf32> to vector<128x128xf32>
    %131 = arith.subf %127, %130 : vector<128x128xf32>
    %132 = math.exp %131 : vector<128x128xf32>
    %cst_36 = arith.constant dense<0.000000e+00> : vector<128xf32>
    %133 = vector.multi_reduction <add>, %132, %cst_36 [1] : vector<128x128xf32> to vector<128xf32>
    %134 = vector.shape_cast %133 : vector<128xf32> to vector<128x1xf32>
    %135 = tpu.reciprocal %134 {approx = true} : vector<128x1xf32> -> vector<128x1xf32>
    %136 = vector.broadcast %135 : vector<128x1xf32> to vector<128x128xf32>
    %137 = arith.mulf %132, %136 : vector<128x128xf32>
    %138 = arith.truncf %137 : vector<128x128xf32> to vector<128x128xbf16>
    %cst_37 = arith.constant dense<0.000000e+00> : vector<128x8xf32>
    %139 = tpu.matmul %138, %120, %cst_37 {dimension_numbers = #tpu.dot_dimension_numbers<[1], [0], [0], [1], [0, 0, 1, 1], [], []>} : vector<128x128xbf16>, vector<128x8xbf16>, vector<128x8xf32> -> vector<128x8xf32>
    %140 = tpu.concatenate %64, %89, %114, %139 in 1 : vector<128x8xf32>, vector<128x8xf32>, vector<128x8xf32>, vector<128x8xf32> -> vector<128x32xf32>
    %141 = vector.extract_strided_slice %4 {offsets = [0, 96], sizes = [32, 32], strides = [1, 1]} : vector<32x384xbf16> to vector<32x32xbf16>
    %142 = arith.truncf %140 : vector<128x32xf32> to vector<128x32xbf16>
    %cst_38 = arith.constant dense<0.000000e+00> : vector<128x32xf32>
    %143 = tpu.matmul %142, %141, %cst_38 {dimension_numbers = #tpu.dot_dimension_numbers<[1], [0], [0], [1], [0, 0, 1, 1], [], []>} : vector<128x32xbf16>, vector<32x32xbf16>, vector<128x32xf32> -> vector<128x32xf32>
    %144 = arith.addf %0, %143 : vector<128x32xf32>
    %cst_39 = arith.constant dense<0.000000e+00> : vector<128xf32>
    %145 = vector.multi_reduction <add>, %144, %cst_39 [1] : vector<128x32xf32> to vector<128xf32>
    %146 = vector.shape_cast %145 : vector<128xf32> to vector<128x1xf32>
    %cst_40 = arith.constant 3.200000e+01 : f32
    %147 = vector.broadcast %cst_40 : f32 to vector<128x1xf32>
    %148 = arith.divf %146, %147 : vector<128x1xf32>
    %149 = arith.mulf %144, %144 : vector<128x32xf32>
    %cst_41 = arith.constant dense<0.000000e+00> : vector<128xf32>
    %150 = vector.multi_reduction <add>, %149, %cst_41 [1] : vector<128x32xf32> to vector<128xf32>
    %151 = vector.shape_cast %150 : vector<128xf32> to vector<128x1xf32>
    %cst_42 = arith.constant 3.200000e+01 : f32
    %152 = vector.broadcast %cst_42 : f32 to vector<128x1xf32>
    %153 = arith.divf %151, %152 : vector<128x1xf32>
    %154 = arith.mulf %148, %148 : vector<128x1xf32>
    %155 = arith.subf %153, %154 : vector<128x1xf32>
    %156 = vector.broadcast %148 : vector<128x1xf32> to vector<128x32xf32>
    %157 = arith.subf %144, %156 : vector<128x32xf32>
    %cst_43 = arith.constant 9.99999974E-6 : f32
    %158 = vector.broadcast %cst_43 : f32 to vector<128x1xf32>
    %159 = arith.addf %155, %158 : vector<128x1xf32>
    %160 = math.rsqrt %159 : vector<128x1xf32>
    %161 = vector.broadcast %160 : vector<128x1xf32> to vector<128x32xf32>
    %162 = arith.mulf %157, %161 : vector<128x32xf32>
    %163 = vector.broadcast %9 : vector<1x32xf32> to vector<128x32xf32>
    %164 = arith.mulf %162, %163 : vector<128x32xf32>
    %165 = vector.broadcast %10 : vector<1x32xf32> to vector<128x32xf32>
    %166 = arith.addf %164, %165 : vector<128x32xf32>
    %167 = vector.extract_strided_slice %4 {offsets = [0, 128], sizes = [32, 128], strides = [1, 1]} : vector<32x384xbf16> to vector<32x128xbf16>
    %168 = arith.truncf %166 : vector<128x32xf32> to vector<128x32xbf16>
    %cst_44 = arith.constant dense<0.000000e+00> : vector<128x128xf32>
    %169 = tpu.matmul %168, %167, %cst_44 {dimension_numbers = #tpu.dot_dimension_numbers<[1], [0], [0], [1], [0, 0, 1, 1], [], []>} : vector<128x32xbf16>, vector<32x128xbf16>, vector<128x128xf32> -> vector<128x128xf32>
    %170 = vector.broadcast %11 : vector<1x128xf32> to vector<128x128xf32>
    %171 = arith.addf %169, %170 : vector<128x128xf32>
    %cst_45 = arith.constant 0.000000e+00 : f32
    %172 = vector.broadcast %cst_45 : f32 to vector<128x128xf32>
    %173 = arith.maximumf %171, %172 : vector<128x128xf32>
    %174 = arith.truncf %173 : vector<128x128xf32> to vector<128x128xbf16>
    %175 = vector.extract_strided_slice %4 {offsets = [0, 256], sizes = [32, 128], strides = [1, 1]} : vector<32x384xbf16> to vector<32x128xbf16>
    %cst_46 = arith.constant dense<0.000000e+00> : vector<128x32xf32>
    %176 = tpu.matmul %174, %175, %cst_46 {dimension_numbers = #tpu.dot_dimension_numbers<[1], [1], [0], [0], [0, 0, 1, 0], [], []>} : vector<128x128xbf16>, vector<32x128xbf16>, vector<128x32xf32> -> vector<128x32xf32>
    %177 = arith.addf %144, %176 : vector<128x32xf32>
    %178 = vector.broadcast %12 : vector<1x32xf32> to vector<128x32xf32>
    %179 = arith.addf %177, %178 : vector<128x32xf32>
    %c1 = arith.constant 1 : index
    %c0_47 = arith.constant 0 : index
    %c0_48 = arith.constant 0 : index
    %180 = vector.load %arg5[%c1, %c0_47, %c0_48] : memref<2x32x384xbf16, #tpu.memory_space<vmem>>, vector<1x32x384xbf16>
    %181 = vector.shape_cast %180 : vector<1x32x384xbf16> to vector<32x384xbf16>
    %c1_49 = arith.constant 1 : index
    %c0_50 = arith.constant 0 : index
    %c0_51 = arith.constant 0 : index
    %182 = vector.load %arg6[%c1_49, %c0_50, %c0_51] : memref<2x8x128xf32, #tpu.memory_space<vmem>>, vector<1x8x128xf32>
    %183 = vector.shape_cast %182 : vector<1x8x128xf32> to vector<8x128xf32>
    %184 = vector.extract_strided_slice %183 {offsets = [0, 0], sizes = [1, 32], strides = [1, 1]} : vector<8x128xf32> to vector<1x32xf32>
    %185 = vector.extract_strided_slice %183 {offsets = [1, 0], sizes = [1, 32], strides = [1, 1]} : vector<8x128xf32> to vector<1x32xf32>
    %186 = vector.extract_strided_slice %183 {offsets = [2, 0], sizes = [1, 32], strides = [1, 1]} : vector<8x128xf32> to vector<1x32xf32>
    %187 = vector.extract_strided_slice %183 {offsets = [3, 0], sizes = [1, 32], strides = [1, 1]} : vector<8x128xf32> to vector<1x32xf32>
    %188 = vector.extract_strided_slice %183 {offsets = [4, 0], sizes = [1, 128], strides = [1, 1]} : vector<8x128xf32> to vector<1x128xf32>
    %189 = vector.extract_strided_slice %183 {offsets = [5, 0], sizes = [1, 32], strides = [1, 1]} : vector<8x128xf32> to vector<1x32xf32>
    %c1_52 = arith.constant 1 : index
    %c0_53 = arith.constant 0 : index
    %c0_54 = arith.constant 0 : index
    %190 = vector.load %arg4[%c1_52, %c0_53, %c0_54] : memref<2x128x64xf32, #tpu.memory_space<vmem>>, vector<1x128x64xf32>
    %191 = vector.shape_cast %190 : vector<1x128x64xf32> to vector<128x64xf32>
    %cst_55 = arith.constant dense<0.000000e+00> : vector<128xf32>
    %192 = vector.multi_reduction <add>, %179, %cst_55 [1] : vector<128x32xf32> to vector<128xf32>
    %193 = vector.shape_cast %192 : vector<128xf32> to vector<128x1xf32>
    %cst_56 = arith.constant 3.200000e+01 : f32
    %194 = vector.broadcast %cst_56 : f32 to vector<128x1xf32>
    %195 = arith.divf %193, %194 : vector<128x1xf32>
    %196 = arith.mulf %179, %179 : vector<128x32xf32>
    %cst_57 = arith.constant dense<0.000000e+00> : vector<128xf32>
    %197 = vector.multi_reduction <add>, %196, %cst_57 [1] : vector<128x32xf32> to vector<128xf32>
    %198 = vector.shape_cast %197 : vector<128xf32> to vector<128x1xf32>
    %cst_58 = arith.constant 3.200000e+01 : f32
    %199 = vector.broadcast %cst_58 : f32 to vector<128x1xf32>
    %200 = arith.divf %198, %199 : vector<128x1xf32>
    %201 = arith.mulf %195, %195 : vector<128x1xf32>
    %202 = arith.subf %200, %201 : vector<128x1xf32>
    %203 = vector.broadcast %195 : vector<128x1xf32> to vector<128x32xf32>
    %204 = arith.subf %179, %203 : vector<128x32xf32>
    %cst_59 = arith.constant 9.99999974E-6 : f32
    %205 = vector.broadcast %cst_59 : f32 to vector<128x1xf32>
    %206 = arith.addf %202, %205 : vector<128x1xf32>
    %207 = math.rsqrt %206 : vector<128x1xf32>
    %208 = vector.broadcast %207 : vector<128x1xf32> to vector<128x32xf32>
    %209 = arith.mulf %204, %208 : vector<128x32xf32>
    %210 = vector.broadcast %184 : vector<1x32xf32> to vector<128x32xf32>
    %211 = arith.mulf %209, %210 : vector<128x32xf32>
    %212 = vector.broadcast %185 : vector<1x32xf32> to vector<128x32xf32>
    %213 = arith.addf %211, %212 : vector<128x32xf32>
    %214 = vector.extract_strided_slice %181 {offsets = [0, 0], sizes = [32, 96], strides = [1, 1]} : vector<32x384xbf16> to vector<32x96xbf16>
    %215 = arith.truncf %213 : vector<128x32xf32> to vector<128x32xbf16>
    %cst_60 = arith.constant dense<0.000000e+00> : vector<128x96xf32>
    %216 = tpu.matmul %215, %214, %cst_60 {dimension_numbers = #tpu.dot_dimension_numbers<[1], [0], [0], [1], [0, 0, 1, 1], [], []>} : vector<128x32xbf16>, vector<32x96xbf16>, vector<128x96xf32> -> vector<128x96xf32>
    %217 = vector.extract_strided_slice %216 {offsets = [0, 0], sizes = [128, 8], strides = [1, 1]} : vector<128x96xf32> to vector<128x8xf32>
    %218 = arith.truncf %217 : vector<128x8xf32> to vector<128x8xbf16>
    %219 = vector.extract_strided_slice %216 {offsets = [0, 32], sizes = [128, 8], strides = [1, 1]} : vector<128x96xf32> to vector<128x8xf32>
    %220 = arith.truncf %219 : vector<128x8xf32> to vector<128x8xbf16>
    %221 = vector.extract_strided_slice %216 {offsets = [0, 64], sizes = [128, 8], strides = [1, 1]} : vector<128x96xf32> to vector<128x8xf32>
    %222 = arith.truncf %221 : vector<128x8xf32> to vector<128x8xbf16>
    %cst_61 = arith.constant dense<0.000000e+00> : vector<128x128xf32>
    %223 = tpu.matmul %218, %220, %cst_61 {dimension_numbers = #tpu.dot_dimension_numbers<[1], [1], [0], [0], [0, 0, 1, 0], [], []>} : vector<128x8xbf16>, vector<128x8xbf16>, vector<128x128xf32> -> vector<128x128xf32>
    %cst_62 = arith.constant 0.353553385 : f32
    %224 = vector.broadcast %cst_62 : f32 to vector<128x128xf32>
    %225 = arith.mulf %223, %224 : vector<128x128xf32>
    %226 = vector.extract_strided_slice %191 {offsets = [0, 0], sizes = [128, 16], strides = [1, 1]} : vector<128x64xf32> to vector<128x16xf32>
    %227 = tpu.concatenate %226, %226, %226, %226, %226, %226, %226, %226 in 1 : vector<128x16xf32>, vector<128x16xf32>, vector<128x16xf32>, vector<128x16xf32>, vector<128x16xf32>, vector<128x16xf32>, vector<128x16xf32>, vector<128x16xf32> -> vector<128x128xf32>
    %228 = arith.addf %225, %227 : vector<128x128xf32>
    %229 = arith.addf %228, %2 : vector<128x128xf32>
    %cst_63 = arith.constant dense<0xFF800000> : vector<128xf32>
    %230 = vector.multi_reduction <maximumf>, %229, %cst_63 [1] : vector<128x128xf32> to vector<128xf32>
    %231 = vector.shape_cast %230 : vector<128xf32> to vector<128x1xf32>
    %232 = vector.broadcast %231 : vector<128x1xf32> to vector<128x128xf32>
    %233 = arith.subf %229, %232 : vector<128x128xf32>
    %234 = math.exp %233 : vector<128x128xf32>
    %cst_64 = arith.constant dense<0.000000e+00> : vector<128xf32>
    %235 = vector.multi_reduction <add>, %234, %cst_64 [1] : vector<128x128xf32> to vector<128xf32>
    %236 = vector.shape_cast %235 : vector<128xf32> to vector<128x1xf32>
    %237 = tpu.reciprocal %236 {approx = true} : vector<128x1xf32> -> vector<128x1xf32>
    %238 = vector.broadcast %237 : vector<128x1xf32> to vector<128x128xf32>
    %239 = arith.mulf %234, %238 : vector<128x128xf32>
    %240 = arith.truncf %239 : vector<128x128xf32> to vector<128x128xbf16>
    %cst_65 = arith.constant dense<0.000000e+00> : vector<128x8xf32>
    %241 = tpu.matmul %240, %222, %cst_65 {dimension_numbers = #tpu.dot_dimension_numbers<[1], [0], [0], [1], [0, 0, 1, 1], [], []>} : vector<128x128xbf16>, vector<128x8xbf16>, vector<128x8xf32> -> vector<128x8xf32>
    %242 = vector.extract_strided_slice %216 {offsets = [0, 8], sizes = [128, 8], strides = [1, 1]} : vector<128x96xf32> to vector<128x8xf32>
    %243 = arith.truncf %242 : vector<128x8xf32> to vector<128x8xbf16>
    %244 = vector.extract_strided_slice %216 {offsets = [0, 40], sizes = [128, 8], strides = [1, 1]} : vector<128x96xf32> to vector<128x8xf32>
    %245 = arith.truncf %244 : vector<128x8xf32> to vector<128x8xbf16>
    %246 = vector.extract_strided_slice %216 {offsets = [0, 72], sizes = [128, 8], strides = [1, 1]} : vector<128x96xf32> to vector<128x8xf32>
    %247 = arith.truncf %246 : vector<128x8xf32> to vector<128x8xbf16>
    %cst_66 = arith.constant dense<0.000000e+00> : vector<128x128xf32>
    %248 = tpu.matmul %243, %245, %cst_66 {dimension_numbers = #tpu.dot_dimension_numbers<[1], [1], [0], [0], [0, 0, 1, 0], [], []>} : vector<128x8xbf16>, vector<128x8xbf16>, vector<128x128xf32> -> vector<128x128xf32>
    %cst_67 = arith.constant 0.353553385 : f32
    %249 = vector.broadcast %cst_67 : f32 to vector<128x128xf32>
    %250 = arith.mulf %248, %249 : vector<128x128xf32>
    %251 = vector.extract_strided_slice %191 {offsets = [0, 16], sizes = [128, 16], strides = [1, 1]} : vector<128x64xf32> to vector<128x16xf32>
    %252 = tpu.concatenate %251, %251, %251, %251, %251, %251, %251, %251 in 1 : vector<128x16xf32>, vector<128x16xf32>, vector<128x16xf32>, vector<128x16xf32>, vector<128x16xf32>, vector<128x16xf32>, vector<128x16xf32>, vector<128x16xf32> -> vector<128x128xf32>
    %253 = arith.addf %250, %252 : vector<128x128xf32>
    %254 = arith.addf %253, %2 : vector<128x128xf32>
    %cst_68 = arith.constant dense<0xFF800000> : vector<128xf32>
    %255 = vector.multi_reduction <maximumf>, %254, %cst_68 [1] : vector<128x128xf32> to vector<128xf32>
    %256 = vector.shape_cast %255 : vector<128xf32> to vector<128x1xf32>
    %257 = vector.broadcast %256 : vector<128x1xf32> to vector<128x128xf32>
    %258 = arith.subf %254, %257 : vector<128x128xf32>
    %259 = math.exp %258 : vector<128x128xf32>
    %cst_69 = arith.constant dense<0.000000e+00> : vector<128xf32>
    %260 = vector.multi_reduction <add>, %259, %cst_69 [1] : vector<128x128xf32> to vector<128xf32>
    %261 = vector.shape_cast %260 : vector<128xf32> to vector<128x1xf32>
    %262 = tpu.reciprocal %261 {approx = true} : vector<128x1xf32> -> vector<128x1xf32>
    %263 = vector.broadcast %262 : vector<128x1xf32> to vector<128x128xf32>
    %264 = arith.mulf %259, %263 : vector<128x128xf32>
    %265 = arith.truncf %264 : vector<128x128xf32> to vector<128x128xbf16>
    %cst_70 = arith.constant dense<0.000000e+00> : vector<128x8xf32>
    %266 = tpu.matmul %265, %247, %cst_70 {dimension_numbers = #tpu.dot_dimension_numbers<[1], [0], [0], [1], [0, 0, 1, 1], [], []>} : vector<128x128xbf16>, vector<128x8xbf16>, vector<128x8xf32> -> vector<128x8xf32>
    %267 = vector.extract_strided_slice %216 {offsets = [0, 16], sizes = [128, 8], strides = [1, 1]} : vector<128x96xf32> to vector<128x8xf32>
    %268 = arith.truncf %267 : vector<128x8xf32> to vector<128x8xbf16>
    %269 = vector.extract_strided_slice %216 {offsets = [0, 48], sizes = [128, 8], strides = [1, 1]} : vector<128x96xf32> to vector<128x8xf32>
    %270 = arith.truncf %269 : vector<128x8xf32> to vector<128x8xbf16>
    %271 = vector.extract_strided_slice %216 {offsets = [0, 80], sizes = [128, 8], strides = [1, 1]} : vector<128x96xf32> to vector<128x8xf32>
    %272 = arith.truncf %271 : vector<128x8xf32> to vector<128x8xbf16>
    %cst_71 = arith.constant dense<0.000000e+00> : vector<128x128xf32>
    %273 = tpu.matmul %268, %270, %cst_71 {dimension_numbers = #tpu.dot_dimension_numbers<[1], [1], [0], [0], [0, 0, 1, 0], [], []>} : vector<128x8xbf16>, vector<128x8xbf16>, vector<128x128xf32> -> vector<128x128xf32>
    %cst_72 = arith.constant 0.353553385 : f32
    %274 = vector.broadcast %cst_72 : f32 to vector<128x128xf32>
    %275 = arith.mulf %273, %274 : vector<128x128xf32>
    %276 = vector.extract_strided_slice %191 {offsets = [0, 32], sizes = [128, 16], strides = [1, 1]} : vector<128x64xf32> to vector<128x16xf32>
    %277 = tpu.concatenate %276, %276, %276, %276, %276, %276, %276, %276 in 1 : vector<128x16xf32>, vector<128x16xf32>, vector<128x16xf32>, vector<128x16xf32>, vector<128x16xf32>, vector<128x16xf32>, vector<128x16xf32>, vector<128x16xf32> -> vector<128x128xf32>
    %278 = arith.addf %275, %277 : vector<128x128xf32>
    %279 = arith.addf %278, %2 : vector<128x128xf32>
    %cst_73 = arith.constant dense<0xFF800000> : vector<128xf32>
    %280 = vector.multi_reduction <maximumf>, %279, %cst_73 [1] : vector<128x128xf32> to vector<128xf32>
    %281 = vector.shape_cast %280 : vector<128xf32> to vector<128x1xf32>
    %282 = vector.broadcast %281 : vector<128x1xf32> to vector<128x128xf32>
    %283 = arith.subf %279, %282 : vector<128x128xf32>
    %284 = math.exp %283 : vector<128x128xf32>
    %cst_74 = arith.constant dense<0.000000e+00> : vector<128xf32>
    %285 = vector.multi_reduction <add>, %284, %cst_74 [1] : vector<128x128xf32> to vector<128xf32>
    %286 = vector.shape_cast %285 : vector<128xf32> to vector<128x1xf32>
    %287 = tpu.reciprocal %286 {approx = true} : vector<128x1xf32> -> vector<128x1xf32>
    %288 = vector.broadcast %287 : vector<128x1xf32> to vector<128x128xf32>
    %289 = arith.mulf %284, %288 : vector<128x128xf32>
    %290 = arith.truncf %289 : vector<128x128xf32> to vector<128x128xbf16>
    %cst_75 = arith.constant dense<0.000000e+00> : vector<128x8xf32>
    %291 = tpu.matmul %290, %272, %cst_75 {dimension_numbers = #tpu.dot_dimension_numbers<[1], [0], [0], [1], [0, 0, 1, 1], [], []>} : vector<128x128xbf16>, vector<128x8xbf16>, vector<128x8xf32> -> vector<128x8xf32>
    %292 = vector.extract_strided_slice %216 {offsets = [0, 24], sizes = [128, 8], strides = [1, 1]} : vector<128x96xf32> to vector<128x8xf32>
    %293 = arith.truncf %292 : vector<128x8xf32> to vector<128x8xbf16>
    %294 = vector.extract_strided_slice %216 {offsets = [0, 56], sizes = [128, 8], strides = [1, 1]} : vector<128x96xf32> to vector<128x8xf32>
    %295 = arith.truncf %294 : vector<128x8xf32> to vector<128x8xbf16>
    %296 = vector.extract_strided_slice %216 {offsets = [0, 88], sizes = [128, 8], strides = [1, 1]} : vector<128x96xf32> to vector<128x8xf32>
    %297 = arith.truncf %296 : vector<128x8xf32> to vector<128x8xbf16>
    %cst_76 = arith.constant dense<0.000000e+00> : vector<128x128xf32>
    %298 = tpu.matmul %293, %295, %cst_76 {dimension_numbers = #tpu.dot_dimension_numbers<[1], [1], [0], [0], [0, 0, 1, 0], [], []>} : vector<128x8xbf16>, vector<128x8xbf16>, vector<128x128xf32> -> vector<128x128xf32>
    %cst_77 = arith.constant 0.353553385 : f32
    %299 = vector.broadcast %cst_77 : f32 to vector<128x128xf32>
    %300 = arith.mulf %298, %299 : vector<128x128xf32>
    %301 = vector.extract_strided_slice %191 {offsets = [0, 48], sizes = [128, 16], strides = [1, 1]} : vector<128x64xf32> to vector<128x16xf32>
    %302 = tpu.concatenate %301, %301, %301, %301, %301, %301, %301, %301 in 1 : vector<128x16xf32>, vector<128x16xf32>, vector<128x16xf32>, vector<128x16xf32>, vector<128x16xf32>, vector<128x16xf32>, vector<128x16xf32>, vector<128x16xf32> -> vector<128x128xf32>
    %303 = arith.addf %300, %302 : vector<128x128xf32>
    %304 = arith.addf %303, %2 : vector<128x128xf32>
    %cst_78 = arith.constant dense<0xFF800000> : vector<128xf32>
    %305 = vector.multi_reduction <maximumf>, %304, %cst_78 [1] : vector<128x128xf32> to vector<128xf32>
    %306 = vector.shape_cast %305 : vector<128xf32> to vector<128x1xf32>
    %307 = vector.broadcast %306 : vector<128x1xf32> to vector<128x128xf32>
    %308 = arith.subf %304, %307 : vector<128x128xf32>
    %309 = math.exp %308 : vector<128x128xf32>
    %cst_79 = arith.constant dense<0.000000e+00> : vector<128xf32>
    %310 = vector.multi_reduction <add>, %309, %cst_79 [1] : vector<128x128xf32> to vector<128xf32>
    %311 = vector.shape_cast %310 : vector<128xf32> to vector<128x1xf32>
    %312 = tpu.reciprocal %311 {approx = true} : vector<128x1xf32> -> vector<128x1xf32>
    %313 = vector.broadcast %312 : vector<128x1xf32> to vector<128x128xf32>
    %314 = arith.mulf %309, %313 : vector<128x128xf32>
    %315 = arith.truncf %314 : vector<128x128xf32> to vector<128x128xbf16>
    %cst_80 = arith.constant dense<0.000000e+00> : vector<128x8xf32>
    %316 = tpu.matmul %315, %297, %cst_80 {dimension_numbers = #tpu.dot_dimension_numbers<[1], [0], [0], [1], [0, 0, 1, 1], [], []>} : vector<128x128xbf16>, vector<128x8xbf16>, vector<128x8xf32> -> vector<128x8xf32>
    %317 = tpu.concatenate %241, %266, %291, %316 in 1 : vector<128x8xf32>, vector<128x8xf32>, vector<128x8xf32>, vector<128x8xf32> -> vector<128x32xf32>
    %318 = vector.extract_strided_slice %181 {offsets = [0, 96], sizes = [32, 32], strides = [1, 1]} : vector<32x384xbf16> to vector<32x32xbf16>
    %319 = arith.truncf %317 : vector<128x32xf32> to vector<128x32xbf16>
    %cst_81 = arith.constant dense<0.000000e+00> : vector<128x32xf32>
    %320 = tpu.matmul %319, %318, %cst_81 {dimension_numbers = #tpu.dot_dimension_numbers<[1], [0], [0], [1], [0, 0, 1, 1], [], []>} : vector<128x32xbf16>, vector<32x32xbf16>, vector<128x32xf32> -> vector<128x32xf32>
    %321 = arith.addf %179, %320 : vector<128x32xf32>
    %cst_82 = arith.constant dense<0.000000e+00> : vector<128xf32>
    %322 = vector.multi_reduction <add>, %321, %cst_82 [1] : vector<128x32xf32> to vector<128xf32>
    %323 = vector.shape_cast %322 : vector<128xf32> to vector<128x1xf32>
    %cst_83 = arith.constant 3.200000e+01 : f32
    %324 = vector.broadcast %cst_83 : f32 to vector<128x1xf32>
    %325 = arith.divf %323, %324 : vector<128x1xf32>
    %326 = arith.mulf %321, %321 : vector<128x32xf32>
    %cst_84 = arith.constant dense<0.000000e+00> : vector<128xf32>
    %327 = vector.multi_reduction <add>, %326, %cst_84 [1] : vector<128x32xf32> to vector<128xf32>
    %328 = vector.shape_cast %327 : vector<128xf32> to vector<128x1xf32>
    %cst_85 = arith.constant 3.200000e+01 : f32
    %329 = vector.broadcast %cst_85 : f32 to vector<128x1xf32>
    %330 = arith.divf %328, %329 : vector<128x1xf32>
    %331 = arith.mulf %325, %325 : vector<128x1xf32>
    %332 = arith.subf %330, %331 : vector<128x1xf32>
    %333 = vector.broadcast %325 : vector<128x1xf32> to vector<128x32xf32>
    %334 = arith.subf %321, %333 : vector<128x32xf32>
    %cst_86 = arith.constant 9.99999974E-6 : f32
    %335 = vector.broadcast %cst_86 : f32 to vector<128x1xf32>
    %336 = arith.addf %332, %335 : vector<128x1xf32>
    %337 = math.rsqrt %336 : vector<128x1xf32>
    %338 = vector.broadcast %337 : vector<128x1xf32> to vector<128x32xf32>
    %339 = arith.mulf %334, %338 : vector<128x32xf32>
    %340 = vector.broadcast %186 : vector<1x32xf32> to vector<128x32xf32>
    %341 = arith.mulf %339, %340 : vector<128x32xf32>
    %342 = vector.broadcast %187 : vector<1x32xf32> to vector<128x32xf32>
    %343 = arith.addf %341, %342 : vector<128x32xf32>
    %344 = vector.extract_strided_slice %181 {offsets = [0, 128], sizes = [32, 128], strides = [1, 1]} : vector<32x384xbf16> to vector<32x128xbf16>
    %345 = arith.truncf %343 : vector<128x32xf32> to vector<128x32xbf16>
    %cst_87 = arith.constant dense<0.000000e+00> : vector<128x128xf32>
    %346 = tpu.matmul %345, %344, %cst_87 {dimension_numbers = #tpu.dot_dimension_numbers<[1], [0], [0], [1], [0, 0, 1, 1], [], []>} : vector<128x32xbf16>, vector<32x128xbf16>, vector<128x128xf32> -> vector<128x128xf32>
    %347 = vector.broadcast %188 : vector<1x128xf32> to vector<128x128xf32>
    %348 = arith.addf %346, %347 : vector<128x128xf32>
    %cst_88 = arith.constant 0.000000e+00 : f32
    %349 = vector.broadcast %cst_88 : f32 to vector<128x128xf32>
    %350 = arith.maximumf %348, %349 : vector<128x128xf32>
    %351 = arith.truncf %350 : vector<128x128xf32> to vector<128x128xbf16>
    %352 = vector.extract_strided_slice %181 {offsets = [0, 256], sizes = [32, 128], strides = [1, 1]} : vector<32x384xbf16> to vector<32x128xbf16>
    %cst_89 = arith.constant dense<0.000000e+00> : vector<128x32xf32>
    %353 = tpu.matmul %351, %352, %cst_89 {dimension_numbers = #tpu.dot_dimension_numbers<[1], [1], [0], [0], [0, 0, 1, 0], [], []>} : vector<128x128xbf16>, vector<32x128xbf16>, vector<128x32xf32> -> vector<128x32xf32>
    %354 = arith.addf %321, %353 : vector<128x32xf32>
    %355 = vector.broadcast %189 : vector<1x32xf32> to vector<128x32xf32>
    %356 = arith.addf %354, %355 : vector<128x32xf32>
    %c0_90 = arith.constant 0 : index
    %c0_91 = arith.constant 0 : index
    %357 = vector.load %arg7[%c0_90, %c0_91] : memref<48x128xf32, #tpu.memory_space<vmem>>, vector<48x128xf32>
    %358 = vector.extract_strided_slice %357 {offsets = [0, 0], sizes = [32, 1], strides = [1, 1]} : vector<48x128xf32> to vector<32x1xf32>
    %359 = vector.extract_strided_slice %357 {offsets = [0, 1], sizes = [32, 16], strides = [1, 1]} : vector<48x128xf32> to vector<32x16xf32>
    %360 = vector.extract_strided_slice %357 {offsets = [0, 17], sizes = [16, 8], strides = [1, 1]} : vector<48x128xf32> to vector<16x8xf32>
    %361 = vector.extract_strided_slice %357 {offsets = [40, 0], sizes = [1, 8], strides = [1, 1]} : vector<48x128xf32> to vector<1x8xf32>
    %362 = vector.extract_strided_slice %357 {offsets = [32, 0], sizes = [1, 128], strides = [1, 1]} : vector<48x128xf32> to vector<1x128xf32>
    %363 = vector.extract_strided_slice %362 {offsets = [0, 0], sizes = [1, 1], strides = [1, 1]} : vector<1x128xf32> to vector<1x1xf32>
    %364 = vector.extract_strided_slice %362 {offsets = [0, 1], sizes = [1, 16], strides = [1, 1]} : vector<1x128xf32> to vector<1x16xf32>
    %365 = vector.extract_strided_slice %362 {offsets = [0, 17], sizes = [1, 8], strides = [1, 1]} : vector<1x128xf32> to vector<1x8xf32>
    %366 = vector.extract_strided_slice %362 {offsets = [0, 25], sizes = [1, 1], strides = [1, 1]} : vector<1x128xf32> to vector<1x1xf32>
    %c0_92 = arith.constant 0 : index
    %c0_93 = arith.constant 0 : index
    %367 = vector.load %arg2[%c0_92, %c0_93] : memref<128x1xf32, #tpu.memory_space<vmem>>, vector<128x1xf32>
    %368 = vector.broadcast %367 : vector<128x1xf32> to vector<128x32xf32>
    %369 = arith.mulf %356, %368 : vector<128x32xf32>
    %cst_94 = arith.constant dense<0.000000e+00> : vector<128x1xf32>
    %370 = tpu.matmul %369, %358, %cst_94 {dimension_numbers = #tpu.dot_dimension_numbers<[1], [0], [0], [1], [0, 0, 1, 1], [], []>} : vector<128x32xf32>, vector<32x1xf32>, vector<128x1xf32> -> vector<128x1xf32>
    %371 = vector.broadcast %363 : vector<1x1xf32> to vector<128x1xf32>
    %372 = arith.addf %370, %371 : vector<128x1xf32>
    %373 = math.absf %372 : vector<128x1xf32>
    %cst_95 = arith.constant 0.000000e+00 : f32
    %374 = vector.broadcast %cst_95 : f32 to vector<128x1xf32>
    %375 = arith.subf %374, %373 : vector<128x1xf32>
    %376 = math.exp %375 : vector<128x1xf32>
    %cst_96 = arith.constant 1.000000e+00 : f32
    %377 = vector.broadcast %cst_96 : f32 to vector<128x1xf32>
    %378 = arith.addf %377, %376 : vector<128x1xf32>
    %379 = tpu.reciprocal %378 {approx = true} : vector<128x1xf32> -> vector<128x1xf32>
    %cst_97 = arith.constant 0.000000e+00 : f32
    %380 = vector.broadcast %cst_97 : f32 to vector<128x1xf32>
    %381 = arith.cmpf oge, %372, %380 : vector<128x1xf32>
    %382 = arith.mulf %376, %379 : vector<128x1xf32>
    %383 = arith.select %381, %379, %382 : vector<128x1xi1>, vector<128x1xf32>
    %c0_98 = arith.constant 0 : index
    %c0_99 = arith.constant 0 : index
    %384 = vector.load %arg8[%c0_98, %c0_99] : memref<8x128xf32, #tpu.memory_space<vmem>>, vector<8x128xf32>
    %385 = vector.broadcast %383 : vector<128x1xf32> to vector<128x32xf32>
    %386 = arith.mulf %385, %369 : vector<128x32xf32>
    %cst_100 = arith.constant dense<0.000000e+00> : vector<8x32xf32>
    %387 = tpu.matmul %384, %386, %cst_100 {dimension_numbers = #tpu.dot_dimension_numbers<[1], [0], [0], [1], [0, 0, 1, 1], [], []>} : vector<8x128xf32>, vector<128x32xf32>, vector<8x32xf32> -> vector<8x32xf32>
    %cst_101 = arith.constant dense<0.000000e+00> : vector<8x16xf32>
    %388 = tpu.matmul %387, %359, %cst_101 {dimension_numbers = #tpu.dot_dimension_numbers<[1], [0], [0], [1], [0, 0, 1, 1], [], []>} : vector<8x32xf32>, vector<32x16xf32>, vector<8x16xf32> -> vector<8x16xf32>
    %389 = vector.broadcast %364 : vector<1x16xf32> to vector<8x16xf32>
    %390 = arith.addf %388, %389 : vector<8x16xf32>
    %cst_102 = arith.constant 0.000000e+00 : f32
    %391 = vector.broadcast %cst_102 : f32 to vector<8x16xf32>
    %392 = arith.maximumf %390, %391 : vector<8x16xf32>
    %cst_103 = arith.constant dense<0.000000e+00> : vector<8x8xf32>
    %393 = tpu.matmul %392, %360, %cst_103 {dimension_numbers = #tpu.dot_dimension_numbers<[1], [0], [0], [1], [0, 0, 1, 1], [], []>} : vector<8x16xf32>, vector<16x8xf32>, vector<8x8xf32> -> vector<8x8xf32>
    %394 = vector.broadcast %365 : vector<1x8xf32> to vector<8x8xf32>
    %395 = arith.addf %393, %394 : vector<8x8xf32>
    %cst_104 = arith.constant 0.000000e+00 : f32
    %396 = vector.broadcast %cst_104 : f32 to vector<8x8xf32>
    %397 = arith.maximumf %395, %396 : vector<8x8xf32>
    %cst_105 = arith.constant dense<0.000000e+00> : vector<1x8xf32>
    %398 = tpu.matmul %361, %397, %cst_105 {dimension_numbers = #tpu.dot_dimension_numbers<[1], [1], [0], [0], [0, 0, 1, 0], [], []>} : vector<1x8xf32>, vector<8x8xf32>, vector<1x8xf32> -> vector<1x8xf32>
    %399 = vector.broadcast %366 : vector<1x1xf32> to vector<1x8xf32>
    %400 = arith.addf %398, %399 : vector<1x8xf32>
    %c0_106 = arith.constant 0 : index
    %c0_107 = arith.constant 0 : index
    %c0_108 = arith.constant 0 : index
    %401 = vector.load %arg9[%c0_106, %c0_107, %c0_108] : memref<1x1x8xf32, #tpu.memory_space<vmem>>, vector<1x1x8xf32>
    %402 = vector.shape_cast %401 : vector<1x1x8xf32> to vector<1x8xf32>
    %403 = vector.shape_cast %400 : vector<1x8xf32> to vector<1x1x8xf32>
    tpu.vector_store %arg9[%c0_106, %c0_107, %c0_108], %403 {strides = array<i32>} : memref<1x1x8xf32, #tpu.memory_space<vmem>>, vector<1x1x8xf32>,
    return
  }
  func.func @transform_0(%arg0: i32) -> (i32, i32) {
    %c0_i32 = arith.constant 0 : i32
    %c0_i32_0 = arith.constant 0 : i32
    return %arg0, %c0_i32 : i32, i32
  }
  func.func @transform_1(%arg0: i32) -> (i32, i32) {
    %c0_i32 = arith.constant 0 : i32
    %c0_i32_0 = arith.constant 0 : i32
    return %arg0, %c0_i32 : i32, i32
  }
  func.func @transform_2(%arg0: i32) -> (i32, i32, i32) {
    %c0_i32 = arith.constant 0 : i32
    %c0_i32_0 = arith.constant 0 : i32
    %c0_i32_1 = arith.constant 0 : i32
    return %arg0, %c0_i32, %c0_i32_0 : i32, i32, i32
  }
  func.func @transform_3(%arg0: i32) -> (i32, i32, i32) {
    %c0_i32 = arith.constant 0 : i32
    %c0_i32_0 = arith.constant 0 : i32
    %c0_i32_1 = arith.constant 0 : i32
    return %c0_i32, %arg0, %c0_i32_0 : i32, i32, i32
  }
  func.func @transform_4(%arg0: i32) -> (i32, i32, i32) {
    %c0_i32 = arith.constant 0 : i32
    %c0_i32_0 = arith.constant 0 : i32
    %c0_i32_1 = arith.constant 0 : i32
    %c0_i32_2 = arith.constant 0 : i32
    return %c0_i32, %c0_i32_0, %c0_i32_1 : i32, i32, i32
  }
  func.func @transform_5(%arg0: i32) -> (i32, i32, i32) {
    %c0_i32 = arith.constant 0 : i32
    %c0_i32_0 = arith.constant 0 : i32
    %c0_i32_1 = arith.constant 0 : i32
    %c0_i32_2 = arith.constant 0 : i32
    return %c0_i32, %c0_i32_0, %c0_i32_1 : i32, i32, i32
  }
  func.func @transform_6(%arg0: i32) -> (i32, i32) {
    %c0_i32 = arith.constant 0 : i32
    %c0_i32_0 = arith.constant 0 : i32
    %c0_i32_1 = arith.constant 0 : i32
    return %c0_i32, %c0_i32_0 : i32, i32
  }
  func.func @transform_7(%arg0: i32) -> (i32, i32) {
    %c0_i32 = arith.constant 0 : i32
    %c0_i32_0 = arith.constant 0 : i32
    %c0_i32_1 = arith.constant 0 : i32
    return %c0_i32, %c0_i32_0 : i32, i32
  }
  func.func @transform_8(%arg0: i32) -> (i32, i32, i32) {
    %c0_i32 = arith.constant 0 : i32
    %c0_i32_0 = arith.constant 0 : i32
    %c0_i32_1 = arith.constant 0 : i32
    return %arg0, %c0_i32, %c0_i32_0 : i32, i32, i32
  }
}

</mosaic_0001>

<llo_original>
// kernel: equiscore_forward.1
$region0: #{equiscore_forward.1}
  #allocation0 [shape = 'u32[]', space=smem, size = 0x4, offset = 0x4, fixed_abs, tag = 'smem constant byte address 0x4 - core index']
  #allocation1 [shape = 'u32[144,128]{1,0:T(1,128)}', space=vmem, size = 0x12000, scoped, tag = 'internal scratch']
  %s0 = inlined_call_operand.vmem [shape: f32[128,32], index: 0, kind: input, shape index: {}]
  %s1 = inlined_call_operand.vmem [shape: f32[128,1], index: 1, kind: input, shape index: {}]
  %s2 = inlined_call_operand.vmem [shape: f32[1,128,128], index: 2, kind: input, shape index: {}]
  %s3 = inlined_call_operand.vmem [shape: f32[2,128,64], index: 3, kind: input, shape index: {}]
  %s4 = inlined_call_operand.vmem [shape: bf16[2,32,384], index: 4, kind: input, shape index: {}]
  %s5 = inlined_call_operand.vmem [shape: f32[2,8,128], index: 5, kind: input, shape index: {}]
  %s6 = inlined_call_operand.vmem [shape: f32[48,128], index: 6, kind: input, shape index: {}]
  %s7 = inlined_call_operand.vmem [shape: f32[8,128], index: 7, kind: input, shape index: {}]
  %s8 = inlined_call_operand.hbm [shape: f32[1,1,8], index: 8, kind: output, shape index: {}]
  %s9 = sld [smem:[#allocation0]]
  $region42: #{equiscore_forward.1} parent=0
    _
  %s11 = ssub.s32 1, %s9
  %s12 = scalar_select 0, %s11, %s9
  $region1: #{equiscore_forward.1} parent=0
    #allocation2 [shape = 'u8[512]{0}', space=vmem, size = 0x400, scoped, tag = 'output window, operand 0, single buffered']
    #allocation3 [shape = 's32[1]{0}', space=sflag, size = 0x4, scoped, tag = 'scoped memory for equiscore_forward.1']
    %13 = vsyncpa [#allocation3], 0
    // Predicated region
    $region2: #{equiscore_forward.1} parent=1 // pred_check
      _
    $region3: #{equiscore_forward.1} parent=1 // pred_check_branch
      %15 = sbr.rel (0) target = $region5
    $region4: #{equiscore_forward.1} parent=1 // pred_region
      _
    $region5: #{equiscore_forward.1} parent=1 // pred_fallthru
      _
    // Predicated region
    $region6: #{equiscore_forward.1} parent=1 // pred_check
      _
    $region7: #{equiscore_forward.1} parent=1 // pred_check_branch
      %17 = sbr.rel (0) target = $region9
    $region8: #{equiscore_forward.1} parent=1 // pred_region
      _
    $region9: #{equiscore_forward.1} parent=1 // pred_fallthru
      _
    // Predicated region
    $region10: #{equiscore_forward.1} parent=1 // pred_check
      _
    $region11: #{equiscore_forward.1} parent=1 // pred_check_branch
      %19 = sbr.rel (0) target = $region13
    $region12: #{equiscore_forward.1} parent=1 // pred_region
      _
    $region13: #{equiscore_forward.1} parent=1 // pred_fallthru
      _
    // Predicated region
    $region14: #{equiscore_forward.1} parent=1 // pred_check
      _
    $region15: #{equiscore_forward.1} parent=1 // pred_check_branch
      %21 = sbr.rel (0) target = $region17
    $region16: #{equiscore_forward.1} parent=1 // pred_region
      _
    $region17: #{equiscore_forward.1} parent=1 // pred_fallthru
      _
    // Predicated region
    $region18: #{equiscore_forward.1} parent=1 // pred_check
      _
    $region19: #{equiscore_forward.1} parent=1 // pred_check_branch
      %23 = sbr.rel (0) target = $region21
    $region20: #{equiscore_forward.1} parent=1 // pred_region
      _
    $region21: #{equiscore_forward.1} parent=1 // pred_fallthru
      _
    // Predicated region
    $region22: #{equiscore_forward.1} parent=1 // pred_check
      _
    $region23: #{equiscore_forward.1} parent=1 // pred_check_branch
      %25 = sbr.rel (0) target = $region25
    $region24: #{equiscore_forward.1} parent=1 // pred_region
      _
    $region25: #{equiscore_forward.1} parent=1 // pred_fallthru
      _
    // Predicated region
    $region26: #{equiscore_forward.1} parent=1 // pred_check
      _
    $region27: #{equiscore_forward.1} parent=1 // pred_check_branch
      %27 = sbr.rel (0) target = $region29
    $region28: #{equiscore_forward.1} parent=1 // pred_region
      _
    $region29: #{equiscore_forward.1} parent=1 // pred_fallthru
      _
    // Predicated region
    $region30: #{equiscore_forward.1} parent=1 // pred_check
      _
    $region31: #{equiscore_forward.1} parent=1 // pred_check_branch
      %29 = sbr.rel (0) target = $region33
    $region32: #{equiscore_forward.1} parent=1 // pred_region
      _
    $region33: #{equiscore_forward.1} parent=1 // pred_fallthru
      _
    %v31 = vld [vmem:[%s0] sm:$0xff]
    %v32 = vld [vmem:[%s0 + $0x8] sm:$0xff]
    %v33 = vld [vmem:[%s0 + $0x10] sm:$0xff]
    %v34 = vld [vmem:[%s0 + $0x18] sm:$0xff]
    %v35 = vld [vmem:[%s0 + $0x20] sm:$0xff]
    %v36 = vld [vmem:[%s0 + $0x28] sm:$0xff]
    %v37 = vld [vmem:[%s0 + $0x30] sm:$0xff]
    %v38 = vld [vmem:[%s0 + $0x38] sm:$0xff]
    %v39 = vld [vmem:[%s0 + $0x40] sm:$0xff]
    %v40 = vld [vmem:[%s0 + $0x48] sm:$0xff]
    %v41 = vld [vmem:[%s0 + $0x50] sm:$0xff]
    %v42 = vld [vmem:[%s0 + $0x58] sm:$0xff]
    %v43 = vld [vmem:[%s0 + $0x60] sm:$0xff]
    %v44 = vld [vmem:[%s0 + $0x68] sm:$0xff]
    %v45 = vld [vmem:[%s0 + $0x70] sm:$0xff]
    %v46 = vld [vmem:[%s0 + $0x78] sm:$0xff]
    %v47 = vld [vmem:[%s2] sm:$0xff]
    %v48 = vld [vmem:[%s2 + $0x8] sm:$0xff]
    %v49 = vld [vmem:[%s2 + $0x10] sm:$0xff]
    %v50 = vld [vmem:[%s2 + $0x18] sm:$0xff]
    %v51 = vld [vmem:[%s2 + $0x20] sm:$0xff]
    %v52 = vld [vmem:[%s2 + $0x28] sm:$0xff]
    %v53 = vld [vmem:[%s2 + $0x30] sm:$0xff]
    %v54 = vld [vmem:[%s2 + $0x38] sm:$0xff]
    %v55 = vld [vmem:[%s2 + $0x40] sm:$0xff]
    %v56 = vld [vmem:[%s2 + $0x48] sm:$0xff]
    %v57 = vld [vmem:[%s2 + $0x50] sm:$0xff]
    %v58 = vld [vmem:[%s2 + $0x58] sm:$0xff]
    %v59 = vld [vmem:[%s2 + $0x60] sm:$0xff]
    %v60 = vld [vmem:[%s2 + $0x68] sm:$0xff]
    %v61 = vld [vmem:[%s2 + $0x70] sm:$0xff]
    %v62 = vld [vmem:[%s2 + $0x78] sm:$0xff]
    %v63 = vld [vmem:[%s4] sm:$0xff]
    %v64 = vld [vmem:[%s4 + $0x8] sm:$0xf]
    %v65 = vld [vmem:[%s4 + $0xc] sm:$0xff]
    %v66 = vld [vmem:[%s4 + $0x14] sm:$0xf]
    %v67 = vld [vmem:[%s4 + $0x18] sm:$0xff]
    %v68 = vld [vmem:[%s4 + $0x20] sm:$0xf]
    %v69 = vld [vmem:[%s4 + $0x24] sm:$0xff]
    %v70 = vld [vmem:[%s4 + $0x2c] sm:$0xf]
    %v71 = vld [vmem:[%s5] sm:$0xff]
    %v72 = vld [vmem:[%s3] sm:$0xff]
    %v73 = vld [vmem:[%s3 + $0x8] sm:$0xff]
    %v74 = vld [vmem:[%s3 + $0x10] sm:$0xff]
    %v75 = vld [vmem:[%s3 + $0x18] sm:$0xff]
    %v76 = vld [vmem:[%s3 + $0x20] sm:$0xff]
    %v77 = vld [vmem:[%s3 + $0x28] sm:$0xff]
    %v78 = vld [vmem:[%s3 + $0x30] sm:$0xff]
    %v79 = vld [vmem:[%s3 + $0x38] sm:$0xff]
    %v80 = vld [vmem:[%s3 + $0x40] sm:$0xff]
    %v81 = vld [vmem:[%s3 + $0x48] sm:$0xff]
    %v82 = vld [vmem:[%s3 + $0x50] sm:$0xff]
    %v83 = vld [vmem:[%s3 + $0x58] sm:$0xff]
    %v84 = vld [vmem:[%s3 + $0x60] sm:$0xff]
    %v85 = vld [vmem:[%s3 + $0x68] sm:$0xff]
    %v86 = vld [vmem:[%s3 + $0x70] sm:$0xff]
    %v87 = vld [vmem:[%s3 + $0x78] sm:$0xff]
    %vm88 = vcmask 261120
    %v89 = vsel %vm88, %v31, 0.0
    %90 = vadd.xlane.f32.xlu0 %v89
    %v91 = vpop.xlane.xlu0 %90
    %v92 = vsel %vm88, %v32, 0.0
    %93 = vadd.xlane.f32.xlu0 %v92
    %v94 = vpop.xlane.xlu0 %93
    %v95 = vsel %vm88, %v33, 0.0
    %96 = vadd.xlane.f32.xlu0 %v95
    %v97 = vpop.xlane.xlu0 %96
    %v98 = vsel %vm88, %v34, 0.0
    %99 = vadd.xlane.f32.xlu0 %v98
    %v100 = vpop.xlane.xlu0 %99
    %v101 = vsel %vm88, %v35, 0.0
    %102 = vadd.xlane.f32.xlu0 %v101
    %v103 = vpop.xlane.xlu0 %102
    %v104 = vsel %vm88, %v36, 0.0
    %105 = vadd.xlane.f32.xlu0 %v104
    %v106 = vpop.xlane.xlu0 %105
    %v107 = vsel %vm88, %v37, 0.0
    %108 = vadd.xlane.f32.xlu0 %v107
    %v109 = vpop.xlane.xlu0 %108
    %v110 = vsel %vm88, %v38, 0.0
    %111 = vadd.xlane.f32.xlu0 %v110
    %v112 = vpop.xlane.xlu0 %111
    %v113 = vsel %vm88, %v39, 0.0
    %114 = vadd.xlane.f32.xlu0 %v113
    %v115 = vpop.xlane.xlu0 %114
    %v116 = vsel %vm88, %v40, 0.0
    %117 = vadd.xlane.f32.xlu0 %v116
    %v118 = vpop.xlane.xlu0 %117
    %v119 = vsel %vm88, %v41, 0.0
    %120 = vadd.xlane.f32.xlu0 %v119
    %v121 = vpop.xlane.xlu0 %120
    %v122 = vsel %vm88, %v42, 0.0
    %123 = vadd.xlane.f32.xlu0 %v122
    %v124 = vpop.xlane.xlu0 %123
    %v125 = vsel %vm88, %v43, 0.0
    %126 = vadd.xlane.f32.xlu0 %v125
    %v127 = vpop.xlane.xlu0 %126
    %v128 = vsel %vm88, %v44, 0.0
    %129 = vadd.xlane.f32.xlu0 %v128
    %v130 = vpop.xlane.xlu0 %129
    %v131 = vsel %vm88, %v45, 0.0
    %132 = vadd.xlane.f32.xlu0 %v131
    %v133 = vpop.xlane.xlu0 %132
    %v134 = vsel %vm88, %v46, 0.0
    %135 = vadd.xlane.f32.xlu0 %v134
    %v136 = vpop.xlane.xlu0 %135
    %v137 = vrcp.pop 32.0
    %v138 = vmul.f32 %v91, %v137
    %v139 = vmul.f32 %v94, %v137
    %v140 = vmul.f32 %v97, %v137
    %v141 = vmul.f32 %v100, %v137
    %v142 = vmul.f32 %v103, %v137
    %v143 = vmul.f32 %v106, %v137
    %v144 = vmul.f32 %v109, %v137
    %v145 = vmul.f32 %v112, %v137
    %v146 = vmul.f32 %v115, %v137
    %v147 = vmul.f32 %v118, %v137
    %v148 = vmul.f32 %v121, %v137
    %v149 = vmul.f32 %v124, %v137
    %v150 = vmul.f32 %v127, %v137
    %v151 = vmul.f32 %v130, %v137
    %v152 = vmul.f32 %v133, %v137
    %v153 = vmul.f32 %v136, %v137
    %v154 = vmul.f32 %v31, %v31
    %v155 = vmul.f32 %v32, %v32
    %v156 = vmul.f32 %v33, %v33
    %v157 = vmul.f32 %v34, %v34
    %v158 = vmul.f32 %v35, %v35
    %v159 = vmul.f32 %v36, %v36
    %v160 = vmul.f32 %v37, %v37
    %v161 = vmul.f32 %v38, %v38
    %v162 = vmul.f32 %v39, %v39
    %v163 = vmul.f32 %v40, %v40
    %v164 = vmul.f32 %v41, %v41
    %v165 = vmul.f32 %v42, %v42
    %v166 = vmul.f32 %v43, %v43
    %v167 = vmul.f32 %v44, %v44
    %v168 = vmul.f32 %v45, %v45
    %v169 = vmul.f32 %v46, %v46
    %v170 = vsel %vm88, %v154, 0.0
    %171 = vadd.xlane.f32.xlu0 %v170
    %v172 = vpop.xlane.xlu0 %171
    %v173 = vsel %vm88, %v155, 0.0
    %174 = vadd.xlane.f32.xlu0 %v173
    %v175 = vpop.xlane.xlu0 %174
    %v176 = vsel %vm88, %v156, 0.0
    %177 = vadd.xlane.f32.xlu0 %v176
    %v178 = vpop.xlane.xlu0 %177
    %v179 = vsel %vm88, %v157, 0.0
    %180 = vadd.xlane.f32.xlu0 %v179
    %v181 = vpop.xlane.xlu0 %180
    %v182 = vsel %vm88, %v158, 0.0
    %183 = vadd.xlane.f32.xlu0 %v182
    %v184 = vpop.xlane.xlu0 %183
    %v185 = vsel %vm88, %v159, 0.0
    %186 = vadd.xlane.f32.xlu0 %v185
    %v187 = vpop.xlane.xlu0 %186
    %v188 = vsel %vm88, %v160, 0.0
    %189 = vadd.xlane.f32.xlu0 %v188
    %v190 = vpop.xlane.xlu0 %189
    %v191 = vsel %vm88, %v161, 0.0
    %192 = vadd.xlane.f32.xlu0 %v191
    %v193 = vpop.xlane.xlu0 %192
    %v194 = vsel %vm88, %v162, 0.0
    %195 = vadd.xlane.f32.xlu0 %v194
    %v196 = vpop.xlane.xlu0 %195
    %v197 = vsel %vm88, %v163, 0.0
    %198 = vadd.xlane.f32.xlu0 %v197
    %v199 = vpop.xlane.xlu0 %198
    %v200 = vsel %vm88, %v164, 0.0
    %201 = vadd.xlane.f32.xlu0 %v200
    %v202 = vpop.xlane.xlu0 %201
    %v203 = vsel %vm88, %v165, 0.0
    %204 = vadd.xlane.f32.xlu0 %v203
    %v205 = vpop.xlane.xlu0 %204
    %v206 = vsel %vm88, %v166, 0.0
    %207 = vadd.xlane.f32.xlu0 %v206
    %v208 = vpop.xlane.xlu0 %207
    %v209 = vsel %vm88, %v167, 0.0
    %210 = vadd.xlane.f32.xlu0 %v209
    %v211 = vpop.xlane.xlu0 %210
    %v212 = vsel %vm88, %v168, 0.0
    %213 = vadd.xlane.f32.xlu0 %v212
    %v214 = vpop.xlane.xlu0 %213
    %v215 = vsel %vm88, %v169, 0.0
    %216 = vadd.xlane.f32.xlu0 %v215
    %v217 = vpop.xlane.xlu0 %216
    %v218 = vmul.f32 %v172, %v137
    %v219 = vmul.f32 %v175, %v137
    %v220 = vmul.f32 %v178, %v137
    %v221 = vmul.f32 %v181, %v137
    %v222 = vmul.f32 %v184, %v137
    %v223 = vmul.f32 %v187, %v137
    %v224 = vmul.f32 %v190, %v137
    %v225 = vmul.f32 %v193, %v137
    %v226 = vmul.f32 %v196, %v137
    %v227 = vmul.f32 %v199, %v137
    %v228 = vmul.f32 %v202, %v137
    %v229 = vmul.f32 %v205, %v137
    %v230 = vmul.f32 %v208, %v137
    %v231 = vmul.f32 %v211, %v137
    %v232 = vmul.f32 %v214, %v137
    %v233 = vmul.f32 %v217, %v137
    %v234 = vmul.f32 %v138, %v138
    %v235 = vmul.f32 %v139, %v139
    %v236 = vmul.f32 %v140, %v140
    %v237 = vmul.f32 %v141, %v141
    %v238 = vmul.f32 %v142, %v142
    %v239 = vmul.f32 %v143, %v143
    %v240 = vmul.f32 %v144, %v144
    %v241 = vmul.f32 %v145, %v145
    %v242 = vmul.f32 %v146, %v146
    %v243 = vmul.f32 %v147, %v147
    %v244 = vmul.f32 %v148, %v148
    %v245 = vmul.f32 %v149, %v149
    %v246 = vmul.f32 %v150, %v150
    %v247 = vmul.f32 %v151, %v151
    %v248 = vmul.f32 %v152, %v152
    %v249 = vmul.f32 %v153, %v153
    %v250 = vsub.f32 %v218, %v234
    %v251 = vsub.f32 %v219, %v235
    %v252 = vsub.f32 %v220, %v236
    %v253 = vsub.f32 %v221, %v237
    %v254 = vsub.f32 %v222, %v238
    %v255 = vsub.f32 %v223, %v239
    %v256 = vsub.f32 %v224, %v240
    %v257 = vsub.f32 %v225, %v241
    %v258 = vsub.f32 %v226, %v242
    %v259 = vsub.f32 %v227, %v243
    %v260 = vsub.f32 %v228, %v244
    %v261 = vsub.f32 %v229, %v245
    %v262 = vsub.f32 %v230, %v246
    %v263 = vsub.f32 %v231, %v247
    %v264 = vsub.f32 %v232, %v248
    %v265 = vsub.f32 %v233, %v249
    %v266 = vsub.f32 %v31, %v138
    %v267 = vsub.f32 %v32, %v139
    %v268 = vsub.f32 %v33, %v140
    %v269 = vsub.f32 %v34, %v141
    %v270 = vsub.f32 %v35, %v142
    %v271 = vsub.f32 %v36, %v143
    %v272 = vsub.f32 %v37, %v144
    %v273 = vsub.f32 %v38, %v145
    %v274 = vsub.f32 %v39, %v146
    %v275 = vsub.f32 %v40, %v147
    %v276 = vsub.f32 %v41, %v148
    %v277 = vsub.f32 %v42, %v149
    %v278 = vsub.f32 %v43, %v150
    %v279 = vsub.f32 %v44, %v151
    %v280 = vsub.f32 %v45, %v152
    %v281 = vsub.f32 %v46, %v153
    %v282 = vadd.f32 %v250, 1e-05
    %v283 = vadd.f32 %v251, 1e-05
    %v284 = vadd.f32 %v252, 1e-05
    %v285 = vadd.f32 %v253, 1e-05
    %v286 = vadd.f32 %v254, 1e-05
    %v287 = vadd.f32 %v255, 1e-05
    %v288 = vadd.f32 %v256, 1e-05
    %v289 = vadd.f32 %v257, 1e-05
    %v290 = vadd.f32 %v258, 1e-05
    %v291 = vadd.f32 %v259, 1e-05
    %v292 = vadd.f32 %v260, 1e-05
    %v293 = vadd.f32 %v261, 1e-05
    %v294 = vadd.f32 %v262, 1e-05
    %v295 = vadd.f32 %v263, 1e-05
    %v296 = vadd.f32 %v264, 1e-05
    %v297 = vadd.f32 %v265, 1e-05
    %v298 = vrsqrt.pop %v282
    %v299 = vrsqrt.pop %v283
    %v300 = vrsqrt.pop %v284
    %v301 = vrsqrt.pop %v285
    %v302 = vrsqrt.pop %v286
    %v303 = vrsqrt.pop %v287
    %v304 = vrsqrt.pop %v288
    %v305 = vrsqrt.pop %v289
    %v306 = vrsqrt.pop %v290
    %v307 = vrsqrt.pop %v291
    %v308 = vrsqrt.pop %v292
    %v309 = vrsqrt.pop %v293
    %v310 = vrsqrt.pop %v294
    %v311 = vrsqrt.pop %v295
    %v312 = vrsqrt.pop %v296
    %v313 = vrsqrt.pop %v297
    %v314 = vmul.f32 %v266, %v298
    %v315 = vmul.f32 %v267, %v299
    %v316 = vmul.f32 %v268, %v300
    %v317 = vmul.f32 %v269, %v301
    %v318 = vmul.f32 %v270, %v302
    %v319 = vmul.f32 %v271, %v303
    %v320 = vmul.f32 %v272, %v304
    %v321 = vmul.f32 %v273, %v305
    %v322 = vmul.f32 %v274, %v306
    %v323 = vmul.f32 %v275, %v307
    %v324 = vmul.f32 %v276, %v308
    %v325 = vmul.f32 %v277, %v309
    %v326 = vmul.f32 %v278, %v310
    %v327 = vmul.f32 %v279, %v311
    %v328 = vmul.f32 %v280, %v312
    %v329 = vmul.f32 %v281, %v313
    %v330 = vlaneseq
    %v331 = vshrl.u32 %v330, 7
    %v332 = vsub.s32 0, %v331
    %v333 = vrot.slane %v71, %v332
    %v334 = vmul.f32 %v314, %v333
    %v335 = vmul.f32 %v315, %v333
    %v336 = vmul.f32 %v316, %v333
    %v337 = vmul.f32 %v317, %v333
    %v338 = vmul.f32 %v318, %v333
    %v339 = vmul.f32 %v319, %v333
    %v340 = vmul.f32 %v320, %v333
    %v341 = vmul.f32 %v321, %v333
    %v342 = vmul.f32 %v322, %v333
    %v343 = vmul.f32 %v323, %v333
    %v344 = vmul.f32 %v324, %v333
    %v345 = vmul.f32 %v325, %v333
    %v346 = vmul.f32 %v326, %v333
    %v347 = vmul.f32 %v327, %v333
    %v348 = vmul.f32 %v328, %v333
    %v349 = vmul.f32 %v329, %v333
    %v350 = vlaneseq
    %v351 = vshrl.u32 %v350, 7
    %v352 = vsub.s32 1, %v351
    %v353 = vrot.slane %v71, %v352
    %v354 = vadd.f32 %v334, %v353
    %v355 = vadd.f32 %v335, %v353
    %v356 = vadd.f32 %v336, %v353
    %v357 = vadd.f32 %v337, %v353
    %v358 = vadd.f32 %v338, %v353
    %v359 = vadd.f32 %v339, %v353
    %v360 = vadd.f32 %v340, %v353
    %v361 = vadd.f32 %v341, %v353
    %v362 = vadd.f32 %v342, %v353
    %v363 = vadd.f32 %v343, %v353
    %v364 = vadd.f32 %v344, %v353
    %v365 = vadd.f32 %v345, %v353
    %v366 = vadd.f32 %v346, %v353
    %v367 = vadd.f32 %v347, %v353
    %v368 = vadd.f32 %v348, %v353
    %v369 = vadd.f32 %v349, %v353
    %v370 = vpack.c.bf16 %v355, %v354
    %v371 = vpack.c.bf16 %v357, %v356
    %v372 = vpack.c.bf16 %v359, %v358
    %v373 = vpack.c.bf16 %v361, %v360
    %v374 = vpack.c.bf16 %v363, %v362
    %v375 = vpack.c.bf16 %v365, %v364
    %v376 = vpack.c.bf16 %v367, %v366
    %v377 = vpack.c.bf16 %v369, %v368
    %v382 = vunpack.c.l.b16 %v63
    %v383 = vunpack.c.l.b16 %v65
    %v384 = vunpack.c.l.b16 %v67
    %v385 = vunpack.c.l.b16 %v69
    %v386 = vpack.c.b16 %v383, %v382
    %v387 = vpack.c.b16 %v385, %v384
    %v391 = vsel %vm88, %v370, 0
    %v394 = vsel %vm88, %v371, 0
    %v397 = vsel %vm88, %v372, 0
    %v400 = vsel %vm88, %v373, 0
    %v403 = vsel %vm88, %v374, 0
    %v406 = vsel %vm88, %v375, 0
    %v409 = vsel %vm88, %v376, 0
    %v412 = vsel %vm88, %v377, 0
    %414 = vmatprep.subr.bf16.mxu0 0
    %415 = vmatpush1.bf16.msra.mxu0 %v386
    %416 = vmatprep.subr.bf16.mxu0 0
    %417 = vmatpush1.bf16.msra.mxu0 %v387
    %418 = vmatprep.subr.bf16.mxu0 0
    %419 = vmatpush1.bf16.msra.mxu0 0
    %420 = vmatprep.subr.bf16.mxu0 0
    %421 = vmatpush1.bf16.msra.mxu0 0
    %422 = vmatprep.subr.bf16.mxu0 0
    %423 = vmatpush1.bf16.msra.mxu0 0
    %424 = vmatprep.subr.bf16.mxu0 0
    %425 = vmatpush1.bf16.msra.mxu0 0
    %426 = vmatprep.subr.bf16.mxu0 0
    %427 = vmatpush1.bf16.msra.mxu0 0
    %428 = vmatprep.subr.bf16.mxu0 0
    %429 = vmatpush1.bf16.msra.mxu0 0
    %430 = vmatprep.subr.bf16.mxu0 0
    %431 = vmatpush1.bf16.msra.mxu0 0
    %432 = vmatprep.subr.bf16.mxu0 0
    %433 = vmatpush1.bf16.msra.mxu0 0
    %434 = vmatprep.subr.bf16.mxu0 0
    %435 = vmatpush1.bf16.msra.mxu0 0
    %436 = vmatprep.subr.bf16.mxu0 0
    %437 = vmatpush1.bf16.msra.mxu0 0
    %438 = vmatprep.subr.bf16.mxu0 0
    %439 = vmatpush1.bf16.msra.mxu0 0
    %440 = vmatprep.subr.bf16.mxu0 0
    %441 = vmatpush1.bf16.msra.mxu0 0
    %442 = vmatprep.subr.bf16.mxu0 0
    %443 = vmatpush1.bf16.msra.mxu0 0
    %444 = vmatprep.subr.bf16.mxu0 0
    %445 = vmatpush1.bf16.msra.mxu0 0
    %446 = vmatprep.mubr.bf16.mxu0 0
    %447 = vmatmul.mubr.bf16.gmra.mrb[0].mxu0 %v391
    %v448 = vpop.f32.mrb[0].mxu0
    %v449 = vadd.f32 0.0, %v448
    %v450 = vpop.f32.mrb[0].mxu0
    %v451 = vpop.f32.mrb[0].mxu0
    %v452 = vadd.f32 0.0, %v451
    %v453 = vpop.f32.mrb[0].mxu0
    %454 = vmatprep.mubr.bf16.mxu0 0
    %455 = vmatmul.mubr.bf16.gmra.mrb[0].mxu0 %v394
    %v456 = vpop.f32.mrb[0].mxu0
    %v457 = vadd.f32 0.0, %v456
    %v458 = vpop.f32.mrb[0].mxu0
    %v459 = vpop.f32.mrb[0].mxu0
    %v460 = vadd.f32 0.0, %v459
    %v461 = vpop.f32.mrb[0].mxu0
    %462 = vmatprep.mubr.bf16.mxu0 0
    %463 = vmatmul.mubr.bf16.gmra.mrb[0].mxu0 %v397
    %v464 = vpop.f32.mrb[0].mxu0
    %v465 = vadd.f32 0.0, %v464
    %v466 = vpop.f32.mrb[0].mxu0
    %v467 = vpop.f32.mrb[0].mxu0
    %v468 = vadd.f32 0.0, %v467
    %v469 = vpop.f32.mrb[0].mxu0
    %470 = vmatprep.mubr.bf16.mxu0 0
    %471 = vmatmul.mubr.bf16.gmra.mrb[0].mxu0 %v400
    %v472 = vpop.f32.mrb[0].mxu0
    %v473 = vadd.f32 0.0, %v472
    %v474 = vpop.f32.mrb[0].mxu0
    %v475 = vpop.f32.mrb[0].mxu0
    %v476 = vadd.f32 0.0, %v475
    %v477 = vpop.f32.mrb[0].mxu0
    %478 = vmatprep.mubr.bf16.mxu0 0
    %479 = vmatmul.mubr.bf16.gmra.mrb[0].mxu0 %v403
    %v480 = vpop.f32.mrb[0].mxu0
    %v481 = vadd.f32 0.0, %v480
    %v482 = vpop.f32.mrb[0].mxu0
    %v483 = vpop.f32.mrb[0].mxu0
    %v484 = vadd.f32 0.0, %v483
    %v485 = vpop.f32.mrb[0].mxu0
    %486 = vmatprep.mubr.bf16.mxu0 0
    %487 = vmatmul.mubr.bf16.gmra.mrb[0].mxu0 %v406
    %v488 = vpop.f32.mrb[0].mxu0
    %v489 = vadd.f32 0.0, %v488
    %v490 = vpop.f32.mrb[0].mxu0
    %v491 = vpop.f32.mrb[0].mxu0
    %v492 = vadd.f32 0.0, %v491
    %v493 = vpop.f32.mrb[0].mxu0
    %494 = vmatprep.mubr.bf16.mxu0 0
    %495 = vmatmul.mubr.bf16.gmra.mrb[0].mxu0 %v409
    %v496 = vpop.f32.mrb[0].mxu0
    %v497 = vadd.f32 0.0, %v496
    %v498 = vpop.f32.mrb[0].mxu0
    %v499 = vpop.f32.mrb[0].mxu0
    %v500 = vadd.f32 0.0, %v499
    %v501 = vpop.f32.mrb[0].mxu0
    %502 = vmatprep.mubr.bf16.mxu0 0
    %503 = vmatmul.mubr.bf16.gmra.mrb[0].mxu0 %v412
    %v504 = vpop.f32.mrb[0].mxu0
    %v505 = vadd.f32 0.0, %v504
    %v506 = vpop.f32.mrb[0].mxu0
    %v507 = vpop.f32.mrb[0].mxu0
    %v508 = vadd.f32 0.0, %v507
    %v509 = vpop.f32.mrb[0].mxu0
    %510 = vdwg.mxu0
    %v511 = vpack.c.bf16 %v452, %v449
    %v512 = vpack.c.bf16 %v460, %v457
    %v513 = vpack.c.bf16 %v468, %v465
    %v514 = vpack.c.bf16 %v476, %v473
    %v515 = vpack.c.bf16 %v484, %v481
    %v516 = vpack.c.bf16 %v492, %v489
    %v517 = vpack.c.bf16 %v500, %v497
    %v518 = vpack.c.bf16 %v508, %v505
    %527 = vrot.lane.b32.xlu0 %v511, 96
    %v528 = vpop.permute.xlu0 %527
    %529 = vrot.lane.b32.xlu0 %v512, 96
    %v530 = vpop.permute.xlu0 %529
    %531 = vrot.lane.b32.xlu0 %v513, 96
    %v532 = vpop.permute.xlu0 %531
    %533 = vrot.lane.b32.xlu0 %v514, 96
    %v534 = vpop.permute.xlu0 %533
    %535 = vrot.lane.b32.xlu0 %v515, 96
    %v536 = vpop.permute.xlu0 %535
    %537 = vrot.lane.b32.xlu0 %v516, 96
    %v538 = vpop.permute.xlu0 %537
    %539 = vrot.lane.b32.xlu0 %v517, 96
    %v540 = vpop.permute.xlu0 %539
    %541 = vrot.lane.b32.xlu0 %v518, 96
    %v542 = vpop.permute.xlu0 %541
    %vm543 = vcmask 64512
    %v545 = vsel %vm543, %v511, 0
    %v548 = vsel %vm543, %v512, 0
    %v551 = vsel %vm543, %v513, 0
    %v554 = vsel %vm543, %v514, 0
    %v557 = vsel %vm543, %v515, 0
    %v560 = vsel %vm543, %v516, 0
    %v563 = vsel %vm543, %v517, 0
    %v566 = vsel %vm543, %v518, 0
    %v569 = vsel %vm543, %v528, 0
    %v572 = vsel %vm543, %v530, 0
    %v575 = vsel %vm543, %v532, 0
    %v578 = vsel %vm543, %v534, 0
    %v581 = vsel %vm543, %v536, 0
    %v584 = vsel %vm543, %v538, 0
    %v587 = vsel %vm543, %v540, 0
    %v590 = vsel %vm543, %v542, 0
    %592 = vmatprep.subr.bf16.mxu0 0
    %593 = vmatpush1.bf16.xpose.msra.mxu0 %v569
    %594 = vmatprep.subr.bf16.mxu0 0
    %595 = vmatpush1.bf16.xpose.msra.mxu0 %v572
    %596 = vmatprep.subr.bf16.mxu0 0
    %597 = vmatpush1.bf16.xpose.msra.mxu0 %v575
    %598 = vmatprep.subr.bf16.mxu0 0
    %599 = vmatpush1.bf16.xpose.msra.mxu0 %v578
    %600 = vmatprep.subr.bf16.mxu0 0
    %601 = vmatpush1.bf16.xpose.msra.mxu0 %v581
    %602 = vmatprep.subr.bf16.mxu0 0
    %603 = vmatpush1.bf16.xpose.msra.mxu0 %v584
    %604 = vmatprep.subr.bf16.mxu0 0
    %605 = vmatpush1.bf16.xpose.msra.mxu0 %v587
    %606 = vmatprep.subr.bf16.mxu0 0
    %607 = vmatpush1.bf16.xpose.msra.mxu0 %v590
    %608 = vmatprep.subr.bf16.mxu0 0
    %609 = vmatpush1.bf16.xpose.msra.mxu0 0
    %610 = vmatprep.subr.bf16.mxu0 0
    %611 = vmatpush1.bf16.xpose.msra.mxu0 0
    %612 = vmatprep.subr.bf16.mxu0 0
    %613 = vmatpush1.bf16.xpose.msra.mxu0 0
    %614 = vmatprep.subr.bf16.mxu0 0
    %615 = vmatpush1.bf16.xpose.msra.mxu0 0
    %616 = vmatprep.subr.bf16.mxu0 0
    %617 = vmatpush1.bf16.xpose.msra.mxu0 0
    %618 = vmatprep.subr.bf16.mxu0 0
    %619 = vmatpush1.bf16.xpose.msra.mxu0 0
    %620 = vmatprep.subr.bf16.mxu0 0
    %621 = vmatpush1.bf16.xpose.msra.mxu0 0
    %622 = vmatprep.subr.bf16.mxu0 0
    %623 = vmatpush1.bf16.xpose.msra.mxu0 0
    %624 = vmatprep.mubr.bf16.mxu0 0
    %625 = vmatmul.mubr.bf16.gmra.mrb[0].mxu0 %v545
    %v626 = vpop.f32.mrb[0].mxu0
    %v627 = vadd.f32 0.0, %v626
    %v628 = vpop.f32.mrb[0].mxu0
    %v629 = vpop.f32.mrb[0].mxu0
    %v630 = vadd.f32 0.0, %v629
    %v631 = vpop.f32.mrb[0].mxu0
    %632 = vmatprep.mubr.bf16.mxu0 0
    %633 = vmatmul.mubr.bf16.gmra.mrb[0].mxu0 %v548
    %v634 = vpop.f32.mrb[0].mxu0
    %v635 = vadd.f32 0.0, %v634
    %v636 = vpop.f32.mrb[0].mxu0
    %v637 = vpop.f32.mrb[0].mxu0
    %v638 = vadd.f32 0.0, %v637
    %v639 = vpop.f32.mrb[0].mxu0
    %640 = vmatprep.mubr.bf16.mxu0 0
    %641 = vmatmul.mubr.bf16.gmra.mrb[0].mxu0 %v551
    %v642 = vpop.f32.mrb[0].mxu0
    %v643 = vadd.f32 0.0, %v642
    %v644 = vpop.f32.mrb[0].mxu0
    %v645 = vpop.f32.mrb[0].mxu0
    %v646 = vadd.f32 0.0, %v645
    %v647 = vpop.f32.mrb[0].mxu0
    %648 = vmatprep.mubr.bf16.mxu0 0
    %649 = vmatmul.mubr.bf16.gmra.mrb[0].mxu0 %v554
    %v650 = vpop.f32.mrb[0].mxu0
    %v651 = vadd.f32 0.0, %v650
    %v652 = vpop.f32.mrb[0].mxu0
    %v653 = vpop.f32.mrb[0].mxu0
    %v654 = vadd.f32 0.0, %v653
    %v655 = vpop.f32.mrb[0].mxu0
    %656 = vmatprep.mubr.bf16.mxu0 0
    %657 = vmatmul.mubr.bf16.gmra.mrb[0].mxu0 %v557
    %v658 = vpop.f32.mrb[0].mxu0
    %v659 = vadd.f32 0.0, %v658
    %v660 = vpop.f32.mrb[0].mxu0
    %v661 = vpop.f32.mrb[0].mxu0
    %v662 = vadd.f32 0.0, %v661
    %v663 = vpop.f32.mrb[0].mxu0
    %664 = vmatprep.mubr.bf16.mxu0 0
    %665 = vmatmul.mubr.bf16.gmra.mrb[0].mxu0 %v560
    %v666 = vpop.f32.mrb[0].mxu0
    %v667 = vadd.f32 0.0, %v666
    %v668 = vpop.f32.mrb[0].mxu0
    %v669 = vpop.f32.mrb[0].mxu0
    %v670 = vadd.f32 0.0, %v669
    %v671 = vpop.f32.mrb[0].mxu0
    %672 = vmatprep.mubr.bf16.mxu0 0
    %673 = vmatmul.mubr.bf16.gmra.mrb[0].mxu0 %v563
    %v674 = vpop.f32.mrb[0].mxu0
    %v675 = vadd.f32 0.0, %v674
    %v676 = vpop.f32.mrb[0].mxu0
    %v677 = vpop.f32.mrb[0].mxu0
    %v678 = vadd.f32 0.0, %v677
    %v679 = vpop.f32.mrb[0].mxu0
    %680 = vmatprep.mubr.bf16.mxu0 0
    %681 = vmatmul.mubr.bf16.gmra.mrb[0].mxu0 %v566
    %v682 = vpop.f32.mrb[0].mxu0
    %v683 = vadd.f32 0.0, %v682
    %v684 = vpop.f32.mrb[0].mxu0
    %v685 = vpop.f32.mrb[0].mxu0
    %v686 = vadd.f32 0.0, %v685
    %v687 = vpop.f32.mrb[0].mxu0
    %688 = vdwg.mxu0
    %v689 = vmul.f32 %v627, 0.35355338
    %v690 = vmul.f32 %v630, 0.35355338
    %v691 = vmul.f32 %v635, 0.35355338
    %v692 = vmul.f32 %v638, 0.35355338
    %v693 = vmul.f32 %v643, 0.35355338
    %v694 = vmul.f32 %v646, 0.35355338
    %v695 = vmul.f32 %v651, 0.35355338
    %v696 = vmul.f32 %v654, 0.35355338
    %v697 = vmul.f32 %v659, 0.35355338
    %v698 = vmul.f32 %v662, 0.35355338
    %v699 = vmul.f32 %v667, 0.35355338
    %v700 = vmul.f32 %v670, 0.35355338
    %v701 = vmul.f32 %v675, 0.35355338
    %v702 = vmul.f32 %v678, 0.35355338
    %v703 = vmul.f32 %v683, 0.35355338
    %v704 = vmul.f32 %v686, 0.35355338
    %721 = vrot.lane.b32.xlu0 %v72, 16
    %v722 = vpop.permute.xlu0 %721
    %723 = vrot.lane.b32.xlu0 %v73, 16
    %v724 = vpop.permute.xlu0 %723
    %725 = vrot.lane.b32.xlu0 %v74, 16
    %v726 = vpop.permute.xlu0 %725
    %727 = vrot.lane.b32.xlu0 %v75, 16
    %v728 = vpop.permute.xlu0 %727
    %729 = vrot.lane.b32.xlu0 %v76, 16
    %v730 = vpop.permute.xlu0 %729
    %731 = vrot.lane.b32.xlu0 %v77, 16
    %v732 = vpop.permute.xlu0 %731
    %733 = vrot.lane.b32.xlu0 %v78, 16
    %v734 = vpop.permute.xlu0 %733
    %735 = vrot.lane.b32.xlu0 %v79, 16
    %v736 = vpop.permute.xlu0 %735
    %737 = vrot.lane.b32.xlu0 %v80, 16
    %v738 = vpop.permute.xlu0 %737
    %739 = vrot.lane.b32.xlu0 %v81, 16
    %v740 = vpop.permute.xlu0 %739
    %741 = vrot.lane.b32.xlu0 %v82, 16
    %v742 = vpop.permute.xlu0 %741
    %743 = vrot.lane.b32.xlu0 %v83, 16
    %v744 = vpop.permute.xlu0 %743
    %745 = vrot.lane.b32.xlu0 %v84, 16
    %v746 = vpop.permute.xlu0 %745
    %747 = vrot.lane.b32.xlu0 %v85, 16
    %v748 = vpop.permute.xlu0 %747
    %749 = vrot.lane.b32.xlu0 %v86, 16
    %v750 = vpop.permute.xlu0 %749
    %751 = vrot.lane.b32.xlu0 %v87, 16
    %v752 = vpop.permute.xlu0 %751
    %769 = vrot.lane.b32.xlu0 %v72, 32
    %v770 = vpop.permute.xlu0 %769
    %771 = vrot.lane.b32.xlu0 %v73, 32
    %v772 = vpop.permute.xlu0 %771
    %773 = vrot.lane.b32.xlu0 %v74, 32
    %v774 = vpop.permute.xlu0 %773
    %775 = vrot.lane.b32.xlu0 %v75, 32
    %v776 = vpop.permute.xlu0 %775
    %777 = vrot.lane.b32.xlu0 %v76, 32
    %v778 = vpop.permute.xlu0 %777
    %779 = vrot.lane.b32.xlu0 %v77, 32
    %v780 = vpop.permute.xlu0 %779
    %781 = vrot.lane.b32.xlu0 %v78, 32
    %v782 = vpop.permute.xlu0 %781
    %783 = vrot.lane.b32.xlu0 %v79, 32
    %v784 = vpop.permute.xlu0 %783
    %785 = vrot.lane.b32.xlu0 %v80, 32
    %v786 = vpop.permute.xlu0 %785
    %787 = vrot.lane.b32.xlu0 %v81, 32
    %v788 = vpop.permute.xlu0 %787
    %789 = vrot.lane.b32.xlu0 %v82, 32
    %v790 = vpop.permute.xlu0 %789
    %791 = vrot.lane.b32.xlu0 %v83, 32
    %v792 = vpop.permute.xlu0 %791
    %793 = vrot.lane.b32.xlu0 %v84, 32
    %v794 = vpop.permute.xlu0 %793
    %795 = vrot.lane.b32.xlu0 %v85, 32
    %v796 = vpop.permute.xlu0 %795
    %797 = vrot.lane.b32.xlu0 %v86, 32
    %v798 = vpop.permute.xlu0 %797
    %799 = vrot.lane.b32.xlu0 %v87, 32
    %v800 = vpop.permute.xlu0 %799
    %817 = vrot.lane.b32.xlu0 %v72, 48
    %v818 = vpop.permute.xlu0 %817
    %819 = vrot.lane.b32.xlu0 %v73, 48
    %v820 = vpop.permute.xlu0 %819
    %821 = vrot.lane.b32.xlu0 %v74, 48
    %v822 = vpop.permute.xlu0 %821
    %823 = vrot.lane.b32.xlu0 %v75, 48
    %v824 = vpop.permute.xlu0 %823
    %825 = vrot.lane.b32.xlu0 %v76, 48
    %v826 = vpop.permute.xlu0 %825
    %827 = vrot.lane.b32.xlu0 %v77, 48
    %v828 = vpop.permute.xlu0 %827
    %829 = vrot.lane.b32.xlu0 %v78, 48
    %v830 = vpop.permute.xlu0 %829
    %831 = vrot.lane.b32.xlu0 %v79, 48
    %v832 = vpop.permute.xlu0 %831
    %833 = vrot.lane.b32.xlu0 %v80, 48
    %v834 = vpop.permute.xlu0 %833
    %835 = vrot.lane.b32.xlu0 %v81, 48
    %v836 = vpop.permute.xlu0 %835
    %837 = vrot.lane.b32.xlu0 %v82, 48
    %v838 = vpop.permute.xlu0 %837
    %839 = vrot.lane.b32.xlu0 %v83, 48
    %v840 = vpop.permute.xlu0 %839
    %841 = vrot.lane.b32.xlu0 %v84, 48
    %v842 = vpop.permute.xlu0 %841
    %843 = vrot.lane.b32.xlu0 %v85, 48
    %v844 = vpop.permute.xlu0 %843
    %845 = vrot.lane.b32.xlu0 %v86, 48
    %v846 = vpop.permute.xlu0 %845
    %847 = vrot.lane.b32.xlu0 %v87, 48
    %v848 = vpop.permute.xlu0 %847
    %865 = vrot.lane.b32.xlu0 %v72, 64
    %v866 = vpop.permute.xlu0 %865
    %867 = vrot.lane.b32.xlu0 %v73, 64
    %v868 = vpop.permute.xlu0 %867
    %869 = vrot.lane.b32.xlu0 %v74, 64
    %v870 = vpop.permute.xlu0 %869
    %871 = vrot.lane.b32.xlu0 %v75, 64
    %v872 = vpop.permute.xlu0 %871
    %873 = vrot.lane.b32.xlu0 %v76, 64
    %v874 = vpop.permute.xlu0 %873
    %875 = vrot.lane.b32.xlu0 %v77, 64
    %v876 = vpop.permute.xlu0 %875
    %877 = vrot.lane.b32.xlu0 %v78, 64
    %v878 = vpop.permute.xlu0 %877
    %879 = vrot.lane.b32.xlu0 %v79, 64
    %v880 = vpop.permute.xlu0 %879
    %881 = vrot.lane.b32.xlu0 %v80, 64
    %v882 = vpop.permute.xlu0 %881
    %883 = vrot.lane.b32.xlu0 %v81, 64
    %v884 = vpop.permute.xlu0 %883
    %885 = vrot.lane.b32.xlu0 %v82, 64
    %v886 = vpop.permute.xlu0 %885
    %887 = vrot.lane.b32.xlu0 %v83, 64
    %v888 = vpop.permute.xlu0 %887
    %889 = vrot.lane.b32.xlu0 %v84, 64
    %v890 = vpop.permute.xlu0 %889
    %891 = vrot.lane.b32.xlu0 %v85, 64
    %v892 = vpop.permute.xlu0 %891
    %893 = vrot.lane.b32.xlu0 %v86, 64
    %v894 = vpop.permute.xlu0 %893
    %895 = vrot.lane.b32.xlu0 %v87, 64
    %v896 = vpop.permute.xlu0 %895
    %913 = vrot.lane.b32.xlu0 %v72, 80
    %v914 = vpop.permute.xlu0 %913
    %915 = vrot.lane.b32.xlu0 %v73, 80
    %v916 = vpop.permute.xlu0 %915
    %917 = vrot.lane.b32.xlu0 %v74, 80
    %v918 = vpop.permute.xlu0 %917
    %919 = vrot.lane.b32.xlu0 %v75, 80
    %v920 = vpop.permute.xlu0 %919
    %921 = vrot.lane.b32.xlu0 %v76, 80
    %v922 = vpop.permute.xlu0 %921
    %923 = vrot.lane.b32.xlu0 %v77, 80
    %v924 = vpop.permute.xlu0 %923
    %925 = vrot.lane.b32.xlu0 %v78, 80
    %v926 = vpop.permute.xlu0 %925
    %927 = vrot.lane.b32.xlu0 %v79, 80
    %v928 = vpop.permute.xlu0 %927
    %929 = vrot.lane.b32.xlu0 %v80, 80
    %v930 = vpop.permute.xlu0 %929
    %931 = vrot.lane.b32.xlu0 %v81, 80
    %v932 = vpop.permute.xlu0 %931
    %933 = vrot.lane.b32.xlu0 %v82, 80
    %v934 = vpop.permute.xlu0 %933
    %935 = vrot.lane.b32.xlu0 %v83, 80
    %v936 = vpop.permute.xlu0 %935
    %937 = vrot.lane.b32.xlu0 %v84, 80
    %v938 = vpop.permute.xlu0 %937
    %939 = vrot.lane.b32.xlu0 %v85, 80
    %v940 = vpop.permute.xlu0 %939
    %941 = vrot.lane.b32.xlu0 %v86, 80
    %v942 = vpop.permute.xlu0 %941
    %943 = vrot.lane.b32.xlu0 %v87, 80
    %v944 = vpop.permute.xlu0 %943
    %961 = vrot.lane.b32.xlu0 %v72, 96
    %v962 = vpop.permute.xlu0 %961
    %963 = vrot.lane.b32.xlu0 %v73, 96
    %v964 = vpop.permute.xlu0 %963
    %965 = vrot.lane.b32.xlu0 %v74, 96
    %v966 = vpop.permute.xlu0 %965
    %967 = vrot.lane.b32.xlu0 %v75, 96
    %v968 = vpop.permute.xlu0 %967
    %969 = vrot.lane.b32.xlu0 %v76, 96
    %v970 = vpop.permute.xlu0 %969
    %971 = vrot.lane.b32.xlu0 %v77, 96
    %v972 = vpop.permute.xlu0 %971
    %973 = vrot.lane.b32.xlu0 %v78, 96
    %v974 = vpop.permute.xlu0 %973
    %975 = vrot.lane.b32.xlu0 %v79, 96
    %v976 = vpop.permute.xlu0 %975
    %977 = vrot.lane.b32.xlu0 %v80, 96
    %v978 = vpop.permute.xlu0 %977
    %979 = vrot.lane.b32.xlu0 %v81, 96
    %v980 = vpop.permute.xlu0 %979
    %981 = vrot.lane.b32.xlu0 %v82, 96
    %v982 = vpop.permute.xlu0 %981
    %983 = vrot.lane.b32.xlu0 %v83, 96
    %v984 = vpop.permute.xlu0 %983
    %985 = vrot.lane.b32.xlu0 %v84, 96
    %v986 = vpop.permute.xlu0 %985
    %987 = vrot.lane.b32.xlu0 %v85, 96
    %v988 = vpop.permute.xlu0 %987
    %989 = vrot.lane.b32.xlu0 %v86, 96
    %v990 = vpop.permute.xlu0 %989
    %991 = vrot.lane.b32.xlu0 %v87, 96
    %v992 = vpop.permute.xlu0 %991
    %1009 = vrot.lane.b32.xlu0 %v72, 112
    %v1010 = vpop.permute.xlu0 %1009
    %1011 = vrot.lane.b32.xlu0 %v73, 112
    %v1012 = vpop.permute.xlu0 %1011
    %1013 = vrot.lane.b32.xlu0 %v74, 112
    %v1014 = vpop.permute.xlu0 %1013
    %1015 = vrot.lane.b32.xlu0 %v75, 112
    %v1016 = vpop.permute.xlu0 %1015
    %1017 = vrot.lane.b32.xlu0 %v76, 112
    %v1018 = vpop.permute.xlu0 %1017
    %1019 = vrot.lane.b32.xlu0 %v77, 112
    %v1020 = vpop.permute.xlu0 %1019
    %1021 = vrot.lane.b32.xlu0 %v78, 112
    %v1022 = vpop.permute.xlu0 %1021
    %1023 = vrot.lane.b32.xlu0 %v79, 112
    %v1024 = vpop.permute.xlu0 %1023
    %1025 = vrot.lane.b32.xlu0 %v80, 112
    %v1026 = vpop.permute.xlu0 %1025
    %1027 = vrot.lane.b32.xlu0 %v81, 112
    %v1028 = vpop.permute.xlu0 %1027
    %1029 = vrot.lane.b32.xlu0 %v82, 112
    %v1030 = vpop.permute.xlu0 %1029
    %1031 = vrot.lane.b32.xlu0 %v83, 112
    %v1032 = vpop.permute.xlu0 %1031
    %1033 = vrot.lane.b32.xlu0 %v84, 112
    %v1034 = vpop.permute.xlu0 %1033
    %1035 = vrot.lane.b32.xlu0 %v85, 112
    %v1036 = vpop.permute.xlu0 %1035
    %1037 = vrot.lane.b32.xlu0 %v86, 112
    %v1038 = vpop.permute.xlu0 %1037
    %1039 = vrot.lane.b32.xlu0 %v87, 112
    %v1040 = vpop.permute.xlu0 %1039
    %vm1057 = vcmask 130048
    %v1058 = vsel %vm1057, %v72, %v722
    %v1059 = vsel %vm1057, %v73, %v724
    %v1060 = vsel %vm1057, %v74, %v726
    %v1061 = vsel %vm1057, %v75, %v728
    %v1062 = vsel %vm1057, %v76, %v730
    %v1063 = vsel %vm1057, %v77, %v732
    %v1064 = vsel %vm1057, %v78, %v734
    %v1065 = vsel %vm1057, %v79, %v736
    %v1066 = vsel %vm1057, %v80, %v738
    %v1067 = vsel %vm1057, %v81, %v740
    %v1068 = vsel %vm1057, %v82, %v742
    %v1069 = vsel %vm1057, %v83, %v744
    %v1070 = vsel %vm1057, %v84, %v746
    %v1071 = vsel %vm1057, %v85, %v748
    %v1072 = vsel %vm1057, %v86, %v750
    %v1073 = vsel %vm1057, %v87, %v752
    %v1074 = vsel %vm88, %v1058, %v770
    %v1075 = vsel %vm88, %v1059, %v772
    %v1076 = vsel %vm88, %v1060, %v774
    %v1077 = vsel %vm88, %v1061, %v776
    %v1078 = vsel %vm88, %v1062, %v778
    %v1079 = vsel %vm88, %v1063, %v780
    %v1080 = vsel %vm88, %v1064, %v782
    %v1081 = vsel %vm88, %v1065, %v784
    %v1082 = vsel %vm88, %v1066, %v786
    %v1083 = vsel %vm88, %v1067, %v788
    %v1084 = vsel %vm88, %v1068, %v790
    %v1085 = vsel %vm88, %v1069, %v792
    %v1086 = vsel %vm88, %v1070, %v794
    %v1087 = vsel %vm88, %v1071, %v796
    %v1088 = vsel %vm88, %v1072, %v798
    %v1089 = vsel %vm88, %v1073, %v800
    %vm1090 = vcmask 392192
    %v1091 = vsel %vm1090, %v1074, %v818
    %v1092 = vsel %vm1090, %v1075, %v820
    %v1093 = vsel %vm1090, %v1076, %v822
    %v1094 = vsel %vm1090, %v1077, %v824
    %v1095 = vsel %vm1090, %v1078, %v826
    %v1096 = vsel %vm1090, %v1079, %v828
    %v1097 = vsel %vm1090, %v1080, %v830
    %v1098 = vsel %vm1090, %v1081, %v832
    %v1099 = vsel %vm1090, %v1082, %v834
    %v1100 = vsel %vm1090, %v1083, %v836
    %v1101 = vsel %vm1090, %v1084, %v838
    %v1102 = vsel %vm1090, %v1085, %v840
    %v1103 = vsel %vm1090, %v1086, %v842
    %v1104 = vsel %vm1090, %v1087, %v844
    %v1105 = vsel %vm1090, %v1088, %v846
    %v1106 = vsel %vm1090, %v1089, %v848
    %vm1107 = vcmask 523264
    %v1108 = vsel %vm1107, %v1091, %v866
    %v1109 = vsel %vm1107, %v1092, %v868
    %v1110 = vsel %vm1107, %v1093, %v870
    %v1111 = vsel %vm1107, %v1094, %v872
    %v1112 = vsel %vm1107, %v1095, %v874
    %v1113 = vsel %vm1107, %v1096, %v876
    %v1114 = vsel %vm1107, %v1097, %v878
    %v1115 = vsel %vm1107, %v1098, %v880
    %v1116 = vsel %vm1107, %v1099, %v882
    %v1117 = vsel %vm1107, %v1100, %v884
    %v1118 = vsel %vm1107, %v1101, %v886
    %v1119 = vsel %vm1107, %v1102, %v888
    %v1120 = vsel %vm1107, %v1103, %v890
    %v1121 = vsel %vm1107, %v1104, %v892
    %v1122 = vsel %vm1107, %v1105, %v894
    %v1123 = vsel %vm1107, %v1106, %v896
    %vm1124 = vcmask 654336
    %v1125 = vsel %vm1124, %v1108, %v914
    %v1126 = vsel %vm1124, %v1109, %v916
    %v1127 = vsel %vm1124, %v1110, %v918
    %v1128 = vsel %vm1124, %v1111, %v920
    %v1129 = vsel %vm1124, %v1112, %v922
    %v1130 = vsel %vm1124, %v1113, %v924
    %v1131 = vsel %vm1124, %v1114, %v926
    %v1132 = vsel %vm1124, %v1115, %v928
    %v1133 = vsel %vm1124, %v1116, %v930
    %v1134 = vsel %vm1124, %v1117, %v932
    %v1135 = vsel %vm1124, %v1118, %v934
    %v1136 = vsel %vm1124, %v1119, %v936
    %v1137 = vsel %vm1124, %v1120, %v938
    %v1138 = vsel %vm1124, %v1121, %v940
    %v1139 = vsel %vm1124, %v1122, %v942
    %v1140 = vsel %vm1124, %v1123, %v944
    %vm1141 = vcmask 785408
    %v1142 = vsel %vm1141, %v1125, %v962
    %v1143 = vsel %vm1141, %v1126, %v964
    %v1144 = vsel %vm1141, %v1127, %v966
    %v1145 = vsel %vm1141, %v1128, %v968
    %v1146 = vsel %vm1141, %v1129, %v970
    %v1147 = vsel %vm1141, %v1130, %v972
    %v1148 = vsel %vm1141, %v1131, %v974
    %v1149 = vsel %vm1141, %v1132, %v976
    %v1150 = vsel %vm1141, %v1133, %v978
    %v1151 = vsel %vm1141, %v1134, %v980
    %v1152 = vsel %vm1141, %v1135, %v982
    %v1153 = vsel %vm1141, %v1136, %v984
    %v1154 = vsel %vm1141, %v1137, %v986
    %v1155 = vsel %vm1141, %v1138, %v988
    %v1156 = vsel %vm1141, %v1139, %v990
    %v1157 = vsel %vm1141, %v1140, %v992
    %vm1158 = vcmask 916480
    %v1159 = vsel %vm1158, %v1142, %v1010
    %v1160 = vsel %vm1158, %v1143, %v1012
    %v1161 = vsel %vm1158, %v1144, %v1014
    %v1162 = vsel %vm1158, %v1145, %v1016
    %v1163 = vsel %vm1158, %v1146, %v1018
    %v1164 = vsel %vm1158, %v1147, %v1020
    %v1165 = vsel %vm1158, %v1148, %v1022
    %v1166 = vsel %vm1158, %v1149, %v1024
    %v1167 = vsel %vm1158, %v1150, %v1026
    %v1168 = vsel %vm1158, %v1151, %v1028
    %v1169 = vsel %vm1158, %v1152, %v1030
    %v1170 = vsel %vm1158, %v1153, %v1032
    %v1171 = vsel %vm1158, %v1154, %v1034
    %v1172 = vsel %vm1158, %v1155, %v1036
    %v1173 = vsel %vm1158, %v1156, %v1038
    %v1174 = vsel %vm1158, %v1157, %v1040
    %v1175 = vadd.f32 %v689, %v1159
    %v1176 = vadd.f32 %v690, %v1160
    %v1177 = vadd.f32 %v691, %v1161
    %v1178 = vadd.f32 %v692, %v1162
    %v1179 = vadd.f32 %v693, %v1163
    %v1180 = vadd.f32 %v694, %v1164
    %v1181 = vadd.f32 %v695, %v1165
    %v1182 = vadd.f32 %v696, %v1166
    %v1183 = vadd.f32 %v697, %v1167
    %v1184 = vadd.f32 %v698, %v1168
    %v1185 = vadd.f32 %v699, %v1169
    %v1186 = vadd.f32 %v700, %v1170
    %v1187 = vadd.f32 %v701, %v1171
    %v1188 = vadd.f32 %v702, %v1172
    %v1189 = vadd.f32 %v703, %v1173
    %v1190 = vadd.f32 %v704, %v1174
    %v1191 = vadd.f32 %v1175, %v47
    %v1192 = vadd.f32 %v1176, %v48
    %v1193 = vadd.f32 %v1177, %v49
    %v1194 = vadd.f32 %v1178, %v50
    %v1195 = vadd.f32 %v1179, %v51
    %v1196 = vadd.f32 %v1180, %v52
    %v1197 = vadd.f32 %v1181, %v53
    %v1198 = vadd.f32 %v1182, %v54
    %v1199 = vadd.f32 %v1183, %v55
    %v1200 = vadd.f32 %v1184, %v56
    %v1201 = vadd.f32 %v1185, %v57
    %v1202 = vadd.f32 %v1186, %v58
    %v1203 = vadd.f32 %v1187, %v59
    %v1204 = vadd.f32 %v1188, %v60
    %v1205 = vadd.f32 %v1189, %v61
    %v1206 = vadd.f32 %v1190, %v62
    %1207 = vmax.xlane.f32.xlu0 %v1191
    %v1208 = vpop.xlane.xlu0 %1207
    %1209 = vmax.xlane.f32.xlu0 %v1192
    %v1210 = vpop.xlane.xlu0 %1209
    %1211 = vmax.xlane.f32.xlu0 %v1193
    %v1212 = vpop.xlane.xlu0 %1211
    %1213 = vmax.xlane.f32.xlu0 %v1194
    %v1214 = vpop.xlane.xlu0 %1213
    %1215 = vmax.xlane.f32.xlu0 %v1195
    %v1216 = vpop.xlane.xlu0 %1215
    %1217 = vmax.xlane.f32.xlu0 %v1196
    %v1218 = vpop.xlane.xlu0 %1217
    %1219 = vmax.xlane.f32.xlu0 %v1197
    %v1220 = vpop.xlane.xlu0 %1219
    %1221 = vmax.xlane.f32.xlu0 %v1198
    %v1222 = vpop.xlane.xlu0 %1221
    %1223 = vmax.xlane.f32.xlu0 %v1199
    %v1224 = vpop.xlane.xlu0 %1223
    %1225 = vmax.xlane.f32.xlu0 %v1200
    %v1226 = vpop.xlane.xlu0 %1225
    %1227 = vmax.xlane.f32.xlu0 %v1201
    %v1228 = vpop.xlane.xlu0 %1227
    %1229 = vmax.xlane.f32.xlu0 %v1202
    %v1230 = vpop.xlane.xlu0 %1229
    %1231 = vmax.xlane.f32.xlu0 %v1203
    %v1232 = vpop.xlane.xlu0 %1231
    %1233 = vmax.xlane.f32.xlu0 %v1204
    %v1234 = vpop.xlane.xlu0 %1233
    %1235 = vmax.xlane.f32.xlu0 %v1205
    %v1236 = vpop.xlane.xlu0 %1235
    %1237 = vmax.xlane.f32.xlu0 %v1206
    %v1238 = vpop.xlane.xlu0 %1237
    %v1239 = vsub.f32 %v1191, %v1208
    %v1240 = vsub.f32 %v1192, %v1210
    %v1241 = vsub.f32 %v1193, %v1212
    %v1242 = vsub.f32 %v1194, %v1214
    %v1243 = vsub.f32 %v1195, %v1216
    %v1244 = vsub.f32 %v1196, %v1218
    %v1245 = vsub.f32 %v1197, %v1220
    %v1246 = vsub.f32 %v1198, %v1222
    %v1247 = vsub.f32 %v1199, %v1224
    %v1248 = vsub.f32 %v1200, %v1226
    %v1249 = vsub.f32 %v1201, %v1228
    %v1250 = vsub.f32 %v1202, %v1230
    %v1251 = vsub.f32 %v1203, %v1232
    %v1252 = vsub.f32 %v1204, %v1234
    %v1253 = vsub.f32 %v1205, %v1236
    %v1254 = vsub.f32 %v1206, %v1238
    %v1255 = vmul.f32 %v1239, 1.442695
    %v1256 = vpow.pop %v1255
    %v1257 = vmul.f32 %v1240, 1.442695
    %v1258 = vpow.pop %v1257
    %v1259 = vmul.f32 %v1241, 1.442695
    %v1260 = vpow.pop %v1259
    %v1261 = vmul.f32 %v1242, 1.442695
    %v1262 = vpow.pop %v1261
    %v1263 = vmul.f32 %v1243, 1.442695
    %v1264 = vpow.pop %v1263
    %v1265 = vmul.f32 %v1244, 1.442695
    %v1266 = vpow.pop %v1265
    %v1267 = vmul.f32 %v1245, 1.442695
    %v1268 = vpow.pop %v1267
    %v1269 = vmul.f32 %v1246, 1.442695
    %v1270 = vpow.pop %v1269
    %v1271 = vmul.f32 %v1247, 1.442695
    %v1272 = vpow.pop %v1271
    %v1273 = vmul.f32 %v1248, 1.442695
    %v1274 = vpow.pop %v1273
    %v1275 = vmul.f32 %v1249, 1.442695
    %v1276 = vpow.pop %v1275
    %v1277 = vmul.f32 %v1250, 1.442695
    %v1278 = vpow.pop %v1277
    %v1279 = vmul.f32 %v1251, 1.442695
    %v1280 = vpow.pop %v1279
    %v1281 = vmul.f32 %v1252, 1.442695
    %v1282 = vpow.pop %v1281
    %v1283 = vmul.f32 %v1253, 1.442695
    %v1284 = vpow.pop %v1283
    %v1285 = vmul.f32 %v1254, 1.442695
    %v1286 = vpow.pop %v1285
    %1287 = vadd.xlane.f32.xlu0 %v1256
    %v1288 = vpop.xlane.xlu0 %1287
    %1289 = vadd.xlane.f32.xlu0 %v1258
    %v1290 = vpop.xlane.xlu0 %1289
    %1291 = vadd.xlane.f32.xlu0 %v1260
    %v1292 = vpop.xlane.xlu0 %1291
    %1293 = vadd.xlane.f32.xlu0 %v1262
    %v1294 = vpop.xlane.xlu0 %1293
    %1295 = vadd.xlane.f32.xlu0 %v1264
    %v1296 = vpop.xlane.xlu0 %1295
    %1297 = vadd.xlane.f32.xlu0 %v1266
    %v1298 = vpop.xlane.xlu0 %1297
    %1299 = vadd.xlane.f32.xlu0 %v1268
    %v1300 = vpop.xlane.xlu0 %1299
    %1301 = vadd.xlane.f32.xlu0 %v1270
    %v1302 = vpop.xlane.xlu0 %1301
    %1303 = vadd.xlane.f32.xlu0 %v1272
    %v1304 = vpop.xlane.xlu0 %1303
    %1305 = vadd.xlane.f32.xlu0 %v1274
    %v1306 = vpop.xlane.xlu0 %1305
    %1307 = vadd.xlane.f32.xlu0 %v1276
    %v1308 = vpop.xlane.xlu0 %1307
    %1309 = vadd.xlane.f32.xlu0 %v1278
    %v1310 = vpop.xlane.xlu0 %1309
    %1311 = vadd.xlane.f32.xlu0 %v1280
    %v1312 = vpop.xlane.xlu0 %1311
    %1313 = vadd.xlane.f32.xlu0 %v1282
    %v1314 = vpop.xlane.xlu0 %1313
    %1315 = vadd.xlane.f32.xlu0 %v1284
    %v1316 = vpop.xlane.xlu0 %1315
    %1317 = vadd.xlane.f32.xlu0 %v1286
    %v1318 = vpop.xlane.xlu0 %1317
    %v1319 = vrcp.pop %v1288
    %v1320 = vrcp.pop %v1290
    %v1321 = vrcp.pop %v1292
    %v1322 = vrcp.pop %v1294
    %v1323 = vrcp.pop %v1296
    %v1324 = vrcp.pop %v1298
    %v1325 = vrcp.pop %v1300
    %v1326 = vrcp.pop %v1302
    %v1327 = vrcp.pop %v1304
    %v1328 = vrcp.pop %v1306
    %v1329 = vrcp.pop %v1308
    %v1330 = vrcp.pop %v1310
    %v1331 = vrcp.pop %v1312
    %v1332 = vrcp.pop %v1314
    %v1333 = vrcp.pop %v1316
    %v1334 = vrcp.pop %v1318
    %v1335 = vmul.f32 %v1256, %v1319
    %v1336 = vmul.f32 %v1258, %v1320
    %v1337 = vmul.f32 %v1260, %v1321
    %v1338 = vmul.f32 %v1262, %v1322
    %v1339 = vmul.f32 %v1264, %v1323
    %v1340 = vmul.f32 %v1266, %v1324
    %v1341 = vmul.f32 %v1268, %v1325
    %v1342 = vmul.f32 %v1270, %v1326
    %v1343 = vmul.f32 %v1272, %v1327
    %v1344 = vmul.f32 %v1274, %v1328
    %v1345 = vmul.f32 %v1276, %v1329
    %v1346 = vmul.f32 %v1278, %v1330
    %v1347 = vmul.f32 %v1280, %v1331
    %v1348 = vmul.f32 %v1282, %v1332
    %v1349 = vmul.f32 %v1284, %v1333
    %v1350 = vmul.f32 %v1286, %v1334
    %v1351 = vpack.c.bf16 %v1336, %v1335
    %v1352 = vpack.c.bf16 %v1338, %v1337
    %v1353 = vpack.c.bf16 %v1340, %v1339
    %v1354 = vpack.c.bf16 %v1342, %v1341
    %v1355 = vpack.c.bf16 %v1344, %v1343
    %v1356 = vpack.c.bf16 %v1346, %v1345
    %v1357 = vpack.c.bf16 %v1348, %v1347
    %v1358 = vpack.c.bf16 %v1350, %v1349
    %1359 = vrot.lane.b32.xlu0 %v511, 64
    %v1360 = vpop.permute.xlu0 %1359
    %1361 = vrot.lane.b32.xlu0 %v512, 64
    %v1362 = vpop.permute.xlu0 %1361
    %1363 = vrot.lane.b32.xlu0 %v513, 64
    %v1364 = vpop.permute.xlu0 %1363
    %1365 = vrot.lane.b32.xlu0 %v514, 64
    %v1366 = vpop.permute.xlu0 %1365
    %1367 = vrot.lane.b32.xlu0 %v515, 64
    %v1368 = vpop.permute.xlu0 %1367
    %1369 = vrot.lane.b32.xlu0 %v516, 64
    %v1370 = vpop.permute.xlu0 %1369
    %1371 = vrot.lane.b32.xlu0 %v517, 64
    %v1372 = vpop.permute.xlu0 %1371
    %1373 = vrot.lane.b32.xlu0 %v518, 64
    %v1374 = vpop.permute.xlu0 %1373
    %1383 = vmatprep.subr.bf16.mxu0 0
    %1384 = vmatpush1.bf16.msra.mxu0 %v1360
    %1385 = vmatprep.subr.bf16.mxu0 0
    %1386 = vmatpush1.bf16.msra.mxu0 %v1362
    %1387 = vmatprep.subr.bf16.mxu0 0
    %1388 = vmatpush1.bf16.msra.mxu0 %v1364
    %1389 = vmatprep.subr.bf16.mxu0 0
    %1390 = vmatpush1.bf16.msra.mxu0 %v1366
    %1391 = vmatprep.subr.bf16.mxu0 0
    %1392 = vmatpush1.bf16.msra.mxu0 %v1368
    %1393 = vmatprep.subr.bf16.mxu0 0
    %1394 = vmatpush1.bf16.msra.mxu0 %v1370
    %1395 = vmatprep.subr.bf16.mxu0 0
    %1396 = vmatpush1.bf16.msra.mxu0 %v1372
    %1397 = vmatprep.subr.bf16.mxu0 0
    %1398 = vmatpush1.bf16.msra.mxu0 %v1374
    %1399 = vmatprep.subr.bf16.mxu0 0
    %1400 = vmatpush1.bf16.msra.mxu0 0
    %1401 = vmatprep.subr.bf16.mxu0 0
    %1402 = vmatpush1.bf16.msra.mxu0 0
    %1403 = vmatprep.subr.bf16.mxu0 0
    %1404 = vmatpush1.bf16.msra.mxu0 0
    %1405 = vmatprep.subr.bf16.mxu0 0
    %1406 = vmatpush1.bf16.msra.mxu0 0
    %1407 = vmatprep.subr.bf16.mxu0 0
    %1408 = vmatpush1.bf16.msra.mxu0 0
    %1409 = vmatprep.subr.bf16.mxu0 0
    %1410 = vmatpush1.bf16.msra.mxu0 0
    %1411 = vmatprep.subr.bf16.mxu0 0
    %1412 = vmatpush1.bf16.msra.mxu0 0
    %1413 = vmatprep.subr.bf16.mxu0 0
    %1414 = vmatpush1.bf16.msra.mxu0 0
    %1415 = vmatprep.mubr.bf16.mxu0 0
    %1416 = vmatmul.mubr.bf16.gmra.mrb[0].mxu0 %v1351
    %v1417 = vpop.f32.mrb[0].mxu0
    %v1418 = vadd.f32 0.0, %v1417
    %v1419 = vpop.f32.mrb[0].mxu0
    %v1420 = vpop.f32.mrb[0].mxu0
    %v1421 = vadd.f32 0.0, %v1420
    %v1422 = vpop.f32.mrb[0].mxu0
    %1423 = vmatprep.mubr.bf16.mxu0 0
    %1424 = vmatmul.mubr.bf16.gmra.mrb[0].mxu0 %v1352
    %v1425 = vpop.f32.mrb[0].mxu0
    %v1426 = vadd.f32 0.0, %v1425
    %v1427 = vpop.f32.mrb[0].mxu0
    %v1428 = vpop.f32.mrb[0].mxu0
    %v1429 = vadd.f32 0.0, %v1428
    %v1430 = vpop.f32.mrb[0].mxu0
    %1431 = vmatprep.mubr.bf16.mxu0 0
    %1432 = vmatmul.mubr.bf16.gmra.mrb[0].mxu0 %v1353
    %v1433 = vpop.f32.mrb[0].mxu0
    %v1434 = vadd.f32 0.0, %v1433
    %v1435 = vpop.f32.mrb[0].mxu0
    %v1436 = vpop.f32.mrb[0].mxu0
    %v1437 = vadd.f32 0.0, %v1436
    %v1438 = vpop.f32.mrb[0].mxu0
    %1439 = vmatprep.mubr.bf16.mxu0 0
    %1440 = vmatmul.mubr.bf16.gmra.mrb[0].mxu0 %v1354
    %v1441 = vpop.f32.mrb[0].mxu0
    %v1442 = vadd.f32 0.0, %v1441
    %v1443 = vpop.f32.mrb[0].mxu0
    %v1444 = vpop.f32.mrb[0].mxu0
    %v1445 = vadd.f32 0.0, %v1444
    %v1446 = vpop.f32.mrb[0].mxu0
    %1447 = vmatprep.mubr.bf16.mxu0 0
    %1448 = vmatmul.mubr.bf16.gmra.mrb[0].mxu0 %v1355
    %v1449 = vpop.f32.mrb[0].mxu0
    %v1450 = vadd.f32 0.0, %v1449
    %v1451 = vpop.f32.mrb[0].mxu0
    %v1452 = vpop.f32.mrb[0].mxu0
    %v1453 = vadd.f32 0.0, %v1452
    %v1454 = vpop.f32.mrb[0].mxu0
    %1455 = vmatprep.mubr.bf16.mxu0 0
    %1456 = vmatmul.mubr.bf16.gmra.mrb[0].mxu0 %v1356
    %v1457 = vpop.f32.mrb[0].mxu0
    %v1458 = vadd.f32 0.0, %v1457
    %v1459 = vpop.f32.mrb[0].mxu0
    %v1460 = vpop.f32.mrb[0].mxu0
    %v1461 = vadd.f32 0.0, %v1460
    %v1462 = vpop.f32.mrb[0].mxu0
    %1463 = vmatprep.mubr.bf16.mxu0 0
    %1464 = vmatmul.mubr.bf16.gmra.mrb[0].mxu0 %v1357
    %v1465 = vpop.f32.mrb[0].mxu0
    %v1466 = vadd.f32 0.0, %v1465
    %v1467 = vpop.f32.mrb[0].mxu0
    %v1468 = vpop.f32.mrb[0].mxu0
    %v1469 = vadd.f32 0.0, %v1468
    %v1470 = vpop.f32.mrb[0].mxu0
    %1471 = vmatprep.mubr.bf16.mxu0 0
    %1472 = vmatmul.mubr.bf16.gmra.mrb[0].mxu0 %v1358
    %v1473 = vpop.f32.mrb[0].mxu0
    %v1474 = vadd.f32 0.0, %v1473
    %v1475 = vpop.f32.mrb[0].mxu0
    %v1476 = vpop.f32.mrb[0].mxu0
    %v1477 = vadd.f32 0.0, %v1476
    %v1478 = vpop.f32.mrb[0].mxu0
    %1479 = vdwg.mxu0
    %1480 = vrot.lane.b32.xlu0 %v511, 120
    %v1481 = vpop.permute.xlu0 %1480
    %1482 = vrot.lane.b32.xlu0 %v512, 120
    %v1483 = vpop.permute.xlu0 %1482
    %1484 = vrot.lane.b32.xlu0 %v513, 120
    %v1485 = vpop.permute.xlu0 %1484
    %1486 = vrot.lane.b32.xlu0 %v514, 120
    %v1487 = vpop.permute.xlu0 %1486
    %1488 = vrot.lane.b32.xlu0 %v515, 120
    %v1489 = vpop.permute.xlu0 %1488
    %1490 = vrot.lane.b32.xlu0 %v516, 120
    %v1491 = vpop.permute.xlu0 %1490
    %1492 = vrot.lane.b32.xlu0 %v517, 120
    %v1493 = vpop.permute.xlu0 %1492
    %1494 = vrot.lane.b32.xlu0 %v518, 120
    %v1495 = vpop.permute.xlu0 %1494
    %1496 = vrot.lane.b32.xlu0 %v511, 88
    %v1497 = vpop.permute.xlu0 %1496
    %1498 = vrot.lane.b32.xlu0 %v512, 88
    %v1499 = vpop.permute.xlu0 %1498
    %1500 = vrot.lane.b32.xlu0 %v513, 88
    %v1501 = vpop.permute.xlu0 %1500
    %1502 = vrot.lane.b32.xlu0 %v514, 88
    %v1503 = vpop.permute.xlu0 %1502
    %1504 = vrot.lane.b32.xlu0 %v515, 88
    %v1505 = vpop.permute.xlu0 %1504
    %1506 = vrot.lane.b32.xlu0 %v516, 88
    %v1507 = vpop.permute.xlu0 %1506
    %1508 = vrot.lane.b32.xlu0 %v517, 88
    %v1509 = vpop.permute.xlu0 %1508
    %1510 = vrot.lane.b32.xlu0 %v518, 88
    %v1511 = vpop.permute.xlu0 %1510
    %v1513 = vsel %vm543, %v1481, 0
    %v1516 = vsel %vm543, %v1483, 0
    %v1519 = vsel %vm543, %v1485, 0
    %v1522 = vsel %vm543, %v1487, 0
    %v1525 = vsel %vm543, %v1489, 0
    %v1528 = vsel %vm543, %v1491, 0
    %v1531 = vsel %vm543, %v1493, 0
    %v1534 = vsel %vm543, %v1495, 0
    %v1537 = vsel %vm543, %v1497, 0
    %v1540 = vsel %vm543, %v1499, 0
    %v1543 = vsel %vm543, %v1501, 0
    %v1546 = vsel %vm543, %v1503, 0
    %v1549 = vsel %vm543, %v1505, 0
    %v1552 = vsel %vm543, %v1507, 0
    %v1555 = vsel %vm543, %v1509, 0
    %v1558 = vsel %vm543, %v1511, 0
    %1560 = vmatprep.subr.bf16.mxu0 0
    %1561 = vmatpush1.bf16.xpose.msra.mxu0 %v1537
    %1562 = vmatprep.subr.bf16.mxu0 0
    %1563 = vmatpush1.bf16.xpose.msra.mxu0 %v1540
    %1564 = vmatprep.subr.bf16.mxu0 0
    %1565 = vmatpush1.bf16.xpose.msra.mxu0 %v1543
    %1566 = vmatprep.subr.bf16.mxu0 0
    %1567 = vmatpush1.bf16.xpose.msra.mxu0 %v1546
    %1568 = vmatprep.subr.bf16.mxu0 0
    %1569 = vmatpush1.bf16.xpose.msra.mxu0 %v1549
    %1570 = vmatprep.subr.bf16.mxu0 0
    %1571 = vmatpush1.bf16.xpose.msra.mxu0 %v1552
    %1572 = vmatprep.subr.bf16.mxu0 0
    %1573 = vmatpush1.bf16.xpose.msra.mxu0 %v1555
    %1574 = vmatprep.subr.bf16.mxu0 0
    %1575 = vmatpush1.bf16.xpose.msra.mxu0 %v1558
    %1576 = vmatprep.subr.bf16.mxu0 0
    %1577 = vmatpush1.bf16.xpose.msra.mxu0 0
    %1578 = vmatprep.subr.bf16.mxu0 0
    %1579 = vmatpush1.bf16.xpose.msra.mxu0 0
    %1580 = vmatprep.subr.bf16.mxu0 0
    %1581 = vmatpush1.bf16.xpose.msra.mxu0 0
    %1582 = vmatprep.subr.bf16.mxu0 0
    %1583 = vmatpush1.bf16.xpose.msra.mxu0 0
    %1584 = vmatprep.subr.bf16.mxu0 0
    %1585 = vmatpush1.bf16.xpose.msra.mxu0 0
    %1586 = vmatprep.subr.bf16.mxu0 0
    %1587 = vmatpush1.bf16.xpose.msra.mxu0 0
    %1588 = vmatprep.subr.bf16.mxu0 0
    %1589 = vmatpush1.bf16.xpose.msra.mxu0 0
    %1590 = vmatprep.subr.bf16.mxu0 0
    %1591 = vmatpush1.bf16.xpose.msra.mxu0 0
    %1592 = vmatprep.mubr.bf16.mxu0 0
    %1593 = vmatmul.mubr.bf16.gmra.mrb[0].mxu0 %v1513
    %v1594 = vpop.f32.mrb[0].mxu0
    %v1595 = vadd.f32 0.0, %v1594
    %v1596 = vpop.f32.mrb[0].mxu0
    %v1597 = vpop.f32.mrb[0].mxu0
    %v1598 = vadd.f32 0.0, %v1597
    %v1599 = vpop.f32.mrb[0].mxu0
    %1600 = vmatprep.mubr.bf16.mxu0 0
    %1601 = vmatmul.mubr.bf16.gmra.mrb[0].mxu0 %v1516
    %v1602 = vpop.f32.mrb[0].mxu0
    %v1603 = vadd.f32 0.0, %v1602
    %v1604 = vpop.f32.mrb[0].mxu0
    %v1605 = vpop.f32.mrb[0].mxu0
    %v1606 = vadd.f32 0.0, %v1605
    %v1607 = vpop.f32.mrb[0].mxu0
    %1608 = vmatprep.mubr.bf16.mxu0 0
    %1609 = vmatmul.mubr.bf16.gmra.mrb[0].mxu0 %v1519
    %v1610 = vpop.f32.mrb[0].mxu0
    %v1611 = vadd.f32 0.0, %v1610
    %v1612 = vpop.f32.mrb[0].mxu0
    %v1613 = vpop.f32.mrb[0].mxu0
    %v1614 = vadd.f32 0.0, %v1613
    %v1615 = vpop.f32.mrb[0].mxu0
    %1616 = vmatprep.mubr.bf16.mxu0 0
    %1617 = vmatmul.mubr.bf16.gmra.mrb[0].mxu0 %v1522
    %v1618 = vpop.f32.mrb[0].mxu0
    %v1619 = vadd.f32 0.0, %v1618
    %v1620 = vpop.f32.mrb[0].mxu0
    %v1621 = vpop.f32.mrb[0].mxu0
    %v1622 = vadd.f32 0.0, %v1621
    %v1623 = vpop.f32.mrb[0].mxu0
    %1624 = vmatprep.mubr.bf16.mxu0 0
    %1625 = vmatmul.mubr.bf16.gmra.mrb[0].mxu0 %v1525
    %v1626 = vpop.f32.mrb[0].mxu0
    %v1627 = vadd.f32 0.0, %v1626
    %v1628 = vpop.f32.mrb[0].mxu0
    %v1629 = vpop.f32.mrb[0].mxu0
    %v1630 = vadd.f32 0.0, %v1629
    %v1631 = vpop.f32.mrb[0].mxu0
    %1632 = vmatprep.mubr.bf16.mxu0 0
    %1633 = vmatmul.mubr.bf16.gmra.mrb[0].mxu0 %v1528
    %v1634 = vpop.f32.mrb[0].mxu0
    %v1635 = vadd.f32 0.0, %v1634
    %v1636 = vpop.f32.mrb[0].mxu0
    %v1637 = vpop.f32.mrb[0].mxu0
    %v1638 = vadd.f32 0.0, %v1637
    %v1639 = vpop.f32.mrb[0].mxu0
    %1640 = vmatprep.mubr.bf16.mxu0 0
    %1641 = vmatmul.mubr.bf16.gmra.mrb[0].mxu0 %v1531
    %v1642 = vpop.f32.mrb[0].mxu0
    %v1643 = vadd.f32 0.0, %v1642
    %v1644 = vpop.f32.mrb[0].mxu0
    %v1645 = vpop.f32.mrb[0].mxu0
    %v1646 = vadd.f32 0.0, %v1645
    %v1647 = vpop.f32.mrb[0].mxu0
    %1648 = vmatprep.mubr.bf16.mxu0 0
    %1649 = vmatmul.mubr.bf16.gmra.mrb[0].mxu0 %v1534
    %v1650 = vpop.f32.mrb[0].mxu0
    %v1651 = vadd.f32 0.0, %v1650
    %v1652 = vpop.f32.mrb[0].mxu0
    %v1653 = vpop.f32.mrb[0].mxu0
    %v1654 = vadd.f32 0.0, %v1653
    %v1655 = vpop.f32.mrb[0].mxu0
    %1656 = vdwg.mxu0
    %v1657 = vmul.f32 %v1595, 0.35355338
    %v1658 = vmul.f32 %v1598, 0.35355338
    %v1659 = vmul.f32 %v1603, 0.35355338
    %v1660 = vmul.f32 %v1606, 0.35355338
    %v1661 = vmul.f32 %v1611, 0.35355338
    %v1662 = vmul.f32 %v1614, 0.35355338
    %v1663 = vmul.f32 %v1619, 0.35355338
    %v1664 = vmul.f32 %v1622, 0.35355338
    %v1665 = vmul.f32 %v1627, 0.35355338
    %v1666 = vmul.f32 %v1630, 0.35355338
    %v1667 = vmul.f32 %v1635, 0.35355338
    %v1668 = vmul.f32 %v1638, 0.35355338
    %v1669 = vmul.f32 %v1643, 0.35355338
    %v1670 = vmul.f32 %v1646, 0.35355338
    %v1671 = vmul.f32 %v1651, 0.35355338
    %v1672 = vmul.f32 %v1654, 0.35355338
    %v1673 = vsel %vm1057, %v1010, %v72
    %v1674 = vsel %vm1057, %v1012, %v73
    %v1675 = vsel %vm1057, %v1014, %v74
    %v1676 = vsel %vm1057, %v1016, %v75
    %v1677 = vsel %vm1057, %v1018, %v76
    %v1678 = vsel %vm1057, %v1020, %v77
    %v1679 = vsel %vm1057, %v1022, %v78
    %v1680 = vsel %vm1057, %v1024, %v79
    %v1681 = vsel %vm1057, %v1026, %v80
    %v1682 = vsel %vm1057, %v1028, %v81
    %v1683 = vsel %vm1057, %v1030, %v82
    %v1684 = vsel %vm1057, %v1032, %v83
    %v1685 = vsel %vm1057, %v1034, %v84
    %v1686 = vsel %vm1057, %v1036, %v85
    %v1687 = vsel %vm1057, %v1038, %v86
    %v1688 = vsel %vm1057, %v1040, %v87
    %v1689 = vsel %vm88, %v1673, %v722
    %v1690 = vsel %vm88, %v1674, %v724
    %v1691 = vsel %vm88, %v1675, %v726
    %v1692 = vsel %vm88, %v1676, %v728
    %v1693 = vsel %vm88, %v1677, %v730
    %v1694 = vsel %vm88, %v1678, %v732
    %v1695 = vsel %vm88, %v1679, %v734
    %v1696 = vsel %vm88, %v1680, %v736
    %v1697 = vsel %vm88, %v1681, %v738
    %v1698 = vsel %vm88, %v1682, %v740
    %v1699 = vsel %vm88, %v1683, %v742
    %v1700 = vsel %vm88, %v1684, %v744
    %v1701 = vsel %vm88, %v1685, %v746
    %v1702 = vsel %vm88, %v1686, %v748
    %v1703 = vsel %vm88, %v1687, %v750
    %v1704 = vsel %vm88, %v1688, %v752
    %v1705 = vsel %vm1090, %v1689, %v770
    %v1706 = vsel %vm1090, %v1690, %v772
    %v1707 = vsel %vm1090, %v1691, %v774
    %v1708 = vsel %vm1090, %v1692, %v776
    %v1709 = vsel %vm1090, %v1693, %v778
    %v1710 = vsel %vm1090, %v1694, %v780
    %v1711 = vsel %vm1090, %v1695, %v782
    %v1712 = vsel %vm1090, %v1696, %v784
    %v1713 = vsel %vm1090, %v1697, %v786
    %v1714 = vsel %vm1090, %v1698, %v788
    %v1715 = vsel %vm1090, %v1699, %v790
    %v1716 = vsel %vm1090, %v1700, %v792
    %v1717 = vsel %vm1090, %v1701, %v794
    %v1718 = vsel %vm1090, %v1702, %v796
    %v1719 = vsel %vm1090, %v1703, %v798
    %v1720 = vsel %vm1090, %v1704, %v800
    %v1721 = vsel %vm1107, %v1705, %v818
    %v1722 = vsel %vm1107, %v1706, %v820
    %v1723 = vsel %vm1107, %v1707, %v822
    %v1724 = vsel %vm1107, %v1708, %v824
    %v1725 = vsel %vm1107, %v1709, %v826
    %v1726 = vsel %vm1107, %v1710, %v828
    %v1727 = vsel %vm1107, %v1711, %v830
    %v1728 = vsel %vm1107, %v1712, %v832
    %v1729 = vsel %vm1107, %v1713, %v834
    %v1730 = vsel %vm1107, %v1714, %v836
    %v1731 = vsel %vm1107, %v1715, %v838
    %v1732 = vsel %vm1107, %v1716, %v840
    %v1733 = vsel %vm1107, %v1717, %v842
    %v1734 = vsel %vm1107, %v1718, %v844
    %v1735 = vsel %vm1107, %v1719, %v846
    %v1736 = vsel %vm1107, %v1720, %v848
    %v1737 = vsel %vm1124, %v1721, %v866
    %v1738 = vsel %vm1124, %v1722, %v868
    %v1739 = vsel %vm1124, %v1723, %v870
    %v1740 = vsel %vm1124, %v1724, %v872
    %v1741 = vsel %vm1124, %v1725, %v874
    %v1742 = vsel %vm1124, %v1726, %v876
    %v1743 = vsel %vm1124, %v1727, %v878
    %v1744 = vsel %vm1124, %v1728, %v880
    %v1745 = vsel %vm1124, %v1729, %v882
    %v1746 = vsel %vm1124, %v1730, %v884
    %v1747 = vsel %vm1124, %v1731, %v886
    %v1748 = vsel %vm1124, %v1732, %v888
    %v1749 = vsel %vm1124, %v1733, %v890
    %v1750 = vsel %vm1124, %v1734, %v892
    %v1751 = vsel %vm1124, %v1735, %v894
    %v1752 = vsel %vm1124, %v1736, %v896
    %v1753 = vsel %vm1141, %v1737, %v914
    %v1754 = vsel %vm1141, %v1738, %v916
    %v1755 = vsel %vm1141, %v1739, %v918
    %v1756 = vsel %vm1141, %v1740, %v920
    %v1757 = vsel %vm1141, %v1741, %v922
    %v1758 = vsel %vm1141, %v1742, %v924
    %v1759 = vsel %vm1141, %v1743, %v926
    %v1760 = vsel %vm1141, %v1744, %v928
    %v1761 = vsel %vm1141, %v1745, %v930
    %v1762 = vsel %vm1141, %v1746, %v932
    %v1763 = vsel %vm1141, %v1747, %v934
    %v1764 = vsel %vm1141, %v1748, %v936
    %v1765 = vsel %vm1141, %v1749, %v938
    %v1766 = vsel %vm1141, %v1750, %v940
    %v1767 = vsel %vm1141, %v1751, %v942
    %v1768 = vsel %vm1141, %v1752, %v944
    %v1769 = vsel %vm1158, %v1753, %v962
    %v1770 = vsel %vm1158, %v1754, %v964
    %v1771 = vsel %vm1158, %v1755, %v966
    %v1772 = vsel %vm1158, %v1756, %v968
    %v1773 = vsel %vm1158, %v1757, %v970
    %v1774 = vsel %vm1158, %v1758, %v972
    %v1775 = vsel %vm1158, %v1759, %v974
    %v1776 = vsel %vm1158, %v1760, %v976
    %v1777 = vsel %vm1158, %v1761, %v978
    %v1778 = vsel %vm1158, %v1762, %v980
    %v1779 = vsel %vm1158, %v1763, %v982
    %v1780 = vsel %vm1158, %v1764, %v984
    %v1781 = vsel %vm1158, %v1765, %v986
    %v1782 = vsel %vm1158, %v1766, %v988
    %v1783 = vsel %vm1158, %v1767, %v990
    %v1784 = vsel %vm1158, %v1768, %v992
    %v1785 = vadd.f32 %v1657, %v1769
    %v1786 = vadd.f32 %v1658, %v1770
    %v1787 = vadd.f32 %v1659, %v1771
    %v1788 = vadd.f32 %v1660, %v1772
    %v1789 = vadd.f32 %v1661, %v1773
    %v1790 = vadd.f32 %v1662, %v1774
    %v1791 = vadd.f32 %v1663, %v1775
    %v1792 = vadd.f32 %v1664, %v1776
    %v1793 = vadd.f32 %v1665, %v1777
    %v1794 = vadd.f32 %v1666, %v1778
    %v1795 = vadd.f32 %v1667, %v1779
    %v1796 = vadd.f32 %v1668, %v1780
    %v1797 = vadd.f32 %v1669, %v1781
    %v1798 = vadd.f32 %v1670, %v1782
    %v1799 = vadd.f32 %v1671, %v1783
    %v1800 = vadd.f32 %v1672, %v1784
    %v1801 = vadd.f32 %v1785, %v47
    %v1802 = vadd.f32 %v1786, %v48
    %v1803 = vadd.f32 %v1787, %v49
    %v1804 = vadd.f32 %v1788, %v50
    %v1805 = vadd.f32 %v1789, %v51
    %v1806 = vadd.f32 %v1790, %v52
    %v1807 = vadd.f32 %v1791, %v53
    %v1808 = vadd.f32 %v1792, %v54
    %v1809 = vadd.f32 %v1793, %v55
    %v1810 = vadd.f32 %v1794, %v56
    %v1811 = vadd.f32 %v1795, %v57
    %v1812 = vadd.f32 %v1796, %v58
    %v1813 = vadd.f32 %v1797, %v59
    %v1814 = vadd.f32 %v1798, %v60
    %v1815 = vadd.f32 %v1799, %v61
    %v1816 = vadd.f32 %v1800, %v62
    %1817 = vmax.xlane.f32.xlu0 %v1801
    %v1818 = vpop.xlane.xlu0 %1817
    %1819 = vmax.xlane.f32.xlu0 %v1802
    %v1820 = vpop.xlane.xlu0 %1819
    %1821 = vmax.xlane.f32.xlu0 %v1803
    %v1822 = vpop.xlane.xlu0 %1821
    %1823 = vmax.xlane.f32.xlu0 %v1804
    %v1824 = vpop.xlane.xlu0 %1823
    %1825 = vmax.xlane.f32.xlu0 %v1805
    %v1826 = vpop.xlane.xlu0 %1825
    %1827 = vmax.xlane.f32.xlu0 %v1806
    %v1828 = vpop.xlane.xlu0 %1827
    %1829 = vmax.xlane.f32.xlu0 %v1807
    %v1830 = vpop.xlane.xlu0 %1829
    %1831 = vmax.xlane.f32.xlu0 %v1808
    %v1832 = vpop.xlane.xlu0 %1831
    %1833 = vmax.xlane.f32.xlu0 %v1809
    %v1834 = vpop.xlane.xlu0 %1833
    %1835 = vmax.xlane.f32.xlu0 %v1810
    %v1836 = vpop.xlane.xlu0 %1835
    %1837 = vmax.xlane.f32.xlu0 %v1811
    %v1838 = vpop.xlane.xlu0 %1837
    %1839 = vmax.xlane.f32.xlu0 %v1812
    %v1840 = vpop.xlane.xlu0 %1839
    %1841 = vmax.xlane.f32.xlu0 %v1813
    %v1842 = vpop.xlane.xlu0 %1841
    %1843 = vmax.xlane.f32.xlu0 %v1814
    %v1844 = vpop.xlane.xlu0 %1843
    %1845 = vmax.xlane.f32.xlu0 %v1815
    %v1846 = vpop.xlane.xlu0 %1845
    %1847 = vmax.xlane.f32.xlu0 %v1816
    %v1848 = vpop.xlane.xlu0 %1847
    %v1849 = vsub.f32 %v1801, %v1818
    %v1850 = vsub.f32 %v1802, %v1820
    %v1851 = vsub.f32 %v1803, %v1822
    %v1852 = vsub.f32 %v1804, %v1824
    %v1853 = vsub.f32 %v1805, %v1826
    %v1854 = vsub.f32 %v1806, %v1828
    %v1855 = vsub.f32 %v1807, %v1830
    %v1856 = vsub.f32 %v1808, %v1832
    %v1857 = vsub.f32 %v1809, %v1834
    %v1858 = vsub.f32 %v1810, %v1836
    %v1859 = vsub.f32 %v1811, %v1838
    %v1860 = vsub.f32 %v1812, %v1840
    %v1861 = vsub.f32 %v1813, %v1842
    %v1862 = vsub.f32 %v1814, %v1844
    %v1863 = vsub.f32 %v1815, %v1846
    %v1864 = vsub.f32 %v1816, %v1848
    %v1865 = vmul.f32 %v1849, 1.442695
    %v1866 = vpow.pop %v1865
    %v1867 = vmul.f32 %v1850, 1.442695
    %v1868 = vpow.pop %v1867
    %v1869 = vmul.f32 %v1851, 1.442695
    %v1870 = vpow.pop %v1869
    %v1871 = vmul.f32 %v1852, 1.442695
    %v1872 = vpow.pop %v1871
    %v1873 = vmul.f32 %v1853, 1.442695
    %v1874 = vpow.pop %v1873
    %v1875 = vmul.f32 %v1854, 1.442695
    %v1876 = vpow.pop %v1875
    %v1877 = vmul.f32 %v1855, 1.442695
    %v1878 = vpow.pop %v1877
    %v1879 = vmul.f32 %v1856, 1.442695
    %v1880 = vpow.pop %v1879
    %v1881 = vmul.f32 %v1857, 1.442695
    %v1882 = vpow.pop %v1881
    %v1883 = vmul.f32 %v1858, 1.442695
    %v1884 = vpow.pop %v1883
    %v1885 = vmul.f32 %v1859, 1.442695
    %v1886 = vpow.pop %v1885
    %v1887 = vmul.f32 %v1860, 1.442695
    %v1888 = vpow.pop %v1887
    %v1889 = vmul.f32 %v1861, 1.442695
    %v1890 = vpow.pop %v1889
    %v1891 = vmul.f32 %v1862, 1.442695
    %v1892 = vpow.pop %v1891
    %v1893 = vmul.f32 %v1863, 1.442695
    %v1894 = vpow.pop %v1893
    %v1895 = vmul.f32 %v1864, 1.442695
    %v1896 = vpow.pop %v1895
    %1897 = vadd.xlane.f32.xlu0 %v1866
    %v1898 = vpop.xlane.xlu0 %1897
    %1899 = vadd.xlane.f32.xlu0 %v1868
    %v1900 = vpop.xlane.xlu0 %1899
    %1901 = vadd.xlane.f32.xlu0 %v1870
    %v1902 = vpop.xlane.xlu0 %1901
    %1903 = vadd.xlane.f32.xlu0 %v1872
    %v1904 = vpop.xlane.xlu0 %1903
    %1905 = vadd.xlane.f32.xlu0 %v1874
    %v1906 = vpop.xlane.xlu0 %1905
    %1907 = vadd.xlane.f32.xlu0 %v1876
    %v1908 = vpop.xlane.xlu0 %1907
    %1909 = vadd.xlane.f32.xlu0 %v1878
    %v1910 = vpop.xlane.xlu0 %1909
    %1911 = vadd.xlane.f32.xlu0 %v1880
    %v1912 = vpop.xlane.xlu0 %1911
    %1913 = vadd.xlane.f32.xlu0 %v1882
    %v1914 = vpop.xlane.xlu0 %1913
    %1915 = vadd.xlane.f32.xlu0 %v1884
    %v1916 = vpop.xlane.xlu0 %1915
    %1917 = vadd.xlane.f32.xlu0 %v1886
    %v1918 = vpop.xlane.xlu0 %1917
    %1919 = vadd.xlane.f32.xlu0 %v1888
    %v1920 = vpop.xlane.xlu0 %1919
    %1921 = vadd.xlane.f32.xlu0 %v1890
    %v1922 = vpop.xlane.xlu0 %1921
    %1923 = vadd.xlane.f32.xlu0 %v1892
    %v1924 = vpop.xlane.xlu0 %1923
    %1925 = vadd.xlane.f32.xlu0 %v1894
    %v1926 = vpop.xlane.xlu0 %1925
    %1927 = vadd.xlane.f32.xlu0 %v1896
    %v1928 = vpop.xlane.xlu0 %1927
    %v1929 = vrcp.pop %v1898
    %v1930 = vrcp.pop %v1900
    %v1931 = vrcp.pop %v1902
    %v1932 = vrcp.pop %v1904
    %v1933 = vrcp.pop %v1906
    %v1934 = vrcp.pop %v1908
    %v1935 = vrcp.pop %v1910
    %v1936 = vrcp.pop %v1912
    %v1937 = vrcp.pop %v1914
    %v1938 = vrcp.pop %v1916
    %v1939 = vrcp.pop %v1918
    %v1940 = vrcp.pop %v1920
    %v1941 = vrcp.pop %v1922
    %v1942 = vrcp.pop %v1924
    %v1943 = vrcp.pop %v1926
    %v1944 = vrcp.pop %v1928
    %v1945 = vmul.f32 %v1866, %v1929
    %v1946 = vmul.f32 %v1868, %v1930
    %v1947 = vmul.f32 %v1870, %v1931
    %v1948 = vmul.f32 %v1872, %v1932
    %v1949 = vmul.f32 %v1874, %v1933
    %v1950 = vmul.f32 %v1876, %v1934
    %v1951 = vmul.f32 %v1878, %v1935
    %v1952 = vmul.f32 %v1880, %v1936
    %v1953 = vmul.f32 %v1882, %v1937
    %v1954 = vmul.f32 %v1884, %v1938
    %v1955 = vmul.f32 %v1886, %v1939
    %v1956 = vmul.f32 %v1888, %v1940
    %v1957 = vmul.f32 %v1890, %v1941
    %v1958 = vmul.f32 %v1892, %v1942
    %v1959 = vmul.f32 %v1894, %v1943
    %v1960 = vmul.f32 %v1896, %v1944
    %v1961 = vpack.c.bf16 %v1946, %v1945
    %v1962 = vpack.c.bf16 %v1948, %v1947
    %v1963 = vpack.c.bf16 %v1950, %v1949
    %v1964 = vpack.c.bf16 %v1952, %v1951
    %v1965 = vpack.c.bf16 %v1954, %v1953
    %v1966 = vpack.c.bf16 %v1956, %v1955
    %v1967 = vpack.c.bf16 %v1958, %v1957
    %v1968 = vpack.c.bf16 %v1960, %v1959
    %1969 = vrot.lane.b32.xlu0 %v511, 56
    %v1970 = vpop.permute.xlu0 %1969
    %1971 = vrot.lane.b32.xlu0 %v512, 56
    %v1972 = vpop.permute.xlu0 %1971
    %1973 = vrot.lane.b32.xlu0 %v513, 56
    %v1974 = vpop.permute.xlu0 %1973
    %1975 = vrot.lane.b32.xlu0 %v514, 56
    %v1976 = vpop.permute.xlu0 %1975
    %1977 = vrot.lane.b32.xlu0 %v515, 56
    %v1978 = vpop.permute.xlu0 %1977
    %1979 = vrot.lane.b32.xlu0 %v516, 56
    %v1980 = vpop.permute.xlu0 %1979
    %1981 = vrot.lane.b32.xlu0 %v517, 56
    %v1982 = vpop.permute.xlu0 %1981
    %1983 = vrot.lane.b32.xlu0 %v518, 56
    %v1984 = vpop.permute.xlu0 %1983
    %1993 = vmatprep.subr.bf16.mxu0 0
    %1994 = vmatpush1.bf16.msra.mxu0 %v1970
    %1995 = vmatprep.subr.bf16.mxu0 0
    %1996 = vmatpush1.bf16.msra.mxu0 %v1972
    %1997 = vmatprep.subr.bf16.mxu0 0
    %1998 = vmatpush1.bf16.msra.mxu0 %v1974
    %1999 = vmatprep.subr.bf16.mxu0 0
    %2000 = vmatpush1.bf16.msra.mxu0 %v1976
    %2001 = vmatprep.subr.bf16.mxu0 0
    %2002 = vmatpush1.bf16.msra.mxu0 %v1978
    %2003 = vmatprep.subr.bf16.mxu0 0
    %2004 = vmatpush1.bf16.msra.mxu0 %v1980
    %2005 = vmatprep.subr.bf16.mxu0 0
    %2006 = vmatpush1.bf16.msra.mxu0 %v1982
    %2007 = vmatprep.subr.bf16.mxu0 0
    %2008 = vmatpush1.bf16.msra.mxu0 %v1984
    %2009 = vmatprep.subr.bf16.mxu0 0
    %2010 = vmatpush1.bf16.msra.mxu0 0
    %2011 = vmatprep.subr.bf16.mxu0 0
    %2012 = vmatpush1.bf16.msra.mxu0 0
    %2013 = vmatprep.subr.bf16.mxu0 0
    %2014 = vmatpush1.bf16.msra.mxu0 0
    %2015 = vmatprep.subr.bf16.mxu0 0
    %2016 = vmatpush1.bf16.msra.mxu0 0
    %2017 = vmatprep.subr.bf16.mxu0 0
    %2018 = vmatpush1.bf16.msra.mxu0 0
    %2019 = vmatprep.subr.bf16.mxu0 0
    %2020 = vmatpush1.bf16.msra.mxu0 0
    %2021 = vmatprep.subr.bf16.mxu0 0
    %2022 = vmatpush1.bf16.msra.mxu0 0
    %2023 = vmatprep.subr.bf16.mxu0 0
    %2024 = vmatpush1.bf16.msra.mxu0 0
    %2025 = vmatprep.mubr.bf16.mxu0 0
    %2026 = vmatmul.mubr.bf16.gmra.mrb[0].mxu0 %v1961
    %v2027 = vpop.f32.mrb[0].mxu0
    %v2028 = vadd.f32 0.0, %v2027
    %v2029 = vpop.f32.mrb[0].mxu0
    %v2030 = vpop.f32.mrb[0].mxu0
    %v2031 = vadd.f32 0.0, %v2030
    %v2032 = vpop.f32.mrb[0].mxu0
    %2033 = vmatprep.mubr.bf16.mxu0 0
    %2034 = vmatmul.mubr.bf16.gmra.mrb[0].mxu0 %v1962
    %v2035 = vpop.f32.mrb[0].mxu0
    %v2036 = vadd.f32 0.0, %v2035
    %v2037 = vpop.f32.mrb[0].mxu0
    %v2038 = vpop.f32.mrb[0].mxu0
    %v2039 = vadd.f32 0.0, %v2038
    %v2040 = vpop.f32.mrb[0].mxu0
    %2041 = vmatprep.mubr.bf16.mxu0 0
    %2042 = vmatmul.mubr.bf16.gmra.mrb[0].mxu0 %v1963
    %v2043 = vpop.f32.mrb[0].mxu0
    %v2044 = vadd.f32 0.0, %v2043
    %v2045 = vpop.f32.mrb[0].mxu0
    %v2046 = vpop.f32.mrb[0].mxu0
    %v2047 = vadd.f32 0.0, %v2046
    %v2048 = vpop.f32.mrb[0].mxu0
    %2049 = vmatprep.mubr.bf16.mxu0 0
    %2050 = vmatmul.mubr.bf16.gmra.mrb[0].mxu0 %v1964
    %v2051 = vpop.f32.mrb[0].mxu0
    %v2052 = vadd.f32 0.0, %v2051
    %v2053 = vpop.f32.mrb[0].mxu0
    %v2054 = vpop.f32.mrb[0].mxu0
    %v2055 = vadd.f32 0.0, %v2054
    %v2056 = vpop.f32.mrb[0].mxu0
    %2057 = vmatprep.mubr.bf16.mxu0 0
    %2058 = vmatmul.mubr.bf16.gmra.mrb[0].mxu0 %v1965
    %v2059 = vpop.f32.mrb[0].mxu0
    %v2060 = vadd.f32 0.0, %v2059
    %v2061 = vpop.f32.mrb[0].mxu0
    %v2062 = vpop.f32.mrb[0].mxu0
    %v2063 = vadd.f32 0.0, %v2062
    %v2064 = vpop.f32.mrb[0].mxu0
    %2065 = vmatprep.mubr.bf16.mxu0 0
    %2066 = vmatmul.mubr.bf16.gmra.mrb[0].mxu0 %v1966
    %v2067 = vpop.f32.mrb[0].mxu0
    %v2068 = vadd.f32 0.0, %v2067
    %v2069 = vpop.f32.mrb[0].mxu0
    %v2070 = vpop.f32.mrb[0].mxu0
    %v2071 = vadd.f32 0.0, %v2070
    %v2072 = vpop.f32.mrb[0].mxu0
    %2073 = vmatprep.mubr.bf16.mxu0 0
    %2074 = vmatmul.mubr.bf16.gmra.mrb[0].mxu0 %v1967
    %v2075 = vpop.f32.mrb[0].mxu0
    %v2076 = vadd.f32 0.0, %v2075
    %v2077 = vpop.f32.mrb[0].mxu0
    %v2078 = vpop.f32.mrb[0].mxu0
    %v2079 = vadd.f32 0.0, %v2078
    %v2080 = vpop.f32.mrb[0].mxu0
    %2081 = vmatprep.mubr.bf16.mxu0 0
    %2082 = vmatmul.mubr.bf16.gmra.mrb[0].mxu0 %v1968
    %v2083 = vpop.f32.mrb[0].mxu0
    %v2084 = vadd.f32 0.0, %v2083
    %v2085 = vpop.f32.mrb[0].mxu0
    %v2086 = vpop.f32.mrb[0].mxu0
    %v2087 = vadd.f32 0.0, %v2086
    %v2088 = vpop.f32.mrb[0].mxu0
    %2089 = vdwg.mxu0
    %2090 = vrot.lane.b32.xlu0 %v511, 112
    %v2091 = vpop.permute.xlu0 %2090
    %2092 = vrot.lane.b32.xlu0 %v512, 112
    %v2093 = vpop.permute.xlu0 %2092
    %2094 = vrot.lane.b32.xlu0 %v513, 112
    %v2095 = vpop.permute.xlu0 %2094
    %2096 = vrot.lane.b32.xlu0 %v514, 112
    %v2097 = vpop.permute.xlu0 %2096
    %2098 = vrot.lane.b32.xlu0 %v515, 112
    %v2099 = vpop.permute.xlu0 %2098
    %2100 = vrot.lane.b32.xlu0 %v516, 112
    %v2101 = vpop.permute.xlu0 %2100
    %2102 = vrot.lane.b32.xlu0 %v517, 112
    %v2103 = vpop.permute.xlu0 %2102
    %2104 = vrot.lane.b32.xlu0 %v518, 112
    %v2105 = vpop.permute.xlu0 %2104
    %2106 = vrot.lane.b32.xlu0 %v511, 80
    %v2107 = vpop.permute.xlu0 %2106
    %2108 = vrot.lane.b32.xlu0 %v512, 80
    %v2109 = vpop.permute.xlu0 %2108
    %2110 = vrot.lane.b32.xlu0 %v513, 80
    %v2111 = vpop.permute.xlu0 %2110
    %2112 = vrot.lane.b32.xlu0 %v514, 80
    %v2113 = vpop.permute.xlu0 %2112
    %2114 = vrot.lane.b32.xlu0 %v515, 80
    %v2115 = vpop.permute.xlu0 %2114
    %2116 = vrot.lane.b32.xlu0 %v516, 80
    %v2117 = vpop.permute.xlu0 %2116
    %2118 = vrot.lane.b32.xlu0 %v517, 80
    %v2119 = vpop.permute.xlu0 %2118
    %2120 = vrot.lane.b32.xlu0 %v518, 80
    %v2121 = vpop.permute.xlu0 %2120
    %v2123 = vsel %vm543, %v2091, 0
    %v2126 = vsel %vm543, %v2093, 0
    %v2129 = vsel %vm543, %v2095, 0
    %v2132 = vsel %vm543, %v2097, 0
    %v2135 = vsel %vm543, %v2099, 0
    %v2138 = vsel %vm543, %v2101, 0
    %v2141 = vsel %vm543, %v2103, 0
    %v2144 = vsel %vm543, %v2105, 0
    %v2147 = vsel %vm543, %v2107, 0
    %v2150 = vsel %vm543, %v2109, 0
    %v2153 = vsel %vm543, %v2111, 0
    %v2156 = vsel %vm543, %v2113, 0
    %v2159 = vsel %vm543, %v2115, 0
    %v2162 = vsel %vm543, %v2117, 0
    %v2165 = vsel %vm543, %v2119, 0
    %v2168 = vsel %vm543, %v2121, 0
    %2170 = vmatprep.subr.bf16.mxu0 0
    %2171 = vmatpush1.bf16.xpose.msra.mxu0 %v2147
    %2172 = vmatprep.subr.bf16.mxu0 0
    %2173 = vmatpush1.bf16.xpose.msra.mxu0 %v2150
    %2174 = vmatprep.subr.bf16.mxu0 0
    %2175 = vmatpush1.bf16.xpose.msra.mxu0 %v2153
    %2176 = vmatprep.subr.bf16.mxu0 0
    %2177 = vmatpush1.bf16.xpose.msra.mxu0 %v2156
    %2178 = vmatprep.subr.bf16.mxu0 0
    %2179 = vmatpush1.bf16.xpose.msra.mxu0 %v2159
    %2180 = vmatprep.subr.bf16.mxu0 0
    %2181 = vmatpush1.bf16.xpose.msra.mxu0 %v2162
    %2182 = vmatprep.subr.bf16.mxu0 0
    %2183 = vmatpush1.bf16.xpose.msra.mxu0 %v2165
    %2184 = vmatprep.subr.bf16.mxu0 0
    %2185 = vmatpush1.bf16.xpose.msra.mxu0 %v2168
    %2186 = vmatprep.subr.bf16.mxu0 0
    %2187 = vmatpush1.bf16.xpose.msra.mxu0 0
    %2188 = vmatprep.subr.bf16.mxu0 0
    %2189 = vmatpush1.bf16.xpose.msra.mxu0 0
    %2190 = vmatprep.subr.bf16.mxu0 0
    %2191 = vmatpush1.bf16.xpose.msra.mxu0 0
    %2192 = vmatprep.subr.bf16.mxu0 0
    %2193 = vmatpush1.bf16.xpose.msra.mxu0 0
    %2194 = vmatprep.subr.bf16.mxu0 0
    %2195 = vmatpush1.bf16.xpose.msra.mxu0 0
    %2196 = vmatprep.subr.bf16.mxu0 0
    %2197 = vmatpush1.bf16.xpose.msra.mxu0 0
    %2198 = vmatprep.subr.bf16.mxu0 0
    %2199 = vmatpush1.bf16.xpose.msra.mxu0 0
    %2200 = vmatprep.subr.bf16.mxu0 0
    %2201 = vmatpush1.bf16.xpose.msra.mxu0 0
    %2202 = vmatprep.mubr.bf16.mxu0 0
    %2203 = vmatmul.mubr.bf16.gmra.mrb[0].mxu0 %v2123
    %v2204 = vpop.f32.mrb[0].mxu0
    %v2205 = vadd.f32 0.0, %v2204
    %v2206 = vpop.f32.mrb[0].mxu0
    %v2207 = vpop.f32.mrb[0].mxu0
    %v2208 = vadd.f32 0.0, %v2207
    %v2209 = vpop.f32.mrb[0].mxu0
    %2210 = vmatprep.mubr.bf16.mxu0 0
    %2211 = vmatmul.mubr.bf16.gmra.mrb[0].mxu0 %v2126
    %v2212 = vpop.f32.mrb[0].mxu0
    %v2213 = vadd.f32 0.0, %v2212
    %v2214 = vpop.f32.mrb[0].mxu0
    %v2215 = vpop.f32.mrb[0].mxu0
    %v2216 = vadd.f32 0.0, %v2215
    %v2217 = vpop.f32.mrb[0].mxu0
    %2218 = vmatprep.mubr.bf16.mxu0 0
    %2219 = vmatmul.mubr.bf16.gmra.mrb[0].mxu0 %v2129
    %v2220 = vpop.f32.mrb[0].mxu0
    %v2221 = vadd.f32 0.0, %v2220
    %v2222 = vpop.f32.mrb[0].mxu0
    %v2223 = vpop.f32.mrb[0].mxu0
    %v2224 = vadd.f32 0.0, %v2223
    %v2225 = vpop.f32.mrb[0].mxu0
    %2226 = vmatprep.mubr.bf16.mxu0 0
    %2227 = vmatmul.mubr.bf16.gmra.mrb[0].mxu0 %v2132
    %v2228 = vpop.f32.mrb[0].mxu0
    %v2229 = vadd.f32 0.0, %v2228
    %v2230 = vpop.f32.mrb[0].mxu0
    %v2231 = vpop.f32.mrb[0].mxu0
    %v2232 = vadd.f32 0.0, %v2231
    %v2233 = vpop.f32.mrb[0].mxu0
    %2234 = vmatprep.mubr.bf16.mxu0 0
    %2235 = vmatmul.mubr.bf16.gmra.mrb[0].mxu0 %v2135
    %v2236 = vpop.f32.mrb[0].mxu0
    %v2237 = vadd.f32 0.0, %v2236
    %v2238 = vpop.f32.mrb[0].mxu0
    %v2239 = vpop.f32.mrb[0].mxu0
    %v2240 = vadd.f32 0.0, %v2239
    %v2241 = vpop.f32.mrb[0].mxu0
    %2242 = vmatprep.mubr.bf16.mxu0 0
    %2243 = vmatmul.mubr.bf16.gmra.mrb[0].mxu0 %v2138
    %v2244 = vpop.f32.mrb[0].mxu0
    %v2245 = vadd.f32 0.0, %v2244
    %v2246 = vpop.f32.mrb[0].mxu0
    %v2247 = vpop.f32.mrb[0].mxu0
    %v2248 = vadd.f32 0.0, %v2247
    %v2249 = vpop.f32.mrb[0].mxu0
    %2250 = vmatprep.mubr.bf16.mxu0 0
    %2251 = vmatmul.mubr.bf16.gmra.mrb[0].mxu0 %v2141
    %v2252 = vpop.f32.mrb[0].mxu0
    %v2253 = vadd.f32 0.0, %v2252
    %v2254 = vpop.f32.mrb[0].mxu0
    %v2255 = vpop.f32.mrb[0].mxu0
    %v2256 = vadd.f32 0.0, %v2255
    %v2257 = vpop.f32.mrb[0].mxu0
    %2258 = vmatprep.mubr.bf16.mxu0 0
    %2259 = vmatmul.mubr.bf16.gmra.mrb[0].mxu0 %v2144
    %v2260 = vpop.f32.mrb[0].mxu0
    %v2261 = vadd.f32 0.0, %v2260
    %v2262 = vpop.f32.mrb[0].mxu0
    %v2263 = vpop.f32.mrb[0].mxu0
    %v2264 = vadd.f32 0.0, %v2263
    %v2265 = vpop.f32.mrb[0].mxu0
    %2266 = vdwg.mxu0
    %v2267 = vmul.f32 %v2205, 0.35355338
    %v2268 = vmul.f32 %v2208, 0.35355338
    %v2269 = vmul.f32 %v2213, 0.35355338
    %v2270 = vmul.f32 %v2216, 0.35355338
    %v2271 = vmul.f32 %v2221, 0.35355338
    %v2272 = vmul.f32 %v2224, 0.35355338
    %v2273 = vmul.f32 %v2229, 0.35355338
    %v2274 = vmul.f32 %v2232, 0.35355338
    %v2275 = vmul.f32 %v2237, 0.35355338
    %v2276 = vmul.f32 %v2240, 0.35355338
    %v2277 = vmul.f32 %v2245, 0.35355338
    %v2278 = vmul.f32 %v2248, 0.35355338
    %v2279 = vmul.f32 %v2253, 0.35355338
    %v2280 = vmul.f32 %v2256, 0.35355338
    %v2281 = vmul.f32 %v2261, 0.35355338
    %v2282 = vmul.f32 %v2264, 0.35355338
    %v2283 = vsel %vm1057, %v962, %v1010
    %v2284 = vsel %vm1057, %v964, %v1012
    %v2285 = vsel %vm1057, %v966, %v1014
    %v2286 = vsel %vm1057, %v968, %v1016
    %v2287 = vsel %vm1057, %v970, %v1018
    %v2288 = vsel %vm1057, %v972, %v1020
    %v2289 = vsel %vm1057, %v974, %v1022
    %v2290 = vsel %vm1057, %v976, %v1024
    %v2291 = vsel %vm1057, %v978, %v1026
    %v2292 = vsel %vm1057, %v980, %v1028
    %v2293 = vsel %vm1057, %v982, %v1030
    %v2294 = vsel %vm1057, %v984, %v1032
    %v2295 = vsel %vm1057, %v986, %v1034
    %v2296 = vsel %vm1057, %v988, %v1036
    %v2297 = vsel %vm1057, %v990, %v1038
    %v2298 = vsel %vm1057, %v992, %v1040
    %v2299 = vsel %vm88, %v2283, %v72
    %v2300 = vsel %vm88, %v2284, %v73
    %v2301 = vsel %vm88, %v2285, %v74
    %v2302 = vsel %vm88, %v2286, %v75
    %v2303 = vsel %vm88, %v2287, %v76
    %v2304 = vsel %vm88, %v2288, %v77
    %v2305 = vsel %vm88, %v2289, %v78
    %v2306 = vsel %vm88, %v2290, %v79
    %v2307 = vsel %vm88, %v2291, %v80
    %v2308 = vsel %vm88, %v2292, %v81
    %v2309 = vsel %vm88, %v2293, %v82
    %v2310 = vsel %vm88, %v2294, %v83
    %v2311 = vsel %vm88, %v2295, %v84
    %v2312 = vsel %vm88, %v2296, %v85
    %v2313 = vsel %vm88, %v2297, %v86
    %v2314 = vsel %vm88, %v2298, %v87
    %v2315 = vsel %vm1090, %v2299, %v722
    %v2316 = vsel %vm1090, %v2300, %v724
    %v2317 = vsel %vm1090, %v2301, %v726
    %v2318 = vsel %vm1090, %v2302, %v728
    %v2319 = vsel %vm1090, %v2303, %v730
    %v2320 = vsel %vm1090, %v2304, %v732
    %v2321 = vsel %vm1090, %v2305, %v734
    %v2322 = vsel %vm1090, %v2306, %v736
    %v2323 = vsel %vm1090, %v2307, %v738
    %v2324 = vsel %vm1090, %v2308, %v740
    %v2325 = vsel %vm1090, %v2309, %v742
    %v2326 = vsel %vm1090, %v2310, %v744
    %v2327 = vsel %vm1090, %v2311, %v746
    %v2328 = vsel %vm1090, %v2312, %v748
    %v2329 = vsel %vm1090, %v2313, %v750
    %v2330 = vsel %vm1090, %v2314, %v752
    %v2331 = vsel %vm1107, %v2315, %v770
    %v2332 = vsel %vm1107, %v2316, %v772
    %v2333 = vsel %vm1107, %v2317, %v774
    %v2334 = vsel %vm1107, %v2318, %v776
    %v2335 = vsel %vm1107, %v2319, %v778
    %v2336 = vsel %vm1107, %v2320, %v780
    %v2337 = vsel %vm1107, %v2321, %v782
    %v2338 = vsel %vm1107, %v2322, %v784
    %v2339 = vsel %vm1107, %v2323, %v786
    %v2340 = vsel %vm1107, %v2324, %v788
    %v2341 = vsel %vm1107, %v2325, %v790
    %v2342 = vsel %vm1107, %v2326, %v792
    %v2343 = vsel %vm1107, %v2327, %v794
    %v2344 = vsel %vm1107, %v2328, %v796
    %v2345 = vsel %vm1107, %v2329, %v798
    %v2346 = vsel %vm1107, %v2330, %v800
    %v2347 = vsel %vm1124, %v2331, %v818
    %v2348 = vsel %vm1124, %v2332, %v820
    %v2349 = vsel %vm1124, %v2333, %v822
    %v2350 = vsel %vm1124, %v2334, %v824
    %v2351 = vsel %vm1124, %v2335, %v826
    %v2352 = vsel %vm1124, %v2336, %v828
    %v2353 = vsel %vm1124, %v2337, %v830
    %v2354 = vsel %vm1124, %v2338, %v832
    %v2355 = vsel %vm1124, %v2339, %v834
    %v2356 = vsel %vm1124, %v2340, %v836
    %v2357 = vsel %vm1124, %v2341, %v838
    %v2358 = vsel %vm1124, %v2342, %v840
    %v2359 = vsel %vm1124, %v2343, %v842
    %v2360 = vsel %vm1124, %v2344, %v844
    %v2361 = vsel %vm1124, %v2345, %v846
    %v2362 = vsel %vm1124, %v2346, %v848
    %v2363 = vsel %vm1141, %v2347, %v866
    %v2364 = vsel %vm1141, %v2348, %v868
    %v2365 = vsel %vm1141, %v2349, %v870
    %v2366 = vsel %vm1141, %v2350, %v872
    %v2367 = vsel %vm1141, %v2351, %v874
    %v2368 = vsel %vm1141, %v2352, %v876
    %v2369 = vsel %vm1141, %v2353, %v878
    %v2370 = vsel %vm1141, %v2354, %v880
    %v2371 = vsel %vm1141, %v2355, %v882
    %v2372 = vsel %vm1141, %v2356, %v884
    %v2373 = vsel %vm1141, %v2357, %v886
    %v2374 = vsel %vm1141, %v2358, %v888
    %v2375 = vsel %vm1141, %v2359, %v890
    %v2376 = vsel %vm1141, %v2360, %v892
    %v2377 = vsel %vm1141, %v2361, %v894
    %v2378 = vsel %vm1141, %v2362, %v896
    %v2379 = vsel %vm1158, %v2363, %v914
    %v2380 = vsel %vm1158, %v2364, %v916
    %v2381 = vsel %vm1158, %v2365, %v918
    %v2382 = vsel %vm1158, %v2366, %v920
    %v2383 = vsel %vm1158, %v2367, %v922
    %v2384 = vsel %vm1158, %v2368, %v924
    %v2385 = vsel %vm1158, %v2369, %v926
    %v2386 = vsel %vm1158, %v2370, %v928
    %v2387 = vsel %vm1158, %v2371, %v930
    %v2388 = vsel %vm1158, %v2372, %v932
    %v2389 = vsel %vm1158, %v2373, %v934
    %v2390 = vsel %vm1158, %v2374, %v936
    %v2391 = vsel %vm1158, %v2375, %v938
    %v2392 = vsel %vm1158, %v2376, %v940
    %v2393 = vsel %vm1158, %v2377, %v942
    %v2394 = vsel %vm1158, %v2378, %v944
    %v2395 = vadd.f32 %v2267, %v2379
    %v2396 = vadd.f32 %v2268, %v2380
    %v2397 = vadd.f32 %v2269, %v2381
    %v2398 = vadd.f32 %v2270, %v2382
    %v2399 = vadd.f32 %v2271, %v2383
    %v2400 = vadd.f32 %v2272, %v2384
    %v2401 = vadd.f32 %v2273, %v2385
    %v2402 = vadd.f32 %v2274, %v2386
    %v2403 = vadd.f32 %v2275, %v2387
    %v2404 = vadd.f32 %v2276, %v2388
    %v2405 = vadd.f32 %v2277, %v2389
    %v2406 = vadd.f32 %v2278, %v2390
    %v2407 = vadd.f32 %v2279, %v2391
    %v2408 = vadd.f32 %v2280, %v2392
    %v2409 = vadd.f32 %v2281, %v2393
    %v2410 = vadd.f32 %v2282, %v2394
    %v2411 = vadd.f32 %v2395, %v47
    %v2412 = vadd.f32 %v2396, %v48
    %v2413 = vadd.f32 %v2397, %v49
    %v2414 = vadd.f32 %v2398, %v50
    %v2415 = vadd.f32 %v2399, %v51
    %v2416 = vadd.f32 %v2400, %v52
    %v2417 = vadd.f32 %v2401, %v53
    %v2418 = vadd.f32 %v2402, %v54
    %v2419 = vadd.f32 %v2403, %v55
    %v2420 = vadd.f32 %v2404, %v56
    %v2421 = vadd.f32 %v2405, %v57
    %v2422 = vadd.f32 %v2406, %v58
    %v2423 = vadd.f32 %v2407, %v59
    %v2424 = vadd.f32 %v2408, %v60
    %v2425 = vadd.f32 %v2409, %v61
    %v2426 = vadd.f32 %v2410, %v62
    %2427 = vmax.xlane.f32.xlu0 %v2411
    %v2428 = vpop.xlane.xlu0 %2427
    %2429 = vmax.xlane.f32.xlu0 %v2412
    %v2430 = vpop.xlane.xlu0 %2429
    %2431 = vmax.xlane.f32.xlu0 %v2413
    %v2432 = vpop.xlane.xlu0 %2431
    %2433 = vmax.xlane.f32.xlu0 %v2414
    %v2434 = vpop.xlane.xlu0 %2433
    %2435 = vmax.xlane.f32.xlu0 %v2415
    %v2436 = vpop.xlane.xlu0 %2435
    %2437 = vmax.xlane.f32.xlu0 %v2416
    %v2438 = vpop.xlane.xlu0 %2437
    %2439 = vmax.xlane.f32.xlu0 %v2417
    %v2440 = vpop.xlane.xlu0 %2439
    %2441 = vmax.xlane.f32.xlu0 %v2418
    %v2442 = vpop.xlane.xlu0 %2441
    %2443 = vmax.xlane.f32.xlu0 %v2419
    %v2444 = vpop.xlane.xlu0 %2443
    %2445 = vmax.xlane.f32.xlu0 %v2420
    %v2446 = vpop.xlane.xlu0 %2445
    %2447 = vmax.xlane.f32.xlu0 %v2421
    %v2448 = vpop.xlane.xlu0 %2447
    %2449 = vmax.xlane.f32.xlu0 %v2422
    %v2450 = vpop.xlane.xlu0 %2449
    %2451 = vmax.xlane.f32.xlu0 %v2423
    %v2452 = vpop.xlane.xlu0 %2451
    %2453 = vmax.xlane.f32.xlu0 %v2424
    %v2454 = vpop.xlane.xlu0 %2453
    %2455 = vmax.xlane.f32.xlu0 %v2425
    %v2456 = vpop.xlane.xlu0 %2455
    %2457 = vmax.xlane.f32.xlu0 %v2426
    %v2458 = vpop.xlane.xlu0 %2457
    %v2459 = vsub.f32 %v2411, %v2428
    %v2460 = vsub.f32 %v2412, %v2430
    %v2461 = vsub.f32 %v2413, %v2432
    %v2462 = vsub.f32 %v2414, %v2434
    %v2463 = vsub.f32 %v2415, %v2436
    %v2464 = vsub.f32 %v2416, %v2438
    %v2465 = vsub.f32 %v2417, %v2440
    %v2466 = vsub.f32 %v2418, %v2442
    %v2467 = vsub.f32 %v2419, %v2444
    %v2468 = vsub.f32 %v2420, %v2446
    %v2469 = vsub.f32 %v2421, %v2448
    %v2470 = vsub.f32 %v2422, %v2450
    %v2471 = vsub.f32 %v2423, %v2452
    %v2472 = vsub.f32 %v2424, %v2454
    %v2473 = vsub.f32 %v2425, %v2456
    %v2474 = vsub.f32 %v2426, %v2458
    %v2475 = vmul.f32 %v2459, 1.442695
    %v2476 = vpow.pop %v2475
    %v2477 = vmul.f32 %v2460, 1.442695
    %v2478 = vpow.pop %v2477
    %v2479 = vmul.f32 %v2461, 1.442695
    %v2480 = vpow.pop %v2479
    %v2481 = vmul.f32 %v2462, 1.442695
    %v2482 = vpow.pop %v2481
    %v2483 = vmul.f32 %v2463, 1.442695
    %v2484 = vpow.pop %v2483
    %v2485 = vmul.f32 %v2464, 1.442695
    %v2486 = vpow.pop %v2485
    %v2487 = vmul.f32 %v2465, 1.442695
    %v2488 = vpow.pop %v2487
    %v2489 = vmul.f32 %v2466, 1.442695
    %v2490 = vpow.pop %v2489
    %v2491 = vmul.f32 %v2467, 1.442695
    %v2492 = vpow.pop %v2491
    %v2493 = vmul.f32 %v2468, 1.442695
    %v2494 = vpow.pop %v2493
    %v2495 = vmul.f32 %v2469, 1.442695
    %v2496 = vpow.pop %v2495
    %v2497 = vmul.f32 %v2470, 1.442695
    %v2498 = vpow.pop %v2497
    %v2499 = vmul.f32 %v2471, 1.442695
    %v2500 = vpow.pop %v2499
    %v2501 = vmul.f32 %v2472, 1.442695
    %v2502 = vpow.pop %v2501
    %v2503 = vmul.f32 %v2473, 1.442695
    %v2504 = vpow.pop %v2503
    %v2505 = vmul.f32 %v2474, 1.442695
    %v2506 = vpow.pop %v2505
    %2507 = vadd.xlane.f32.xlu0 %v2476
    %v2508 = vpop.xlane.xlu0 %2507
    %2509 = vadd.xlane.f32.xlu0 %v2478
    %v2510 = vpop.xlane.xlu0 %2509
    %2511 = vadd.xlane.f32.xlu0 %v2480
    %v2512 = vpop.xlane.xlu0 %2511
    %2513 = vadd.xlane.f32.xlu0 %v2482
    %v2514 = vpop.xlane.xlu0 %2513
    %2515 = vadd.xlane.f32.xlu0 %v2484
    %v2516 = vpop.xlane.xlu0 %2515
    %2517 = vadd.xlane.f32.xlu0 %v2486
    %v2518 = vpop.xlane.xlu0 %2517
    %2519 = vadd.xlane.f32.xlu0 %v2488
    %v2520 = vpop.xlane.xlu0 %2519
    %2521 = vadd.xlane.f32.xlu0 %v2490
    %v2522 = vpop.xlane.xlu0 %2521
    %2523 = vadd.xlane.f32.xlu0 %v2492
    %v2524 = vpop.xlane.xlu0 %2523
    %2525 = vadd.xlane.f32.xlu0 %v2494
    %v2526 = vpop.xlane.xlu0 %2525
    %2527 = vadd.xlane.f32.xlu0 %v2496
    %v2528 = vpop.xlane.xlu0 %2527
    %2529 = vadd.xlane.f32.xlu0 %v2498
    %v2530 = vpop.xlane.xlu0 %2529
    %2531 = vadd.xlane.f32.xlu0 %v2500
    %v2532 = vpop.xlane.xlu0 %2531
    %2533 = vadd.xlane.f32.xlu0 %v2502
    %v2534 = vpop.xlane.xlu0 %2533
    %2535 = vadd.xlane.f32.xlu0 %v2504
    %v2536 = vpop.xlane.xlu0 %2535
    %2537 = vadd.xlane.f32.xlu0 %v2506
    %v2538 = vpop.xlane.xlu0 %2537
    %v2539 = vrcp.pop %v2508
    %v2540 = vrcp.pop %v2510
    %v2541 = vrcp.pop %v2512
    %v2542 = vrcp.pop %v2514
    %v2543 = vrcp.pop %v2516
    %v2544 = vrcp.pop %v2518
    %v2545 = vrcp.pop %v2520
    %v2546 = vrcp.pop %v2522
    %v2547 = vrcp.pop %v2524
    %v2548 = vrcp.pop %v2526
    %v2549 = vrcp.pop %v2528
    %v2550 = vrcp.pop %v2530
    %v2551 = vrcp.pop %v2532
    %v2552 = vrcp.pop %v2534
    %v2553 = vrcp.pop %v2536
    %v2554 = vrcp.pop %v2538
    %v2555 = vmul.f32 %v2476, %v2539
    %v2556 = vmul.f32 %v2478, %v2540
    %v2557 = vmul.f32 %v2480, %v2541
    %v2558 = vmul.f32 %v2482, %v2542
    %v2559 = vmul.f32 %v2484, %v2543
    %v2560 = vmul.f32 %v2486, %v2544
    %v2561 = vmul.f32 %v2488, %v2545
    %v2562 = vmul.f32 %v2490, %v2546
    %v2563 = vmul.f32 %v2492, %v2547
    %v2564 = vmul.f32 %v2494, %v2548
    %v2565 = vmul.f32 %v2496, %v2549
    %v2566 = vmul.f32 %v2498, %v2550
    %v2567 = vmul.f32 %v2500, %v2551
    %v2568 = vmul.f32 %v2502, %v2552
    %v2569 = vmul.f32 %v2504, %v2553
    %v2570 = vmul.f32 %v2506, %v2554
    %v2571 = vpack.c.bf16 %v2556, %v2555
    %v2572 = vpack.c.bf16 %v2558, %v2557
    %v2573 = vpack.c.bf16 %v2560, %v2559
    %v2574 = vpack.c.bf16 %v2562, %v2561
    %v2575 = vpack.c.bf16 %v2564, %v2563
    %v2576 = vpack.c.bf16 %v2566, %v2565
    %v2577 = vpack.c.bf16 %v2568, %v2567
    %v2578 = vpack.c.bf16 %v2570, %v2569
    %2579 = vrot.lane.b32.xlu0 %v511, 48
    %v2580 = vpop.permute.xlu0 %2579
    %2581 = vrot.lane.b32.xlu0 %v512, 48
    %v2582 = vpop.permute.xlu0 %2581
    %2583 = vrot.lane.b32.xlu0 %v513, 48
    %v2584 = vpop.permute.xlu0 %2583
    %2585 = vrot.lane.b32.xlu0 %v514, 48
    %v2586 = vpop.permute.xlu0 %2585
    %2587 = vrot.lane.b32.xlu0 %v515, 48
    %v2588 = vpop.permute.xlu0 %2587
    %2589 = vrot.lane.b32.xlu0 %v516, 48
    %v2590 = vpop.permute.xlu0 %2589
    %2591 = vrot.lane.b32.xlu0 %v517, 48
    %v2592 = vpop.permute.xlu0 %2591
    %2593 = vrot.lane.b32.xlu0 %v518, 48
    %v2594 = vpop.permute.xlu0 %2593
    %2603 = vmatprep.subr.bf16.mxu0 0
    %2604 = vmatpush1.bf16.msra.mxu0 %v2580
    %2605 = vmatprep.subr.bf16.mxu0 0
    %2606 = vmatpush1.bf16.msra.mxu0 %v2582
    %2607 = vmatprep.subr.bf16.mxu0 0
    %2608 = vmatpush1.bf16.msra.mxu0 %v2584
    %2609 = vmatprep.subr.bf16.mxu0 0
    %2610 = vmatpush1.bf16.msra.mxu0 %v2586
    %2611 = vmatprep.subr.bf16.mxu0 0
    %2612 = vmatpush1.bf16.msra.mxu0 %v2588
    %2613 = vmatprep.subr.bf16.mxu0 0
    %2614 = vmatpush1.bf16.msra.mxu0 %v2590
    %2615 = vmatprep.subr.bf16.mxu0 0
    %2616 = vmatpush1.bf16.msra.mxu0 %v2592
    %2617 = vmatprep.subr.bf16.mxu0 0
    %2618 = vmatpush1.bf16.msra.mxu0 %v2594
    %2619 = vmatprep.subr.bf16.mxu0 0
    %2620 = vmatpush1.bf16.msra.mxu0 0
    %2621 = vmatprep.subr.bf16.mxu0 0
    %2622 = vmatpush1.bf16.msra.mxu0 0
    %2623 = vmatprep.subr.bf16.mxu0 0
    %2624 = vmatpush1.bf16.msra.mxu0 0
    %2625 = vmatprep.subr.bf16.mxu0 0
    %2626 = vmatpush1.bf16.msra.mxu0 0
    %2627 = vmatprep.subr.bf16.mxu0 0
    %2628 = vmatpush1.bf16.msra.mxu0 0
    %2629 = vmatprep.subr.bf16.mxu0 0
    %2630 = vmatpush1.bf16.msra.mxu0 0
    %2631 = vmatprep.subr.bf16.mxu0 0
    %2632 = vmatpush1.bf16.msra.mxu0 0
    %2633 = vmatprep.subr.bf16.mxu0 0
    %2634 = vmatpush1.bf16.msra.mxu0 0
    %2635 = vmatprep.mubr.bf16.mxu0 0
    %2636 = vmatmul.mubr.bf16.gmra.mrb[0].mxu0 %v2571
    %v2637 = vpop.f32.mrb[0].mxu0
    %v2638 = vadd.f32 0.0, %v2637
    %v2639 = vpop.f32.mrb[0].mxu0
    %v2640 = vpop.f32.mrb[0].mxu0
    %v2641 = vadd.f32 0.0, %v2640
    %v2642 = vpop.f32.mrb[0].mxu0
    %2643 = vmatprep.mubr.bf16.mxu0 0
    %2644 = vmatmul.mubr.bf16.gmra.mrb[0].mxu0 %v2572
    %v2645 = vpop.f32.mrb[0].mxu0
    %v2646 = vadd.f32 0.0, %v2645
    %v2647 = vpop.f32.mrb[0].mxu0
    %v2648 = vpop.f32.mrb[0].mxu0
    %v2649 = vadd.f32 0.0, %v2648
    %v2650 = vpop.f32.mrb[0].mxu0
    %2651 = vmatprep.mubr.bf16.mxu0 0
    %2652 = vmatmul.mubr.bf16.gmra.mrb[0].mxu0 %v2573
    %v2653 = vpop.f32.mrb[0].mxu0
    %v2654 = vadd.f32 0.0, %v2653
    %v2655 = vpop.f32.mrb[0].mxu0
    %v2656 = vpop.f32.mrb[0].mxu0
    %v2657 = vadd.f32 0.0, %v2656
    %v2658 = vpop.f32.mrb[0].mxu0
    %2659 = vmatprep.mubr.bf16.mxu0 0
    %2660 = vmatmul.mubr.bf16.gmra.mrb[0].mxu0 %v2574
    %v2661 = vpop.f32.mrb[0].mxu0
    %v2662 = vadd.f32 0.0, %v2661
    %v2663 = vpop.f32.mrb[0].mxu0
    %v2664 = vpop.f32.mrb[0].mxu0
    %v2665 = vadd.f32 0.0, %v2664
    %v2666 = vpop.f32.mrb[0].mxu0
    %2667 = vmatprep.mubr.bf16.mxu0 0
    %2668 = vmatmul.mubr.bf16.gmra.mrb[0].mxu0 %v2575
    %v2669 = vpop.f32.mrb[0].mxu0
    %v2670 = vadd.f32 0.0, %v2669
    %v2671 = vpop.f32.mrb[0].mxu0
    %v2672 = vpop.f32.mrb[0].mxu0
    %v2673 = vadd.f32 0.0, %v2672
    %v2674 = vpop.f32.mrb[0].mxu0
    %2675 = vmatprep.mubr.bf16.mxu0 0
    %2676 = vmatmul.mubr.bf16.gmra.mrb[0].mxu0 %v2576
    %v2677 = vpop.f32.mrb[0].mxu0
    %v2678 = vadd.f32 0.0, %v2677
    %v2679 = vpop.f32.mrb[0].mxu0
    %v2680 = vpop.f32.mrb[0].mxu0
    %v2681 = vadd.f32 0.0, %v2680
    %v2682 = vpop.f32.mrb[0].mxu0
    %2683 = vmatprep.mubr.bf16.mxu0 0
    %2684 = vmatmul.mubr.bf16.gmra.mrb[0].mxu0 %v2577
    %v2685 = vpop.f32.mrb[0].mxu0
    %v2686 = vadd.f32 0.0, %v2685
    %v2687 = vpop.f32.mrb[0].mxu0
    %v2688 = vpop.f32.mrb[0].mxu0
    %v2689 = vadd.f32 0.0, %v2688
    %v2690 = vpop.f32.mrb[0].mxu0
    %2691 = vmatprep.mubr.bf16.mxu0 0
    %2692 = vmatmul.mubr.bf16.gmra.mrb[0].mxu0 %v2578
    %v2693 = vpop.f32.mrb[0].mxu0
    %v2694 = vadd.f32 0.0, %v2693
    %v2695 = vpop.f32.mrb[0].mxu0
    %v2696 = vpop.f32.mrb[0].mxu0
    %v2697 = vadd.f32 0.0, %v2696
    %v2698 = vpop.f32.mrb[0].mxu0
    %2699 = vdwg.mxu0
    %2700 = vrot.lane.b32.xlu0 %v511, 104
    %v2701 = vpop.permute.xlu0 %2700
    %2702 = vrot.lane.b32.xlu0 %v512, 104
    %v2703 = vpop.permute.xlu0 %2702
    %2704 = vrot.lane.b32.xlu0 %v513, 104
    %v2705 = vpop.permute.xlu0 %2704
    %2706 = vrot.lane.b32.xlu0 %v514, 104
    %v2707 = vpop.permute.xlu0 %2706
    %2708 = vrot.lane.b32.xlu0 %v515, 104
    %v2709 = vpop.permute.xlu0 %2708
    %2710 = vrot.lane.b32.xlu0 %v516, 104
    %v2711 = vpop.permute.xlu0 %2710
    %2712 = vrot.lane.b32.xlu0 %v517, 104
    %v2713 = vpop.permute.xlu0 %2712
    %2714 = vrot.lane.b32.xlu0 %v518, 104
    %v2715 = vpop.permute.xlu0 %2714
    %2716 = vrot.lane.b32.xlu0 %v511, 72
    %v2717 = vpop.permute.xlu0 %2716
    %2718 = vrot.lane.b32.xlu0 %v512, 72
    %v2719 = vpop.permute.xlu0 %2718
    %2720 = vrot.lane.b32.xlu0 %v513, 72
    %v2721 = vpop.permute.xlu0 %2720
    %2722 = vrot.lane.b32.xlu0 %v514, 72
    %v2723 = vpop.permute.xlu0 %2722
    %2724 = vrot.lane.b32.xlu0 %v515, 72
    %v2725 = vpop.permute.xlu0 %2724
    %2726 = vrot.lane.b32.xlu0 %v516, 72
    %v2727 = vpop.permute.xlu0 %2726
    %2728 = vrot.lane.b32.xlu0 %v517, 72
    %v2729 = vpop.permute.xlu0 %2728
    %2730 = vrot.lane.b32.xlu0 %v518, 72
    %v2731 = vpop.permute.xlu0 %2730
    %v2733 = vsel %vm543, %v2701, 0
    %v2736 = vsel %vm543, %v2703, 0
    %v2739 = vsel %vm543, %v2705, 0
    %v2742 = vsel %vm543, %v2707, 0
    %v2745 = vsel %vm543, %v2709, 0
    %v2748 = vsel %vm543, %v2711, 0
    %v2751 = vsel %vm543, %v2713, 0
    %v2754 = vsel %vm543, %v2715, 0
    %v2757 = vsel %vm543, %v2717, 0
    %v2760 = vsel %vm543, %v2719, 0
    %v2763 = vsel %vm543, %v2721, 0
    %v2766 = vsel %vm543, %v2723, 0
    %v2769 = vsel %vm543, %v2725, 0
    %v2772 = vsel %vm543, %v2727, 0
    %v2775 = vsel %vm543, %v2729, 0
    %v2778 = vsel %vm543, %v2731, 0
    %2780 = vmatprep.subr.bf16.mxu0 0
    %2781 = vmatpush1.bf16.xpose.msra.mxu0 %v2757
    %2782 = vmatprep.subr.bf16.mxu0 0
    %2783 = vmatpush1.bf16.xpose.msra.mxu0 %v2760
    %2784 = vmatprep.subr.bf16.mxu0 0
    %2785 = vmatpush1.bf16.xpose.msra.mxu0 %v2763
    %2786 = vmatprep.subr.bf16.mxu0 0
    %2787 = vmatpush1.bf16.xpose.msra.mxu0 %v2766
    %2788 = vmatprep.subr.bf16.mxu0 0
    %2789 = vmatpush1.bf16.xpose.msra.mxu0 %v2769
    %2790 = vmatprep.subr.bf16.mxu0 0
    %2791 = vmatpush1.bf16.xpose.msra.mxu0 %v2772
    %2792 = vmatprep.subr.bf16.mxu0 0
    %2793 = vmatpush1.bf16.xpose.msra.mxu0 %v2775
    %2794 = vmatprep.subr.bf16.mxu0 0
    %2795 = vmatpush1.bf16.xpose.msra.mxu0 %v2778
    %2796 = vmatprep.subr.bf16.mxu0 0
    %2797 = vmatpush1.bf16.xpose.msra.mxu0 0
    %2798 = vmatprep.subr.bf16.mxu0 0
    %2799 = vmatpush1.bf16.xpose.msra.mxu0 0
    %2800 = vmatprep.subr.bf16.mxu0 0
    %2801 = vmatpush1.bf16.xpose.msra.mxu0 0
    %2802 = vmatprep.subr.bf16.mxu0 0
    %2803 = vmatpush1.bf16.xpose.msra.mxu0 0
    %2804 = vmatprep.subr.bf16.mxu0 0
    %2805 = vmatpush1.bf16.xpose.msra.mxu0 0
    %2806 = vmatprep.subr.bf16.mxu0 0
    %2807 = vmatpush1.bf16.xpose.msra.mxu0 0
    %2808 = vmatprep.subr.bf16.mxu0 0
    %2809 = vmatpush1.bf16.xpose.msra.mxu0 0
    %2810 = vmatprep.subr.bf16.mxu0 0
    %2811 = vmatpush1.bf16.xpose.msra.mxu0 0
    %2812 = vmatprep.mubr.bf16.mxu0 0
    %2813 = vmatmul.mubr.bf16.gmra.mrb[0].mxu0 %v2733
    %v2814 = vpop.f32.mrb[0].mxu0
    %v2815 = vadd.f32 0.0, %v2814
    %v2816 = vpop.f32.mrb[0].mxu0
    %v2817 = vpop.f32.mrb[0].mxu0
    %v2818 = vadd.f32 0.0, %v2817
    %v2819 = vpop.f32.mrb[0].mxu0
    %2820 = vmatprep.mubr.bf16.mxu0 0
    %2821 = vmatmul.mubr.bf16.gmra.mrb[0].mxu0 %v2736
    %v2822 = vpop.f32.mrb[0].mxu0
    %v2823 = vadd.f32 0.0, %v2822
    %v2824 = vpop.f32.mrb[0].mxu0
    %v2825 = vpop.f32.mrb[0].mxu0
    %v2826 = vadd.f32 0.0, %v2825
    %v2827 = vpop.f32.mrb[0].mxu0
    %2828 = vmatprep.mubr.bf16.mxu0 0
    %2829 = vmatmul.mubr.bf16.gmra.mrb[0].mxu0 %v2739
    %v2830 = vpop.f32.mrb[0].mxu0
    %v2831 = vadd.f32 0.0, %v2830
    %v2832 = vpop.f32.mrb[0].mxu0
    %v2833 = vpop.f32.mrb[0].mxu0
    %v2834 = vadd.f32 0.0, %v2833
    %v2835 = vpop.f32.mrb[0].mxu0
    %2836 = vmatprep.mubr.bf16.mxu0 0
    %2837 = vmatmul.mubr.bf16.gmra.mrb[0].mxu0 %v2742
    %v2838 = vpop.f32.mrb[0].mxu0
    %v2839 = vadd.f32 0.0, %v2838
    %v2840 = vpop.f32.mrb[0].mxu0
    %v2841 = vpop.f32.mrb[0].mxu0
    %v2842 = vadd.f32 0.0, %v2841
    %v2843 = vpop.f32.mrb[0].mxu0
    %2844 = vmatprep.mubr.bf16.mxu0 0
    %2845 = vmatmul.mubr.bf16.gmra.mrb[0].mxu0 %v2745
    %v2846 = vpop.f32.mrb[0].mxu0
    %v2847 = vadd.f32 0.0, %v2846
    %v2848 = vpop.f32.mrb[0].mxu0
    %v2849 = vpop.f32.mrb[0].mxu0
    %v2850 = vadd.f32 0.0, %v2849
    %v2851 = vpop.f32.mrb[0].mxu0
    %2852 = vmatprep.mubr.bf16.mxu0 0
    %2853 = vmatmul.mubr.bf16.gmra.mrb[0].mxu0 %v2748
    %v2854 = vpop.f32.mrb[0].mxu0
    %v2855 = vadd.f32 0.0, %v2854
    %v2856 = vpop.f32.mrb[0].mxu0
    %v2857 = vpop.f32.mrb[0].mxu0
    %v2858 = vadd.f32 0.0, %v2857
    %v2859 = vpop.f32.mrb[0].mxu0
    %2860 = vmatprep.mubr.bf16.mxu0 0
    %2861 = vmatmul.mubr.bf16.gmra.mrb[0].mxu0 %v2751
    %v2862 = vpop.f32.mrb[0].mxu0
    %v2863 = vadd.f32 0.0, %v2862
    %v2864 = vpop.f32.mrb[0].mxu0
    %v2865 = vpop.f32.mrb[0].mxu0
    %v2866 = vadd.f32 0.0, %v2865
    %v2867 = vpop.f32.mrb[0].mxu0
    %2868 = vmatprep.mubr.bf16.mxu0 0
    %2869 = vmatmul.mubr.bf16.gmra.mrb[0].mxu0 %v2754
    %v2870 = vpop.f32.mrb[0].mxu0
    %v2871 = vadd.f32 0.0, %v2870
    %v2872 = vpop.f32.mrb[0].mxu0
    %v2873 = vpop.f32.mrb[0].mxu0
    %v2874 = vadd.f32 0.0, %v2873
    %v2875 = vpop.f32.mrb[0].mxu0
    %2876 = vdwg.mxu0
    %v2877 = vmul.f32 %v2815, 0.35355338
    %v2878 = vmul.f32 %v2818, 0.35355338
    %v2879 = vmul.f32 %v2823, 0.35355338
    %v2880 = vmul.f32 %v2826, 0.35355338
    %v2881 = vmul.f32 %v2831, 0.35355338
    %v2882 = vmul.f32 %v2834, 0.35355338
    %v2883 = vmul.f32 %v2839, 0.35355338
    %v2884 = vmul.f32 %v2842, 0.35355338
    %v2885 = vmul.f32 %v2847, 0.35355338
    %v2886 = vmul.f32 %v2850, 0.35355338
    %v2887 = vmul.f32 %v2855, 0.35355338
    %v2888 = vmul.f32 %v2858, 0.35355338
    %v2889 = vmul.f32 %v2863, 0.35355338
    %v2890 = vmul.f32 %v2866, 0.35355338
    %v2891 = vmul.f32 %v2871, 0.35355338
    %v2892 = vmul.f32 %v2874, 0.35355338
    %v2893 = vsel %vm1057, %v914, %v962
    %v2894 = vsel %vm1057, %v916, %v964
    %v2895 = vsel %vm1057, %v918, %v966
    %v2896 = vsel %vm1057, %v920, %v968
    %v2897 = vsel %vm1057, %v922, %v970
    %v2898 = vsel %vm1057, %v924, %v972
    %v2899 = vsel %vm1057, %v926, %v974
    %v2900 = vsel %vm1057, %v928, %v976
    %v2901 = vsel %vm1057, %v930, %v978
    %v2902 = vsel %vm1057, %v932, %v980
    %v2903 = vsel %vm1057, %v934, %v982
    %v2904 = vsel %vm1057, %v936, %v984
    %v2905 = vsel %vm1057, %v938, %v986
    %v2906 = vsel %vm1057, %v940, %v988
    %v2907 = vsel %vm1057, %v942, %v990
    %v2908 = vsel %vm1057, %v944, %v992
    %v2909 = vsel %vm88, %v2893, %v1010
    %v2910 = vsel %vm88, %v2894, %v1012
    %v2911 = vsel %vm88, %v2895, %v1014
    %v2912 = vsel %vm88, %v2896, %v1016
    %v2913 = vsel %vm88, %v2897, %v1018
    %v2914 = vsel %vm88, %v2898, %v1020
    %v2915 = vsel %vm88, %v2899, %v1022
    %v2916 = vsel %vm88, %v2900, %v1024
    %v2917 = vsel %vm88, %v2901, %v1026
    %v2918 = vsel %vm88, %v2902, %v1028
    %v2919 = vsel %vm88, %v2903, %v1030
    %v2920 = vsel %vm88, %v2904, %v1032
    %v2921 = vsel %vm88, %v2905, %v1034
    %v2922 = vsel %vm88, %v2906, %v1036
    %v2923 = vsel %vm88, %v2907, %v1038
    %v2924 = vsel %vm88, %v2908, %v1040
    %v2925 = vsel %vm1090, %v2909, %v72
    %v2926 = vsel %vm1090, %v2910, %v73
    %v2927 = vsel %vm1090, %v2911, %v74
    %v2928 = vsel %vm1090, %v2912, %v75
    %v2929 = vsel %vm1090, %v2913, %v76
    %v2930 = vsel %vm1090, %v2914, %v77
    %v2931 = vsel %vm1090, %v2915, %v78
    %v2932 = vsel %vm1090, %v2916, %v79
    %v2933 = vsel %vm1090, %v2917, %v80
    %v2934 = vsel %vm1090, %v2918, %v81
    %v2935 = vsel %vm1090, %v2919, %v82
    %v2936 = vsel %vm1090, %v2920, %v83
    %v2937 = vsel %vm1090, %v2921, %v84
    %v2938 = vsel %vm1090, %v2922, %v85
    %v2939 = vsel %vm1090, %v2923, %v86
    %v2940 = vsel %vm1090, %v2924, %v87
    %v2941 = vsel %vm1107, %v2925, %v722
    %v2942 = vsel %vm1107, %v2926, %v724
    %v2943 = vsel %vm1107, %v2927, %v726
    %v2944 = vsel %vm1107, %v2928, %v728
    %v2945 = vsel %vm1107, %v2929, %v730
    %v2946 = vsel %vm1107, %v2930, %v732
    %v2947 = vsel %vm1107, %v2931, %v734
    %v2948 = vsel %vm1107, %v2932, %v736
    %v2949 = vsel %vm1107, %v2933, %v738
    %v2950 = vsel %vm1107, %v2934, %v740
    %v2951 = vsel %vm1107, %v2935, %v742
    %v2952 = vsel %vm1107, %v2936, %v744
    %v2953 = vsel %vm1107, %v2937, %v746
    %v2954 = vsel %vm1107, %v2938, %v748
    %v2955 = vsel %vm1107, %v2939, %v750
    %v2956 = vsel %vm1107, %v2940, %v752
    %v2957 = vsel %vm1124, %v2941, %v770
    %v2958 = vsel %vm1124, %v2942, %v772
    %v2959 = vsel %vm1124, %v2943, %v774
    %v2960 = vsel %vm1124, %v2944, %v776
    %v2961 = vsel %vm1124, %v2945, %v778
    %v2962 = vsel %vm1124, %v2946, %v780
    %v2963 = vsel %vm1124, %v2947, %v782
    %v2964 = vsel %vm1124, %v2948, %v784
    %v2965 = vsel %vm1124, %v2949, %v786
    %v2966 = vsel %vm1124, %v2950, %v788
    %v2967 = vsel %vm1124, %v2951, %v790
    %v2968 = vsel %vm1124, %v2952, %v792
    %v2969 = vsel %vm1124, %v2953, %v794
    %v2970 = vsel %vm1124, %v2954, %v796
    %v2971 = vsel %vm1124, %v2955, %v798
    %v2972 = vsel %vm1124, %v2956, %v800
    %v2973 = vsel %vm1141, %v2957, %v818
    %v2974 = vsel %vm1141, %v2958, %v820
    %v2975 = vsel %vm1141, %v2959, %v822
    %v2976 = vsel %vm1141, %v2960, %v824
    %v2977 = vsel %vm1141, %v2961, %v826
    %v2978 = vsel %vm1141, %v2962, %v828
    %v2979 = vsel %vm1141, %v2963, %v830
    %v2980 = vsel %vm1141, %v2964, %v832
    %v2981 = vsel %vm1141, %v2965, %v834
    %v2982 = vsel %vm1141, %v2966, %v836
    %v2983 = vsel %vm1141, %v2967, %v838
    %v2984 = vsel %vm1141, %v2968, %v840
    %v2985 = vsel %vm1141, %v2969, %v842
    %v2986 = vsel %vm1141, %v2970, %v844
    %v2987 = vsel %vm1141, %v2971, %v846
    %v2988 = vsel %vm1141, %v2972, %v848
    %v2989 = vsel %vm1158, %v2973, %v866
    %v2990 = vsel %vm1158, %v2974, %v868
    %v2991 = vsel %vm1158, %v2975, %v870
    %v2992 = vsel %vm1158, %v2976, %v872
    %v2993 = vsel %vm1158, %v2977, %v874
    %v2994 = vsel %vm1158, %v2978, %v876
    %v2995 = vsel %vm1158, %v2979, %v878
    %v2996 = vsel %vm1158, %v2980, %v880
    %v2997 = vsel %vm1158, %v2981, %v882
    %v2998 = vsel %vm1158, %v2982, %v884
    %v2999 = vsel %vm1158, %v2983, %v886
    %v3000 = vsel %vm1158, %v2984, %v888
    %v3001 = vsel %vm1158, %v2985, %v890
    %v3002 = vsel %vm1158, %v2986, %v892
    %v3003 = vsel %vm1158, %v2987, %v894
    %v3004 = vsel %vm1158, %v2988, %v896
    %v3005 = vadd.f32 %v2877, %v2989
    %v3006 = vadd.f32 %v2878, %v2990
    %v3007 = vadd.f32 %v2879, %v2991
    %v3008 = vadd.f32 %v2880, %v2992
    %v3009 = vadd.f32 %v2881, %v2993
    %v3010 = vadd.f32 %v2882, %v2994
    %v3011 = vadd.f32 %v2883, %v2995
    %v3012 = vadd.f32 %v2884, %v2996
    %v3013 = vadd.f32 %v2885, %v2997
    %v3014 = vadd.f32 %v2886, %v2998
    %v3015 = vadd.f32 %v2887, %v2999
    %v3016 = vadd.f32 %v2888, %v3000
    %v3017 = vadd.f32 %v2889, %v3001
    %v3018 = vadd.f32 %v2890, %v3002
    %v3019 = vadd.f32 %v2891, %v3003
    %v3020 = vadd.f32 %v2892, %v3004
    %v3021 = vadd.f32 %v3005, %v47
    %v3022 = vadd.f32 %v3006, %v48
    %v3023 = vadd.f32 %v3007, %v49
    %v3024 = vadd.f32 %v3008, %v50
    %v3025 = vadd.f32 %v3009, %v51
    %v3026 = vadd.f32 %v3010, %v52
    %v3027 = vadd.f32 %v3011, %v53
    %v3028 = vadd.f32 %v3012, %v54
    %v3029 = vadd.f32 %v3013, %v55
    %v3030 = vadd.f32 %v3014, %v56
    %v3031 = vadd.f32 %v3015, %v57
    %v3032 = vadd.f32 %v3016, %v58
    %v3033 = vadd.f32 %v3017, %v59
    %v3034 = vadd.f32 %v3018, %v60
    %v3035 = vadd.f32 %v3019, %v61
    %v3036 = vadd.f32 %v3020, %v62
    %3037 = vmax.xlane.f32.xlu0 %v3021
    %v3038 = vpop.xlane.xlu0 %3037
    %3039 = vmax.xlane.f32.xlu0 %v3022
    %v3040 = vpop.xlane.xlu0 %3039
    %3041 = vmax.xlane.f32.xlu0 %v3023
    %v3042 = vpop.xlane.xlu0 %3041
    %3043 = vmax.xlane.f32.xlu0 %v3024
    %v3044 = vpop.xlane.xlu0 %3043
    %3045 = vmax.xlane.f32.xlu0 %v3025
    %v3046 = vpop.xlane.xlu0 %3045
    %3047 = vmax.xlane.f32.xlu0 %v3026
    %v3048 = vpop.xlane.xlu0 %3047
    %3049 = vmax.xlane.f32.xlu0 %v3027
    %v3050 = vpop.xlane.xlu0 %3049
    %3051 = vmax.xlane.f32.xlu0 %v3028
    %v3052 = vpop.xlane.xlu0 %3051
    %3053 = vmax.xlane.f32.xlu0 %v3029
    %v3054 = vpop.xlane.xlu0 %3053
    %3055 = vmax.xlane.f32.xlu0 %v3030
    %v3056 = vpop.xlane.xlu0 %3055
    %3057 = vmax.xlane.f32.xlu0 %v3031
    %v3058 = vpop.xlane.xlu0 %3057
    %3059 = vmax.xlane.f32.xlu0 %v3032
    %v3060 = vpop.xlane.xlu0 %3059
    %3061 = vmax.xlane.f32.xlu0 %v3033
    %v3062 = vpop.xlane.xlu0 %3061
    %3063 = vmax.xlane.f32.xlu0 %v3034
    %v3064 = vpop.xlane.xlu0 %3063
    %3065 = vmax.xlane.f32.xlu0 %v3035
    %v3066 = vpop.xlane.xlu0 %3065
    %3067 = vmax.xlane.f32.xlu0 %v3036
    %v3068 = vpop.xlane.xlu0 %3067
    %v3069 = vsub.f32 %v3021, %v3038
    %v3070 = vsub.f32 %v3022, %v3040
    %v3071 = vsub.f32 %v3023, %v3042
    %v3072 = vsub.f32 %v3024, %v3044
    %v3073 = vsub.f32 %v3025, %v3046
    %v3074 = vsub.f32 %v3026, %v3048
    %v3075 = vsub.f32 %v3027, %v3050
    %v3076 = vsub.f32 %v3028, %v3052
    %v3077 = vsub.f32 %v3029, %v3054
    %v3078 = vsub.f32 %v3030, %v3056
    %v3079 = vsub.f32 %v3031, %v3058
    %v3080 = vsub.f32 %v3032, %v3060
    %v3081 = vsub.f32 %v3033, %v3062
    %v3082 = vsub.f32 %v3034, %v3064
    %v3083 = vsub.f32 %v3035, %v3066
    %v3084 = vsub.f32 %v3036, %v3068
    %v3085 = vmul.f32 %v3069, 1.442695
    %v3086 = vpow.pop %v3085
    %v3087 = vmul.f32 %v3070, 1.442695
    %v3088 = vpow.pop %v3087
    %v3089 = vmul.f32 %v3071, 1.442695
    %v3090 = vpow.pop %v3089
    %v3091 = vmul.f32 %v3072, 1.442695
    %v3092 = vpow.pop %v3091
    %v3093 = vmul.f32 %v3073, 1.442695
    %v3094 = vpow.pop %v3093
    %v3095 = vmul.f32 %v3074, 1.442695
    %v3096 = vpow.pop %v3095
    %v3097 = vmul.f32 %v3075, 1.442695
    %v3098 = vpow.pop %v3097
    %v3099 = vmul.f32 %v3076, 1.442695
    %v3100 = vpow.pop %v3099
    %v3101 = vmul.f32 %v3077, 1.442695
    %v3102 = vpow.pop %v3101
    %v3103 = vmul.f32 %v3078, 1.442695
    %v3104 = vpow.pop %v3103
    %v3105 = vmul.f32 %v3079, 1.442695
    %v3106 = vpow.pop %v3105
    %v3107 = vmul.f32 %v3080, 1.442695
    %v3108 = vpow.pop %v3107
    %v3109 = vmul.f32 %v3081, 1.442695
    %v3110 = vpow.pop %v3109
    %v3111 = vmul.f32 %v3082, 1.442695
    %v3112 = vpow.pop %v3111
    %v3113 = vmul.f32 %v3083, 1.442695
    %v3114 = vpow.pop %v3113
    %v3115 = vmul.f32 %v3084, 1.442695
    %v3116 = vpow.pop %v3115
    %3117 = vadd.xlane.f32.xlu0 %v3086
    %v3118 = vpop.xlane.xlu0 %3117
    %3119 = vadd.xlane.f32.xlu0 %v3088
    %v3120 = vpop.xlane.xlu0 %3119
    %3121 = vadd.xlane.f32.xlu0 %v3090
    %v3122 = vpop.xlane.xlu0 %3121
    %3123 = vadd.xlane.f32.xlu0 %v3092
    %v3124 = vpop.xlane.xlu0 %3123
    %3125 = vadd.xlane.f32.xlu0 %v3094
    %v3126 = vpop.xlane.xlu0 %3125
    %3127 = vadd.xlane.f32.xlu0 %v3096
    %v3128 = vpop.xlane.xlu0 %3127
    %3129 = vadd.xlane.f32.xlu0 %v3098
    %v3130 = vpop.xlane.xlu0 %3129
    %3131 = vadd.xlane.f32.xlu0 %v3100
    %v3132 = vpop.xlane.xlu0 %3131
    %3133 = vadd.xlane.f32.xlu0 %v3102
    %v3134 = vpop.xlane.xlu0 %3133
    %3135 = vadd.xlane.f32.xlu0 %v3104
    %v3136 = vpop.xlane.xlu0 %3135
    %3137 = vadd.xlane.f32.xlu0 %v3106
    %v3138 = vpop.xlane.xlu0 %3137
    %3139 = vadd.xlane.f32.xlu0 %v3108
    %v3140 = vpop.xlane.xlu0 %3139
    %3141 = vadd.xlane.f32.xlu0 %v3110
    %v3142 = vpop.xlane.xlu0 %3141
    %3143 = vadd.xlane.f32.xlu0 %v3112
    %v3144 = vpop.xlane.xlu0 %3143
    %3145 = vadd.xlane.f32.xlu0 %v3114
    %v3146 = vpop.xlane.xlu0 %3145
    %3147 = vadd.xlane.f32.xlu0 %v3116
    %v3148 = vpop.xlane.xlu0 %3147
    %v3149 = vrcp.pop %v3118
    %v3150 = vrcp.pop %v3120
    %v3151 = vrcp.pop %v3122
    %v3152 = vrcp.pop %v3124
    %v3153 = vrcp.pop %v3126
    %v3154 = vrcp.pop %v3128
    %v3155 = vrcp.pop %v3130
    %v3156 = vrcp.pop %v3132
    %v3157 = vrcp.pop %v3134
    %v3158 = vrcp.pop %v3136
    %v3159 = vrcp.pop %v3138
    %v3160 = vrcp.pop %v3140
    %v3161 = vrcp.pop %v3142
    %v3162 = vrcp.pop %v3144
    %v3163 = vrcp.pop %v3146
    %v3164 = vrcp.pop %v3148
    %v3165 = vmul.f32 %v3086, %v3149
    %v3166 = vmul.f32 %v3088, %v3150
    %v3167 = vmul.f32 %v3090, %v3151
    %v3168 = vmul.f32 %v3092, %v3152
    %v3169 = vmul.f32 %v3094, %v3153
    %v3170 = vmul.f32 %v3096, %v3154
    %v3171 = vmul.f32 %v3098, %v3155
    %v3172 = vmul.f32 %v3100, %v3156
    %v3173 = vmul.f32 %v3102, %v3157
    %v3174 = vmul.f32 %v3104, %v3158
    %v3175 = vmul.f32 %v3106, %v3159
    %v3176 = vmul.f32 %v3108, %v3160
    %v3177 = vmul.f32 %v3110, %v3161
    %v3178 = vmul.f32 %v3112, %v3162
    %v3179 = vmul.f32 %v3114, %v3163
    %v3180 = vmul.f32 %v3116, %v3164
    %v3181 = vpack.c.bf16 %v3166, %v3165
    %v3182 = vpack.c.bf16 %v3168, %v3167
    %v3183 = vpack.c.bf16 %v3170, %v3169
    %v3184 = vpack.c.bf16 %v3172, %v3171
    %v3185 = vpack.c.bf16 %v3174, %v3173
    %v3186 = vpack.c.bf16 %v3176, %v3175
    %v3187 = vpack.c.bf16 %v3178, %v3177
    %v3188 = vpack.c.bf16 %v3180, %v3179
    %3189 = vrot.lane.b32.xlu0 %v511, 40
    %v3190 = vpop.permute.xlu0 %3189
    %3191 = vrot.lane.b32.xlu0 %v512, 40
    %v3192 = vpop.permute.xlu0 %3191
    %3193 = vrot.lane.b32.xlu0 %v513, 40
    %v3194 = vpop.permute.xlu0 %3193
    %3195 = vrot.lane.b32.xlu0 %v514, 40
    %v3196 = vpop.permute.xlu0 %3195
    %3197 = vrot.lane.b32.xlu0 %v515, 40
    %v3198 = vpop.permute.xlu0 %3197
    %3199 = vrot.lane.b32.xlu0 %v516, 40
    %v3200 = vpop.permute.xlu0 %3199
    %3201 = vrot.lane.b32.xlu0 %v517, 40
    %v3202 = vpop.permute.xlu0 %3201
    %3203 = vrot.lane.b32.xlu0 %v518, 40
    %v3204 = vpop.permute.xlu0 %3203
    %3213 = vmatprep.subr.bf16.mxu0 0
    %3214 = vmatpush1.bf16.msra.mxu0 %v3190
    %3215 = vmatprep.subr.bf16.mxu0 0
    %3216 = vmatpush1.bf16.msra.mxu0 %v3192
    %3217 = vmatprep.subr.bf16.mxu0 0
    %3218 = vmatpush1.bf16.msra.mxu0 %v3194
    %3219 = vmatprep.subr.bf16.mxu0 0
    %3220 = vmatpush1.bf16.msra.mxu0 %v3196
    %3221 = vmatprep.subr.bf16.mxu0 0
    %3222 = vmatpush1.bf16.msra.mxu0 %v3198
    %3223 = vmatprep.subr.bf16.mxu0 0
    %3224 = vmatpush1.bf16.msra.mxu0 %v3200
    %3225 = vmatprep.subr.bf16.mxu0 0
    %3226 = vmatpush1.bf16.msra.mxu0 %v3202
    %3227 = vmatprep.subr.bf16.mxu0 0
    %3228 = vmatpush1.bf16.msra.mxu0 %v3204
    %3229 = vmatprep.subr.bf16.mxu0 0
    %3230 = vmatpush1.bf16.msra.mxu0 0
    %3231 = vmatprep.subr.bf16.mxu0 0
    %3232 = vmatpush1.bf16.msra.mxu0 0
    %3233 = vmatprep.subr.bf16.mxu0 0
    %3234 = vmatpush1.bf16.msra.mxu0 0
    %3235 = vmatprep.subr.bf16.mxu0 0
    %3236 = vmatpush1.bf16.msra.mxu0 0
    %3237 = vmatprep.subr.bf16.mxu0 0
    %3238 = vmatpush1.bf16.msra.mxu0 0
    %3239 = vmatprep.subr.bf16.mxu0 0
    %3240 = vmatpush1.bf16.msra.mxu0 0
    %3241 = vmatprep.subr.bf16.mxu0 0
    %3242 = vmatpush1.bf16.msra.mxu0 0
    %3243 = vmatprep.subr.bf16.mxu0 0
    %3244 = vmatpush1.bf16.msra.mxu0 0
    %3245 = vmatprep.mubr.bf16.mxu0 0
    %3246 = vmatmul.mubr.bf16.gmra.mrb[0].mxu0 %v3181
    %v3247 = vpop.f32.mrb[0].mxu0
    %v3248 = vadd.f32 0.0, %v3247
    %v3249 = vpop.f32.mrb[0].mxu0
    %v3250 = vpop.f32.mrb[0].mxu0
    %v3251 = vadd.f32 0.0, %v3250
    %v3252 = vpop.f32.mrb[0].mxu0
    %3253 = vmatprep.mubr.bf16.mxu0 0
    %3254 = vmatmul.mubr.bf16.gmra.mrb[0].mxu0 %v3182
    %v3255 = vpop.f32.mrb[0].mxu0
    %v3256 = vadd.f32 0.0, %v3255
    %v3257 = vpop.f32.mrb[0].mxu0
    %v3258 = vpop.f32.mrb[0].mxu0
    %v3259 = vadd.f32 0.0, %v3258
    %v3260 = vpop.f32.mrb[0].mxu0
    %3261 = vmatprep.mubr.bf16.mxu0 0
    %3262 = vmatmul.mubr.bf16.gmra.mrb[0].mxu0 %v3183
    %v3263 = vpop.f32.mrb[0].mxu0
    %v3264 = vadd.f32 0.0, %v3263
    %v3265 = vpop.f32.mrb[0].mxu0
    %v3266 = vpop.f32.mrb[0].mxu0
    %v3267 = vadd.f32 0.0, %v3266
    %v3268 = vpop.f32.mrb[0].mxu0
    %3269 = vmatprep.mubr.bf16.mxu0 0
    %3270 = vmatmul.mubr.bf16.gmra.mrb[0].mxu0 %v3184
    %v3271 = vpop.f32.mrb[0].mxu0
    %v3272 = vadd.f32 0.0, %v3271
    %v3273 = vpop.f32.mrb[0].mxu0
    %v3274 = vpop.f32.mrb[0].mxu0
    %v3275 = vadd.f32 0.0, %v3274
    %v3276 = vpop.f32.mrb[0].mxu0
    %3277 = vmatprep.mubr.bf16.mxu0 0
    %3278 = vmatmul.mubr.bf16.gmra.mrb[0].mxu0 %v3185
    %v3279 = vpop.f32.mrb[0].mxu0
    %v3280 = vadd.f32 0.0, %v3279
    %v3281 = vpop.f32.mrb[0].mxu0
    %v3282 = vpop.f32.mrb[0].mxu0
    %v3283 = vadd.f32 0.0, %v3282
    %v3284 = vpop.f32.mrb[0].mxu0
    %3285 = vmatprep.mubr.bf16.mxu0 0
    %3286 = vmatmul.mubr.bf16.gmra.mrb[0].mxu0 %v3186
    %v3287 = vpop.f32.mrb[0].mxu0
    %v3288 = vadd.f32 0.0, %v3287
    %v3289 = vpop.f32.mrb[0].mxu0
    %v3290 = vpop.f32.mrb[0].mxu0
    %v3291 = vadd.f32 0.0, %v3290
    %v3292 = vpop.f32.mrb[0].mxu0
    %3293 = vmatprep.mubr.bf16.mxu0 0
    %3294 = vmatmul.mubr.bf16.gmra.mrb[0].mxu0 %v3187
    %v3295 = vpop.f32.mrb[0].mxu0
    %v3296 = vadd.f32 0.0, %v3295
    %v3297 = vpop.f32.mrb[0].mxu0
    %v3298 = vpop.f32.mrb[0].mxu0
    %v3299 = vadd.f32 0.0, %v3298
    %v3300 = vpop.f32.mrb[0].mxu0
    %3301 = vmatprep.mubr.bf16.mxu0 0
    %3302 = vmatmul.mubr.bf16.gmra.mrb[0].mxu0 %v3188
    %v3303 = vpop.f32.mrb[0].mxu0
    %v3304 = vadd.f32 0.0, %v3303
    %v3305 = vpop.f32.mrb[0].mxu0
    %v3306 = vpop.f32.mrb[0].mxu0
    %v3307 = vadd.f32 0.0, %v3306
    %v3308 = vpop.f32.mrb[0].mxu0
    %3309 = vdwg.mxu0
    %3326 = vrot.lane.b32.xlu0 %v2028, 8
    %v3327 = vpop.permute.xlu0 %3326
    %3328 = vrot.lane.b32.xlu0 %v2031, 8
    %v3329 = vpop.permute.xlu0 %3328
    %3330 = vrot.lane.b32.xlu0 %v2036, 8
    %v3331 = vpop.permute.xlu0 %3330
    %3332 = vrot.lane.b32.xlu0 %v2039, 8
    %v3333 = vpop.permute.xlu0 %3332
    %3334 = vrot.lane.b32.xlu0 %v2044, 8
    %v3335 = vpop.permute.xlu0 %3334
    %3336 = vrot.lane.b32.xlu0 %v2047, 8
    %v3337 = vpop.permute.xlu0 %3336
    %3338 = vrot.lane.b32.xlu0 %v2052, 8
    %v3339 = vpop.permute.xlu0 %3338
    %3340 = vrot.lane.b32.xlu0 %v2055, 8
    %v3341 = vpop.permute.xlu0 %3340
    %3342 = vrot.lane.b32.xlu0 %v2060, 8
    %v3343 = vpop.permute.xlu0 %3342
    %3344 = vrot.lane.b32.xlu0 %v2063, 8
    %v3345 = vpop.permute.xlu0 %3344
    %3346 = vrot.lane.b32.xlu0 %v2068, 8
    %v3347 = vpop.permute.xlu0 %3346
    %3348 = vrot.lane.b32.xlu0 %v2071, 8
    %v3349 = vpop.permute.xlu0 %3348
    %3350 = vrot.lane.b32.xlu0 %v2076, 8
    %v3351 = vpop.permute.xlu0 %3350
    %3352 = vrot.lane.b32.xlu0 %v2079, 8
    %v3353 = vpop.permute.xlu0 %3352
    %3354 = vrot.lane.b32.xlu0 %v2084, 8
    %v3355 = vpop.permute.xlu0 %3354
    %3356 = vrot.lane.b32.xlu0 %v2087, 8
    %v3357 = vpop.permute.xlu0 %3356
    %3390 = vrot.lane.b32.xlu0 %v2638, 16
    %v3391 = vpop.permute.xlu0 %3390
    %3392 = vrot.lane.b32.xlu0 %v2641, 16
    %v3393 = vpop.permute.xlu0 %3392
    %3394 = vrot.lane.b32.xlu0 %v2646, 16
    %v3395 = vpop.permute.xlu0 %3394
    %3396 = vrot.lane.b32.xlu0 %v2649, 16
    %v3397 = vpop.permute.xlu0 %3396
    %3398 = vrot.lane.b32.xlu0 %v2654, 16
    %v3399 = vpop.permute.xlu0 %3398
    %3400 = vrot.lane.b32.xlu0 %v2657, 16
    %v3401 = vpop.permute.xlu0 %3400
    %3402 = vrot.lane.b32.xlu0 %v2662, 16
    %v3403 = vpop.permute.xlu0 %3402
    %3404 = vrot.lane.b32.xlu0 %v2665, 16
    %v3405 = vpop.permute.xlu0 %3404
    %3406 = vrot.lane.b32.xlu0 %v2670, 16
    %v3407 = vpop.permute.xlu0 %3406
    %3408 = vrot.lane.b32.xlu0 %v2673, 16
    %v3409 = vpop.permute.xlu0 %3408
    %3410 = vrot.lane.b32.xlu0 %v2678, 16
    %v3411 = vpop.permute.xlu0 %3410
    %3412 = vrot.lane.b32.xlu0 %v2681, 16
    %v3413 = vpop.permute.xlu0 %3412
    %3414 = vrot.lane.b32.xlu0 %v2686, 16
    %v3415 = vpop.permute.xlu0 %3414
    %3416 = vrot.lane.b32.xlu0 %v2689, 16
    %v3417 = vpop.permute.xlu0 %3416
    %3418 = vrot.lane.b32.xlu0 %v2694, 16
    %v3419 = vpop.permute.xlu0 %3418
    %3420 = vrot.lane.b32.xlu0 %v2697, 16
    %v3421 = vpop.permute.xlu0 %3420
    %3454 = vrot.lane.b32.xlu0 %v3248, 24
    %v3455 = vpop.permute.xlu0 %3454
    %3456 = vrot.lane.b32.xlu0 %v3251, 24
    %v3457 = vpop.permute.xlu0 %3456
    %3458 = vrot.lane.b32.xlu0 %v3256, 24
    %v3459 = vpop.permute.xlu0 %3458
    %3460 = vrot.lane.b32.xlu0 %v3259, 24
    %v3461 = vpop.permute.xlu0 %3460
    %3462 = vrot.lane.b32.xlu0 %v3264, 24
    %v3463 = vpop.permute.xlu0 %3462
    %3464 = vrot.lane.b32.xlu0 %v3267, 24
    %v3465 = vpop.permute.xlu0 %3464
    %3466 = vrot.lane.b32.xlu0 %v3272, 24
    %v3467 = vpop.permute.xlu0 %3466
    %3468 = vrot.lane.b32.xlu0 %v3275, 24
    %v3469 = vpop.permute.xlu0 %3468
    %3470 = vrot.lane.b32.xlu0 %v3280, 24
    %v3471 = vpop.permute.xlu0 %3470
    %3472 = vrot.lane.b32.xlu0 %v3283, 24
    %v3473 = vpop.permute.xlu0 %3472
    %3474 = vrot.lane.b32.xlu0 %v3288, 24
    %v3475 = vpop.permute.xlu0 %3474
    %3476 = vrot.lane.b32.xlu0 %v3291, 24
    %v3477 = vpop.permute.xlu0 %3476
    %3478 = vrot.lane.b32.xlu0 %v3296, 24
    %v3479 = vpop.permute.xlu0 %3478
    %3480 = vrot.lane.b32.xlu0 %v3299, 24
    %v3481 = vpop.permute.xlu0 %3480
    %3482 = vrot.lane.b32.xlu0 %v3304, 24
    %v3483 = vpop.permute.xlu0 %3482
    %3484 = vrot.lane.b32.xlu0 %v3307, 24
    %v3485 = vpop.permute.xlu0 %3484
    %v3502 = vsel %vm543, %v1418, %v3327
    %v3503 = vsel %vm543, %v1421, %v3329
    %v3504 = vsel %vm543, %v1426, %v3331
    %v3505 = vsel %vm543, %v1429, %v3333
    %v3506 = vsel %vm543, %v1434, %v3335
    %v3507 = vsel %vm543, %v1437, %v3337
    %v3508 = vsel %vm543, %v1442, %v3339
    %v3509 = vsel %vm543, %v1445, %v3341
    %v3510 = vsel %vm543, %v1450, %v3343
    %v3511 = vsel %vm543, %v1453, %v3345
    %v3512 = vsel %vm543, %v1458, %v3347
    %v3513 = vsel %vm543, %v1461, %v3349
    %v3514 = vsel %vm543, %v1466, %v3351
    %v3515 = vsel %vm543, %v1469, %v3353
    %v3516 = vsel %vm543, %v1474, %v3355
    %v3517 = vsel %vm543, %v1477, %v3357
    %v3518 = vsel %vm1057, %v3502, %v3391
    %v3519 = vsel %vm1057, %v3503, %v3393
    %v3520 = vsel %vm1057, %v3504, %v3395
    %v3521 = vsel %vm1057, %v3505, %v3397
    %v3522 = vsel %vm1057, %v3506, %v3399
    %v3523 = vsel %vm1057, %v3507, %v3401
    %v3524 = vsel %vm1057, %v3508, %v3403
    %v3525 = vsel %vm1057, %v3509, %v3405
    %v3526 = vsel %vm1057, %v3510, %v3407
    %v3527 = vsel %vm1057, %v3511, %v3409
    %v3528 = vsel %vm1057, %v3512, %v3411
    %v3529 = vsel %vm1057, %v3513, %v3413
    %v3530 = vsel %vm1057, %v3514, %v3415
    %v3531 = vsel %vm1057, %v3515, %v3417
    %v3532 = vsel %vm1057, %v3516, %v3419
    %v3533 = vsel %vm1057, %v3517, %v3421
    %vm3534 = vcmask 195584
    %v3535 = vsel %vm3534, %v3518, %v3455
    %v3536 = vsel %vm3534, %v3519, %v3457
    %v3537 = vsel %vm3534, %v3520, %v3459
    %v3538 = vsel %vm3534, %v3521, %v3461
    %v3539 = vsel %vm3534, %v3522, %v3463
    %v3540 = vsel %vm3534, %v3523, %v3465
    %v3541 = vsel %vm3534, %v3524, %v3467
    %v3542 = vsel %vm3534, %v3525, %v3469
    %v3543 = vsel %vm3534, %v3526, %v3471
    %v3544 = vsel %vm3534, %v3527, %v3473
    %v3545 = vsel %vm3534, %v3528, %v3475
    %v3546 = vsel %vm3534, %v3529, %v3477
    %v3547 = vsel %vm3534, %v3530, %v3479
    %v3548 = vsel %vm3534, %v3531, %v3481
    %v3549 = vsel %vm3534, %v3532, %v3483
    %v3550 = vsel %vm3534, %v3533, %v3485
    %v3551 = vpack.c.bf16 %v3536, %v3535
    %v3552 = vpack.c.bf16 %v3538, %v3537
    %v3553 = vpack.c.bf16 %v3540, %v3539
    %v3554 = vpack.c.bf16 %v3542, %v3541
    %v3555 = vpack.c.bf16 %v3544, %v3543
    %v3556 = vpack.c.bf16 %v3546, %v3545
    %v3557 = vpack.c.bf16 %v3548, %v3547
    %v3558 = vpack.c.bf16 %v3550, %v3549
    %3559 = vrot.lane.b32.xlu0 %v386, 32
    %v3560 = vpop.permute.xlu0 %3559
    %3561 = vrot.lane.b32.xlu0 %v387, 32
    %v3562 = vpop.permute.xlu0 %3561
    %v3566 = vsel %vm88, %v3551, 0
    %v3569 = vsel %vm88, %v3552, 0
    %v3572 = vsel %vm88, %v3553, 0
    %v3575 = vsel %vm88, %v3554, 0
    %v3578 = vsel %vm88, %v3555, 0
    %v3581 = vsel %vm88, %v3556, 0
    %v3584 = vsel %vm88, %v3557, 0
    %v3587 = vsel %vm88, %v3558, 0
    %3589 = vmatprep.subr.bf16.mxu0 0
    %3590 = vmatpush1.bf16.msra.mxu0 %v3560
    %3591 = vmatprep.subr.bf16.mxu0 0
    %3592 = vmatpush1.bf16.msra.mxu0 %v3562
    %3593 = vmatprep.subr.bf16.mxu0 0
    %3594 = vmatpush1.bf16.msra.mxu0 0
    %3595 = vmatprep.subr.bf16.mxu0 0
    %3596 = vmatpush1.bf16.msra.mxu0 0
    %3597 = vmatprep.subr.bf16.mxu0 0
    %3598 = vmatpush1.bf16.msra.mxu0 0
    %3599 = vmatprep.subr.bf16.mxu0 0
    %3600 = vmatpush1.bf16.msra.mxu0 0
    %3601 = vmatprep.subr.bf16.mxu0 0
    %3602 = vmatpush1.bf16.msra.mxu0 0
    %3603 = vmatprep.subr.bf16.mxu0 0
    %3604 = vmatpush1.bf16.msra.mxu0 0
    %3605 = vmatprep.subr.bf16.mxu0 0
    %3606 = vmatpush1.bf16.msra.mxu0 0
    %3607 = vmatprep.subr.bf16.mxu0 0
    %3608 = vmatpush1.bf16.msra.mxu0 0
    %3609 = vmatprep.subr.bf16.mxu0 0
    %3610 = vmatpush1.bf16.msra.mxu0 0
    %3611 = vmatprep.subr.bf16.mxu0 0
    %3612 = vmatpush1.bf16.msra.mxu0 0
    %3613 = vmatprep.subr.bf16.mxu0 0
    %3614 = vmatpush1.bf16.msra.mxu0 0
    %3615 = vmatprep.subr.bf16.mxu0 0
    %3616 = vmatpush1.bf16.msra.mxu0 0
    %3617 = vmatprep.subr.bf16.mxu0 0
    %3618 = vmatpush1.bf16.msra.mxu0 0
    %3619 = vmatprep.subr.bf16.mxu0 0
    %3620 = vmatpush1.bf16.msra.mxu0 0
    %3621 = vmatprep.mubr.bf16.mxu0 0
    %3622 = vmatmul.mubr.bf16.gmra.mrb[0].mxu0 %v3566
    %v3623 = vpop.f32.mrb[0].mxu0
    %v3624 = vadd.f32 0.0, %v3623
    %v3625 = vpop.f32.mrb[0].mxu0
    %v3626 = vpop.f32.mrb[0].mxu0
    %v3627 = vadd.f32 0.0, %v3626
    %v3628 = vpop.f32.mrb[0].mxu0
    %3629 = vmatprep.mubr.bf16.mxu0 0
    %3630 = vmatmul.mubr.bf16.gmra.mrb[0].mxu0 %v3569
    %v3631 = vpop.f32.mrb[0].mxu0
    %v3632 = vadd.f32 0.0, %v3631
    %v3633 = vpop.f32.mrb[0].mxu0
    %v3634 = vpop.f32.mrb[0].mxu0
    %v3635 = vadd.f32 0.0, %v3634
    %v3636 = vpop.f32.mrb[0].mxu0
    %3637 = vmatprep.mubr.bf16.mxu0 0
    %3638 = vmatmul.mubr.bf16.gmra.mrb[0].mxu0 %v3572
    %v3639 = vpop.f32.mrb[0].mxu0
    %v3640 = vadd.f32 0.0, %v3639
    %v3641 = vpop.f32.mrb[0].mxu0
    %v3642 = vpop.f32.mrb[0].mxu0
    %v3643 = vadd.f32 0.0, %v3642
    %v3644 = vpop.f32.mrb[0].mxu0
    %3645 = vmatprep.mubr.bf16.mxu0 0
    %3646 = vmatmul.mubr.bf16.gmra.mrb[0].mxu0 %v3575
    %v3647 = vpop.f32.mrb[0].mxu0
    %v3648 = vadd.f32 0.0, %v3647
    %v3649 = vpop.f32.mrb[0].mxu0
    %v3650 = vpop.f32.mrb[0].mxu0
    %v3651 = vadd.f32 0.0, %v3650
    %v3652 = vpop.f32.mrb[0].mxu0
    %3653 = vmatprep.mubr.bf16.mxu0 0
    %3654 = vmatmul.mubr.bf16.gmra.mrb[0].mxu0 %v3578
    %v3655 = vpop.f32.mrb[0].mxu0
    %v3656 = vadd.f32 0.0, %v3655
    %v3657 = vpop.f32.mrb[0].mxu0
    %v3658 = vpop.f32.mrb[0].mxu0
    %v3659 = vadd.f32 0.0, %v3658
    %v3660 = vpop.f32.mrb[0].mxu0
    %3661 = vmatprep.mubr.bf16.mxu0 0
    %3662 = vmatmul.mubr.bf16.gmra.mrb[0].mxu0 %v3581
    %v3663 = vpop.f32.mrb[0].mxu0
    %v3664 = vadd.f32 0.0, %v3663
    %v3665 = vpop.f32.mrb[0].mxu0
    %v3666 = vpop.f32.mrb[0].mxu0
    %v3667 = vadd.f32 0.0, %v3666
    %v3668 = vpop.f32.mrb[0].mxu0
    %3669 = vmatprep.mubr.bf16.mxu0 0
    %3670 = vmatmul.mubr.bf16.gmra.mrb[0].mxu0 %v3584
    %v3671 = vpop.f32.mrb[0].mxu0
    %v3672 = vadd.f32 0.0, %v3671
    %v3673 = vpop.f32.mrb[0].mxu0
    %v3674 = vpop.f32.mrb[0].mxu0
    %v3675 = vadd.f32 0.0, %v3674
    %v3676 = vpop.f32.mrb[0].mxu0
    %3677 = vmatprep.mubr.bf16.mxu0 0
    %3678 = vmatmul.mubr.bf16.gmra.mrb[0].mxu0 %v3587
    %v3679 = vpop.f32.mrb[0].mxu0
    %v3680 = vadd.f32 0.0, %v3679
    %v3681 = vpop.f32.mrb[0].mxu0
    %v3682 = vpop.f32.mrb[0].mxu0
    %v3683 = vadd.f32 0.0, %v3682
    %v3684 = vpop.f32.mrb[0].mxu0
    %3685 = vdwg.mxu0
    %v3686 = vadd.f32 %v31, %v3624
    %v3687 = vadd.f32 %v32, %v3627
    %v3688 = vadd.f32 %v33, %v3632
    %v3689 = vadd.f32 %v34, %v3635
    %v3690 = vadd.f32 %v35, %v3640
    %v3691 = vadd.f32 %v36, %v3643
    %v3692 = vadd.f32 %v37, %v3648
    %v3693 = vadd.f32 %v38, %v3651
    %v3694 = vadd.f32 %v39, %v3656
    %v3695 = vadd.f32 %v40, %v3659
    %v3696 = vadd.f32 %v41, %v3664
    %v3697 = vadd.f32 %v42, %v3667
    %v3698 = vadd.f32 %v43, %v3672
    %v3699 = vadd.f32 %v44, %v3675
    %v3700 = vadd.f32 %v45, %v3680
    %v3701 = vadd.f32 %v46, %v3683
    %v3702 = vsel %vm88, %v3686, 0.0
    %3703 = vadd.xlane.f32.xlu0 %v3702
    %v3704 = vpop.xlane.xlu0 %3703
    %v3705 = vsel %vm88, %v3687, 0.0
    %3706 = vadd.xlane.f32.xlu0 %v3705
    %v3707 = vpop.xlane.xlu0 %3706
    %v3708 = vsel %vm88, %v3688, 0.0
    %3709 = vadd.xlane.f32.xlu0 %v3708
    %v3710 = vpop.xlane.xlu0 %3709
    %v3711 = vsel %vm88, %v3689, 0.0
    %3712 = vadd.xlane.f32.xlu0 %v3711
    %v3713 = vpop.xlane.xlu0 %3712
    %v3714 = vsel %vm88, %v3690, 0.0
    %3715 = vadd.xlane.f32.xlu0 %v3714
    %v3716 = vpop.xlane.xlu0 %3715
    %v3717 = vsel %vm88, %v3691, 0.0
    %3718 = vadd.xlane.f32.xlu0 %v3717
    %v3719 = vpop.xlane.xlu0 %3718
    %v3720 = vsel %vm88, %v3692, 0.0
    %3721 = vadd.xlane.f32.xlu0 %v3720
    %v3722 = vpop.xlane.xlu0 %3721
    %v3723 = vsel %vm88, %v3693, 0.0
    %3724 = vadd.xlane.f32.xlu0 %v3723
    %v3725 = vpop.xlane.xlu0 %3724
    %v3726 = vsel %vm88, %v3694, 0.0
    %3727 = vadd.xlane.f32.xlu0 %v3726
    %v3728 = vpop.xlane.xlu0 %3727
    %v3729 = vsel %vm88, %v3695, 0.0
    %3730 = vadd.xlane.f32.xlu0 %v3729
    %v3731 = vpop.xlane.xlu0 %3730
    %v3732 = vsel %vm88, %v3696, 0.0
    %3733 = vadd.xlane.f32.xlu0 %v3732
    %v3734 = vpop.xlane.xlu0 %3733
    %v3735 = vsel %vm88, %v3697, 0.0
    %3736 = vadd.xlane.f32.xlu0 %v3735
    %v3737 = vpop.xlane.xlu0 %3736
    %v3738 = vsel %vm88, %v3698, 0.0
    %3739 = vadd.xlane.f32.xlu0 %v3738
    %v3740 = vpop.xlane.xlu0 %3739
    %v3741 = vsel %vm88, %v3699, 0.0
    %3742 = vadd.xlane.f32.xlu0 %v3741
    %v3743 = vpop.xlane.xlu0 %3742
    %v3744 = vsel %vm88, %v3700, 0.0
    %3745 = vadd.xlane.f32.xlu0 %v3744
    %v3746 = vpop.xlane.xlu0 %3745
    %v3747 = vsel %vm88, %v3701, 0.0
    %3748 = vadd.xlane.f32.xlu0 %v3747
    %v3749 = vpop.xlane.xlu0 %3748
    %v3750 = vmul.f32 %v3704, %v137
    %v3751 = vmul.f32 %v3707, %v137
    %v3752 = vmul.f32 %v3710, %v137
    %v3753 = vmul.f32 %v3713, %v137
    %v3754 = vmul.f32 %v3716, %v137
    %v3755 = vmul.f32 %v3719, %v137
    %v3756 = vmul.f32 %v3722, %v137
    %v3757 = vmul.f32 %v3725, %v137
    %v3758 = vmul.f32 %v3728, %v137
    %v3759 = vmul.f32 %v3731, %v137
    %v3760 = vmul.f32 %v3734, %v137
    %v3761 = vmul.f32 %v3737, %v137
    %v3762 = vmul.f32 %v3740, %v137
    %v3763 = vmul.f32 %v3743, %v137
    %v3764 = vmul.f32 %v3746, %v137
    %v3765 = vmul.f32 %v3749, %v137
    %v3766 = vmul.f32 %v3686, %v3686
    %v3767 = vmul.f32 %v3687, %v3687
    %v3768 = vmul.f32 %v3688, %v3688
    %v3769 = vmul.f32 %v3689, %v3689
    %v3770 = vmul.f32 %v3690, %v3690
    %v3771 = vmul.f32 %v3691, %v3691
    %v3772 = vmul.f32 %v3692, %v3692
    %v3773 = vmul.f32 %v3693, %v3693
    %v3774 = vmul.f32 %v3694, %v3694
    %v3775 = vmul.f32 %v3695, %v3695
    %v3776 = vmul.f32 %v3696, %v3696
    %v3777 = vmul.f32 %v3697, %v3697
    %v3778 = vmul.f32 %v3698, %v3698
    %v3779 = vmul.f32 %v3699, %v3699
    %v3780 = vmul.f32 %v3700, %v3700
    %v3781 = vmul.f32 %v3701, %v3701
    %v3782 = vsel %vm88, %v3766, 0.0
    %3783 = vadd.xlane.f32.xlu0 %v3782
    %v3784 = vpop.xlane.xlu0 %3783
    %v3785 = vsel %vm88, %v3767, 0.0
    %3786 = vadd.xlane.f32.xlu0 %v3785
    %v3787 = vpop.xlane.xlu0 %3786
    %v3788 = vsel %vm88, %v3768, 0.0
    %3789 = vadd.xlane.f32.xlu0 %v3788
    %v3790 = vpop.xlane.xlu0 %3789
    %v3791 = vsel %vm88, %v3769, 0.0
    %3792 = vadd.xlane.f32.xlu0 %v3791
    %v3793 = vpop.xlane.xlu0 %3792
    %v3794 = vsel %vm88, %v3770, 0.0
    %3795 = vadd.xlane.f32.xlu0 %v3794
    %v3796 = vpop.xlane.xlu0 %3795
    %v3797 = vsel %vm88, %v3771, 0.0
    %3798 = vadd.xlane.f32.xlu0 %v3797
    %v3799 = vpop.xlane.xlu0 %3798
    %v3800 = vsel %vm88, %v3772, 0.0
    %3801 = vadd.xlane.f32.xlu0 %v3800
    %v3802 = vpop.xlane.xlu0 %3801
    %v3803 = vsel %vm88, %v3773, 0.0
    %3804 = vadd.xlane.f32.xlu0 %v3803
    %v3805 = vpop.xlane.xlu0 %3804
    %v3806 = vsel %vm88, %v3774, 0.0
    %3807 = vadd.xlane.f32.xlu0 %v3806
    %v3808 = vpop.xlane.xlu0 %3807
    %v3809 = vsel %vm88, %v3775, 0.0
    %3810 = vadd.xlane.f32.xlu0 %v3809
    %v3811 = vpop.xlane.xlu0 %3810
    %v3812 = vsel %vm88, %v3776, 0.0
    %3813 = vadd.xlane.f32.xlu0 %v3812
    %v3814 = vpop.xlane.xlu0 %3813
    %v3815 = vsel %vm88, %v3777, 0.0
    %3816 = vadd.xlane.f32.xlu0 %v3815
    %v3817 = vpop.xlane.xlu0 %3816
    %v3818 = vsel %vm88, %v3778, 0.0
    %3819 = vadd.xlane.f32.xlu0 %v3818
    %v3820 = vpop.xlane.xlu0 %3819
    %v3821 = vsel %vm88, %v3779, 0.0
    %3822 = vadd.xlane.f32.xlu0 %v3821
    %v3823 = vpop.xlane.xlu0 %3822
    %v3824 = vsel %vm88, %v3780, 0.0
    %3825 = vadd.xlane.f32.xlu0 %v3824
    %v3826 = vpop.xlane.xlu0 %3825
    %v3827 = vsel %vm88, %v3781, 0.0
    %3828 = vadd.xlane.f32.xlu0 %v3827
    %v3829 = vpop.xlane.xlu0 %3828
    %v3830 = vmul.f32 %v3784, %v137
    %v3831 = vmul.f32 %v3787, %v137
    %v3832 = vmul.f32 %v3790, %v137
    %v3833 = vmul.f32 %v3793, %v137
    %v3834 = vmul.f32 %v3796, %v137
    %v3835 = vmul.f32 %v3799, %v137
    %v3836 = vmul.f32 %v3802, %v137
    %v3837 = vmul.f32 %v3805, %v137
    %v3838 = vmul.f32 %v3808, %v137
    %v3839 = vmul.f32 %v3811, %v137
    %v3840 = vmul.f32 %v3814, %v137
    %v3841 = vmul.f32 %v3817, %v137
    %v3842 = vmul.f32 %v3820, %v137
    %v3843 = vmul.f32 %v3823, %v137
    %v3844 = vmul.f32 %v3826, %v137
    %v3845 = vmul.f32 %v3829, %v137
    %v3846 = vmul.f32 %v3750, %v3750
    %v3847 = vmul.f32 %v3751, %v3751
    %v3848 = vmul.f32 %v3752, %v3752
    %v3849 = vmul.f32 %v3753, %v3753
    %v3850 = vmul.f32 %v3754, %v3754
    %v3851 = vmul.f32 %v3755, %v3755
    %v3852 = vmul.f32 %v3756, %v3756
    %v3853 = vmul.f32 %v3757, %v3757
    %v3854 = vmul.f32 %v3758, %v3758
    %v3855 = vmul.f32 %v3759, %v3759
    %v3856 = vmul.f32 %v3760, %v3760
    %v3857 = vmul.f32 %v3761, %v3761
    %v3858 = vmul.f32 %v3762, %v3762
    %v3859 = vmul.f32 %v3763, %v3763
    %v3860 = vmul.f32 %v3764, %v3764
    %v3861 = vmul.f32 %v3765, %v3765
    %v3862 = vsub.f32 %v3830, %v3846
    %v3863 = vsub.f32 %v3831, %v3847
    %v3864 = vsub.f32 %v3832, %v3848
    %v3865 = vsub.f32 %v3833, %v3849
    %v3866 = vsub.f32 %v3834, %v3850
    %v3867 = vsub.f32 %v3835, %v3851
    %v3868 = vsub.f32 %v3836, %v3852
    %v3869 = vsub.f32 %v3837, %v3853
    %v3870 = vsub.f32 %v3838, %v3854
    %v3871 = vsub.f32 %v3839, %v3855
    %v3872 = vsub.f32 %v3840, %v3856
    %v3873 = vsub.f32 %v3841, %v3857
    %v3874 = vsub.f32 %v3842, %v3858
    %v3875 = vsub.f32 %v3843, %v3859
    %v3876 = vsub.f32 %v3844, %v3860
    %v3877 = vsub.f32 %v3845, %v3861
    %v3878 = vsub.f32 %v3686, %v3750
    %v3879 = vsub.f32 %v3687, %v3751
    %v3880 = vsub.f32 %v3688, %v3752
    %v3881 = vsub.f32 %v3689, %v3753
    %v3882 = vsub.f32 %v3690, %v3754
    %v3883 = vsub.f32 %v3691, %v3755
    %v3884 = vsub.f32 %v3692, %v3756
    %v3885 = vsub.f32 %v3693, %v3757
    %v3886 = vsub.f32 %v3694, %v3758
    %v3887 = vsub.f32 %v3695, %v3759
    %v3888 = vsub.f32 %v3696, %v3760
    %v3889 = vsub.f32 %v3697, %v3761
    %v3890 = vsub.f32 %v3698, %v3762
    %v3891 = vsub.f32 %v3699, %v3763
    %v3892 = vsub.f32 %v3700, %v3764
    %v3893 = vsub.f32 %v3701, %v3765
    %v3894 = vadd.f32 %v3862, 1e-05
    %v3895 = vadd.f32 %v3863, 1e-05
    %v3896 = vadd.f32 %v3864, 1e-05
    %v3897 = vadd.f32 %v3865, 1e-05
    %v3898 = vadd.f32 %v3866, 1e-05
    %v3899 = vadd.f32 %v3867, 1e-05
    %v3900 = vadd.f32 %v3868, 1e-05
    %v3901 = vadd.f32 %v3869, 1e-05
    %v3902 = vadd.f32 %v3870, 1e-05
    %v3903 = vadd.f32 %v3871, 1e-05
    %v3904 = vadd.f32 %v3872, 1e-05
    %v3905 = vadd.f32 %v3873, 1e-05
    %v3906 = vadd.f32 %v3874, 1e-05
    %v3907 = vadd.f32 %v3875, 1e-05
    %v3908 = vadd.f32 %v3876, 1e-05
    %v3909 = vadd.f32 %v3877, 1e-05
    %v3910 = vrsqrt.pop %v3894
    %v3911 = vrsqrt.pop %v3895
    %v3912 = vrsqrt.pop %v3896
    %v3913 = vrsqrt.pop %v3897
    %v3914 = vrsqrt.pop %v3898
    %v3915 = vrsqrt.pop %v3899
    %v3916 = vrsqrt.pop %v3900
    %v3917 = vrsqrt.pop %v3901
    %v3918 = vrsqrt.pop %v3902
    %v3919 = vrsqrt.pop %v3903
    %v3920 = vrsqrt.pop %v3904
    %v3921 = vrsqrt.pop %v3905
    %v3922 = vrsqrt.pop %v3906
    %v3923 = vrsqrt.pop %v3907
    %v3924 = vrsqrt.pop %v3908
    %v3925 = vrsqrt.pop %v3909
    %v3926 = vmul.f32 %v3878, %v3910
    %v3927 = vmul.f32 %v3879, %v3911
    %v3928 = vmul.f32 %v3880, %v3912
    %v3929 = vmul.f32 %v3881, %v3913
    %v3930 = vmul.f32 %v3882, %v3914
    %v3931 = vmul.f32 %v3883, %v3915
    %v3932 = vmul.f32 %v3884, %v3916
    %v3933 = vmul.f32 %v3885, %v3917
    %v3934 = vmul.f32 %v3886, %v3918
    %v3935 = vmul.f32 %v3887, %v3919
    %v3936 = vmul.f32 %v3888, %v3920
    %v3937 = vmul.f32 %v3889, %v3921
    %v3938 = vmul.f32 %v3890, %v3922
    %v3939 = vmul.f32 %v3891, %v3923
    %v3940 = vmul.f32 %v3892, %v3924
    %v3941 = vmul.f32 %v3893, %v3925
    %v3942 = vlaneseq
    %v3943 = vshrl.u32 %v3942, 7
    %v3944 = vsub.s32 2, %v3943
    %v3945 = vrot.slane %v71, %v3944
    %v3946 = vmul.f32 %v3926, %v3945
    %v3947 = vmul.f32 %v3927, %v3945
    %v3948 = vmul.f32 %v3928, %v3945
    %v3949 = vmul.f32 %v3929, %v3945
    %v3950 = vmul.f32 %v3930, %v3945
    %v3951 = vmul.f32 %v3931, %v3945
    %v3952 = vmul.f32 %v3932, %v3945
    %v3953 = vmul.f32 %v3933, %v3945
    %v3954 = vmul.f32 %v3934, %v3945
    %v3955 = vmul.f32 %v3935, %v3945
    %v3956 = vmul.f32 %v3936, %v3945
    %v3957 = vmul.f32 %v3937, %v3945
    %v3958 = vmul.f32 %v3938, %v3945
    %v3959 = vmul.f32 %v3939, %v3945
    %v3960 = vmul.f32 %v3940, %v3945
    %v3961 = vmul.f32 %v3941, %v3945
    %v3962 = vlaneseq
    %v3963 = vshrl.u32 %v3962, 7
    %v3964 = vsub.s32 3, %v3963
    %v3965 = vrot.slane %v71, %v3964
    %v3966 = vadd.f32 %v3946, %v3965
    %v3967 = vadd.f32 %v3947, %v3965
    %v3968 = vadd.f32 %v3948, %v3965
    %v3969 = vadd.f32 %v3949, %v3965
    %v3970 = vadd.f32 %v3950, %v3965
    %v3971 = vadd.f32 %v3951, %v3965
    %v3972 = vadd.f32 %v3952, %v3965
    %v3973 = vadd.f32 %v3953, %v3965
    %v3974 = vadd.f32 %v3954, %v3965
    %v3975 = vadd.f32 %v3955, %v3965
    %v3976 = vadd.f32 %v3956, %v3965
    %v3977 = vadd.f32 %v3957, %v3965
    %v3978 = vadd.f32 %v3958, %v3965
    %v3979 = vadd.f32 %v3959, %v3965
    %v3980 = vadd.f32 %v3960, %v3965
    %v3981 = vadd.f32 %v3961, %v3965
    %v3982 = vpack.c.bf16 %v3967, %v3966
    %v3983 = vpack.c.bf16 %v3969, %v3968
    %v3984 = vpack.c.bf16 %v3971, %v3970
    %v3985 = vpack.c.bf16 %v3973, %v3972
    %v3986 = vpack.c.bf16 %v3975, %v3974
    %v3987 = vpack.c.bf16 %v3977, %v3976
    %v3988 = vpack.c.bf16 %v3979, %v3978
    %v3989 = vpack.c.bf16 %v3981, %v3980
    %v3990 = vlaneseq
    %v3991 = vshrl.u32 %v3990, 7
    %v3992 = vsub.s32 4, %v3991
    %v3993 = vrot.slane %v71, %v3992
    %v3994 = vunpack.c.h.b16 %v63
    %v3995 = vunpack.c.h.b16 %v65
    %v3996 = vunpack.c.h.b16 %v67
    %v3997 = vunpack.c.h.b16 %v69
    %v3998 = vpack.c.b16 %v3995, %v3994
    %v3999 = vpack.c.b16 %v3997, %v3996
    %v4003 = vsel %vm88, %v3982, 0
    %v4006 = vsel %vm88, %v3983, 0
    %v4009 = vsel %vm88, %v3984, 0
    %v4012 = vsel %vm88, %v3985, 0
    %v4015 = vsel %vm88, %v3986, 0
    %v4018 = vsel %vm88, %v3987, 0
    %v4021 = vsel %vm88, %v3988, 0
    %v4024 = vsel %vm88, %v3989, 0
    %4026 = vmatprep.subr.bf16.mxu0 0
    %4027 = vmatpush1.bf16.msra.mxu0 %v3998
    %4028 = vmatprep.subr.bf16.mxu0 0
    %4029 = vmatpush1.bf16.msra.mxu0 %v3999
    %4030 = vmatprep.subr.bf16.mxu0 0
    %4031 = vmatpush1.bf16.msra.mxu0 0
    %4032 = vmatprep.subr.bf16.mxu0 0
    %4033 = vmatpush1.bf16.msra.mxu0 0
    %4034 = vmatprep.subr.bf16.mxu0 0
    %4035 = vmatpush1.bf16.msra.mxu0 0
    %4036 = vmatprep.subr.bf16.mxu0 0
    %4037 = vmatpush1.bf16.msra.mxu0 0
    %4038 = vmatprep.subr.bf16.mxu0 0
    %4039 = vmatpush1.bf16.msra.mxu0 0
    %4040 = vmatprep.subr.bf16.mxu0 0
    %4041 = vmatpush1.bf16.msra.mxu0 0
    %4042 = vmatprep.subr.bf16.mxu0 0
    %4043 = vmatpush1.bf16.msra.mxu0 0
    %4044 = vmatprep.subr.bf16.mxu0 0
    %4045 = vmatpush1.bf16.msra.mxu0 0
    %4046 = vmatprep.subr.bf16.mxu0 0
    %4047 = vmatpush1.bf16.msra.mxu0 0
    %4048 = vmatprep.subr.bf16.mxu0 0
    %4049 = vmatpush1.bf16.msra.mxu0 0
    %4050 = vmatprep.subr.bf16.mxu0 0
    %4051 = vmatpush1.bf16.msra.mxu0 0
    %4052 = vmatprep.subr.bf16.mxu0 0
    %4053 = vmatpush1.bf16.msra.mxu0 0
    %4054 = vmatprep.subr.bf16.mxu0 0
    %4055 = vmatpush1.bf16.msra.mxu0 0
    %4056 = vmatprep.subr.bf16.mxu0 0
    %4057 = vmatpush1.bf16.msra.mxu0 0
    %4058 = vmatprep.mubr.bf16.mxu0 0
    %4059 = vmatmul.mubr.bf16.gmra.mrb[0].mxu0 %v4003
    %v4060 = vpop.f32.mrb[0].mxu0
    %v4061 = vadd.f32 %v3993, %v4060
    %v4062 = vpop.f32.mrb[0].mxu0
    %v4063 = vpop.f32.mrb[0].mxu0
    %v4064 = vadd.f32 %v3993, %v4063
    %v4065 = vpop.f32.mrb[0].mxu0
    %4066 = vmatprep.mubr.bf16.mxu0 0
    %4067 = vmatmul.mubr.bf16.gmra.mrb[0].mxu0 %v4006
    %v4068 = vpop.f32.mrb[0].mxu0
    %v4069 = vadd.f32 %v3993, %v4068
    %v4070 = vpop.f32.mrb[0].mxu0
    %v4071 = vpop.f32.mrb[0].mxu0
    %v4072 = vadd.f32 %v3993, %v4071
    %v4073 = vpop.f32.mrb[0].mxu0
    %4074 = vmatprep.mubr.bf16.mxu0 0
    %4075 = vmatmul.mubr.bf16.gmra.mrb[0].mxu0 %v4009
    %v4076 = vpop.f32.mrb[0].mxu0
    %v4077 = vadd.f32 %v3993, %v4076
    %v4078 = vpop.f32.mrb[0].mxu0
    %v4079 = vpop.f32.mrb[0].mxu0
    %v4080 = vadd.f32 %v3993, %v4079
    %v4081 = vpop.f32.mrb[0].mxu0
    %4082 = vmatprep.mubr.bf16.mxu0 0
    %4083 = vmatmul.mubr.bf16.gmra.mrb[0].mxu0 %v4012
    %v4084 = vpop.f32.mrb[0].mxu0
    %v4085 = vadd.f32 %v3993, %v4084
    %v4086 = vpop.f32.mrb[0].mxu0
    %v4087 = vpop.f32.mrb[0].mxu0
    %v4088 = vadd.f32 %v3993, %v4087
    %v4089 = vpop.f32.mrb[0].mxu0
    %4090 = vmatprep.mubr.bf16.mxu0 0
    %4091 = vmatmul.mubr.bf16.gmra.mrb[0].mxu0 %v4015
    %v4092 = vpop.f32.mrb[0].mxu0
    %v4093 = vadd.f32 %v3993, %v4092
    %v4094 = vpop.f32.mrb[0].mxu0
    %v4095 = vpop.f32.mrb[0].mxu0
    %v4096 = vadd.f32 %v3993, %v4095
    %v4097 = vpop.f32.mrb[0].mxu0
    %4098 = vmatprep.mubr.bf16.mxu0 0
    %4099 = vmatmul.mubr.bf16.gmra.mrb[0].mxu0 %v4018
    %v4100 = vpop.f32.mrb[0].mxu0
    %v4101 = vadd.f32 %v3993, %v4100
    %v4102 = vpop.f32.mrb[0].mxu0
    %v4103 = vpop.f32.mrb[0].mxu0
    %v4104 = vadd.f32 %v3993, %v4103
    %v4105 = vpop.f32.mrb[0].mxu0
    %4106 = vmatprep.mubr.bf16.mxu0 0
    %4107 = vmatmul.mubr.bf16.gmra.mrb[0].mxu0 %v4021
    %v4108 = vpop.f32.mrb[0].mxu0
    %v4109 = vadd.f32 %v3993, %v4108
    %v4110 = vpop.f32.mrb[0].mxu0
    %v4111 = vpop.f32.mrb[0].mxu0
    %v4112 = vadd.f32 %v3993, %v4111
    %v4113 = vpop.f32.mrb[0].mxu0
    %4114 = vmatprep.mubr.bf16.mxu0 0
    %4115 = vmatmul.mubr.bf16.gmra.mrb[0].mxu0 %v4024
    %v4116 = vpop.f32.mrb[0].mxu0
    %v4117 = vadd.f32 %v3993, %v4116
    %v4118 = vpop.f32.mrb[0].mxu0
    %v4119 = vpop.f32.mrb[0].mxu0
    %v4120 = vadd.f32 %v3993, %v4119
    %v4121 = vpop.f32.mrb[0].mxu0
    %4122 = vdwg.mxu0
    %v4123 = vmax.f32 %v4061, 0.0
    %v4124 = vmax.f32 %v4064, 0.0
    %v4125 = vmax.f32 %v4069, 0.0
    %v4126 = vmax.f32 %v4072, 0.0
    %v4127 = vmax.f32 %v4077, 0.0
    %v4128 = vmax.f32 %v4080, 0.0
    %v4129 = vmax.f32 %v4085, 0.0
    %v4130 = vmax.f32 %v4088, 0.0
    %v4131 = vmax.f32 %v4093, 0.0
    %v4132 = vmax.f32 %v4096, 0.0
    %v4133 = vmax.f32 %v4101, 0.0
    %v4134 = vmax.f32 %v4104, 0.0
    %v4135 = vmax.f32 %v4109, 0.0
    %v4136 = vmax.f32 %v4112, 0.0
    %v4137 = vmax.f32 %v4117, 0.0
    %v4138 = vmax.f32 %v4120, 0.0
    %v4139 = vpack.c.bf16 %v4124, %v4123
    %v4140 = vpack.c.bf16 %v4126, %v4125
    %v4141 = vpack.c.bf16 %v4128, %v4127
    %v4142 = vpack.c.bf16 %v4130, %v4129
    %v4143 = vpack.c.bf16 %v4132, %v4131
    %v4144 = vpack.c.bf16 %v4134, %v4133
    %v4145 = vpack.c.bf16 %v4136, %v4135
    %v4146 = vpack.c.bf16 %v4138, %v4137
    %v4151 = vunpack.c.l.b16 %v64
    %v4152 = vunpack.c.l.b16 %v66
    %v4153 = vunpack.c.l.b16 %v68
    %v4154 = vunpack.c.l.b16 %v70
    %v4155 = vpack.c.b16 %v4152, %v4151
    %v4156 = vpack.c.b16 %v4154, %v4153
    %4159 = vmatprep.subr.bf16.mxu0 0
    %4160 = vmatpush1.bf16.xpose.msra.mxu0 %v4155
    %4161 = vmatprep.subr.bf16.mxu0 0
    %4162 = vmatpush1.bf16.xpose.msra.mxu0 %v4156
    %4163 = vmatprep.subr.bf16.mxu0 0
    %4164 = vmatpush1.bf16.xpose.msra.mxu0 0
    %4165 = vmatprep.subr.bf16.mxu0 0
    %4166 = vmatpush1.bf16.xpose.msra.mxu0 0
    %4167 = vmatprep.subr.bf16.mxu0 0
    %4168 = vmatpush1.bf16.xpose.msra.mxu0 0
    %4169 = vmatprep.subr.bf16.mxu0 0
    %4170 = vmatpush1.bf16.xpose.msra.mxu0 0
    %4171 = vmatprep.subr.bf16.mxu0 0
    %4172 = vmatpush1.bf16.xpose.msra.mxu0 0
    %4173 = vmatprep.subr.bf16.mxu0 0
    %4174 = vmatpush1.bf16.xpose.msra.mxu0 0
    %4175 = vmatprep.subr.bf16.mxu0 0
    %4176 = vmatpush1.bf16.xpose.msra.mxu0 0
    %4177 = vmatprep.subr.bf16.mxu0 0
    %4178 = vmatpush1.bf16.xpose.msra.mxu0 0
    %4179 = vmatprep.subr.bf16.mxu0 0
    %4180 = vmatpush1.bf16.xpose.msra.mxu0 0
    %4181 = vmatprep.subr.bf16.mxu0 0
    %4182 = vmatpush1.bf16.xpose.msra.mxu0 0
    %4183 = vmatprep.subr.bf16.mxu0 0
    %4184 = vmatpush1.bf16.xpose.msra.mxu0 0
    %4185 = vmatprep.subr.bf16.mxu0 0
    %4186 = vmatpush1.bf16.xpose.msra.mxu0 0
    %4187 = vmatprep.subr.bf16.mxu0 0
    %4188 = vmatpush1.bf16.xpose.msra.mxu0 0
    %4189 = vmatprep.subr.bf16.mxu0 0
    %4190 = vmatpush1.bf16.xpose.msra.mxu0 0
    %4191 = vmatprep.mubr.bf16.mxu0 0
    %4192 = vmatmul.mubr.bf16.gmra.mrb[0].mxu0 %v4139
    %v4193 = vpop.f32.mrb[0].mxu0
    %v4194 = vadd.f32 0.0, %v4193
    %v4195 = vpop.f32.mrb[0].mxu0
    %v4196 = vpop.f32.mrb[0].mxu0
    %v4197 = vadd.f32 0.0, %v4196
    %v4198 = vpop.f32.mrb[0].mxu0
    %4199 = vmatprep.mubr.bf16.mxu0 0
    %4200 = vmatmul.mubr.bf16.gmra.mrb[0].mxu0 %v4140
    %v4201 = vpop.f32.mrb[0].mxu0
    %v4202 = vadd.f32 0.0, %v4201
    %v4203 = vpop.f32.mrb[0].mxu0
    %v4204 = vpop.f32.mrb[0].mxu0
    %v4205 = vadd.f32 0.0, %v4204
    %v4206 = vpop.f32.mrb[0].mxu0
    %4207 = vmatprep.mubr.bf16.mxu0 0
    %4208 = vmatmul.mubr.bf16.gmra.mrb[0].mxu0 %v4141
    %v4209 = vpop.f32.mrb[0].mxu0
    %v4210 = vadd.f32 0.0, %v4209
    %v4211 = vpop.f32.mrb[0].mxu0
    %v4212 = vpop.f32.mrb[0].mxu0
    %v4213 = vadd.f32 0.0, %v4212
    %v4214 = vpop.f32.mrb[0].mxu0
    %4215 = vmatprep.mubr.bf16.mxu0 0
    %4216 = vmatmul.mubr.bf16.gmra.mrb[0].mxu0 %v4142
    %v4217 = vpop.f32.mrb[0].mxu0
    %v4218 = vadd.f32 0.0, %v4217
    %v4219 = vpop.f32.mrb[0].mxu0
    %v4220 = vpop.f32.mrb[0].mxu0
    %v4221 = vadd.f32 0.0, %v4220
    %v4222 = vpop.f32.mrb[0].mxu0
    %4223 = vmatprep.mubr.bf16.mxu0 0
    %4224 = vmatmul.mubr.bf16.gmra.mrb[0].mxu0 %v4143
    %v4225 = vpop.f32.mrb[0].mxu0
    %v4226 = vadd.f32 0.0, %v4225
    %v4227 = vpop.f32.mrb[0].mxu0
    %v4228 = vpop.f32.mrb[0].mxu0
    %v4229 = vadd.f32 0.0, %v4228
    %v4230 = vpop.f32.mrb[0].mxu0
    %4231 = vmatprep.mubr.bf16.mxu0 0
    %4232 = vmatmul.mubr.bf16.gmra.mrb[0].mxu0 %v4144
    %v4233 = vpop.f32.mrb[0].mxu0
    %v4234 = vadd.f32 0.0, %v4233
    %v4235 = vpop.f32.mrb[0].mxu0
    %v4236 = vpop.f32.mrb[0].mxu0
    %v4237 = vadd.f32 0.0, %v4236
    %v4238 = vpop.f32.mrb[0].mxu0
    %4239 = vmatprep.mubr.bf16.mxu0 0
    %4240 = vmatmul.mubr.bf16.gmra.mrb[0].mxu0 %v4145
    %v4241 = vpop.f32.mrb[0].mxu0
    %v4242 = vadd.f32 0.0, %v4241
    %v4243 = vpop.f32.mrb[0].mxu0
    %v4244 = vpop.f32.mrb[0].mxu0
    %v4245 = vadd.f32 0.0, %v4244
    %v4246 = vpop.f32.mrb[0].mxu0
    %4247 = vmatprep.mubr.bf16.mxu0 0
    %4248 = vmatmul.mubr.bf16.gmra.mrb[0].mxu0 %v4146
    %v4249 = vpop.f32.mrb[0].mxu0
    %v4250 = vadd.f32 0.0, %v4249
    %v4251 = vpop.f32.mrb[0].mxu0
    %v4252 = vpop.f32.mrb[0].mxu0
    %v4253 = vadd.f32 0.0, %v4252
    %v4254 = vpop.f32.mrb[0].mxu0
    %4255 = vdwg.mxu0
    %v4256 = vadd.f32 %v3686, %v4194
    %v4257 = vadd.f32 %v3687, %v4197
    %v4258 = vadd.f32 %v3688, %v4202
    %v4259 = vadd.f32 %v3689, %v4205
    %v4260 = vadd.f32 %v3690, %v4210
    %v4261 = vadd.f32 %v3691, %v4213
    %v4262 = vadd.f32 %v3692, %v4218
    %v4263 = vadd.f32 %v3693, %v4221
    %v4264 = vadd.f32 %v3694, %v4226
    %v4265 = vadd.f32 %v3695, %v4229
    %v4266 = vadd.f32 %v3696, %v4234
    %v4267 = vadd.f32 %v3697, %v4237
    %v4268 = vadd.f32 %v3698, %v4242
    %v4269 = vadd.f32 %v3699, %v4245
    %v4270 = vadd.f32 %v3700, %v4250
    %v4271 = vadd.f32 %v3701, %v4253
    %v4272 = vlaneseq
    %v4273 = vshrl.u32 %v4272, 7
    %v4274 = vsub.s32 5, %v4273
    %v4275 = vrot.slane %v71, %v4274
    %v4276 = vadd.f32 %v4256, %v4275
    %v4277 = vadd.f32 %v4257, %v4275
    %v4278 = vadd.f32 %v4258, %v4275
    %v4279 = vadd.f32 %v4259, %v4275
    %v4280 = vadd.f32 %v4260, %v4275
    %v4281 = vadd.f32 %v4261, %v4275
    %v4282 = vadd.f32 %v4262, %v4275
    %v4283 = vadd.f32 %v4263, %v4275
    %v4284 = vadd.f32 %v4264, %v4275
    %v4285 = vadd.f32 %v4265, %v4275
    %v4286 = vadd.f32 %v4266, %v4275
    %v4287 = vadd.f32 %v4267, %v4275
    %v4288 = vadd.f32 %v4268, %v4275
    %v4289 = vadd.f32 %v4269, %v4275
    %v4290 = vadd.f32 %v4270, %v4275
    %v4291 = vadd.f32 %v4271, %v4275
    %s4292 = scalar_lea.vmem %s4, 48
    %v4293 = vld [vmem:[%s4292] sm:$0xff]
    %v4294 = vld [vmem:[%s4292 + $0x8] sm:$0xf]
    %v4295 = vld [vmem:[%s4292 + $0xc] sm:$0xff]
    %v4296 = vld [vmem:[%s4292 + $0x14] sm:$0xf]
    %v4297 = vld [vmem:[%s4292 + $0x18] sm:$0xff]
    %v4298 = vld [vmem:[%s4292 + $0x20] sm:$0xf]
    %v4299 = vld [vmem:[%s4292 + $0x24] sm:$0xff]
    %v4300 = vld [vmem:[%s4292 + $0x2c] sm:$0xf]
    %s4301 = scalar_lea.vmem %s5, 8
    %v4302 = vld [vmem:[%s4301] sm:$0xff]
    %s4303 = scalar_lea.vmem %s3, 128
    %v4304 = vld [vmem:[%s4303] sm:$0xff]
    %v4305 = vld [vmem:[%s4303 + $0x8] sm:$0xff]
    %v4306 = vld [vmem:[%s4303 + $0x10] sm:$0xff]
    %v4307 = vld [vmem:[%s4303 + $0x18] sm:$0xff]
    %v4308 = vld [vmem:[%s4303 + $0x20] sm:$0xff]
    %v4309 = vld [vmem:[%s4303 + $0x28] sm:$0xff]
    %v4310 = vld [vmem:[%s4303 + $0x30] sm:$0xff]
    %v4311 = vld [vmem:[%s4303 + $0x38] sm:$0xff]
    %v4312 = vld [vmem:[%s4303 + $0x40] sm:$0xff]
    %v4313 = vld [vmem:[%s4303 + $0x48] sm:$0xff]
    %v4314 = vld [vmem:[%s4303 + $0x50] sm:$0xff]
    %v4315 = vld [vmem:[%s4303 + $0x58] sm:$0xff]
    %v4316 = vld [vmem:[%s4303 + $0x60] sm:$0xff]
    %v4317 = vld [vmem:[%s4303 + $0x68] sm:$0xff]
    %v4318 = vld [vmem:[%s4303 + $0x70] sm:$0xff]
    %v4319 = vld [vmem:[%s4303 + $0x78] sm:$0xff]
    %v4320 = vsel %vm88, %v4276, 0.0
    %4321 = vadd.xlane.f32.xlu0 %v4320
    %v4322 = vpop.xlane.xlu0 %4321
    %v4323 = vsel %vm88, %v4277, 0.0
    %4324 = vadd.xlane.f32.xlu0 %v4323
    %v4325 = vpop.xlane.xlu0 %4324
    %v4326 = vsel %vm88, %v4278, 0.0
    %4327 = vadd.xlane.f32.xlu0 %v4326
    %v4328 = vpop.xlane.xlu0 %4327
    %v4329 = vsel %vm88, %v4279, 0.0
    %4330 = vadd.xlane.f32.xlu0 %v4329
    %v4331 = vpop.xlane.xlu0 %4330
    %v4332 = vsel %vm88, %v4280, 0.0
    %4333 = vadd.xlane.f32.xlu0 %v4332
    %v4334 = vpop.xlane.xlu0 %4333
    %v4335 = vsel %vm88, %v4281, 0.0
    %4336 = vadd.xlane.f32.xlu0 %v4335
    %v4337 = vpop.xlane.xlu0 %4336
    %v4338 = vsel %vm88, %v4282, 0.0
    %4339 = vadd.xlane.f32.xlu0 %v4338
    %v4340 = vpop.xlane.xlu0 %4339
    %v4341 = vsel %vm88, %v4283, 0.0
    %4342 = vadd.xlane.f32.xlu0 %v4341
    %v4343 = vpop.xlane.xlu0 %4342
    %v4344 = vsel %vm88, %v4284, 0.0
    %4345 = vadd.xlane.f32.xlu0 %v4344
    %v4346 = vpop.xlane.xlu0 %4345
    %v4347 = vsel %vm88, %v4285, 0.0
    %4348 = vadd.xlane.f32.xlu0 %v4347
    %v4349 = vpop.xlane.xlu0 %4348
    %v4350 = vsel %vm88, %v4286, 0.0
    %4351 = vadd.xlane.f32.xlu0 %v4350
    %v4352 = vpop.xlane.xlu0 %4351
    %v4353 = vsel %vm88, %v4287, 0.0
    %4354 = vadd.xlane.f32.xlu0 %v4353
    %v4355 = vpop.xlane.xlu0 %4354
    %v4356 = vsel %vm88, %v4288, 0.0
    %4357 = vadd.xlane.f32.xlu0 %v4356
    %v4358 = vpop.xlane.xlu0 %4357
    %v4359 = vsel %vm88, %v4289, 0.0
    %4360 = vadd.xlane.f32.xlu0 %v4359
    %v4361 = vpop.xlane.xlu0 %4360
    %v4362 = vsel %vm88, %v4290, 0.0
    %4363 = vadd.xlane.f32.xlu0 %v4362
    %v4364 = vpop.xlane.xlu0 %4363
    %v4365 = vsel %vm88, %v4291, 0.0
    %4366 = vadd.xlane.f32.xlu0 %v4365
    %v4367 = vpop.xlane.xlu0 %4366
    %v4368 = vmul.f32 %v4322, %v137
    %v4369 = vmul.f32 %v4325, %v137
    %v4370 = vmul.f32 %v4328, %v137
    %v4371 = vmul.f32 %v4331, %v137
    %v4372 = vmul.f32 %v4334, %v137
    %v4373 = vmul.f32 %v4337, %v137
    %v4374 = vmul.f32 %v4340, %v137
    %v4375 = vmul.f32 %v4343, %v137
    %v4376 = vmul.f32 %v4346, %v137
    %v4377 = vmul.f32 %v4349, %v137
    %v4378 = vmul.f32 %v4352, %v137
    %v4379 = vmul.f32 %v4355, %v137
    %v4380 = vmul.f32 %v4358, %v137
    %v4381 = vmul.f32 %v4361, %v137
    %v4382 = vmul.f32 %v4364, %v137
    %v4383 = vmul.f32 %v4367, %v137
    %v4384 = vmul.f32 %v4276, %v4276
    %v4385 = vmul.f32 %v4277, %v4277
    %v4386 = vmul.f32 %v4278, %v4278
    %v4387 = vmul.f32 %v4279, %v4279
    %v4388 = vmul.f32 %v4280, %v4280
    %v4389 = vmul.f32 %v4281, %v4281
    %v4390 = vmul.f32 %v4282, %v4282
    %v4391 = vmul.f32 %v4283, %v4283
    %v4392 = vmul.f32 %v4284, %v4284
    %v4393 = vmul.f32 %v4285, %v4285
    %v4394 = vmul.f32 %v4286, %v4286
    %v4395 = vmul.f32 %v4287, %v4287
    %v4396 = vmul.f32 %v4288, %v4288
    %v4397 = vmul.f32 %v4289, %v4289
    %v4398 = vmul.f32 %v4290, %v4290
    %v4399 = vmul.f32 %v4291, %v4291
    %v4400 = vsel %vm88, %v4384, 0.0
    %4401 = vadd.xlane.f32.xlu0 %v4400
    %v4402 = vpop.xlane.xlu0 %4401
    %v4403 = vsel %vm88, %v4385, 0.0
    %4404 = vadd.xlane.f32.xlu0 %v4403
    %v4405 = vpop.xlane.xlu0 %4404
    %v4406 = vsel %vm88, %v4386, 0.0
    %4407 = vadd.xlane.f32.xlu0 %v4406
    %v4408 = vpop.xlane.xlu0 %4407
    %v4409 = vsel %vm88, %v4387, 0.0
    %4410 = vadd.xlane.f32.xlu0 %v4409
    %v4411 = vpop.xlane.xlu0 %4410
    %v4412 = vsel %vm88, %v4388, 0.0
    %4413 = vadd.xlane.f32.xlu0 %v4412
    %v4414 = vpop.xlane.xlu0 %4413
    %v4415 = vsel %vm88, %v4389, 0.0
    %4416 = vadd.xlane.f32.xlu0 %v4415
    %v4417 = vpop.xlane.xlu0 %4416
    %v4418 = vsel %vm88, %v4390, 0.0
    %4419 = vadd.xlane.f32.xlu0 %v4418
    %v4420 = vpop.xlane.xlu0 %4419
    %v4421 = vsel %vm88, %v4391, 0.0
    %4422 = vadd.xlane.f32.xlu0 %v4421
    %v4423 = vpop.xlane.xlu0 %4422
    %v4424 = vsel %vm88, %v4392, 0.0
    %4425 = vadd.xlane.f32.xlu0 %v4424
    %v4426 = vpop.xlane.xlu0 %4425
    %v4427 = vsel %vm88, %v4393, 0.0
    %4428 = vadd.xlane.f32.xlu0 %v4427
    %v4429 = vpop.xlane.xlu0 %4428
    %v4430 = vsel %vm88, %v4394, 0.0
    %4431 = vadd.xlane.f32.xlu0 %v4430
    %v4432 = vpop.xlane.xlu0 %4431
    %v4433 = vsel %vm88, %v4395, 0.0
    %4434 = vadd.xlane.f32.xlu0 %v4433
    %v4435 = vpop.xlane.xlu0 %4434
    %v4436 = vsel %vm88, %v4396, 0.0
    %4437 = vadd.xlane.f32.xlu0 %v4436
    %v4438 = vpop.xlane.xlu0 %4437
    %v4439 = vsel %vm88, %v4397, 0.0
    %4440 = vadd.xlane.f32.xlu0 %v4439
    %v4441 = vpop.xlane.xlu0 %4440
    %v4442 = vsel %vm88, %v4398, 0.0
    %4443 = vadd.xlane.f32.xlu0 %v4442
    %v4444 = vpop.xlane.xlu0 %4443
    %v4445 = vsel %vm88, %v4399, 0.0
    %4446 = vadd.xlane.f32.xlu0 %v4445
    %v4447 = vpop.xlane.xlu0 %4446
    %v4448 = vmul.f32 %v4402, %v137
    %v4449 = vmul.f32 %v4405, %v137
    %v4450 = vmul.f32 %v4408, %v137
    %v4451 = vmul.f32 %v4411, %v137
    %v4452 = vmul.f32 %v4414, %v137
    %v4453 = vmul.f32 %v4417, %v137
    %v4454 = vmul.f32 %v4420, %v137
    %v4455 = vmul.f32 %v4423, %v137
    %v4456 = vmul.f32 %v4426, %v137
    %v4457 = vmul.f32 %v4429, %v137
    %v4458 = vmul.f32 %v4432, %v137
    %v4459 = vmul.f32 %v4435, %v137
    %v4460 = vmul.f32 %v4438, %v137
    %v4461 = vmul.f32 %v4441, %v137
    %v4462 = vmul.f32 %v4444, %v137
    %v4463 = vmul.f32 %v4447, %v137
    %v4464 = vmul.f32 %v4368, %v4368
    %v4465 = vmul.f32 %v4369, %v4369
    %v4466 = vmul.f32 %v4370, %v4370
    %v4467 = vmul.f32 %v4371, %v4371
    %v4468 = vmul.f32 %v4372, %v4372
    %v4469 = vmul.f32 %v4373, %v4373
    %v4470 = vmul.f32 %v4374, %v4374
    %v4471 = vmul.f32 %v4375, %v4375
    %v4472 = vmul.f32 %v4376, %v4376
    %v4473 = vmul.f32 %v4377, %v4377
    %v4474 = vmul.f32 %v4378, %v4378
    %v4475 = vmul.f32 %v4379, %v4379
    %v4476 = vmul.f32 %v4380, %v4380
    %v4477 = vmul.f32 %v4381, %v4381
    %v4478 = vmul.f32 %v4382, %v4382
    %v4479 = vmul.f32 %v4383, %v4383
    %v4480 = vsub.f32 %v4448, %v4464
    %v4481 = vsub.f32 %v4449, %v4465
    %v4482 = vsub.f32 %v4450, %v4466
    %v4483 = vsub.f32 %v4451, %v4467
    %v4484 = vsub.f32 %v4452, %v4468
    %v4485 = vsub.f32 %v4453, %v4469
    %v4486 = vsub.f32 %v4454, %v4470
    %v4487 = vsub.f32 %v4455, %v4471
    %v4488 = vsub.f32 %v4456, %v4472
    %v4489 = vsub.f32 %v4457, %v4473
    %v4490 = vsub.f32 %v4458, %v4474
    %v4491 = vsub.f32 %v4459, %v4475
    %v4492 = vsub.f32 %v4460, %v4476
    %v4493 = vsub.f32 %v4461, %v4477
    %v4494 = vsub.f32 %v4462, %v4478
    %v4495 = vsub.f32 %v4463, %v4479
    %v4496 = vsub.f32 %v4276, %v4368
    %v4497 = vsub.f32 %v4277, %v4369
    %v4498 = vsub.f32 %v4278, %v4370
    %v4499 = vsub.f32 %v4279, %v4371
    %v4500 = vsub.f32 %v4280, %v4372
    %v4501 = vsub.f32 %v4281, %v4373
    %v4502 = vsub.f32 %v4282, %v4374
    %v4503 = vsub.f32 %v4283, %v4375
    %v4504 = vsub.f32 %v4284, %v4376
    %v4505 = vsub.f32 %v4285, %v4377
    %v4506 = vsub.f32 %v4286, %v4378
    %v4507 = vsub.f32 %v4287, %v4379
    %v4508 = vsub.f32 %v4288, %v4380
    %v4509 = vsub.f32 %v4289, %v4381
    %v4510 = vsub.f32 %v4290, %v4382
    %v4511 = vsub.f32 %v4291, %v4383
    %v4512 = vadd.f32 %v4480, 1e-05
    %v4513 = vadd.f32 %v4481, 1e-05
    %v4514 = vadd.f32 %v4482, 1e-05
    %v4515 = vadd.f32 %v4483, 1e-05
    %v4516 = vadd.f32 %v4484, 1e-05
    %v4517 = vadd.f32 %v4485, 1e-05
    %v4518 = vadd.f32 %v4486, 1e-05
    %v4519 = vadd.f32 %v4487, 1e-05
    %v4520 = vadd.f32 %v4488, 1e-05
    %v4521 = vadd.f32 %v4489, 1e-05
    %v4522 = vadd.f32 %v4490, 1e-05
    %v4523 = vadd.f32 %v4491, 1e-05
    %v4524 = vadd.f32 %v4492, 1e-05
    %v4525 = vadd.f32 %v4493, 1e-05
    %v4526 = vadd.f32 %v4494, 1e-05
    %v4527 = vadd.f32 %v4495, 1e-05
    %v4528 = vrsqrt.pop %v4512
    %v4529 = vrsqrt.pop %v4513
    %v4530 = vrsqrt.pop %v4514
    %v4531 = vrsqrt.pop %v4515
    %v4532 = vrsqrt.pop %v4516
    %v4533 = vrsqrt.pop %v4517
    %v4534 = vrsqrt.pop %v4518
    %v4535 = vrsqrt.pop %v4519
    %v4536 = vrsqrt.pop %v4520
    %v4537 = vrsqrt.pop %v4521
    %v4538 = vrsqrt.pop %v4522
    %v4539 = vrsqrt.pop %v4523
    %v4540 = vrsqrt.pop %v4524
    %v4541 = vrsqrt.pop %v4525
    %v4542 = vrsqrt.pop %v4526
    %v4543 = vrsqrt.pop %v4527
    %v4544 = vmul.f32 %v4496, %v4528
    %v4545 = vmul.f32 %v4497, %v4529
    %v4546 = vmul.f32 %v4498, %v4530
    %v4547 = vmul.f32 %v4499, %v4531
    %v4548 = vmul.f32 %v4500, %v4532
    %v4549 = vmul.f32 %v4501, %v4533
    %v4550 = vmul.f32 %v4502, %v4534
    %v4551 = vmul.f32 %v4503, %v4535
    %v4552 = vmul.f32 %v4504, %v4536
    %v4553 = vmul.f32 %v4505, %v4537
    %v4554 = vmul.f32 %v4506, %v4538
    %v4555 = vmul.f32 %v4507, %v4539
    %v4556 = vmul.f32 %v4508, %v4540
    %v4557 = vmul.f32 %v4509, %v4541
    %v4558 = vmul.f32 %v4510, %v4542
    %v4559 = vmul.f32 %v4511, %v4543
    %v4560 = vlaneseq
    %v4561 = vshrl.u32 %v4560, 7
    %v4562 = vsub.s32 0, %v4561
    %v4563 = vrot.slane %v4302, %v4562
    %v4564 = vmul.f32 %v4544, %v4563
    %v4565 = vmul.f32 %v4545, %v4563
    %v4566 = vmul.f32 %v4546, %v4563
    %v4567 = vmul.f32 %v4547, %v4563
    %v4568 = vmul.f32 %v4548, %v4563
    %v4569 = vmul.f32 %v4549, %v4563
    %v4570 = vmul.f32 %v4550, %v4563
    %v4571 = vmul.f32 %v4551, %v4563
    %v4572 = vmul.f32 %v4552, %v4563
    %v4573 = vmul.f32 %v4553, %v4563
    %v4574 = vmul.f32 %v4554, %v4563
    %v4575 = vmul.f32 %v4555, %v4563
    %v4576 = vmul.f32 %v4556, %v4563
    %v4577 = vmul.f32 %v4557, %v4563
    %v4578 = vmul.f32 %v4558, %v4563
    %v4579 = vmul.f32 %v4559, %v4563
    %v4580 = vlaneseq
    %v4581 = vshrl.u32 %v4580, 7
    %v4582 = vsub.s32 1, %v4581
    %v4583 = vrot.slane %v4302, %v4582
    %v4584 = vadd.f32 %v4564, %v4583
    %v4585 = vadd.f32 %v4565, %v4583
    %v4586 = vadd.f32 %v4566, %v4583
    %v4587 = vadd.f32 %v4567, %v4583
    %v4588 = vadd.f32 %v4568, %v4583
    %v4589 = vadd.f32 %v4569, %v4583
    %v4590 = vadd.f32 %v4570, %v4583
    %v4591 = vadd.f32 %v4571, %v4583
    %v4592 = vadd.f32 %v4572, %v4583
    %v4593 = vadd.f32 %v4573, %v4583
    %v4594 = vadd.f32 %v4574, %v4583
    %v4595 = vadd.f32 %v4575, %v4583
    %v4596 = vadd.f32 %v4576, %v4583
    %v4597 = vadd.f32 %v4577, %v4583
    %v4598 = vadd.f32 %v4578, %v4583
    %v4599 = vadd.f32 %v4579, %v4583
    %v4600 = vpack.c.bf16 %v4585, %v4584
    %v4601 = vpack.c.bf16 %v4587, %v4586
    %v4602 = vpack.c.bf16 %v4589, %v4588
    %v4603 = vpack.c.bf16 %v4591, %v4590
    %v4604 = vpack.c.bf16 %v4593, %v4592
    %v4605 = vpack.c.bf16 %v4595, %v4594
    %v4606 = vpack.c.bf16 %v4597, %v4596
    %v4607 = vpack.c.bf16 %v4599, %v4598
    %v4612 = vunpack.c.l.b16 %v4293
    %v4613 = vunpack.c.l.b16 %v4295
    %v4614 = vunpack.c.l.b16 %v4297
    %v4615 = vunpack.c.l.b16 %v4299
    %v4616 = vpack.c.b16 %v4613, %v4612
    %v4617 = vpack.c.b16 %v4615, %v4614
    %v4621 = vsel %vm88, %v4600, 0
    %v4624 = vsel %vm88, %v4601, 0
    %v4627 = vsel %vm88, %v4602, 0
    %v4630 = vsel %vm88, %v4603, 0
    %v4633 = vsel %vm88, %v4604, 0
    %v4636 = vsel %vm88, %v4605, 0
    %v4639 = vsel %vm88, %v4606, 0
    %v4642 = vsel %vm88, %v4607, 0
    %4644 = vmatprep.subr.bf16.mxu0 0
    %4645 = vmatpush1.bf16.msra.mxu0 %v4616
    %4646 = vmatprep.subr.bf16.mxu0 0
    %4647 = vmatpush1.bf16.msra.mxu0 %v4617
    %4648 = vmatprep.subr.bf16.mxu0 0
    %4649 = vmatpush1.bf16.msra.mxu0 0
    %4650 = vmatprep.subr.bf16.mxu0 0
    %4651 = vmatpush1.bf16.msra.mxu0 0
    %4652 = vmatprep.subr.bf16.mxu0 0
    %4653 = vmatpush1.bf16.msra.mxu0 0
    %4654 = vmatprep.subr.bf16.mxu0 0
    %4655 = vmatpush1.bf16.msra.mxu0 0
    %4656 = vmatprep.subr.bf16.mxu0 0
    %4657 = vmatpush1.bf16.msra.mxu0 0
    %4658 = vmatprep.subr.bf16.mxu0 0
    %4659 = vmatpush1.bf16.msra.mxu0 0
    %4660 = vmatprep.subr.bf16.mxu0 0
    %4661 = vmatpush1.bf16.msra.mxu0 0
    %4662 = vmatprep.subr.bf16.mxu0 0
    %4663 = vmatpush1.bf16.msra.mxu0 0
    %4664 = vmatprep.subr.bf16.mxu0 0
    %4665 = vmatpush1.bf16.msra.mxu0 0
    %4666 = vmatprep.subr.bf16.mxu0 0
    %4667 = vmatpush1.bf16.msra.mxu0 0
    %4668 = vmatprep.subr.bf16.mxu0 0
    %4669 = vmatpush1.bf16.msra.mxu0 0
    %4670 = vmatprep.subr.bf16.mxu0 0
    %4671 = vmatpush1.bf16.msra.mxu0 0
    %4672 = vmatprep.subr.bf16.mxu0 0
    %4673 = vmatpush1.bf16.msra.mxu0 0
    %4674 = vmatprep.subr.bf16.mxu0 0
    %4675 = vmatpush1.bf16.msra.mxu0 0
    %4676 = vmatprep.mubr.bf16.mxu0 0
    %4677 = vmatmul.mubr.bf16.gmra.mrb[0].mxu0 %v4621
    %v4678 = vpop.f32.mrb[0].mxu0
    %v4679 = vadd.f32 0.0, %v4678
    %v4680 = vpop.f32.mrb[0].mxu0
    %v4681 = vpop.f32.mrb[0].mxu0
    %v4682 = vadd.f32 0.0, %v4681
    %v4683 = vpop.f32.mrb[0].mxu0
    %4684 = vmatprep.mubr.bf16.mxu0 0
    %4685 = vmatmul.mubr.bf16.gmra.mrb[0].mxu0 %v4624
    %v4686 = vpop.f32.mrb[0].mxu0
    %v4687 = vadd.f32 0.0, %v4686
    %v4688 = vpop.f32.mrb[0].mxu0
    %v4689 = vpop.f32.mrb[0].mxu0
    %v4690 = vadd.f32 0.0, %v4689
    %v4691 = vpop.f32.mrb[0].mxu0
    %4692 = vmatprep.mubr.bf16.mxu0 0
    %4693 = vmatmul.mubr.bf16.gmra.mrb[0].mxu0 %v4627
    %v4694 = vpop.f32.mrb[0].mxu0
    %v4695 = vadd.f32 0.0, %v4694
    %v4696 = vpop.f32.mrb[0].mxu0
    %v4697 = vpop.f32.mrb[0].mxu0
    %v4698 = vadd.f32 0.0, %v4697
    %v4699 = vpop.f32.mrb[0].mxu0
    %4700 = vmatprep.mubr.bf16.mxu0 0
    %4701 = vmatmul.mubr.bf16.gmra.mrb[0].mxu0 %v4630
    %v4702 = vpop.f32.mrb[0].mxu0
    %v4703 = vadd.f32 0.0, %v4702
    %v4704 = vpop.f32.mrb[0].mxu0
    %v4705 = vpop.f32.mrb[0].mxu0
    %v4706 = vadd.f32 0.0, %v4705
    %v4707 = vpop.f32.mrb[0].mxu0
    %4708 = vmatprep.mubr.bf16.mxu0 0
    %4709 = vmatmul.mubr.bf16.gmra.mrb[0].mxu0 %v4633
    %v4710 = vpop.f32.mrb[0].mxu0
    %v4711 = vadd.f32 0.0, %v4710
    %v4712 = vpop.f32.mrb[0].mxu0
    %v4713 = vpop.f32.mrb[0].mxu0
    %v4714 = vadd.f32 0.0, %v4713
    %v4715 = vpop.f32.mrb[0].mxu0
    %4716 = vmatprep.mubr.bf16.mxu0 0
    %4717 = vmatmul.mubr.bf16.gmra.mrb[0].mxu0 %v4636
    %v4718 = vpop.f32.mrb[0].mxu0
    %v4719 = vadd.f32 0.0, %v4718
    %v4720 = vpop.f32.mrb[0].mxu0
    %v4721 = vpop.f32.mrb[0].mxu0
    %v4722 = vadd.f32 0.0, %v4721
    %v4723 = vpop.f32.mrb[0].mxu0
    %4724 = vmatprep.mubr.bf16.mxu0 0
    %4725 = vmatmul.mubr.bf16.gmra.mrb[0].mxu0 %v4639
    %v4726 = vpop.f32.mrb[0].mxu0
    %v4727 = vadd.f32 0.0, %v4726
    %v4728 = vpop.f32.mrb[0].mxu0
    %v4729 = vpop.f32.mrb[0].mxu0
    %v4730 = vadd.f32 0.0, %v4729
    %v4731 = vpop.f32.mrb[0].mxu0
    %4732 = vmatprep.mubr.bf16.mxu0 0
    %4733 = vmatmul.mubr.bf16.gmra.mrb[0].mxu0 %v4642
    %v4734 = vpop.f32.mrb[0].mxu0
    %v4735 = vadd.f32 0.0, %v4734
    %v4736 = vpop.f32.mrb[0].mxu0
    %v4737 = vpop.f32.mrb[0].mxu0
    %v4738 = vadd.f32 0.0, %v4737
    %v4739 = vpop.f32.mrb[0].mxu0
    %4740 = vdwg.mxu0
    %v4741 = vpack.c.bf16 %v4682, %v4679
    %v4742 = vpack.c.bf16 %v4690, %v4687
    %v4743 = vpack.c.bf16 %v4698, %v4695
    %v4744 = vpack.c.bf16 %v4706, %v4703
    %v4745 = vpack.c.bf16 %v4714, %v4711
    %v4746 = vpack.c.bf16 %v4722, %v4719
    %v4747 = vpack.c.bf16 %v4730, %v4727
    %v4748 = vpack.c.bf16 %v4738, %v4735
    %4757 = vrot.lane.b32.xlu0 %v4741, 96
    %v4758 = vpop.permute.xlu0 %4757
    %4759 = vrot.lane.b32.xlu0 %v4742, 96
    %v4760 = vpop.permute.xlu0 %4759
    %4761 = vrot.lane.b32.xlu0 %v4743, 96
    %v4762 = vpop.permute.xlu0 %4761
    %4763 = vrot.lane.b32.xlu0 %v4744, 96
    %v4764 = vpop.permute.xlu0 %4763
    %4765 = vrot.lane.b32.xlu0 %v4745, 96
    %v4766 = vpop.permute.xlu0 %4765
    %4767 = vrot.lane.b32.xlu0 %v4746, 96
    %v4768 = vpop.permute.xlu0 %4767
    %4769 = vrot.lane.b32.xlu0 %v4747, 96
    %v4770 = vpop.permute.xlu0 %4769
    %4771 = vrot.lane.b32.xlu0 %v4748, 96
    %v4772 = vpop.permute.xlu0 %4771
    %v4774 = vsel %vm543, %v4741, 0
    %v4777 = vsel %vm543, %v4742, 0
    %v4780 = vsel %vm543, %v4743, 0
    %v4783 = vsel %vm543, %v4744, 0
    %v4786 = vsel %vm543, %v4745, 0
    %v4789 = vsel %vm543, %v4746, 0
    %v4792 = vsel %vm543, %v4747, 0
    %v4795 = vsel %vm543, %v4748, 0
    %v4798 = vsel %vm543, %v4758, 0
    %v4801 = vsel %vm543, %v4760, 0
    %v4804 = vsel %vm543, %v4762, 0
    %v4807 = vsel %vm543, %v4764, 0
    %v4810 = vsel %vm543, %v4766, 0
    %v4813 = vsel %vm543, %v4768, 0
    %v4816 = vsel %vm543, %v4770, 0
    %v4819 = vsel %vm543, %v4772, 0
    %4821 = vmatprep.subr.bf16.mxu0 0
    %4822 = vmatpush1.bf16.xpose.msra.mxu0 %v4798
    %4823 = vmatprep.subr.bf16.mxu0 0
    %4824 = vmatpush1.bf16.xpose.msra.mxu0 %v4801
    %4825 = vmatprep.subr.bf16.mxu0 0
    %4826 = vmatpush1.bf16.xpose.msra.mxu0 %v4804
    %4827 = vmatprep.subr.bf16.mxu0 0
    %4828 = vmatpush1.bf16.xpose.msra.mxu0 %v4807
    %4829 = vmatprep.subr.bf16.mxu0 0
    %4830 = vmatpush1.bf16.xpose.msra.mxu0 %v4810
    %4831 = vmatprep.subr.bf16.mxu0 0
    %4832 = vmatpush1.bf16.xpose.msra.mxu0 %v4813
    %4833 = vmatprep.subr.bf16.mxu0 0
    %4834 = vmatpush1.bf16.xpose.msra.mxu0 %v4816
    %4835 = vmatprep.subr.bf16.mxu0 0
    %4836 = vmatpush1.bf16.xpose.msra.mxu0 %v4819
    %4837 = vmatprep.subr.bf16.mxu0 0
    %4838 = vmatpush1.bf16.xpose.msra.mxu0 0
    %4839 = vmatprep.subr.bf16.mxu0 0
    %4840 = vmatpush1.bf16.xpose.msra.mxu0 0
    %4841 = vmatprep.subr.bf16.mxu0 0
    %4842 = vmatpush1.bf16.xpose.msra.mxu0 0
    %4843 = vmatprep.subr.bf16.mxu0 0
    %4844 = vmatpush1.bf16.xpose.msra.mxu0 0
    %4845 = vmatprep.subr.bf16.mxu0 0
    %4846 = vmatpush1.bf16.xpose.msra.mxu0 0
    %4847 = vmatprep.subr.bf16.mxu0 0
    %4848 = vmatpush1.bf16.xpose.msra.mxu0 0
    %4849 = vmatprep.subr.bf16.mxu0 0
    %4850 = vmatpush1.bf16.xpose.msra.mxu0 0
    %4851 = vmatprep.subr.bf16.mxu0 0
    %4852 = vmatpush1.bf16.xpose.msra.mxu0 0
    %4853 = vmatprep.mubr.bf16.mxu0 0
    %4854 = vmatmul.mubr.bf16.gmra.mrb[0].mxu0 %v4774
    %v4855 = vpop.f32.mrb[0].mxu0
    %v4856 = vadd.f32 0.0, %v4855
    %v4857 = vpop.f32.mrb[0].mxu0
    %v4858 = vpop.f32.mrb[0].mxu0
    %v4859 = vadd.f32 0.0, %v4858
    %v4860 = vpop.f32.mrb[0].mxu0
    %4861 = vmatprep.mubr.bf16.mxu0 0
    %4862 = vmatmul.mubr.bf16.gmra.mrb[0].mxu0 %v4777
    %v4863 = vpop.f32.mrb[0].mxu0
    %v4864 = vadd.f32 0.0, %v4863
    %v4865 = vpop.f32.mrb[0].mxu0
    %v4866 = vpop.f32.mrb[0].mxu0
    %v4867 = vadd.f32 0.0, %v4866
    %v4868 = vpop.f32.mrb[0].mxu0
    %4869 = vmatprep.mubr.bf16.mxu0 0
    %4870 = vmatmul.mubr.bf16.gmra.mrb[0].mxu0 %v4780
    %v4871 = vpop.f32.mrb[0].mxu0
    %v4872 = vadd.f32 0.0, %v4871
    %v4873 = vpop.f32.mrb[0].mxu0
    %v4874 = vpop.f32.mrb[0].mxu0
    %v4875 = vadd.f32 0.0, %v4874
    %v4876 = vpop.f32.mrb[0].mxu0
    %4877 = vmatprep.mubr.bf16.mxu0 0
    %4878 = vmatmul.mubr.bf16.gmra.mrb[0].mxu0 %v4783
    %v4879 = vpop.f32.mrb[0].mxu0
    %v4880 = vadd.f32 0.0, %v4879
    %v4881 = vpop.f32.mrb[0].mxu0
    %v4882 = vpop.f32.mrb[0].mxu0
    %v4883 = vadd.f32 0.0, %v4882
    %v4884 = vpop.f32.mrb[0].mxu0
    %4885 = vmatprep.mubr.bf16.mxu0 0
    %4886 = vmatmul.mubr.bf16.gmra.mrb[0].mxu0 %v4786
    %v4887 = vpop.f32.mrb[0].mxu0
    %v4888 = vadd.f32 0.0, %v4887
    %v4889 = vpop.f32.mrb[0].mxu0
    %v4890 = vpop.f32.mrb[0].mxu0
    %v4891 = vadd.f32 0.0, %v4890
    %v4892 = vpop.f32.mrb[0].mxu0
    %4893 = vmatprep.mubr.bf16.mxu0 0
    %4894 = vmatmul.mubr.bf16.gmra.mrb[0].mxu0 %v4789
    %v4895 = vpop.f32.mrb[0].mxu0
    %v4896 = vadd.f32 0.0, %v4895
    %v4897 = vpop.f32.mrb[0].mxu0
    %v4898 = vpop.f32.mrb[0].mxu0
    %v4899 = vadd.f32 0.0, %v4898
    %v4900 = vpop.f32.mrb[0].mxu0
    %4901 = vmatprep.mubr.bf16.mxu0 0
    %4902 = vmatmul.mubr.bf16.gmra.mrb[0].mxu0 %v4792
    %v4903 = vpop.f32.mrb[0].mxu0
    %v4904 = vadd.f32 0.0, %v4903
    %v4905 = vpop.f32.mrb[0].mxu0
    %v4906 = vpop.f32.mrb[0].mxu0
    %v4907 = vadd.f32 0.0, %v4906
    %v4908 = vpop.f32.mrb[0].mxu0
    %4909 = vmatprep.mubr.bf16.mxu0 0
    %4910 = vmatmul.mubr.bf16.gmra.mrb[0].mxu0 %v4795
    %v4911 = vpop.f32.mrb[0].mxu0
    %v4912 = vadd.f32 0.0, %v4911
    %v4913 = vpop.f32.mrb[0].mxu0
    %v4914 = vpop.f32.mrb[0].mxu0
    %v4915 = vadd.f32 0.0, %v4914
    %v4916 = vpop.f32.mrb[0].mxu0
    %4917 = vdwg.mxu0
    %v4918 = vmul.f32 %v4856, 0.35355338
    %v4919 = vmul.f32 %v4859, 0.35355338
    %v4920 = vmul.f32 %v4864, 0.35355338
    %v4921 = vmul.f32 %v4867, 0.35355338
    %v4922 = vmul.f32 %v4872, 0.35355338
    %v4923 = vmul.f32 %v4875, 0.35355338
    %v4924 = vmul.f32 %v4880, 0.35355338
    %v4925 = vmul.f32 %v4883, 0.35355338
    %v4926 = vmul.f32 %v4888, 0.35355338
    %v4927 = vmul.f32 %v4891, 0.35355338
    %v4928 = vmul.f32 %v4896, 0.35355338
    %v4929 = vmul.f32 %v4899, 0.35355338
    %v4930 = vmul.f32 %v4904, 0.35355338
    %v4931 = vmul.f32 %v4907, 0.35355338
    %v4932 = vmul.f32 %v4912, 0.35355338
    %v4933 = vmul.f32 %v4915, 0.35355338
    %4950 = vrot.lane.b32.xlu0 %v4304, 16
    %v4951 = vpop.permute.xlu0 %4950
    %4952 = vrot.lane.b32.xlu0 %v4305, 16
    %v4953 = vpop.permute.xlu0 %4952
    %4954 = vrot.lane.b32.xlu0 %v4306, 16
    %v4955 = vpop.permute.xlu0 %4954
    %4956 = vrot.lane.b32.xlu0 %v4307, 16
    %v4957 = vpop.permute.xlu0 %4956
    %4958 = vrot.lane.b32.xlu0 %v4308, 16
    %v4959 = vpop.permute.xlu0 %4958
    %4960 = vrot.lane.b32.xlu0 %v4309, 16
    %v4961 = vpop.permute.xlu0 %4960
    %4962 = vrot.lane.b32.xlu0 %v4310, 16
    %v4963 = vpop.permute.xlu0 %4962
    %4964 = vrot.lane.b32.xlu0 %v4311, 16
    %v4965 = vpop.permute.xlu0 %4964
    %4966 = vrot.lane.b32.xlu0 %v4312, 16
    %v4967 = vpop.permute.xlu0 %4966
    %4968 = vrot.lane.b32.xlu0 %v4313, 16
    %v4969 = vpop.permute.xlu0 %4968
    %4970 = vrot.lane.b32.xlu0 %v4314, 16
    %v4971 = vpop.permute.xlu0 %4970
    %4972 = vrot.lane.b32.xlu0 %v4315, 16
    %v4973 = vpop.permute.xlu0 %4972
    %4974 = vrot.lane.b32.xlu0 %v4316, 16
    %v4975 = vpop.permute.xlu0 %4974
    %4976 = vrot.lane.b32.xlu0 %v4317, 16
    %v4977 = vpop.permute.xlu0 %4976
    %4978 = vrot.lane.b32.xlu0 %v4318, 16
    %v4979 = vpop.permute.xlu0 %4978
    %4980 = vrot.lane.b32.xlu0 %v4319, 16
    %v4981 = vpop.permute.xlu0 %4980
    %4998 = vrot.lane.b32.xlu0 %v4304, 32
    %v4999 = vpop.permute.xlu0 %4998
    %5000 = vrot.lane.b32.xlu0 %v4305, 32
    %v5001 = vpop.permute.xlu0 %5000
    %5002 = vrot.lane.b32.xlu0 %v4306, 32
    %v5003 = vpop.permute.xlu0 %5002
    %5004 = vrot.lane.b32.xlu0 %v4307, 32
    %v5005 = vpop.permute.xlu0 %5004
    %5006 = vrot.lane.b32.xlu0 %v4308, 32
    %v5007 = vpop.permute.xlu0 %5006
    %5008 = vrot.lane.b32.xlu0 %v4309, 32
    %v5009 = vpop.permute.xlu0 %5008
    %5010 = vrot.lane.b32.xlu0 %v4310, 32
    %v5011 = vpop.permute.xlu0 %5010
    %5012 = vrot.lane.b32.xlu0 %v4311, 32
    %v5013 = vpop.permute.xlu0 %5012
    %5014 = vrot.lane.b32.xlu0 %v4312, 32
    %v5015 = vpop.permute.xlu0 %5014
    %5016 = vrot.lane.b32.xlu0 %v4313, 32
    %v5017 = vpop.permute.xlu0 %5016
    %5018 = vrot.lane.b32.xlu0 %v4314, 32
    %v5019 = vpop.permute.xlu0 %5018
    %5020 = vrot.lane.b32.xlu0 %v4315, 32
    %v5021 = vpop.permute.xlu0 %5020
    %5022 = vrot.lane.b32.xlu0 %v4316, 32
    %v5023 = vpop.permute.xlu0 %5022
    %5024 = vrot.lane.b32.xlu0 %v4317, 32
    %v5025 = vpop.permute.xlu0 %5024
    %5026 = vrot.lane.b32.xlu0 %v4318, 32
    %v5027 = vpop.permute.xlu0 %5026
    %5028 = vrot.lane.b32.xlu0 %v4319, 32
    %v5029 = vpop.permute.xlu0 %5028
    %5046 = vrot.lane.b32.xlu0 %v4304, 48
    %v5047 = vpop.permute.xlu0 %5046
    %5048 = vrot.lane.b32.xlu0 %v4305, 48
    %v5049 = vpop.permute.xlu0 %5048
    %5050 = vrot.lane.b32.xlu0 %v4306, 48
    %v5051 = vpop.permute.xlu0 %5050
    %5052 = vrot.lane.b32.xlu0 %v4307, 48
    %v5053 = vpop.permute.xlu0 %5052
    %5054 = vrot.lane.b32.xlu0 %v4308, 48
    %v5055 = vpop.permute.xlu0 %5054
    %5056 = vrot.lane.b32.xlu0 %v4309, 48
    %v5057 = vpop.permute.xlu0 %5056
    %5058 = vrot.lane.b32.xlu0 %v4310, 48
    %v5059 = vpop.permute.xlu0 %5058
    %5060 = vrot.lane.b32.xlu0 %v4311, 48
    %v5061 = vpop.permute.xlu0 %5060
    %5062 = vrot.lane.b32.xlu0 %v4312, 48
    %v5063 = vpop.permute.xlu0 %5062
    %5064 = vrot.lane.b32.xlu0 %v4313, 48
    %v5065 = vpop.permute.xlu0 %5064
    %5066 = vrot.lane.b32.xlu0 %v4314, 48
    %v5067 = vpop.permute.xlu0 %5066
    %5068 = vrot.lane.b32.xlu0 %v4315, 48
    %v5069 = vpop.permute.xlu0 %5068
    %5070 = vrot.lane.b32.xlu0 %v4316, 48
    %v5071 = vpop.permute.xlu0 %5070
    %5072 = vrot.lane.b32.xlu0 %v4317, 48
    %v5073 = vpop.permute.xlu0 %5072
    %5074 = vrot.lane.b32.xlu0 %v4318, 48
    %v5075 = vpop.permute.xlu0 %5074
    %5076 = vrot.lane.b32.xlu0 %v4319, 48
    %v5077 = vpop.permute.xlu0 %5076
    %5094 = vrot.lane.b32.xlu0 %v4304, 64
    %v5095 = vpop.permute.xlu0 %5094
    %5096 = vrot.lane.b32.xlu0 %v4305, 64
    %v5097 = vpop.permute.xlu0 %5096
    %5098 = vrot.lane.b32.xlu0 %v4306, 64
    %v5099 = vpop.permute.xlu0 %5098
    %5100 = vrot.lane.b32.xlu0 %v4307, 64
    %v5101 = vpop.permute.xlu0 %5100
    %5102 = vrot.lane.b32.xlu0 %v4308, 64
    %v5103 = vpop.permute.xlu0 %5102
    %5104 = vrot.lane.b32.xlu0 %v4309, 64
    %v5105 = vpop.permute.xlu0 %5104
    %5106 = vrot.lane.b32.xlu0 %v4310, 64
    %v5107 = vpop.permute.xlu0 %5106
    %5108 = vrot.lane.b32.xlu0 %v4311, 64
    %v5109 = vpop.permute.xlu0 %5108
    %5110 = vrot.lane.b32.xlu0 %v4312, 64
    %v5111 = vpop.permute.xlu0 %5110
    %5112 = vrot.lane.b32.xlu0 %v4313, 64
    %v5113 = vpop.permute.xlu0 %5112
    %5114 = vrot.lane.b32.xlu0 %v4314, 64
    %v5115 = vpop.permute.xlu0 %5114
    %5116 = vrot.lane.b32.xlu0 %v4315, 64
    %v5117 = vpop.permute.xlu0 %5116
    %5118 = vrot.lane.b32.xlu0 %v4316, 64
    %v5119 = vpop.permute.xlu0 %5118
    %5120 = vrot.lane.b32.xlu0 %v4317, 64
    %v5121 = vpop.permute.xlu0 %5120
    %5122 = vrot.lane.b32.xlu0 %v4318, 64
    %v5123 = vpop.permute.xlu0 %5122
    %5124 = vrot.lane.b32.xlu0 %v4319, 64
    %v5125 = vpop.permute.xlu0 %5124
    %5142 = vrot.lane.b32.xlu0 %v4304, 80
    %v5143 = vpop.permute.xlu0 %5142
    %5144 = vrot.lane.b32.xlu0 %v4305, 80
    %v5145 = vpop.permute.xlu0 %5144
    %5146 = vrot.lane.b32.xlu0 %v4306, 80
    %v5147 = vpop.permute.xlu0 %5146
    %5148 = vrot.lane.b32.xlu0 %v4307, 80
    %v5149 = vpop.permute.xlu0 %5148
    %5150 = vrot.lane.b32.xlu0 %v4308, 80
    %v5151 = vpop.permute.xlu0 %5150
    %5152 = vrot.lane.b32.xlu0 %v4309, 80
    %v5153 = vpop.permute.xlu0 %5152
    %5154 = vrot.lane.b32.xlu0 %v4310, 80
    %v5155 = vpop.permute.xlu0 %5154
    %5156 = vrot.lane.b32.xlu0 %v4311, 80
    %v5157 = vpop.permute.xlu0 %5156
    %5158 = vrot.lane.b32.xlu0 %v4312, 80
    %v5159 = vpop.permute.xlu0 %5158
    %5160 = vrot.lane.b32.xlu0 %v4313, 80
    %v5161 = vpop.permute.xlu0 %5160
    %5162 = vrot.lane.b32.xlu0 %v4314, 80
    %v5163 = vpop.permute.xlu0 %5162
    %5164 = vrot.lane.b32.xlu0 %v4315, 80
    %v5165 = vpop.permute.xlu0 %5164
    %5166 = vrot.lane.b32.xlu0 %v4316, 80
    %v5167 = vpop.permute.xlu0 %5166
    %5168 = vrot.lane.b32.xlu0 %v4317, 80
    %v5169 = vpop.permute.xlu0 %5168
    %5170 = vrot.lane.b32.xlu0 %v4318, 80
    %v5171 = vpop.permute.xlu0 %5170
    %5172 = vrot.lane.b32.xlu0 %v4319, 80
    %v5173 = vpop.permute.xlu0 %5172
    %5190 = vrot.lane.b32.xlu0 %v4304, 96
    %v5191 = vpop.permute.xlu0 %5190
    %5192 = vrot.lane.b32.xlu0 %v4305, 96
    %v5193 = vpop.permute.xlu0 %5192
    %5194 = vrot.lane.b32.xlu0 %v4306, 96
    %v5195 = vpop.permute.xlu0 %5194
    %5196 = vrot.lane.b32.xlu0 %v4307, 96
    %v5197 = vpop.permute.xlu0 %5196
    %5198 = vrot.lane.b32.xlu0 %v4308, 96
    %v5199 = vpop.permute.xlu0 %5198
    %5200 = vrot.lane.b32.xlu0 %v4309, 96
    %v5201 = vpop.permute.xlu0 %5200
    %5202 = vrot.lane.b32.xlu0 %v4310, 96
    %v5203 = vpop.permute.xlu0 %5202
    %5204 = vrot.lane.b32.xlu0 %v4311, 96
    %v5205 = vpop.permute.xlu0 %5204
    %5206 = vrot.lane.b32.xlu0 %v4312, 96
    %v5207 = vpop.permute.xlu0 %5206
    %5208 = vrot.lane.b32.xlu0 %v4313, 96
    %v5209 = vpop.permute.xlu0 %5208
    %5210 = vrot.lane.b32.xlu0 %v4314, 96
    %v5211 = vpop.permute.xlu0 %5210
    %5212 = vrot.lane.b32.xlu0 %v4315, 96
    %v5213 = vpop.permute.xlu0 %5212
    %5214 = vrot.lane.b32.xlu0 %v4316, 96
    %v5215 = vpop.permute.xlu0 %5214
    %5216 = vrot.lane.b32.xlu0 %v4317, 96
    %v5217 = vpop.permute.xlu0 %5216
    %5218 = vrot.lane.b32.xlu0 %v4318, 96
    %v5219 = vpop.permute.xlu0 %5218
    %5220 = vrot.lane.b32.xlu0 %v4319, 96
    %v5221 = vpop.permute.xlu0 %5220
    %5238 = vrot.lane.b32.xlu0 %v4304, 112
    %v5239 = vpop.permute.xlu0 %5238
    %5240 = vrot.lane.b32.xlu0 %v4305, 112
    %v5241 = vpop.permute.xlu0 %5240
    %5242 = vrot.lane.b32.xlu0 %v4306, 112
    %v5243 = vpop.permute.xlu0 %5242
    %5244 = vrot.lane.b32.xlu0 %v4307, 112
    %v5245 = vpop.permute.xlu0 %5244
    %5246 = vrot.lane.b32.xlu0 %v4308, 112
    %v5247 = vpop.permute.xlu0 %5246
    %5248 = vrot.lane.b32.xlu0 %v4309, 112
    %v5249 = vpop.permute.xlu0 %5248
    %5250 = vrot.lane.b32.xlu0 %v4310, 112
    %v5251 = vpop.permute.xlu0 %5250
    %5252 = vrot.lane.b32.xlu0 %v4311, 112
    %v5253 = vpop.permute.xlu0 %5252
    %5254 = vrot.lane.b32.xlu0 %v4312, 112
    %v5255 = vpop.permute.xlu0 %5254
    %5256 = vrot.lane.b32.xlu0 %v4313, 112
    %v5257 = vpop.permute.xlu0 %5256
    %5258 = vrot.lane.b32.xlu0 %v4314, 112
    %v5259 = vpop.permute.xlu0 %5258
    %5260 = vrot.lane.b32.xlu0 %v4315, 112
    %v5261 = vpop.permute.xlu0 %5260
    %5262 = vrot.lane.b32.xlu0 %v4316, 112
    %v5263 = vpop.permute.xlu0 %5262
    %5264 = vrot.lane.b32.xlu0 %v4317, 112
    %v5265 = vpop.permute.xlu0 %5264
    %5266 = vrot.lane.b32.xlu0 %v4318, 112
    %v5267 = vpop.permute.xlu0 %5266
    %5268 = vrot.lane.b32.xlu0 %v4319, 112
    %v5269 = vpop.permute.xlu0 %5268
    %v5286 = vsel %vm1057, %v4304, %v4951
    %v5287 = vsel %vm1057, %v4305, %v4953
    %v5288 = vsel %vm1057, %v4306, %v4955
    %v5289 = vsel %vm1057, %v4307, %v4957
    %v5290 = vsel %vm1057, %v4308, %v4959
    %v5291 = vsel %vm1057, %v4309, %v4961
    %v5292 = vsel %vm1057, %v4310, %v4963
    %v5293 = vsel %vm1057, %v4311, %v4965
    %v5294 = vsel %vm1057, %v4312, %v4967
    %v5295 = vsel %vm1057, %v4313, %v4969
    %v5296 = vsel %vm1057, %v4314, %v4971
    %v5297 = vsel %vm1057, %v4315, %v4973
    %v5298 = vsel %vm1057, %v4316, %v4975
    %v5299 = vsel %vm1057, %v4317, %v4977
    %v5300 = vsel %vm1057, %v4318, %v4979
    %v5301 = vsel %vm1057, %v4319, %v4981
    %v5302 = vsel %vm88, %v5286, %v4999
    %v5303 = vsel %vm88, %v5287, %v5001
    %v5304 = vsel %vm88, %v5288, %v5003
    %v5305 = vsel %vm88, %v5289, %v5005
    %v5306 = vsel %vm88, %v5290, %v5007
    %v5307 = vsel %vm88, %v5291, %v5009
    %v5308 = vsel %vm88, %v5292, %v5011
    %v5309 = vsel %vm88, %v5293, %v5013
    %v5310 = vsel %vm88, %v5294, %v5015
    %v5311 = vsel %vm88, %v5295, %v5017
    %v5312 = vsel %vm88, %v5296, %v5019
    %v5313 = vsel %vm88, %v5297, %v5021
    %v5314 = vsel %vm88, %v5298, %v5023
    %v5315 = vsel %vm88, %v5299, %v5025
    %v5316 = vsel %vm88, %v5300, %v5027
    %v5317 = vsel %vm88, %v5301, %v5029
    %v5318 = vsel %vm1090, %v5302, %v5047
    %v5319 = vsel %vm1090, %v5303, %v5049
    %v5320 = vsel %vm1090, %v5304, %v5051
    %v5321 = vsel %vm1090, %v5305, %v5053
    %v5322 = vsel %vm1090, %v5306, %v5055
    %v5323 = vsel %vm1090, %v5307, %v5057
    %v5324 = vsel %vm1090, %v5308, %v5059
    %v5325 = vsel %vm1090, %v5309, %v5061
    %v5326 = vsel %vm1090, %v5310, %v5063
    %v5327 = vsel %vm1090, %v5311, %v5065
    %v5328 = vsel %vm1090, %v5312, %v5067
    %v5329 = vsel %vm1090, %v5313, %v5069
    %v5330 = vsel %vm1090, %v5314, %v5071
    %v5331 = vsel %vm1090, %v5315, %v5073
    %v5332 = vsel %vm1090, %v5316, %v5075
    %v5333 = vsel %vm1090, %v5317, %v5077
    %v5334 = vsel %vm1107, %v5318, %v5095
    %v5335 = vsel %vm1107, %v5319, %v5097
    %v5336 = vsel %vm1107, %v5320, %v5099
    %v5337 = vsel %vm1107, %v5321, %v5101
    %v5338 = vsel %vm1107, %v5322, %v5103
    %v5339 = vsel %vm1107, %v5323, %v5105
    %v5340 = vsel %vm1107, %v5324, %v5107
    %v5341 = vsel %vm1107, %v5325, %v5109
    %v5342 = vsel %vm1107, %v5326, %v5111
    %v5343 = vsel %vm1107, %v5327, %v5113
    %v5344 = vsel %vm1107, %v5328, %v5115
    %v5345 = vsel %vm1107, %v5329, %v5117
    %v5346 = vsel %vm1107, %v5330, %v5119
    %v5347 = vsel %vm1107, %v5331, %v5121
    %v5348 = vsel %vm1107, %v5332, %v5123
    %v5349 = vsel %vm1107, %v5333, %v5125
    %v5350 = vsel %vm1124, %v5334, %v5143
    %v5351 = vsel %vm1124, %v5335, %v5145
    %v5352 = vsel %vm1124, %v5336, %v5147
    %v5353 = vsel %vm1124, %v5337, %v5149
    %v5354 = vsel %vm1124, %v5338, %v5151
    %v5355 = vsel %vm1124, %v5339, %v5153
    %v5356 = vsel %vm1124, %v5340, %v5155
    %v5357 = vsel %vm1124, %v5341, %v5157
    %v5358 = vsel %vm1124, %v5342, %v5159
    %v5359 = vsel %vm1124, %v5343, %v5161
    %v5360 = vsel %vm1124, %v5344, %v5163
    %v5361 = vsel %vm1124, %v5345, %v5165
    %v5362 = vsel %vm1124, %v5346, %v5167
    %v5363 = vsel %vm1124, %v5347, %v5169
    %v5364 = vsel %vm1124, %v5348, %v5171
    %v5365 = vsel %vm1124, %v5349, %v5173
    %v5366 = vsel %vm1141, %v5350, %v5191
    %v5367 = vsel %vm1141, %v5351, %v5193
    %v5368 = vsel %vm1141, %v5352, %v5195
    %v5369 = vsel %vm1141, %v5353, %v5197
    %v5370 = vsel %vm1141, %v5354, %v5199
    %v5371 = vsel %vm1141, %v5355, %v5201
    %v5372 = vsel %vm1141, %v5356, %v5203
    %v5373 = vsel %vm1141, %v5357, %v5205
    %v5374 = vsel %vm1141, %v5358, %v5207
    %v5375 = vsel %vm1141, %v5359, %v5209
    %v5376 = vsel %vm1141, %v5360, %v5211
    %v5377 = vsel %vm1141, %v5361, %v5213
    %v5378 = vsel %vm1141, %v5362, %v5215
    %v5379 = vsel %vm1141, %v5363, %v5217
    %v5380 = vsel %vm1141, %v5364, %v5219
    %v5381 = vsel %vm1141, %v5365, %v5221
    %v5382 = vsel %vm1158, %v5366, %v5239
    %v5383 = vsel %vm1158, %v5367, %v5241
    %v5384 = vsel %vm1158, %v5368, %v5243
    %v5385 = vsel %vm1158, %v5369, %v5245
    %v5386 = vsel %vm1158, %v5370, %v5247
    %v5387 = vsel %vm1158, %v5371, %v5249
    %v5388 = vsel %vm1158, %v5372, %v5251
    %v5389 = vsel %vm1158, %v5373, %v5253
    %v5390 = vsel %vm1158, %v5374, %v5255
    %v5391 = vsel %vm1158, %v5375, %v5257
    %v5392 = vsel %vm1158, %v5376, %v5259
    %v5393 = vsel %vm1158, %v5377, %v5261
    %v5394 = vsel %vm1158, %v5378, %v5263
    %v5395 = vsel %vm1158, %v5379, %v5265
    %v5396 = vsel %vm1158, %v5380, %v5267
    %v5397 = vsel %vm1158, %v5381, %v5269
    %v5398 = vadd.f32 %v4918, %v5382
    %v5399 = vadd.f32 %v4919, %v5383
    %v5400 = vadd.f32 %v4920, %v5384
    %v5401 = vadd.f32 %v4921, %v5385
    %v5402 = vadd.f32 %v4922, %v5386
    %v5403 = vadd.f32 %v4923, %v5387
    %v5404 = vadd.f32 %v4924, %v5388
    %v5405 = vadd.f32 %v4925, %v5389
    %v5406 = vadd.f32 %v4926, %v5390
    %v5407 = vadd.f32 %v4927, %v5391
    %v5408 = vadd.f32 %v4928, %v5392
    %v5409 = vadd.f32 %v4929, %v5393
    %v5410 = vadd.f32 %v4930, %v5394
    %v5411 = vadd.f32 %v4931, %v5395
    %v5412 = vadd.f32 %v4932, %v5396
    %v5413 = vadd.f32 %v4933, %v5397
    %v5414 = vadd.f32 %v5398, %v47
    %v5415 = vadd.f32 %v5399, %v48
    %v5416 = vadd.f32 %v5400, %v49
    %v5417 = vadd.f32 %v5401, %v50
    %v5418 = vadd.f32 %v5402, %v51
    %v5419 = vadd.f32 %v5403, %v52
    %v5420 = vadd.f32 %v5404, %v53
    %v5421 = vadd.f32 %v5405, %v54
    %v5422 = vadd.f32 %v5406, %v55
    %v5423 = vadd.f32 %v5407, %v56
    %v5424 = vadd.f32 %v5408, %v57
    %v5425 = vadd.f32 %v5409, %v58
    %v5426 = vadd.f32 %v5410, %v59
    %v5427 = vadd.f32 %v5411, %v60
    %v5428 = vadd.f32 %v5412, %v61
    %v5429 = vadd.f32 %v5413, %v62
    %5430 = vmax.xlane.f32.xlu0 %v5414
    %v5431 = vpop.xlane.xlu0 %5430
    %5432 = vmax.xlane.f32.xlu0 %v5415
    %v5433 = vpop.xlane.xlu0 %5432
    %5434 = vmax.xlane.f32.xlu0 %v5416
    %v5435 = vpop.xlane.xlu0 %5434
    %5436 = vmax.xlane.f32.xlu0 %v5417
    %v5437 = vpop.xlane.xlu0 %5436
    %5438 = vmax.xlane.f32.xlu0 %v5418
    %v5439 = vpop.xlane.xlu0 %5438
    %5440 = vmax.xlane.f32.xlu0 %v5419
    %v5441 = vpop.xlane.xlu0 %5440
    %5442 = vmax.xlane.f32.xlu0 %v5420
    %v5443 = vpop.xlane.xlu0 %5442
    %5444 = vmax.xlane.f32.xlu0 %v5421
    %v5445 = vpop.xlane.xlu0 %5444
    %5446 = vmax.xlane.f32.xlu0 %v5422
    %v5447 = vpop.xlane.xlu0 %5446
    %5448 = vmax.xlane.f32.xlu0 %v5423
    %v5449 = vpop.xlane.xlu0 %5448
    %5450 = vmax.xlane.f32.xlu0 %v5424
    %v5451 = vpop.xlane.xlu0 %5450
    %5452 = vmax.xlane.f32.xlu0 %v5425
    %v5453 = vpop.xlane.xlu0 %5452
    %5454 = vmax.xlane.f32.xlu0 %v5426
    %v5455 = vpop.xlane.xlu0 %5454
    %5456 = vmax.xlane.f32.xlu0 %v5427
    %v5457 = vpop.xlane.xlu0 %5456
    %5458 = vmax.xlane.f32.xlu0 %v5428
    %v5459 = vpop.xlane.xlu0 %5458
    %5460 = vmax.xlane.f32.xlu0 %v5429
    %v5461 = vpop.xlane.xlu0 %5460
    %v5462 = vsub.f32 %v5414, %v5431
    %v5463 = vsub.f32 %v5415, %v5433
    %v5464 = vsub.f32 %v5416, %v5435
    %v5465 = vsub.f32 %v5417, %v5437
    %v5466 = vsub.f32 %v5418, %v5439
    %v5467 = vsub.f32 %v5419, %v5441
    %v5468 = vsub.f32 %v5420, %v5443
    %v5469 = vsub.f32 %v5421, %v5445
    %v5470 = vsub.f32 %v5422, %v5447
    %v5471 = vsub.f32 %v5423, %v5449
    %v5472 = vsub.f32 %v5424, %v5451
    %v5473 = vsub.f32 %v5425, %v5453
    %v5474 = vsub.f32 %v5426, %v5455
    %v5475 = vsub.f32 %v5427, %v5457
    %v5476 = vsub.f32 %v5428, %v5459
    %v5477 = vsub.f32 %v5429, %v5461
    %v5478 = vmul.f32 %v5462, 1.442695
    %v5479 = vpow.pop %v5478
    %v5480 = vmul.f32 %v5463, 1.442695
    %v5481 = vpow.pop %v5480
    %v5482 = vmul.f32 %v5464, 1.442695
    %v5483 = vpow.pop %v5482
    %v5484 = vmul.f32 %v5465, 1.442695
    %v5485 = vpow.pop %v5484
    %v5486 = vmul.f32 %v5466, 1.442695
    %v5487 = vpow.pop %v5486
    %v5488 = vmul.f32 %v5467, 1.442695
    %v5489 = vpow.pop %v5488
    %v5490 = vmul.f32 %v5468, 1.442695
    %v5491 = vpow.pop %v5490
    %v5492 = vmul.f32 %v5469, 1.442695
    %v5493 = vpow.pop %v5492
    %v5494 = vmul.f32 %v5470, 1.442695
    %v5495 = vpow.pop %v5494
    %v5496 = vmul.f32 %v5471, 1.442695
    %v5497 = vpow.pop %v5496
    %v5498 = vmul.f32 %v5472, 1.442695
    %v5499 = vpow.pop %v5498
    %v5500 = vmul.f32 %v5473, 1.442695
    %v5501 = vpow.pop %v5500
    %v5502 = vmul.f32 %v5474, 1.442695
    %v5503 = vpow.pop %v5502
    %v5504 = vmul.f32 %v5475, 1.442695
    %v5505 = vpow.pop %v5504
    %v5506 = vmul.f32 %v5476, 1.442695
    %v5507 = vpow.pop %v5506
    %v5508 = vmul.f32 %v5477, 1.442695
    %v5509 = vpow.pop %v5508
    %5510 = vadd.xlane.f32.xlu0 %v5479
    %v5511 = vpop.xlane.xlu0 %5510
    %5512 = vadd.xlane.f32.xlu0 %v5481
    %v5513 = vpop.xlane.xlu0 %5512
    %5514 = vadd.xlane.f32.xlu0 %v5483
    %v5515 = vpop.xlane.xlu0 %5514
    %5516 = vadd.xlane.f32.xlu0 %v5485
    %v5517 = vpop.xlane.xlu0 %5516
    %5518 = vadd.xlane.f32.xlu0 %v5487
    %v5519 = vpop.xlane.xlu0 %5518
    %5520 = vadd.xlane.f32.xlu0 %v5489
    %v5521 = vpop.xlane.xlu0 %5520
    %5522 = vadd.xlane.f32.xlu0 %v5491
    %v5523 = vpop.xlane.xlu0 %5522
    %5524 = vadd.xlane.f32.xlu0 %v5493
    %v5525 = vpop.xlane.xlu0 %5524
    %5526 = vadd.xlane.f32.xlu0 %v5495
    %v5527 = vpop.xlane.xlu0 %5526
    %5528 = vadd.xlane.f32.xlu0 %v5497
    %v5529 = vpop.xlane.xlu0 %5528
    %5530 = vadd.xlane.f32.xlu0 %v5499
    %v5531 = vpop.xlane.xlu0 %5530
    %5532 = vadd.xlane.f32.xlu0 %v5501
    %v5533 = vpop.xlane.xlu0 %5532
    %5534 = vadd.xlane.f32.xlu0 %v5503
    %v5535 = vpop.xlane.xlu0 %5534
    %5536 = vadd.xlane.f32.xlu0 %v5505
    %v5537 = vpop.xlane.xlu0 %5536
    %5538 = vadd.xlane.f32.xlu0 %v5507
    %v5539 = vpop.xlane.xlu0 %5538
    %5540 = vadd.xlane.f32.xlu0 %v5509
    %v5541 = vpop.xlane.xlu0 %5540
    %v5542 = vrcp.pop %v5511
    %v5543 = vrcp.pop %v5513
    %v5544 = vrcp.pop %v5515
    %v5545 = vrcp.pop %v5517
    %v5546 = vrcp.pop %v5519
    %v5547 = vrcp.pop %v5521
    %v5548 = vrcp.pop %v5523
    %v5549 = vrcp.pop %v5525
    %v5550 = vrcp.pop %v5527
    %v5551 = vrcp.pop %v5529
    %v5552 = vrcp.pop %v5531
    %v5553 = vrcp.pop %v5533
    %v5554 = vrcp.pop %v5535
    %v5555 = vrcp.pop %v5537
    %v5556 = vrcp.pop %v5539
    %v5557 = vrcp.pop %v5541
    %v5558 = vmul.f32 %v5479, %v5542
    %v5559 = vmul.f32 %v5481, %v5543
    %v5560 = vmul.f32 %v5483, %v5544
    %v5561 = vmul.f32 %v5485, %v5545
    %v5562 = vmul.f32 %v5487, %v5546
    %v5563 = vmul.f32 %v5489, %v5547
    %v5564 = vmul.f32 %v5491, %v5548
    %v5565 = vmul.f32 %v5493, %v5549
    %v5566 = vmul.f32 %v5495, %v5550
    %v5567 = vmul.f32 %v5497, %v5551
    %v5568 = vmul.f32 %v5499, %v5552
    %v5569 = vmul.f32 %v5501, %v5553
    %v5570 = vmul.f32 %v5503, %v5554
    %v5571 = vmul.f32 %v5505, %v5555
    %v5572 = vmul.f32 %v5507, %v5556
    %v5573 = vmul.f32 %v5509, %v5557
    %v5574 = vpack.c.bf16 %v5559, %v5558
    %v5575 = vpack.c.bf16 %v5561, %v5560
    %v5576 = vpack.c.bf16 %v5563, %v5562
    %v5577 = vpack.c.bf16 %v5565, %v5564
    %v5578 = vpack.c.bf16 %v5567, %v5566
    %v5579 = vpack.c.bf16 %v5569, %v5568
    %v5580 = vpack.c.bf16 %v5571, %v5570
    %v5581 = vpack.c.bf16 %v5573, %v5572
    %5582 = vrot.lane.b32.xlu0 %v4741, 64
    %v5583 = vpop.permute.xlu0 %5582
    %5584 = vrot.lane.b32.xlu0 %v4742, 64
    %v5585 = vpop.permute.xlu0 %5584
    %5586 = vrot.lane.b32.xlu0 %v4743, 64
    %v5587 = vpop.permute.xlu0 %5586
    %5588 = vrot.lane.b32.xlu0 %v4744, 64
    %v5589 = vpop.permute.xlu0 %5588
    %5590 = vrot.lane.b32.xlu0 %v4745, 64
    %v5591 = vpop.permute.xlu0 %5590
    %5592 = vrot.lane.b32.xlu0 %v4746, 64
    %v5593 = vpop.permute.xlu0 %5592
    %5594 = vrot.lane.b32.xlu0 %v4747, 64
    %v5595 = vpop.permute.xlu0 %5594
    %5596 = vrot.lane.b32.xlu0 %v4748, 64
    %v5597 = vpop.permute.xlu0 %5596
    %5606 = vmatprep.subr.bf16.mxu0 0
    %5607 = vmatpush1.bf16.msra.mxu0 %v5583
    %5608 = vmatprep.subr.bf16.mxu0 0
    %5609 = vmatpush1.bf16.msra.mxu0 %v5585
    %5610 = vmatprep.subr.bf16.mxu0 0
    %5611 = vmatpush1.bf16.msra.mxu0 %v5587
    %5612 = vmatprep.subr.bf16.mxu0 0
    %5613 = vmatpush1.bf16.msra.mxu0 %v5589
    %5614 = vmatprep.subr.bf16.mxu0 0
    %5615 = vmatpush1.bf16.msra.mxu0 %v5591
    %5616 = vmatprep.subr.bf16.mxu0 0
    %5617 = vmatpush1.bf16.msra.mxu0 %v5593
    %5618 = vmatprep.subr.bf16.mxu0 0
    %5619 = vmatpush1.bf16.msra.mxu0 %v5595
    %5620 = vmatprep.subr.bf16.mxu0 0
    %5621 = vmatpush1.bf16.msra.mxu0 %v5597
    %5622 = vmatprep.subr.bf16.mxu0 0
    %5623 = vmatpush1.bf16.msra.mxu0 0
    %5624 = vmatprep.subr.bf16.mxu0 0
    %5625 = vmatpush1.bf16.msra.mxu0 0
    %5626 = vmatprep.subr.bf16.mxu0 0
    %5627 = vmatpush1.bf16.msra.mxu0 0
    %5628 = vmatprep.subr.bf16.mxu0 0
    %5629 = vmatpush1.bf16.msra.mxu0 0
    %5630 = vmatprep.subr.bf16.mxu0 0
    %5631 = vmatpush1.bf16.msra.mxu0 0
    %5632 = vmatprep.subr.bf16.mxu0 0
    %5633 = vmatpush1.bf16.msra.mxu0 0
    %5634 = vmatprep.subr.bf16.mxu0 0
    %5635 = vmatpush1.bf16.msra.mxu0 0
    %5636 = vmatprep.subr.bf16.mxu0 0
    %5637 = vmatpush1.bf16.msra.mxu0 0
    %5638 = vmatprep.mubr.bf16.mxu0 0
    %5639 = vmatmul.mubr.bf16.gmra.mrb[0].mxu0 %v5574
    %v5640 = vpop.f32.mrb[0].mxu0
    %v5641 = vadd.f32 0.0, %v5640
    %v5642 = vpop.f32.mrb[0].mxu0
    %v5643 = vpop.f32.mrb[0].mxu0
    %v5644 = vadd.f32 0.0, %v5643
    %v5645 = vpop.f32.mrb[0].mxu0
    %5646 = vmatprep.mubr.bf16.mxu0 0
    %5647 = vmatmul.mubr.bf16.gmra.mrb[0].mxu0 %v5575
    %v5648 = vpop.f32.mrb[0].mxu0
    %v5649 = vadd.f32 0.0, %v5648
    %v5650 = vpop.f32.mrb[0].mxu0
    %v5651 = vpop.f32.mrb[0].mxu0
    %v5652 = vadd.f32 0.0, %v5651
    %v5653 = vpop.f32.mrb[0].mxu0
    %5654 = vmatprep.mubr.bf16.mxu0 0
    %5655 = vmatmul.mubr.bf16.gmra.mrb[0].mxu0 %v5576
    %v5656 = vpop.f32.mrb[0].mxu0
    %v5657 = vadd.f32 0.0, %v5656
    %v5658 = vpop.f32.mrb[0].mxu0
    %v5659 = vpop.f32.mrb[0].mxu0
    %v5660 = vadd.f32 0.0, %v5659
    %v5661 = vpop.f32.mrb[0].mxu0
    %5662 = vmatprep.mubr.bf16.mxu0 0
    %5663 = vmatmul.mubr.bf16.gmra.mrb[0].mxu0 %v5577
    %v5664 = vpop.f32.mrb[0].mxu0
    %v5665 = vadd.f32 0.0, %v5664
    %v5666 = vpop.f32.mrb[0].mxu0
    %v5667 = vpop.f32.mrb[0].mxu0
    %v5668 = vadd.f32 0.0, %v5667
    %v5669 = vpop.f32.mrb[0].mxu0
    %5670 = vmatprep.mubr.bf16.mxu0 0
    %5671 = vmatmul.mubr.bf16.gmra.mrb[0].mxu0 %v5578
    %v5672 = vpop.f32.mrb[0].mxu0
    %v5673 = vadd.f32 0.0, %v5672
    %v5674 = vpop.f32.mrb[0].mxu0
    %v5675 = vpop.f32.mrb[0].mxu0
    %v5676 = vadd.f32 0.0, %v5675
    %v5677 = vpop.f32.mrb[0].mxu0
    %5678 = vmatprep.mubr.bf16.mxu0 0
    %5679 = vmatmul.mubr.bf16.gmra.mrb[0].mxu0 %v5579
    %v5680 = vpop.f32.mrb[0].mxu0
    %v5681 = vadd.f32 0.0, %v5680
    %v5682 = vpop.f32.mrb[0].mxu0
    %v5683 = vpop.f32.mrb[0].mxu0
    %v5684 = vadd.f32 0.0, %v5683
    %v5685 = vpop.f32.mrb[0].mxu0
    %5686 = vmatprep.mubr.bf16.mxu0 0
    %5687 = vmatmul.mubr.bf16.gmra.mrb[0].mxu0 %v5580
    %v5688 = vpop.f32.mrb[0].mxu0
    %v5689 = vadd.f32 0.0, %v5688
    %v5690 = vpop.f32.mrb[0].mxu0
    %v5691 = vpop.f32.mrb[0].mxu0
    %v5692 = vadd.f32 0.0, %v5691
    %v5693 = vpop.f32.mrb[0].mxu0
    %5694 = vmatprep.mubr.bf16.mxu0 0
    %5695 = vmatmul.mubr.bf16.gmra.mrb[0].mxu0 %v5581
    %v5696 = vpop.f32.mrb[0].mxu0
    %v5697 = vadd.f32 0.0, %v5696
    %v5698 = vpop.f32.mrb[0].mxu0
    %v5699 = vpop.f32.mrb[0].mxu0
    %v5700 = vadd.f32 0.0, %v5699
    %v5701 = vpop.f32.mrb[0].mxu0
    %5702 = vdwg.mxu0
    %5703 = vrot.lane.b32.xlu0 %v4741, 120
    %v5704 = vpop.permute.xlu0 %5703
    %5705 = vrot.lane.b32.xlu0 %v4742, 120
    %v5706 = vpop.permute.xlu0 %5705
    %5707 = vrot.lane.b32.xlu0 %v4743, 120
    %v5708 = vpop.permute.xlu0 %5707
    %5709 = vrot.lane.b32.xlu0 %v4744, 120
    %v5710 = vpop.permute.xlu0 %5709
    %5711 = vrot.lane.b32.xlu0 %v4745, 120
    %v5712 = vpop.permute.xlu0 %5711
    %5713 = vrot.lane.b32.xlu0 %v4746, 120
    %v5714 = vpop.permute.xlu0 %5713
    %5715 = vrot.lane.b32.xlu0 %v4747, 120
    %v5716 = vpop.permute.xlu0 %5715
    %5717 = vrot.lane.b32.xlu0 %v4748, 120
    %v5718 = vpop.permute.xlu0 %5717
    %5719 = vrot.lane.b32.xlu0 %v4741, 88
    %v5720 = vpop.permute.xlu0 %5719
    %5721 = vrot.lane.b32.xlu0 %v4742, 88
    %v5722 = vpop.permute.xlu0 %5721
    %5723 = vrot.lane.b32.xlu0 %v4743, 88
    %v5724 = vpop.permute.xlu0 %5723
    %5725 = vrot.lane.b32.xlu0 %v4744, 88
    %v5726 = vpop.permute.xlu0 %5725
    %5727 = vrot.lane.b32.xlu0 %v4745, 88
    %v5728 = vpop.permute.xlu0 %5727
    %5729 = vrot.lane.b32.xlu0 %v4746, 88
    %v5730 = vpop.permute.xlu0 %5729
    %5731 = vrot.lane.b32.xlu0 %v4747, 88
    %v5732 = vpop.permute.xlu0 %5731
    %5733 = vrot.lane.b32.xlu0 %v4748, 88
    %v5734 = vpop.permute.xlu0 %5733
    %v5736 = vsel %vm543, %v5704, 0
    %v5739 = vsel %vm543, %v5706, 0
    %v5742 = vsel %vm543, %v5708, 0
    %v5745 = vsel %vm543, %v5710, 0
    %v5748 = vsel %vm543, %v5712, 0
    %v5751 = vsel %vm543, %v5714, 0
    %v5754 = vsel %vm543, %v5716, 0
    %v5757 = vsel %vm543, %v5718, 0
    %v5760 = vsel %vm543, %v5720, 0
    %v5763 = vsel %vm543, %v5722, 0
    %v5766 = vsel %vm543, %v5724, 0
    %v5769 = vsel %vm543, %v5726, 0
    %v5772 = vsel %vm543, %v5728, 0
    %v5775 = vsel %vm543, %v5730, 0
    %v5778 = vsel %vm543, %v5732, 0
    %v5781 = vsel %vm543, %v5734, 0
    %5783 = vmatprep.subr.bf16.mxu0 0
    %5784 = vmatpush1.bf16.xpose.msra.mxu0 %v5760
    %5785 = vmatprep.subr.bf16.mxu0 0
    %5786 = vmatpush1.bf16.xpose.msra.mxu0 %v5763
    %5787 = vmatprep.subr.bf16.mxu0 0
    %5788 = vmatpush1.bf16.xpose.msra.mxu0 %v5766
    %5789 = vmatprep.subr.bf16.mxu0 0
    %5790 = vmatpush1.bf16.xpose.msra.mxu0 %v5769
    %5791 = vmatprep.subr.bf16.mxu0 0
    %5792 = vmatpush1.bf16.xpose.msra.mxu0 %v5772
    %5793 = vmatprep.subr.bf16.mxu0 0
    %5794 = vmatpush1.bf16.xpose.msra.mxu0 %v5775
    %5795 = vmatprep.subr.bf16.mxu0 0
    %5796 = vmatpush1.bf16.xpose.msra.mxu0 %v5778
    %5797 = vmatprep.subr.bf16.mxu0 0
    %5798 = vmatpush1.bf16.xpose.msra.mxu0 %v5781
    %5799 = vmatprep.subr.bf16.mxu0 0
    %5800 = vmatpush1.bf16.xpose.msra.mxu0 0
    %5801 = vmatprep.subr.bf16.mxu0 0
    %5802 = vmatpush1.bf16.xpose.msra.mxu0 0
    %5803 = vmatprep.subr.bf16.mxu0 0
    %5804 = vmatpush1.bf16.xpose.msra.mxu0 0
    %5805 = vmatprep.subr.bf16.mxu0 0
    %5806 = vmatpush1.bf16.xpose.msra.mxu0 0
    %5807 = vmatprep.subr.bf16.mxu0 0
    %5808 = vmatpush1.bf16.xpose.msra.mxu0 0
    %5809 = vmatprep.subr.bf16.mxu0 0
    %5810 = vmatpush1.bf16.xpose.msra.mxu0 0
    %5811 = vmatprep.subr.bf16.mxu0 0
    %5812 = vmatpush1.bf16.xpose.msra.mxu0 0
    %5813 = vmatprep.subr.bf16.mxu0 0
    %5814 = vmatpush1.bf16.xpose.msra.mxu0 0
    %5815 = vmatprep.mubr.bf16.mxu0 0
    %5816 = vmatmul.mubr.bf16.gmra.mrb[0].mxu0 %v5736
    %v5817 = vpop.f32.mrb[0].mxu0
    %v5818 = vadd.f32 0.0, %v5817
    %v5819 = vpop.f32.mrb[0].mxu0
    %v5820 = vpop.f32.mrb[0].mxu0
    %v5821 = vadd.f32 0.0, %v5820
    %v5822 = vpop.f32.mrb[0].mxu0
    %5823 = vmatprep.mubr.bf16.mxu0 0
    %5824 = vmatmul.mubr.bf16.gmra.mrb[0].mxu0 %v5739
    %v5825 = vpop.f32.mrb[0].mxu0
    %v5826 = vadd.f32 0.0, %v5825
    %v5827 = vpop.f32.mrb[0].mxu0
    %v5828 = vpop.f32.mrb[0].mxu0
    %v5829 = vadd.f32 0.0, %v5828
    %v5830 = vpop.f32.mrb[0].mxu0
    %5831 = vmatprep.mubr.bf16.mxu0 0
    %5832 = vmatmul.mubr.bf16.gmra.mrb[0].mxu0 %v5742
    %v5833 = vpop.f32.mrb[0].mxu0
    %v5834 = vadd.f32 0.0, %v5833
    %v5835 = vpop.f32.mrb[0].mxu0
    %v5836 = vpop.f32.mrb[0].mxu0
    %v5837 = vadd.f32 0.0, %v5836
    %v5838 = vpop.f32.mrb[0].mxu0
    %5839 = vmatprep.mubr.bf16.mxu0 0
    %5840 = vmatmul.mubr.bf16.gmra.mrb[0].mxu0 %v5745
    %v5841 = vpop.f32.mrb[0].mxu0
    %v5842 = vadd.f32 0.0, %v5841
    %v5843 = vpop.f32.mrb[0].mxu0
    %v5844 = vpop.f32.mrb[0].mxu0
    %v5845 = vadd.f32 0.0, %v5844
    %v5846 = vpop.f32.mrb[0].mxu0
    %5847 = vmatprep.mubr.bf16.mxu0 0
    %5848 = vmatmul.mubr.bf16.gmra.mrb[0].mxu0 %v5748
    %v5849 = vpop.f32.mrb[0].mxu0
    %v5850 = vadd.f32 0.0, %v5849
    %v5851 = vpop.f32.mrb[0].mxu0
    %v5852 = vpop.f32.mrb[0].mxu0
    %v5853 = vadd.f32 0.0, %v5852
    %v5854 = vpop.f32.mrb[0].mxu0
    %5855 = vmatprep.mubr.bf16.mxu0 0
    %5856 = vmatmul.mubr.bf16.gmra.mrb[0].mxu0 %v5751
    %v5857 = vpop.f32.mrb[0].mxu0
    %v5858 = vadd.f32 0.0, %v5857
    %v5859 = vpop.f32.mrb[0].mxu0
    %v5860 = vpop.f32.mrb[0].mxu0
    %v5861 = vadd.f32 0.0, %v5860
    %v5862 = vpop.f32.mrb[0].mxu0
    %5863 = vmatprep.mubr.bf16.mxu0 0
    %5864 = vmatmul.mubr.bf16.gmra.mrb[0].mxu0 %v5754
    %v5865 = vpop.f32.mrb[0].mxu0
    %v5866 = vadd.f32 0.0, %v5865
    %v5867 = vpop.f32.mrb[0].mxu0
    %v5868 = vpop.f32.mrb[0].mxu0
    %v5869 = vadd.f32 0.0, %v5868
    %v5870 = vpop.f32.mrb[0].mxu0
    %5871 = vmatprep.mubr.bf16.mxu0 0
    %5872 = vmatmul.mubr.bf16.gmra.mrb[0].mxu0 %v5757
    %v5873 = vpop.f32.mrb[0].mxu0
    %v5874 = vadd.f32 0.0, %v5873
    %v5875 = vpop.f32.mrb[0].mxu0
    %v5876 = vpop.f32.mrb[0].mxu0
    %v5877 = vadd.f32 0.0, %v5876
    %v5878 = vpop.f32.mrb[0].mxu0
    %5879 = vdwg.mxu0
    %v5880 = vmul.f32 %v5818, 0.35355338
    %v5881 = vmul.f32 %v5821, 0.35355338
    %v5882 = vmul.f32 %v5826, 0.35355338
    %v5883 = vmul.f32 %v5829, 0.35355338
    %v5884 = vmul.f32 %v5834, 0.35355338
    %v5885 = vmul.f32 %v5837, 0.35355338
    %v5886 = vmul.f32 %v5842, 0.35355338
    %v5887 = vmul.f32 %v5845, 0.35355338
    %v5888 = vmul.f32 %v5850, 0.35355338
    %v5889 = vmul.f32 %v5853, 0.35355338
    %v5890 = vmul.f32 %v5858, 0.35355338
    %v5891 = vmul.f32 %v5861, 0.35355338
    %v5892 = vmul.f32 %v5866, 0.35355338
    %v5893 = vmul.f32 %v5869, 0.35355338
    %v5894 = vmul.f32 %v5874, 0.35355338
    %v5895 = vmul.f32 %v5877, 0.35355338
    %v5896 = vsel %vm1057, %v5239, %v4304
    %v5897 = vsel %vm1057, %v5241, %v4305
    %v5898 = vsel %vm1057, %v5243, %v4306
    %v5899 = vsel %vm1057, %v5245, %v4307
    %v5900 = vsel %vm1057, %v5247, %v4308
    %v5901 = vsel %vm1057, %v5249, %v4309
    %v5902 = vsel %vm1057, %v5251, %v4310
    %v5903 = vsel %vm1057, %v5253, %v4311
    %v5904 = vsel %vm1057, %v5255, %v4312
    %v5905 = vsel %vm1057, %v5257, %v4313
    %v5906 = vsel %vm1057, %v5259, %v4314
    %v5907 = vsel %vm1057, %v5261, %v4315
    %v5908 = vsel %vm1057, %v5263, %v4316
    %v5909 = vsel %vm1057, %v5265, %v4317
    %v5910 = vsel %vm1057, %v5267, %v4318
    %v5911 = vsel %vm1057, %v5269, %v4319
    %v5912 = vsel %vm88, %v5896, %v4951
    %v5913 = vsel %vm88, %v5897, %v4953
    %v5914 = vsel %vm88, %v5898, %v4955
    %v5915 = vsel %vm88, %v5899, %v4957
    %v5916 = vsel %vm88, %v5900, %v4959
    %v5917 = vsel %vm88, %v5901, %v4961
    %v5918 = vsel %vm88, %v5902, %v4963
    %v5919 = vsel %vm88, %v5903, %v4965
    %v5920 = vsel %vm88, %v5904, %v4967
    %v5921 = vsel %vm88, %v5905, %v4969
    %v5922 = vsel %vm88, %v5906, %v4971
    %v5923 = vsel %vm88, %v5907, %v4973
    %v5924 = vsel %vm88, %v5908, %v4975
    %v5925 = vsel %vm88, %v5909, %v4977
    %v5926 = vsel %vm88, %v5910, %v4979
    %v5927 = vsel %vm88, %v5911, %v4981
    %v5928 = vsel %vm1090, %v5912, %v4999
    %v5929 = vsel %vm1090, %v5913, %v5001
    %v5930 = vsel %vm1090, %v5914, %v5003
    %v5931 = vsel %vm1090, %v5915, %v5005
    %v5932 = vsel %vm1090, %v5916, %v5007
    %v5933 = vsel %vm1090, %v5917, %v5009
    %v5934 = vsel %vm1090, %v5918, %v5011
    %v5935 = vsel %vm1090, %v5919, %v5013
    %v5936 = vsel %vm1090, %v5920, %v5015
    %v5937 = vsel %vm1090, %v5921, %v5017
    %v5938 = vsel %vm1090, %v5922, %v5019
    %v5939 = vsel %vm1090, %v5923, %v5021
    %v5940 = vsel %vm1090, %v5924, %v5023
    %v5941 = vsel %vm1090, %v5925, %v5025
    %v5942 = vsel %vm1090, %v5926, %v5027
    %v5943 = vsel %vm1090, %v5927, %v5029
    %v5944 = vsel %vm1107, %v5928, %v5047
    %v5945 = vsel %vm1107, %v5929, %v5049
    %v5946 = vsel %vm1107, %v5930, %v5051
    %v5947 = vsel %vm1107, %v5931, %v5053
    %v5948 = vsel %vm1107, %v5932, %v5055
    %v5949 = vsel %vm1107, %v5933, %v5057
    %v5950 = vsel %vm1107, %v5934, %v5059
    %v5951 = vsel %vm1107, %v5935, %v5061
    %v5952 = vsel %vm1107, %v5936, %v5063
    %v5953 = vsel %vm1107, %v5937, %v5065
    %v5954 = vsel %vm1107, %v5938, %v5067
    %v5955 = vsel %vm1107, %v5939, %v5069
    %v5956 = vsel %vm1107, %v5940, %v5071
    %v5957 = vsel %vm1107, %v5941, %v5073
    %v5958 = vsel %vm1107, %v5942, %v5075
    %v5959 = vsel %vm1107, %v5943, %v5077
    %v5960 = vsel %vm1124, %v5944, %v5095
    %v5961 = vsel %vm1124, %v5945, %v5097
    %v5962 = vsel %vm1124, %v5946, %v5099
    %v5963 = vsel %vm1124, %v5947, %v5101
    %v5964 = vsel %vm1124, %v5948, %v5103
    %v5965 = vsel %vm1124, %v5949, %v5105
    %v5966 = vsel %vm1124, %v5950, %v5107
    %v5967 = vsel %vm1124, %v5951, %v5109
    %v5968 = vsel %vm1124, %v5952, %v5111
    %v5969 = vsel %vm1124, %v5953, %v5113
    %v5970 = vsel %vm1124, %v5954, %v5115
    %v5971 = vsel %vm1124, %v5955, %v5117
    %v5972 = vsel %vm1124, %v5956, %v5119
    %v5973 = vsel %vm1124, %v5957, %v5121
    %v5974 = vsel %vm1124, %v5958, %v5123
    %v5975 = vsel %vm1124, %v5959, %v5125
    %v5976 = vsel %vm1141, %v5960, %v5143
    %v5977 = vsel %vm1141, %v5961, %v5145
    %v5978 = vsel %vm1141, %v5962, %v5147
    %v5979 = vsel %vm1141, %v5963, %v5149
    %v5980 = vsel %vm1141, %v5964, %v5151
    %v5981 = vsel %vm1141, %v5965, %v5153
    %v5982 = vsel %vm1141, %v5966, %v5155
    %v5983 = vsel %vm1141, %v5967, %v5157
    %v5984 = vsel %vm1141, %v5968, %v5159
    %v5985 = vsel %vm1141, %v5969, %v5161
    %v5986 = vsel %vm1141, %v5970, %v5163
    %v5987 = vsel %vm1141, %v5971, %v5165
    %v5988 = vsel %vm1141, %v5972, %v5167
    %v5989 = vsel %vm1141, %v5973, %v5169
    %v5990 = vsel %vm1141, %v5974, %v5171
    %v5991 = vsel %vm1141, %v5975, %v5173
    %v5992 = vsel %vm1158, %v5976, %v5191
    %v5993 = vsel %vm1158, %v5977, %v5193
    %v5994 = vsel %vm1158, %v5978, %v5195
    %v5995 = vsel %vm1158, %v5979, %v5197
    %v5996 = vsel %vm1158, %v5980, %v5199
    %v5997 = vsel %vm1158, %v5981, %v5201
    %v5998 = vsel %vm1158, %v5982, %v5203
    %v5999 = vsel %vm1158, %v5983, %v5205
    %v6000 = vsel %vm1158, %v5984, %v5207
    %v6001 = vsel %vm1158, %v5985, %v5209
    %v6002 = vsel %vm1158, %v5986, %v5211
    %v6003 = vsel %vm1158, %v5987, %v5213
    %v6004 = vsel %vm1158, %v5988, %v5215
    %v6005 = vsel %vm1158, %v5989, %v5217
    %v6006 = vsel %vm1158, %v5990, %v5219
    %v6007 = vsel %vm1158, %v5991, %v5221
    %v6008 = vadd.f32 %v5880, %v5992
    %v6009 = vadd.f32 %v5881, %v5993
    %v6010 = vadd.f32 %v5882, %v5994
    %v6011 = vadd.f32 %v5883, %v5995
    %v6012 = vadd.f32 %v5884, %v5996
    %v6013 = vadd.f32 %v5885, %v5997
    %v6014 = vadd.f32 %v5886, %v5998
    %v6015 = vadd.f32 %v5887, %v5999
    %v6016 = vadd.f32 %v5888, %v6000
    %v6017 = vadd.f32 %v5889, %v6001
    %v6018 = vadd.f32 %v5890, %v6002
    %v6019 = vadd.f32 %v5891, %v6003
    %v6020 = vadd.f32 %v5892, %v6004
    %v6021 = vadd.f32 %v5893, %v6005
    %v6022 = vadd.f32 %v5894, %v6006
    %v6023 = vadd.f32 %v5895, %v6007
    %v6024 = vadd.f32 %v6008, %v47
    %v6025 = vadd.f32 %v6009, %v48
    %v6026 = vadd.f32 %v6010, %v49
    %v6027 = vadd.f32 %v6011, %v50
    %v6028 = vadd.f32 %v6012, %v51
    %v6029 = vadd.f32 %v6013, %v52
    %v6030 = vadd.f32 %v6014, %v53
    %v6031 = vadd.f32 %v6015, %v54
    %v6032 = vadd.f32 %v6016, %v55
    %v6033 = vadd.f32 %v6017, %v56
    %v6034 = vadd.f32 %v6018, %v57
    %v6035 = vadd.f32 %v6019, %v58
    %v6036 = vadd.f32 %v6020, %v59
    %v6037 = vadd.f32 %v6021, %v60
    %v6038 = vadd.f32 %v6022, %v61
    %v6039 = vadd.f32 %v6023, %v62
    %6040 = vmax.xlane.f32.xlu0 %v6024
    %v6041 = vpop.xlane.xlu0 %6040
    %6042 = vmax.xlane.f32.xlu0 %v6025
    %v6043 = vpop.xlane.xlu0 %6042
    %6044 = vmax.xlane.f32.xlu0 %v6026
    %v6045 = vpop.xlane.xlu0 %6044
    %6046 = vmax.xlane.f32.xlu0 %v6027
    %v6047 = vpop.xlane.xlu0 %6046
    %6048 = vmax.xlane.f32.xlu0 %v6028
    %v6049 = vpop.xlane.xlu0 %6048
    %6050 = vmax.xlane.f32.xlu0 %v6029
    %v6051 = vpop.xlane.xlu0 %6050
    %6052 = vmax.xlane.f32.xlu0 %v6030
    %v6053 = vpop.xlane.xlu0 %6052
    %6054 = vmax.xlane.f32.xlu0 %v6031
    %v6055 = vpop.xlane.xlu0 %6054
    %6056 = vmax.xlane.f32.xlu0 %v6032
    %v6057 = vpop.xlane.xlu0 %6056
    %6058 = vmax.xlane.f32.xlu0 %v6033
    %v6059 = vpop.xlane.xlu0 %6058
    %6060 = vmax.xlane.f32.xlu0 %v6034
    %v6061 = vpop.xlane.xlu0 %6060
    %6062 = vmax.xlane.f32.xlu0 %v6035
    %v6063 = vpop.xlane.xlu0 %6062
    %6064 = vmax.xlane.f32.xlu0 %v6036
    %v6065 = vpop.xlane.xlu0 %6064
    %6066 = vmax.xlane.f32.xlu0 %v6037
    %v6067 = vpop.xlane.xlu0 %6066
    %6068 = vmax.xlane.f32.xlu0 %v6038
    %v6069 = vpop.xlane.xlu0 %6068
    %6070 = vmax.xlane.f32.xlu0 %v6039
    %v6071 = vpop.xlane.xlu0 %6070
    %v6072 = vsub.f32 %v6024, %v6041
    %v6073 = vsub.f32 %v6025, %v6043
    %v6074 = vsub.f32 %v6026, %v6045
    %v6075 = vsub.f32 %v6027, %v6047
    %v6076 = vsub.f32 %v6028, %v6049
    %v6077 = vsub.f32 %v6029, %v6051
    %v6078 = vsub.f32 %v6030, %v6053
    %v6079 = vsub.f32 %v6031, %v6055
    %v6080 = vsub.f32 %v6032, %v6057
    %v6081 = vsub.f32 %v6033, %v6059
    %v6082 = vsub.f32 %v6034, %v6061
    %v6083 = vsub.f32 %v6035, %v6063
    %v6084 = vsub.f32 %v6036, %v6065
    %v6085 = vsub.f32 %v6037, %v6067
    %v6086 = vsub.f32 %v6038, %v6069
    %v6087 = vsub.f32 %v6039, %v6071
    %v6088 = vmul.f32 %v6072, 1.442695
    %v6089 = vpow.pop %v6088
    %v6090 = vmul.f32 %v6073, 1.442695
    %v6091 = vpow.pop %v6090
    %v6092 = vmul.f32 %v6074, 1.442695
    %v6093 = vpow.pop %v6092
    %v6094 = vmul.f32 %v6075, 1.442695
    %v6095 = vpow.pop %v6094
    %v6096 = vmul.f32 %v6076, 1.442695
    %v6097 = vpow.pop %v6096
    %v6098 = vmul.f32 %v6077, 1.442695
    %v6099 = vpow.pop %v6098
    %v6100 = vmul.f32 %v6078, 1.442695
    %v6101 = vpow.pop %v6100
    %v6102 = vmul.f32 %v6079, 1.442695
    %v6103 = vpow.pop %v6102
    %v6104 = vmul.f32 %v6080, 1.442695
    %v6105 = vpow.pop %v6104
    %v6106 = vmul.f32 %v6081, 1.442695
    %v6107 = vpow.pop %v6106
    %v6108 = vmul.f32 %v6082, 1.442695
    %v6109 = vpow.pop %v6108
    %v6110 = vmul.f32 %v6083, 1.442695
    %v6111 = vpow.pop %v6110
    %v6112 = vmul.f32 %v6084, 1.442695
    %v6113 = vpow.pop %v6112
    %v6114 = vmul.f32 %v6085, 1.442695
    %v6115 = vpow.pop %v6114
    %v6116 = vmul.f32 %v6086, 1.442695
    %v6117 = vpow.pop %v6116
    %v6118 = vmul.f32 %v6087, 1.442695
    %v6119 = vpow.pop %v6118
    %6120 = vadd.xlane.f32.xlu0 %v6089
    %v6121 = vpop.xlane.xlu0 %6120
    %6122 = vadd.xlane.f32.xlu0 %v6091
    %v6123 = vpop.xlane.xlu0 %6122
    %6124 = vadd.xlane.f32.xlu0 %v6093
    %v6125 = vpop.xlane.xlu0 %6124
    %6126 = vadd.xlane.f32.xlu0 %v6095
    %v6127 = vpop.xlane.xlu0 %6126
    %6128 = vadd.xlane.f32.xlu0 %v6097
    %v6129 = vpop.xlane.xlu0 %6128
    %6130 = vadd.xlane.f32.xlu0 %v6099
    %v6131 = vpop.xlane.xlu0 %6130
    %6132 = vadd.xlane.f32.xlu0 %v6101
    %v6133 = vpop.xlane.xlu0 %6132
    %6134 = vadd.xlane.f32.xlu0 %v6103
    %v6135 = vpop.xlane.xlu0 %6134
    %6136 = vadd.xlane.f32.xlu0 %v6105
    %v6137 = vpop.xlane.xlu0 %6136
    %6138 = vadd.xlane.f32.xlu0 %v6107
    %v6139 = vpop.xlane.xlu0 %6138
    %6140 = vadd.xlane.f32.xlu0 %v6109
    %v6141 = vpop.xlane.xlu0 %6140
    %6142 = vadd.xlane.f32.xlu0 %v6111
    %v6143 = vpop.xlane.xlu0 %6142
    %6144 = vadd.xlane.f32.xlu0 %v6113
    %v6145 = vpop.xlane.xlu0 %6144
    %6146 = vadd.xlane.f32.xlu0 %v6115
    %v6147 = vpop.xlane.xlu0 %6146
    %6148 = vadd.xlane.f32.xlu0 %v6117
    %v6149 = vpop.xlane.xlu0 %6148
    %6150 = vadd.xlane.f32.xlu0 %v6119
    %v6151 = vpop.xlane.xlu0 %6150
    %v6152 = vrcp.pop %v6121
    %v6153 = vrcp.pop %v6123
    %v6154 = vrcp.pop %v6125
    %v6155 = vrcp.pop %v6127
    %v6156 = vrcp.pop %v6129
    %v6157 = vrcp.pop %v6131
    %v6158 = vrcp.pop %v6133
    %v6159 = vrcp.pop %v6135
    %v6160 = vrcp.pop %v6137
    %v6161 = vrcp.pop %v6139
    %v6162 = vrcp.pop %v6141
    %v6163 = vrcp.pop %v6143
    %v6164 = vrcp.pop %v6145
    %v6165 = vrcp.pop %v6147
    %v6166 = vrcp.pop %v6149
    %v6167 = vrcp.pop %v6151
    %v6168 = vmul.f32 %v6089, %v6152
    %v6169 = vmul.f32 %v6091, %v6153
    %v6170 = vmul.f32 %v6093, %v6154
    %v6171 = vmul.f32 %v6095, %v6155
    %v6172 = vmul.f32 %v6097, %v6156
    %v6173 = vmul.f32 %v6099, %v6157
    %v6174 = vmul.f32 %v6101, %v6158
    %v6175 = vmul.f32 %v6103, %v6159
    %v6176 = vmul.f32 %v6105, %v6160
    %v6177 = vmul.f32 %v6107, %v6161
    %v6178 = vmul.f32 %v6109, %v6162
    %v6179 = vmul.f32 %v6111, %v6163
    %v6180 = vmul.f32 %v6113, %v6164
    %v6181 = vmul.f32 %v6115, %v6165
    %v6182 = vmul.f32 %v6117, %v6166
    %v6183 = vmul.f32 %v6119, %v6167
    %v6184 = vpack.c.bf16 %v6169, %v6168
    %v6185 = vpack.c.bf16 %v6171, %v6170
    %v6186 = vpack.c.bf16 %v6173, %v6172
    %v6187 = vpack.c.bf16 %v6175, %v6174
    %v6188 = vpack.c.bf16 %v6177, %v6176
    %v6189 = vpack.c.bf16 %v6179, %v6178
    %v6190 = vpack.c.bf16 %v6181, %v6180
    %v6191 = vpack.c.bf16 %v6183, %v6182
    %6192 = vrot.lane.b32.xlu0 %v4741, 56
    %v6193 = vpop.permute.xlu0 %6192
    %6194 = vrot.lane.b32.xlu0 %v4742, 56
    %v6195 = vpop.permute.xlu0 %6194
    %6196 = vrot.lane.b32.xlu0 %v4743, 56
    %v6197 = vpop.permute.xlu0 %6196
    %6198 = vrot.lane.b32.xlu0 %v4744, 56
    %v6199 = vpop.permute.xlu0 %6198
    %6200 = vrot.lane.b32.xlu0 %v4745, 56
    %v6201 = vpop.permute.xlu0 %6200
    %6202 = vrot.lane.b32.xlu0 %v4746, 56
    %v6203 = vpop.permute.xlu0 %6202
    %6204 = vrot.lane.b32.xlu0 %v4747, 56
    %v6205 = vpop.permute.xlu0 %6204
    %6206 = vrot.lane.b32.xlu0 %v4748, 56
    %v6207 = vpop.permute.xlu0 %6206
    %6216 = vmatprep.subr.bf16.mxu0 0
    %6217 = vmatpush1.bf16.msra.mxu0 %v6193
    %6218 = vmatprep.subr.bf16.mxu0 0
    %6219 = vmatpush1.bf16.msra.mxu0 %v6195
    %6220 = vmatprep.subr.bf16.mxu0 0
    %6221 = vmatpush1.bf16.msra.mxu0 %v6197
    %6222 = vmatprep.subr.bf16.mxu0 0
    %6223 = vmatpush1.bf16.msra.mxu0 %v6199
    %6224 = vmatprep.subr.bf16.mxu0 0
    %6225 = vmatpush1.bf16.msra.mxu0 %v6201
    %6226 = vmatprep.subr.bf16.mxu0 0
    %6227 = vmatpush1.bf16.msra.mxu0 %v6203
    %6228 = vmatprep.subr.bf16.mxu0 0
    %6229 = vmatpush1.bf16.msra.mxu0 %v6205
    %6230 = vmatprep.subr.bf16.mxu0 0
    %6231 = vmatpush1.bf16.msra.mxu0 %v6207
    %6232 = vmatprep.subr.bf16.mxu0 0
    %6233 = vmatpush1.bf16.msra.mxu0 0
    %6234 = vmatprep.subr.bf16.mxu0 0
    %6235 = vmatpush1.bf16.msra.mxu0 0
    %6236 = vmatprep.subr.bf16.mxu0 0
    %6237 = vmatpush1.bf16.msra.mxu0 0
    %6238 = vmatprep.subr.bf16.mxu0 0
    %6239 = vmatpush1.bf16.msra.mxu0 0
    %6240 = vmatprep.subr.bf16.mxu0 0
    %6241 = vmatpush1.bf16.msra.mxu0 0
    %6242 = vmatprep.subr.bf16.mxu0 0
    %6243 = vmatpush1.bf16.msra.mxu0 0
    %6244 = vmatprep.subr.bf16.mxu0 0
    %6245 = vmatpush1.bf16.msra.mxu0 0
    %6246 = vmatprep.subr.bf16.mxu0 0
    %6247 = vmatpush1.bf16.msra.mxu0 0
    %6248 = vmatprep.mubr.bf16.mxu0 0
    %6249 = vmatmul.mubr.bf16.gmra.mrb[0].mxu0 %v6184
    %v6250 = vpop.f32.mrb[0].mxu0
    %v6251 = vadd.f32 0.0, %v6250
    %v6252 = vpop.f32.mrb[0].mxu0
    %v6253 = vpop.f32.mrb[0].mxu0
    %v6254 = vadd.f32 0.0, %v6253
    %v6255 = vpop.f32.mrb[0].mxu0
    %6256 = vmatprep.mubr.bf16.mxu0 0
    %6257 = vmatmul.mubr.bf16.gmra.mrb[0].mxu0 %v6185
    %v6258 = vpop.f32.mrb[0].mxu0
    %v6259 = vadd.f32 0.0, %v6258
    %v6260 = vpop.f32.mrb[0].mxu0
    %v6261 = vpop.f32.mrb[0].mxu0
    %v6262 = vadd.f32 0.0, %v6261
    %v6263 = vpop.f32.mrb[0].mxu0
    %6264 = vmatprep.mubr.bf16.mxu0 0
    %6265 = vmatmul.mubr.bf16.gmra.mrb[0].mxu0 %v6186
    %v6266 = vpop.f32.mrb[0].mxu0
    %v6267 = vadd.f32 0.0, %v6266
    %v6268 = vpop.f32.mrb[0].mxu0
    %v6269 = vpop.f32.mrb[0].mxu0
    %v6270 = vadd.f32 0.0, %v6269
    %v6271 = vpop.f32.mrb[0].mxu0
    %6272 = vmatprep.mubr.bf16.mxu0 0
    %6273 = vmatmul.mubr.bf16.gmra.mrb[0].mxu0 %v6187
    %v6274 = vpop.f32.mrb[0].mxu0
    %v6275 = vadd.f32 0.0, %v6274
    %v6276 = vpop.f32.mrb[0].mxu0
    %v6277 = vpop.f32.mrb[0].mxu0
    %v6278 = vadd.f32 0.0, %v6277
    %v6279 = vpop.f32.mrb[0].mxu0
    %6280 = vmatprep.mubr.bf16.mxu0 0
    %6281 = vmatmul.mubr.bf16.gmra.mrb[0].mxu0 %v6188
    %v6282 = vpop.f32.mrb[0].mxu0
    %v6283 = vadd.f32 0.0, %v6282
    %v6284 = vpop.f32.mrb[0].mxu0
    %v6285 = vpop.f32.mrb[0].mxu0
    %v6286 = vadd.f32 0.0, %v6285
    %v6287 = vpop.f32.mrb[0].mxu0
    %6288 = vmatprep.mubr.bf16.mxu0 0
    %6289 = vmatmul.mubr.bf16.gmra.mrb[0].mxu0 %v6189
    %v6290 = vpop.f32.mrb[0].mxu0
    %v6291 = vadd.f32 0.0, %v6290
    %v6292 = vpop.f32.mrb[0].mxu0
    %v6293 = vpop.f32.mrb[0].mxu0
    %v6294 = vadd.f32 0.0, %v6293
    %v6295 = vpop.f32.mrb[0].mxu0
    %6296 = vmatprep.mubr.bf16.mxu0 0
    %6297 = vmatmul.mubr.bf16.gmra.mrb[0].mxu0 %v6190
    %v6298 = vpop.f32.mrb[0].mxu0
    %v6299 = vadd.f32 0.0, %v6298
    %v6300 = vpop.f32.mrb[0].mxu0
    %v6301 = vpop.f32.mrb[0].mxu0
    %v6302 = vadd.f32 0.0, %v6301
    %v6303 = vpop.f32.mrb[0].mxu0
    %6304 = vmatprep.mubr.bf16.mxu0 0
    %6305 = vmatmul.mubr.bf16.gmra.mrb[0].mxu0 %v6191
    %v6306 = vpop.f32.mrb[0].mxu0
    %v6307 = vadd.f32 0.0, %v6306
    %v6308 = vpop.f32.mrb[0].mxu0
    %v6309 = vpop.f32.mrb[0].mxu0
    %v6310 = vadd.f32 0.0, %v6309
    %v6311 = vpop.f32.mrb[0].mxu0
    %6312 = vdwg.mxu0
    %6313 = vrot.lane.b32.xlu0 %v4741, 112
    %v6314 = vpop.permute.xlu0 %6313
    %6315 = vrot.lane.b32.xlu0 %v4742, 112
    %v6316 = vpop.permute.xlu0 %6315
    %6317 = vrot.lane.b32.xlu0 %v4743, 112
    %v6318 = vpop.permute.xlu0 %6317
    %6319 = vrot.lane.b32.xlu0 %v4744, 112
    %v6320 = vpop.permute.xlu0 %6319
    %6321 = vrot.lane.b32.xlu0 %v4745, 112
    %v6322 = vpop.permute.xlu0 %6321
    %6323 = vrot.lane.b32.xlu0 %v4746, 112
    %v6324 = vpop.permute.xlu0 %6323
    %6325 = vrot.lane.b32.xlu0 %v4747, 112
    %v6326 = vpop.permute.xlu0 %6325
    %6327 = vrot.lane.b32.xlu0 %v4748, 112
    %v6328 = vpop.permute.xlu0 %6327
    %6329 = vrot.lane.b32.xlu0 %v4741, 80
    %v6330 = vpop.permute.xlu0 %6329
    %6331 = vrot.lane.b32.xlu0 %v4742, 80
    %v6332 = vpop.permute.xlu0 %6331
    %6333 = vrot.lane.b32.xlu0 %v4743, 80
    %v6334 = vpop.permute.xlu0 %6333
    %6335 = vrot.lane.b32.xlu0 %v4744, 80
    %v6336 = vpop.permute.xlu0 %6335
    %6337 = vrot.lane.b32.xlu0 %v4745, 80
    %v6338 = vpop.permute.xlu0 %6337
    %6339 = vrot.lane.b32.xlu0 %v4746, 80
    %v6340 = vpop.permute.xlu0 %6339
    %6341 = vrot.lane.b32.xlu0 %v4747, 80
    %v6342 = vpop.permute.xlu0 %6341
    %6343 = vrot.lane.b32.xlu0 %v4748, 80
    %v6344 = vpop.permute.xlu0 %6343
    %v6346 = vsel %vm543, %v6314, 0
    %v6349 = vsel %vm543, %v6316, 0
    %v6352 = vsel %vm543, %v6318, 0
    %v6355 = vsel %vm543, %v6320, 0
    %v6358 = vsel %vm543, %v6322, 0
    %v6361 = vsel %vm543, %v6324, 0
    %v6364 = vsel %vm543, %v6326, 0
    %v6367 = vsel %vm543, %v6328, 0
    %v6370 = vsel %vm543, %v6330, 0
    %v6373 = vsel %vm543, %v6332, 0
    %v6376 = vsel %vm543, %v6334, 0
    %v6379 = vsel %vm543, %v6336, 0
    %v6382 = vsel %vm543, %v6338, 0
    %v6385 = vsel %vm543, %v6340, 0
    %v6388 = vsel %vm543, %v6342, 0
    %v6391 = vsel %vm543, %v6344, 0
    %6393 = vmatprep.subr.bf16.mxu0 0
    %6394 = vmatpush1.bf16.xpose.msra.mxu0 %v6370
    %6395 = vmatprep.subr.bf16.mxu0 0
    %6396 = vmatpush1.bf16.xpose.msra.mxu0 %v6373
    %6397 = vmatprep.subr.bf16.mxu0 0
    %6398 = vmatpush1.bf16.xpose.msra.mxu0 %v6376
    %6399 = vmatprep.subr.bf16.mxu0 0
    %6400 = vmatpush1.bf16.xpose.msra.mxu0 %v6379
    %6401 = vmatprep.subr.bf16.mxu0 0
    %6402 = vmatpush1.bf16.xpose.msra.mxu0 %v6382
    %6403 = vmatprep.subr.bf16.mxu0 0
    %6404 = vmatpush1.bf16.xpose.msra.mxu0 %v6385
    %6405 = vmatprep.subr.bf16.mxu0 0
    %6406 = vmatpush1.bf16.xpose.msra.mxu0 %v6388
    %6407 = vmatprep.subr.bf16.mxu0 0
    %6408 = vmatpush1.bf16.xpose.msra.mxu0 %v6391
    %6409 = vmatprep.subr.bf16.mxu0 0
    %6410 = vmatpush1.bf16.xpose.msra.mxu0 0
    %6411 = vmatprep.subr.bf16.mxu0 0
    %6412 = vmatpush1.bf16.xpose.msra.mxu0 0
    %6413 = vmatprep.subr.bf16.mxu0 0
    %6414 = vmatpush1.bf16.xpose.msra.mxu0 0
    %6415 = vmatprep.subr.bf16.mxu0 0
    %6416 = vmatpush1.bf16.xpose.msra.mxu0 0
    %6417 = vmatprep.subr.bf16.mxu0 0
    %6418 = vmatpush1.bf16.xpose.msra.mxu0 0
    %6419 = vmatprep.subr.bf16.mxu0 0
    %6420 = vmatpush1.bf16.xpose.msra.mxu0 0
    %6421 = vmatprep.subr.bf16.mxu0 0
    %6422 = vmatpush1.bf16.xpose.msra.mxu0 0
    %6423 = vmatprep.subr.bf16.mxu0 0
    %6424 = vmatpush1.bf16.xpose.msra.mxu0 0
    %6425 = vmatprep.mubr.bf16.mxu0 0
    %6426 = vmatmul.mubr.bf16.gmra.mrb[0].mxu0 %v6346
    %v6427 = vpop.f32.mrb[0].mxu0
    %v6428 = vadd.f32 0.0, %v6427
    %v6429 = vpop.f32.mrb[0].mxu0
    %v6430 = vpop.f32.mrb[0].mxu0
    %v6431 = vadd.f32 0.0, %v6430
    %v6432 = vpop.f32.mrb[0].mxu0
    %6433 = vmatprep.mubr.bf16.mxu0 0
    %6434 = vmatmul.mubr.bf16.gmra.mrb[0].mxu0 %v6349
    %v6435 = vpop.f32.mrb[0].mxu0
    %v6436 = vadd.f32 0.0, %v6435
    %v6437 = vpop.f32.mrb[0].mxu0
    %v6438 = vpop.f32.mrb[0].mxu0
    %v6439 = vadd.f32 0.0, %v6438
    %v6440 = vpop.f32.mrb[0].mxu0
    %6441 = vmatprep.mubr.bf16.mxu0 0
    %6442 = vmatmul.mubr.bf16.gmra.mrb[0].mxu0 %v6352
    %v6443 = vpop.f32.mrb[0].mxu0
    %v6444 = vadd.f32 0.0, %v6443
    %v6445 = vpop.f32.mrb[0].mxu0
    %v6446 = vpop.f32.mrb[0].mxu0
    %v6447 = vadd.f32 0.0, %v6446
    %v6448 = vpop.f32.mrb[0].mxu0
    %6449 = vmatprep.mubr.bf16.mxu0 0
    %6450 = vmatmul.mubr.bf16.gmra.mrb[0].mxu0 %v6355
    %v6451 = vpop.f32.mrb[0].mxu0
    %v6452 = vadd.f32 0.0, %v6451
    %v6453 = vpop.f32.mrb[0].mxu0
    %v6454 = vpop.f32.mrb[0].mxu0
    %v6455 = vadd.f32 0.0, %v6454
    %v6456 = vpop.f32.mrb[0].mxu0
    %6457 = vmatprep.mubr.bf16.mxu0 0
    %6458 = vmatmul.mubr.bf16.gmra.mrb[0].mxu0 %v6358
    %v6459 = vpop.f32.mrb[0].mxu0
    %v6460 = vadd.f32 0.0, %v6459
    %v6461 = vpop.f32.mrb[0].mxu0
    %v6462 = vpop.f32.mrb[0].mxu0
    %v6463 = vadd.f32 0.0, %v6462
    %v6464 = vpop.f32.mrb[0].mxu0
    %6465 = vmatprep.mubr.bf16.mxu0 0
    %6466 = vmatmul.mubr.bf16.gmra.mrb[0].mxu0 %v6361
    %v6467 = vpop.f32.mrb[0].mxu0
    %v6468 = vadd.f32 0.0, %v6467
    %v6469 = vpop.f32.mrb[0].mxu0
    %v6470 = vpop.f32.mrb[0].mxu0
    %v6471 = vadd.f32 0.0, %v6470
    %v6472 = vpop.f32.mrb[0].mxu0
    %6473 = vmatprep.mubr.bf16.mxu0 0
    %6474 = vmatmul.mubr.bf16.gmra.mrb[0].mxu0 %v6364
    %v6475 = vpop.f32.mrb[0].mxu0
    %v6476 = vadd.f32 0.0, %v6475
    %v6477 = vpop.f32.mrb[0].mxu0
    %v6478 = vpop.f32.mrb[0].mxu0
    %v6479 = vadd.f32 0.0, %v6478
    %v6480 = vpop.f32.mrb[0].mxu0
    %6481 = vmatprep.mubr.bf16.mxu0 0
    %6482 = vmatmul.mubr.bf16.gmra.mrb[0].mxu0 %v6367
    %v6483 = vpop.f32.mrb[0].mxu0
    %v6484 = vadd.f32 0.0, %v6483
    %v6485 = vpop.f32.mrb[0].mxu0
    %v6486 = vpop.f32.mrb[0].mxu0
    %v6487 = vadd.f32 0.0, %v6486
    %v6488 = vpop.f32.mrb[0].mxu0
    %6489 = vdwg.mxu0
    %v6490 = vmul.f32 %v6428, 0.35355338
    %v6491 = vmul.f32 %v6431, 0.35355338
    %v6492 = vmul.f32 %v6436, 0.35355338
    %v6493 = vmul.f32 %v6439, 0.35355338
    %v6494 = vmul.f32 %v6444, 0.35355338
    %v6495 = vmul.f32 %v6447, 0.35355338
    %v6496 = vmul.f32 %v6452, 0.35355338
    %v6497 = vmul.f32 %v6455, 0.35355338
    %v6498 = vmul.f32 %v6460, 0.35355338
    %v6499 = vmul.f32 %v6463, 0.35355338
    %v6500 = vmul.f32 %v6468, 0.35355338
    %v6501 = vmul.f32 %v6471, 0.35355338
    %v6502 = vmul.f32 %v6476, 0.35355338
    %v6503 = vmul.f32 %v6479, 0.35355338
    %v6504 = vmul.f32 %v6484, 0.35355338
    %v6505 = vmul.f32 %v6487, 0.35355338
    %v6506 = vsel %vm1057, %v5191, %v5239
    %v6507 = vsel %vm1057, %v5193, %v5241
    %v6508 = vsel %vm1057, %v5195, %v5243
    %v6509 = vsel %vm1057, %v5197, %v5245
    %v6510 = vsel %vm1057, %v5199, %v5247
    %v6511 = vsel %vm1057, %v5201, %v5249
    %v6512 = vsel %vm1057, %v5203, %v5251
    %v6513 = vsel %vm1057, %v5205, %v5253
    %v6514 = vsel %vm1057, %v5207, %v5255
    %v6515 = vsel %vm1057, %v5209, %v5257
    %v6516 = vsel %vm1057, %v5211, %v5259
    %v6517 = vsel %vm1057, %v5213, %v5261
    %v6518 = vsel %vm1057, %v5215, %v5263
    %v6519 = vsel %vm1057, %v5217, %v5265
    %v6520 = vsel %vm1057, %v5219, %v5267
    %v6521 = vsel %vm1057, %v5221, %v5269
    %v6522 = vsel %vm88, %v6506, %v4304
    %v6523 = vsel %vm88, %v6507, %v4305
    %v6524 = vsel %vm88, %v6508, %v4306
    %v6525 = vsel %vm88, %v6509, %v4307
    %v6526 = vsel %vm88, %v6510, %v4308
    %v6527 = vsel %vm88, %v6511, %v4309
    %v6528 = vsel %vm88, %v6512, %v4310
    %v6529 = vsel %vm88, %v6513, %v4311
    %v6530 = vsel %vm88, %v6514, %v4312
    %v6531 = vsel %vm88, %v6515, %v4313
    %v6532 = vsel %vm88, %v6516, %v4314
    %v6533 = vsel %vm88, %v6517, %v4315
    %v6534 = vsel %vm88, %v6518, %v4316
    %v6535 = vsel %vm88, %v6519, %v4317
    %v6536 = vsel %vm88, %v6520, %v4318
    %v6537 = vsel %vm88, %v6521, %v4319
    %v6538 = vsel %vm1090, %v6522, %v4951
    %v6539 = vsel %vm1090, %v6523, %v4953
    %v6540 = vsel %vm1090, %v6524, %v4955
    %v6541 = vsel %vm1090, %v6525, %v4957
    %v6542 = vsel %vm1090, %v6526, %v4959
    %v6543 = vsel %vm1090, %v6527, %v4961
    %v6544 = vsel %vm1090, %v6528, %v4963
    %v6545 = vsel %vm1090, %v6529, %v4965
    %v6546 = vsel %vm1090, %v6530, %v4967
    %v6547 = vsel %vm1090, %v6531, %v4969
    %v6548 = vsel %vm1090, %v6532, %v4971
    %v6549 = vsel %vm1090, %v6533, %v4973
    %v6550 = vsel %vm1090, %v6534, %v4975
    %v6551 = vsel %vm1090, %v6535, %v4977
    %v6552 = vsel %vm1090, %v6536, %v4979
    %v6553 = vsel %vm1090, %v6537, %v4981
    %v6554 = vsel %vm1107, %v6538, %v4999
    %v6555 = vsel %vm1107, %v6539, %v5001
    %v6556 = vsel %vm1107, %v6540, %v5003
    %v6557 = vsel %vm1107, %v6541, %v5005
    %v6558 = vsel %vm1107, %v6542, %v5007
    %v6559 = vsel %vm1107, %v6543, %v5009
    %v6560 = vsel %vm1107, %v6544, %v5011
    %v6561 = vsel %vm1107, %v6545, %v5013
    %v6562 = vsel %vm1107, %v6546, %v5015
    %v6563 = vsel %vm1107, %v6547, %v5017
    %v6564 = vsel %vm1107, %v6548, %v5019
    %v6565 = vsel %vm1107, %v6549, %v5021
    %v6566 = vsel %vm1107, %v6550, %v5023
    %v6567 = vsel %vm1107, %v6551, %v5025
    %v6568 = vsel %vm1107, %v6552, %v5027
    %v6569 = vsel %vm1107, %v6553, %v5029
    %v6570 = vsel %vm1124, %v6554, %v5047
    %v6571 = vsel %vm1124, %v6555, %v5049
    %v6572 = vsel %vm1124, %v6556, %v5051
    %v6573 = vsel %vm1124, %v6557, %v5053
    %v6574 = vsel %vm1124, %v6558, %v5055
    %v6575 = vsel %vm1124, %v6559, %v5057
    %v6576 = vsel %vm1124, %v6560, %v5059
    %v6577 = vsel %vm1124, %v6561, %v5061
    %v6578 = vsel %vm1124, %v6562, %v5063
    %v6579 = vsel %vm1124, %v6563, %v5065
    %v6580 = vsel %vm1124, %v6564, %v5067
    %v6581 = vsel %vm1124, %v6565, %v5069
    %v6582 = vsel %vm1124, %v6566, %v5071
    %v6583 = vsel %vm1124, %v6567, %v5073
    %v6584 = vsel %vm1124, %v6568, %v5075
    %v6585 = vsel %vm1124, %v6569, %v5077
    %v6586 = vsel %vm1141, %v6570, %v5095
    %v6587 = vsel %vm1141, %v6571, %v5097
    %v6588 = vsel %vm1141, %v6572, %v5099
    %v6589 = vsel %vm1141, %v6573, %v5101
    %v6590 = vsel %vm1141, %v6574, %v5103
    %v6591 = vsel %vm1141, %v6575, %v5105
    %v6592 = vsel %vm1141, %v6576, %v5107
    %v6593 = vsel %vm1141, %v6577, %v5109
    %v6594 = vsel %vm1141, %v6578, %v5111
    %v6595 = vsel %vm1141, %v6579, %v5113
    %v6596 = vsel %vm1141, %v6580, %v5115
    %v6597 = vsel %vm1141, %v6581, %v5117
    %v6598 = vsel %vm1141, %v6582, %v5119
    %v6599 = vsel %vm1141, %v6583, %v5121
    %v6600 = vsel %vm1141, %v6584, %v5123
    %v6601 = vsel %vm1141, %v6585, %v5125
    %v6602 = vsel %vm1158, %v6586, %v5143
    %v6603 = vsel %vm1158, %v6587, %v5145
    %v6604 = vsel %vm1158, %v6588, %v5147
    %v6605 = vsel %vm1158, %v6589, %v5149
    %v6606 = vsel %vm1158, %v6590, %v5151
    %v6607 = vsel %vm1158, %v6591, %v5153
    %v6608 = vsel %vm1158, %v6592, %v5155
    %v6609 = vsel %vm1158, %v6593, %v5157
    %v6610 = vsel %vm1158, %v6594, %v5159
    %v6611 = vsel %vm1158, %v6595, %v5161
    %v6612 = vsel %vm1158, %v6596, %v5163
    %v6613 = vsel %vm1158, %v6597, %v5165
    %v6614 = vsel %vm1158, %v6598, %v5167
    %v6615 = vsel %vm1158, %v6599, %v5169
    %v6616 = vsel %vm1158, %v6600, %v5171
    %v6617 = vsel %vm1158, %v6601, %v5173
    %v6618 = vadd.f32 %v6490, %v6602
    %v6619 = vadd.f32 %v6491, %v6603
    %v6620 = vadd.f32 %v6492, %v6604
    %v6621 = vadd.f32 %v6493, %v6605
    %v6622 = vadd.f32 %v6494, %v6606
    %v6623 = vadd.f32 %v6495, %v6607
    %v6624 = vadd.f32 %v6496, %v6608
    %v6625 = vadd.f32 %v6497, %v6609
    %v6626 = vadd.f32 %v6498, %v6610
    %v6627 = vadd.f32 %v6499, %v6611
    %v6628 = vadd.f32 %v6500, %v6612
    %v6629 = vadd.f32 %v6501, %v6613
    %v6630 = vadd.f32 %v6502, %v6614
    %v6631 = vadd.f32 %v6503, %v6615
    %v6632 = vadd.f32 %v6504, %v6616
    %v6633 = vadd.f32 %v6505, %v6617
    %v6634 = vadd.f32 %v6618, %v47
    %v6635 = vadd.f32 %v6619, %v48
    %v6636 = vadd.f32 %v6620, %v49
    %v6637 = vadd.f32 %v6621, %v50
    %v6638 = vadd.f32 %v6622, %v51
    %v6639 = vadd.f32 %v6623, %v52
    %v6640 = vadd.f32 %v6624, %v53
    %v6641 = vadd.f32 %v6625, %v54
    %v6642 = vadd.f32 %v6626, %v55
    %v6643 = vadd.f32 %v6627, %v56
    %v6644 = vadd.f32 %v6628, %v57
    %v6645 = vadd.f32 %v6629, %v58
    %v6646 = vadd.f32 %v6630, %v59
    %v6647 = vadd.f32 %v6631, %v60
    %v6648 = vadd.f32 %v6632, %v61
    %v6649 = vadd.f32 %v6633, %v62
    %6650 = vmax.xlane.f32.xlu0 %v6634
    %v6651 = vpop.xlane.xlu0 %6650
    %6652 = vmax.xlane.f32.xlu0 %v6635
    %v6653 = vpop.xlane.xlu0 %6652
    %6654 = vmax.xlane.f32.xlu0 %v6636
    %v6655 = vpop.xlane.xlu0 %6654
    %6656 = vmax.xlane.f32.xlu0 %v6637
    %v6657 = vpop.xlane.xlu0 %6656
    %6658 = vmax.xlane.f32.xlu0 %v6638
    %v6659 = vpop.xlane.xlu0 %6658
    %6660 = vmax.xlane.f32.xlu0 %v6639
    %v6661 = vpop.xlane.xlu0 %6660
    %6662 = vmax.xlane.f32.xlu0 %v6640
    %v6663 = vpop.xlane.xlu0 %6662
    %6664 = vmax.xlane.f32.xlu0 %v6641
    %v6665 = vpop.xlane.xlu0 %6664
    %6666 = vmax.xlane.f32.xlu0 %v6642
    %v6667 = vpop.xlane.xlu0 %6666
    %6668 = vmax.xlane.f32.xlu0 %v6643
    %v6669 = vpop.xlane.xlu0 %6668
    %6670 = vmax.xlane.f32.xlu0 %v6644
    %v6671 = vpop.xlane.xlu0 %6670
    %6672 = vmax.xlane.f32.xlu0 %v6645
    %v6673 = vpop.xlane.xlu0 %6672
    %6674 = vmax.xlane.f32.xlu0 %v6646
    %v6675 = vpop.xlane.xlu0 %6674
    %6676 = vmax.xlane.f32.xlu0 %v6647
    %v6677 = vpop.xlane.xlu0 %6676
    %6678 = vmax.xlane.f32.xlu0 %v6648
    %v6679 = vpop.xlane.xlu0 %6678
    %6680 = vmax.xlane.f32.xlu0 %v6649
    %v6681 = vpop.xlane.xlu0 %6680
    %v6682 = vsub.f32 %v6634, %v6651
    %v6683 = vsub.f32 %v6635, %v6653
    %v6684 = vsub.f32 %v6636, %v6655
    %v6685 = vsub.f32 %v6637, %v6657
    %v6686 = vsub.f32 %v6638, %v6659
    %v6687 = vsub.f32 %v6639, %v6661
    %v6688 = vsub.f32 %v6640, %v6663
    %v6689 = vsub.f32 %v6641, %v6665
    %v6690 = vsub.f32 %v6642, %v6667
    %v6691 = vsub.f32 %v6643, %v6669
    %v6692 = vsub.f32 %v6644, %v6671
    %v6693 = vsub.f32 %v6645, %v6673
    %v6694 = vsub.f32 %v6646, %v6675
    %v6695 = vsub.f32 %v6647, %v6677
    %v6696 = vsub.f32 %v6648, %v6679
    %v6697 = vsub.f32 %v6649, %v6681
    %v6698 = vmul.f32 %v6682, 1.442695
    %v6699 = vpow.pop %v6698
    %v6700 = vmul.f32 %v6683, 1.442695
    %v6701 = vpow.pop %v6700
    %v6702 = vmul.f32 %v6684, 1.442695
    %v6703 = vpow.pop %v6702
    %v6704 = vmul.f32 %v6685, 1.442695
    %v6705 = vpow.pop %v6704
    %v6706 = vmul.f32 %v6686, 1.442695
    %v6707 = vpow.pop %v6706
    %v6708 = vmul.f32 %v6687, 1.442695
    %v6709 = vpow.pop %v6708
    %v6710 = vmul.f32 %v6688, 1.442695
    %v6711 = vpow.pop %v6710
    %v6712 = vmul.f32 %v6689, 1.442695
    %v6713 = vpow.pop %v6712
    %v6714 = vmul.f32 %v6690, 1.442695
    %v6715 = vpow.pop %v6714
    %v6716 = vmul.f32 %v6691, 1.442695
    %v6717 = vpow.pop %v6716
    %v6718 = vmul.f32 %v6692, 1.442695
    %v6719 = vpow.pop %v6718
    %v6720 = vmul.f32 %v6693, 1.442695
    %v6721 = vpow.pop %v6720
    %v6722 = vmul.f32 %v6694, 1.442695
    %v6723 = vpow.pop %v6722
    %v6724 = vmul.f32 %v6695, 1.442695
    %v6725 = vpow.pop %v6724
    %v6726 = vmul.f32 %v6696, 1.442695
    %v6727 = vpow.pop %v6726
    %v6728 = vmul.f32 %v6697, 1.442695
    %v6729 = vpow.pop %v6728
    %6730 = vadd.xlane.f32.xlu0 %v6699
    %v6731 = vpop.xlane.xlu0 %6730
    %6732 = vadd.xlane.f32.xlu0 %v6701
    %v6733 = vpop.xlane.xlu0 %6732
    %6734 = vadd.xlane.f32.xlu0 %v6703
    %v6735 = vpop.xlane.xlu0 %6734
    %6736 = vadd.xlane.f32.xlu0 %v6705
    %v6737 = vpop.xlane.xlu0 %6736
    %6738 = vadd.xlane.f32.xlu0 %v6707
    %v6739 = vpop.xlane.xlu0 %6738
    %6740 = vadd.xlane.f32.xlu0 %v6709
    %v6741 = vpop.xlane.xlu0 %6740
    %6742 = vadd.xlane.f32.xlu0 %v6711
    %v6743 = vpop.xlane.xlu0 %6742
    %6744 = vadd.xlane.f32.xlu0 %v6713
    %v6745 = vpop.xlane.xlu0 %6744
    %6746 = vadd.xlane.f32.xlu0 %v6715
    %v6747 = vpop.xlane.xlu0 %6746
    %6748 = vadd.xlane.f32.xlu0 %v6717
    %v6749 = vpop.xlane.xlu0 %6748
    %6750 = vadd.xlane.f32.xlu0 %v6719
    %v6751 = vpop.xlane.xlu0 %6750
    %6752 = vadd.xlane.f32.xlu0 %v6721
    %v6753 = vpop.xlane.xlu0 %6752
    %6754 = vadd.xlane.f32.xlu0 %v6723
    %v6755 = vpop.xlane.xlu0 %6754
    %6756 = vadd.xlane.f32.xlu0 %v6725
    %v6757 = vpop.xlane.xlu0 %6756
    %6758 = vadd.xlane.f32.xlu0 %v6727
    %v6759 = vpop.xlane.xlu0 %6758
    %6760 = vadd.xlane.f32.xlu0 %v6729
    %v6761 = vpop.xlane.xlu0 %6760
    %v6762 = vrcp.pop %v6731
    %v6763 = vrcp.pop %v6733
    %v6764 = vrcp.pop %v6735
    %v6765 = vrcp.pop %v6737
    %v6766 = vrcp.pop %v6739
    %v6767 = vrcp.pop %v6741
    %v6768 = vrcp.pop %v6743
    %v6769 = vrcp.pop %v6745
    %v6770 = vrcp.pop %v6747
    %v6771 = vrcp.pop %v6749
    %v6772 = vrcp.pop %v6751
    %v6773 = vrcp.pop %v6753
    %v6774 = vrcp.pop %v6755
    %v6775 = vrcp.pop %v6757
    %v6776 = vrcp.pop %v6759
    %v6777 = vrcp.pop %v6761
    %v6778 = vmul.f32 %v6699, %v6762
    %v6779 = vmul.f32 %v6701, %v6763
    %v6780 = vmul.f32 %v6703, %v6764
    %v6781 = vmul.f32 %v6705, %v6765
    %v6782 = vmul.f32 %v6707, %v6766
    %v6783 = vmul.f32 %v6709, %v6767
    %v6784 = vmul.f32 %v6711, %v6768
    %v6785 = vmul.f32 %v6713, %v6769
    %v6786 = vmul.f32 %v6715, %v6770
    %v6787 = vmul.f32 %v6717, %v6771
    %v6788 = vmul.f32 %v6719, %v6772
    %v6789 = vmul.f32 %v6721, %v6773
    %v6790 = vmul.f32 %v6723, %v6774
    %v6791 = vmul.f32 %v6725, %v6775
    %v6792 = vmul.f32 %v6727, %v6776
    %v6793 = vmul.f32 %v6729, %v6777
    %v6794 = vpack.c.bf16 %v6779, %v6778
    %v6795 = vpack.c.bf16 %v6781, %v6780
    %v6796 = vpack.c.bf16 %v6783, %v6782
    %v6797 = vpack.c.bf16 %v6785, %v6784
    %v6798 = vpack.c.bf16 %v6787, %v6786
    %v6799 = vpack.c.bf16 %v6789, %v6788
    %v6800 = vpack.c.bf16 %v6791, %v6790
    %v6801 = vpack.c.bf16 %v6793, %v6792
    %6802 = vrot.lane.b32.xlu0 %v4741, 48
    %v6803 = vpop.permute.xlu0 %6802
    %6804 = vrot.lane.b32.xlu0 %v4742, 48
    %v6805 = vpop.permute.xlu0 %6804
    %6806 = vrot.lane.b32.xlu0 %v4743, 48
    %v6807 = vpop.permute.xlu0 %6806
    %6808 = vrot.lane.b32.xlu0 %v4744, 48
    %v6809 = vpop.permute.xlu0 %6808
    %6810 = vrot.lane.b32.xlu0 %v4745, 48
    %v6811 = vpop.permute.xlu0 %6810
    %6812 = vrot.lane.b32.xlu0 %v4746, 48
    %v6813 = vpop.permute.xlu0 %6812
    %6814 = vrot.lane.b32.xlu0 %v4747, 48
    %v6815 = vpop.permute.xlu0 %6814
    %6816 = vrot.lane.b32.xlu0 %v4748, 48
    %v6817 = vpop.permute.xlu0 %6816
    %6826 = vmatprep.subr.bf16.mxu0 0
    %6827 = vmatpush1.bf16.msra.mxu0 %v6803
    %6828 = vmatprep.subr.bf16.mxu0 0
    %6829 = vmatpush1.bf16.msra.mxu0 %v6805
    %6830 = vmatprep.subr.bf16.mxu0 0
    %6831 = vmatpush1.bf16.msra.mxu0 %v6807
    %6832 = vmatprep.subr.bf16.mxu0 0
    %6833 = vmatpush1.bf16.msra.mxu0 %v6809
    %6834 = vmatprep.subr.bf16.mxu0 0
    %6835 = vmatpush1.bf16.msra.mxu0 %v6811
    %6836 = vmatprep.subr.bf16.mxu0 0
    %6837 = vmatpush1.bf16.msra.mxu0 %v6813
    %6838 = vmatprep.subr.bf16.mxu0 0
    %6839 = vmatpush1.bf16.msra.mxu0 %v6815
    %6840 = vmatprep.subr.bf16.mxu0 0
    %6841 = vmatpush1.bf16.msra.mxu0 %v6817
    %6842 = vmatprep.subr.bf16.mxu0 0
    %6843 = vmatpush1.bf16.msra.mxu0 0
    %6844 = vmatprep.subr.bf16.mxu0 0
    %6845 = vmatpush1.bf16.msra.mxu0 0
    %6846 = vmatprep.subr.bf16.mxu0 0
    %6847 = vmatpush1.bf16.msra.mxu0 0
    %6848 = vmatprep.subr.bf16.mxu0 0
    %6849 = vmatpush1.bf16.msra.mxu0 0
    %6850 = vmatprep.subr.bf16.mxu0 0
    %6851 = vmatpush1.bf16.msra.mxu0 0
    %6852 = vmatprep.subr.bf16.mxu0 0
    %6853 = vmatpush1.bf16.msra.mxu0 0
    %6854 = vmatprep.subr.bf16.mxu0 0
    %6855 = vmatpush1.bf16.msra.mxu0 0
    %6856 = vmatprep.subr.bf16.mxu0 0
    %6857 = vmatpush1.bf16.msra.mxu0 0
    %6858 = vmatprep.mubr.bf16.mxu0 0
    %6859 = vmatmul.mubr.bf16.gmra.mrb[0].mxu0 %v6794
    %v6860 = vpop.f32.mrb[0].mxu0
    %v6861 = vadd.f32 0.0, %v6860
    %v6862 = vpop.f32.mrb[0].mxu0
    %v6863 = vpop.f32.mrb[0].mxu0
    %v6864 = vadd.f32 0.0, %v6863
    %v6865 = vpop.f32.mrb[0].mxu0
    %6866 = vmatprep.mubr.bf16.mxu0 0
    %6867 = vmatmul.mubr.bf16.gmra.mrb[0].mxu0 %v6795
    %v6868 = vpop.f32.mrb[0].mxu0
    %v6869 = vadd.f32 0.0, %v6868
    %v6870 = vpop.f32.mrb[0].mxu0
    %v6871 = vpop.f32.mrb[0].mxu0
    %v6872 = vadd.f32 0.0, %v6871
    %v6873 = vpop.f32.mrb[0].mxu0
    %6874 = vmatprep.mubr.bf16.mxu0 0
    %6875 = vmatmul.mubr.bf16.gmra.mrb[0].mxu0 %v6796
    %v6876 = vpop.f32.mrb[0].mxu0
    %v6877 = vadd.f32 0.0, %v6876
    %v6878 = vpop.f32.mrb[0].mxu0
    %v6879 = vpop.f32.mrb[0].mxu0
    %v6880 = vadd.f32 0.0, %v6879
    %v6881 = vpop.f32.mrb[0].mxu0
    %6882 = vmatprep.mubr.bf16.mxu0 0
    %6883 = vmatmul.mubr.bf16.gmra.mrb[0].mxu0 %v6797
    %v6884 = vpop.f32.mrb[0].mxu0
    %v6885 = vadd.f32 0.0, %v6884
    %v6886 = vpop.f32.mrb[0].mxu0
    %v6887 = vpop.f32.mrb[0].mxu0
    %v6888 = vadd.f32 0.0, %v6887
    %v6889 = vpop.f32.mrb[0].mxu0
    %6890 = vmatprep.mubr.bf16.mxu0 0
    %6891 = vmatmul.mubr.bf16.gmra.mrb[0].mxu0 %v6798
    %v6892 = vpop.f32.mrb[0].mxu0
    %v6893 = vadd.f32 0.0, %v6892
    %v6894 = vpop.f32.mrb[0].mxu0
    %v6895 = vpop.f32.mrb[0].mxu0
    %v6896 = vadd.f32 0.0, %v6895
    %v6897 = vpop.f32.mrb[0].mxu0
    %6898 = vmatprep.mubr.bf16.mxu0 0
    %6899 = vmatmul.mubr.bf16.gmra.mrb[0].mxu0 %v6799
    %v6900 = vpop.f32.mrb[0].mxu0
    %v6901 = vadd.f32 0.0, %v6900
    %v6902 = vpop.f32.mrb[0].mxu0
    %v6903 = vpop.f32.mrb[0].mxu0
    %v6904 = vadd.f32 0.0, %v6903
    %v6905 = vpop.f32.mrb[0].mxu0
    %6906 = vmatprep.mubr.bf16.mxu0 0
    %6907 = vmatmul.mubr.bf16.gmra.mrb[0].mxu0 %v6800
    %v6908 = vpop.f32.mrb[0].mxu0
    %v6909 = vadd.f32 0.0, %v6908
    %v6910 = vpop.f32.mrb[0].mxu0
    %v6911 = vpop.f32.mrb[0].mxu0
    %v6912 = vadd.f32 0.0, %v6911
    %v6913 = vpop.f32.mrb[0].mxu0
    %6914 = vmatprep.mubr.bf16.mxu0 0
    %6915 = vmatmul.mubr.bf16.gmra.mrb[0].mxu0 %v6801
    %v6916 = vpop.f32.mrb[0].mxu0
    %v6917 = vadd.f32 0.0, %v6916
    %v6918 = vpop.f32.mrb[0].mxu0
    %v6919 = vpop.f32.mrb[0].mxu0
    %v6920 = vadd.f32 0.0, %v6919
    %v6921 = vpop.f32.mrb[0].mxu0
    %6922 = vdwg.mxu0
    %6923 = vrot.lane.b32.xlu0 %v4741, 104
    %v6924 = vpop.permute.xlu0 %6923
    %6925 = vrot.lane.b32.xlu0 %v4742, 104
    %v6926 = vpop.permute.xlu0 %6925
    %6927 = vrot.lane.b32.xlu0 %v4743, 104
    %v6928 = vpop.permute.xlu0 %6927
    %6929 = vrot.lane.b32.xlu0 %v4744, 104
    %v6930 = vpop.permute.xlu0 %6929
    %6931 = vrot.lane.b32.xlu0 %v4745, 104
    %v6932 = vpop.permute.xlu0 %6931
    %6933 = vrot.lane.b32.xlu0 %v4746, 104
    %v6934 = vpop.permute.xlu0 %6933
    %6935 = vrot.lane.b32.xlu0 %v4747, 104
    %v6936 = vpop.permute.xlu0 %6935
    %6937 = vrot.lane.b32.xlu0 %v4748, 104
    %v6938 = vpop.permute.xlu0 %6937
    %6939 = vrot.lane.b32.xlu0 %v4741, 72
    %v6940 = vpop.permute.xlu0 %6939
    %6941 = vrot.lane.b32.xlu0 %v4742, 72
    %v6942 = vpop.permute.xlu0 %6941
    %6943 = vrot.lane.b32.xlu0 %v4743, 72
    %v6944 = vpop.permute.xlu0 %6943
    %6945 = vrot.lane.b32.xlu0 %v4744, 72
    %v6946 = vpop.permute.xlu0 %6945
    %6947 = vrot.lane.b32.xlu0 %v4745, 72
    %v6948 = vpop.permute.xlu0 %6947
    %6949 = vrot.lane.b32.xlu0 %v4746, 72
    %v6950 = vpop.permute.xlu0 %6949
    %6951 = vrot.lane.b32.xlu0 %v4747, 72
    %v6952 = vpop.permute.xlu0 %6951
    %6953 = vrot.lane.b32.xlu0 %v4748, 72
    %v6954 = vpop.permute.xlu0 %6953
    %v6956 = vsel %vm543, %v6924, 0
    %v6959 = vsel %vm543, %v6926, 0
    %v6962 = vsel %vm543, %v6928, 0
    %v6965 = vsel %vm543, %v6930, 0
    %v6968 = vsel %vm543, %v6932, 0
    %v6971 = vsel %vm543, %v6934, 0
    %v6974 = vsel %vm543, %v6936, 0
    %v6977 = vsel %vm543, %v6938, 0
    %v6980 = vsel %vm543, %v6940, 0
    %v6983 = vsel %vm543, %v6942, 0
    %v6986 = vsel %vm543, %v6944, 0
    %v6989 = vsel %vm543, %v6946, 0
    %v6992 = vsel %vm543, %v6948, 0
    %v6995 = vsel %vm543, %v6950, 0
    %v6998 = vsel %vm543, %v6952, 0
    %v7001 = vsel %vm543, %v6954, 0
    %7003 = vmatprep.subr.bf16.mxu0 0
    %7004 = vmatpush1.bf16.xpose.msra.mxu0 %v6980
    %7005 = vmatprep.subr.bf16.mxu0 0
    %7006 = vmatpush1.bf16.xpose.msra.mxu0 %v6983
    %7007 = vmatprep.subr.bf16.mxu0 0
    %7008 = vmatpush1.bf16.xpose.msra.mxu0 %v6986
    %7009 = vmatprep.subr.bf16.mxu0 0
    %7010 = vmatpush1.bf16.xpose.msra.mxu0 %v6989
    %7011 = vmatprep.subr.bf16.mxu0 0
    %7012 = vmatpush1.bf16.xpose.msra.mxu0 %v6992
    %7013 = vmatprep.subr.bf16.mxu0 0
    %7014 = vmatpush1.bf16.xpose.msra.mxu0 %v6995
    %7015 = vmatprep.subr.bf16.mxu0 0
    %7016 = vmatpush1.bf16.xpose.msra.mxu0 %v6998
    %7017 = vmatprep.subr.bf16.mxu0 0
    %7018 = vmatpush1.bf16.xpose.msra.mxu0 %v7001
    %7019 = vmatprep.subr.bf16.mxu0 0
    %7020 = vmatpush1.bf16.xpose.msra.mxu0 0
    %7021 = vmatprep.subr.bf16.mxu0 0
    %7022 = vmatpush1.bf16.xpose.msra.mxu0 0
    %7023 = vmatprep.subr.bf16.mxu0 0
    %7024 = vmatpush1.bf16.xpose.msra.mxu0 0
    %7025 = vmatprep.subr.bf16.mxu0 0
    %7026 = vmatpush1.bf16.xpose.msra.mxu0 0
    %7027 = vmatprep.subr.bf16.mxu0 0
    %7028 = vmatpush1.bf16.xpose.msra.mxu0 0
    %7029 = vmatprep.subr.bf16.mxu0 0
    %7030 = vmatpush1.bf16.xpose.msra.mxu0 0
    %7031 = vmatprep.subr.bf16.mxu0 0
    %7032 = vmatpush1.bf16.xpose.msra.mxu0 0
    %7033 = vmatprep.subr.bf16.mxu0 0
    %7034 = vmatpush1.bf16.xpose.msra.mxu0 0
    %7035 = vmatprep.mubr.bf16.mxu0 0
    %7036 = vmatmul.mubr.bf16.gmra.mrb[0].mxu0 %v6956
    %v7037 = vpop.f32.mrb[0].mxu0
    %v7038 = vadd.f32 0.0, %v7037
    %v7039 = vpop.f32.mrb[0].mxu0
    %v7040 = vpop.f32.mrb[0].mxu0
    %v7041 = vadd.f32 0.0, %v7040
    %v7042 = vpop.f32.mrb[0].mxu0
    %7043 = vmatprep.mubr.bf16.mxu0 0
    %7044 = vmatmul.mubr.bf16.gmra.mrb[0].mxu0 %v6959
    %v7045 = vpop.f32.mrb[0].mxu0
    %v7046 = vadd.f32 0.0, %v7045
    %v7047 = vpop.f32.mrb[0].mxu0
    %v7048 = vpop.f32.mrb[0].mxu0
    %v7049 = vadd.f32 0.0, %v7048
    %v7050 = vpop.f32.mrb[0].mxu0
    %7051 = vmatprep.mubr.bf16.mxu0 0
    %7052 = vmatmul.mubr.bf16.gmra.mrb[0].mxu0 %v6962
    %v7053 = vpop.f32.mrb[0].mxu0
    %v7054 = vadd.f32 0.0, %v7053
    %v7055 = vpop.f32.mrb[0].mxu0
    %v7056 = vpop.f32.mrb[0].mxu0
    %v7057 = vadd.f32 0.0, %v7056
    %v7058 = vpop.f32.mrb[0].mxu0
    %7059 = vmatprep.mubr.bf16.mxu0 0
    %7060 = vmatmul.mubr.bf16.gmra.mrb[0].mxu0 %v6965
    %v7061 = vpop.f32.mrb[0].mxu0
    %v7062 = vadd.f32 0.0, %v7061
    %v7063 = vpop.f32.mrb[0].mxu0
    %v7064 = vpop.f32.mrb[0].mxu0
    %v7065 = vadd.f32 0.0, %v7064
    %v7066 = vpop.f32.mrb[0].mxu0
    %7067 = vmatprep.mubr.bf16.mxu0 0
    %7068 = vmatmul.mubr.bf16.gmra.mrb[0].mxu0 %v6968
    %v7069 = vpop.f32.mrb[0].mxu0
    %v7070 = vadd.f32 0.0, %v7069
    %v7071 = vpop.f32.mrb[0].mxu0
    %v7072 = vpop.f32.mrb[0].mxu0
    %v7073 = vadd.f32 0.0, %v7072
    %v7074 = vpop.f32.mrb[0].mxu0
    %7075 = vmatprep.mubr.bf16.mxu0 0
    %7076 = vmatmul.mubr.bf16.gmra.mrb[0].mxu0 %v6971
    %v7077 = vpop.f32.mrb[0].mxu0
    %v7078 = vadd.f32 0.0, %v7077
    %v7079 = vpop.f32.mrb[0].mxu0
    %v7080 = vpop.f32.mrb[0].mxu0
    %v7081 = vadd.f32 0.0, %v7080
    %v7082 = vpop.f32.mrb[0].mxu0
    %7083 = vmatprep.mubr.bf16.mxu0 0
    %7084 = vmatmul.mubr.bf16.gmra.mrb[0].mxu0 %v6974
    %v7085 = vpop.f32.mrb[0].mxu0
    %v7086 = vadd.f32 0.0, %v7085
    %v7087 = vpop.f32.mrb[0].mxu0
    %v7088 = vpop.f32.mrb[0].mxu0
    %v7089 = vadd.f32 0.0, %v7088
    %v7090 = vpop.f32.mrb[0].mxu0
    %7091 = vmatprep.mubr.bf16.mxu0 0
    %7092 = vmatmul.mubr.bf16.gmra.mrb[0].mxu0 %v6977
    %v7093 = vpop.f32.mrb[0].mxu0
    %v7094 = vadd.f32 0.0, %v7093
    %v7095 = vpop.f32.mrb[0].mxu0
    %v7096 = vpop.f32.mrb[0].mxu0
    %v7097 = vadd.f32 0.0, %v7096
    %v7098 = vpop.f32.mrb[0].mxu0
    %7099 = vdwg.mxu0
    %v7100 = vmul.f32 %v7038, 0.35355338
    %v7101 = vmul.f32 %v7041, 0.35355338
    %v7102 = vmul.f32 %v7046, 0.35355338
    %v7103 = vmul.f32 %v7049, 0.35355338
    %v7104 = vmul.f32 %v7054, 0.35355338
    %v7105 = vmul.f32 %v7057, 0.35355338
    %v7106 = vmul.f32 %v7062, 0.35355338
    %v7107 = vmul.f32 %v7065, 0.35355338
    %v7108 = vmul.f32 %v7070, 0.35355338
    %v7109 = vmul.f32 %v7073, 0.35355338
    %v7110 = vmul.f32 %v7078, 0.35355338
    %v7111 = vmul.f32 %v7081, 0.35355338
    %v7112 = vmul.f32 %v7086, 0.35355338
    %v7113 = vmul.f32 %v7089, 0.35355338
    %v7114 = vmul.f32 %v7094, 0.35355338
    %v7115 = vmul.f32 %v7097, 0.35355338
    %v7116 = vsel %vm1057, %v5143, %v5191
    %v7117 = vsel %vm1057, %v5145, %v5193
    %v7118 = vsel %vm1057, %v5147, %v5195
    %v7119 = vsel %vm1057, %v5149, %v5197
    %v7120 = vsel %vm1057, %v5151, %v5199
    %v7121 = vsel %vm1057, %v5153, %v5201
    %v7122 = vsel %vm1057, %v5155, %v5203
    %v7123 = vsel %vm1057, %v5157, %v5205
    %v7124 = vsel %vm1057, %v5159, %v5207
    %v7125 = vsel %vm1057, %v5161, %v5209
    %v7126 = vsel %vm1057, %v5163, %v5211
    %v7127 = vsel %vm1057, %v5165, %v5213
    %v7128 = vsel %vm1057, %v5167, %v5215
    %v7129 = vsel %vm1057, %v5169, %v5217
    %v7130 = vsel %vm1057, %v5171, %v5219
    %v7131 = vsel %vm1057, %v5173, %v5221
    %v7132 = vsel %vm88, %v7116, %v5239
    %v7133 = vsel %vm88, %v7117, %v5241
    %v7134 = vsel %vm88, %v7118, %v5243
    %v7135 = vsel %vm88, %v7119, %v5245
    %v7136 = vsel %vm88, %v7120, %v5247
    %v7137 = vsel %vm88, %v7121, %v5249
    %v7138 = vsel %vm88, %v7122, %v5251
    %v7139 = vsel %vm88, %v7123, %v5253
    %v7140 = vsel %vm88, %v7124, %v5255
    %v7141 = vsel %vm88, %v7125, %v5257
    %v7142 = vsel %vm88, %v7126, %v5259
    %v7143 = vsel %vm88, %v7127, %v5261
    %v7144 = vsel %vm88, %v7128, %v5263
    %v7145 = vsel %vm88, %v7129, %v5265
    %v7146 = vsel %vm88, %v7130, %v5267
    %v7147 = vsel %vm88, %v7131, %v5269
    %v7148 = vsel %vm1090, %v7132, %v4304
    %v7149 = vsel %vm1090, %v7133, %v4305
    %v7150 = vsel %vm1090, %v7134, %v4306
    %v7151 = vsel %vm1090, %v7135, %v4307
    %v7152 = vsel %vm1090, %v7136, %v4308
    %v7153 = vsel %vm1090, %v7137, %v4309
    %v7154 = vsel %vm1090, %v7138, %v4310
    %v7155 = vsel %vm1090, %v7139, %v4311
    %v7156 = vsel %vm1090, %v7140, %v4312
    %v7157 = vsel %vm1090, %v7141, %v4313
    %v7158 = vsel %vm1090, %v7142, %v4314
    %v7159 = vsel %vm1090, %v7143, %v4315
    %v7160 = vsel %vm1090, %v7144, %v4316
    %v7161 = vsel %vm1090, %v7145, %v4317
    %v7162 = vsel %vm1090, %v7146, %v4318
    %v7163 = vsel %vm1090, %v7147, %v4319
    %v7164 = vsel %vm1107, %v7148, %v4951
    %v7165 = vsel %vm1107, %v7149, %v4953
    %v7166 = vsel %vm1107, %v7150, %v4955
    %v7167 = vsel %vm1107, %v7151, %v4957
    %v7168 = vsel %vm1107, %v7152, %v4959
    %v7169 = vsel %vm1107, %v7153, %v4961
    %v7170 = vsel %vm1107, %v7154, %v4963
    %v7171 = vsel %vm1107, %v7155, %v4965
    %v7172 = vsel %vm1107, %v7156, %v4967
    %v7173 = vsel %vm1107, %v7157, %v4969
    %v7174 = vsel %vm1107, %v7158, %v4971
    %v7175 = vsel %vm1107, %v7159, %v4973
    %v7176 = vsel %vm1107, %v7160, %v4975
    %v7177 = vsel %vm1107, %v7161, %v4977
    %v7178 = vsel %vm1107, %v7162, %v4979
    %v7179 = vsel %vm1107, %v7163, %v4981
    %v7180 = vsel %vm1124, %v7164, %v4999
    %v7181 = vsel %vm1124, %v7165, %v5001
    %v7182 = vsel %vm1124, %v7166, %v5003
    %v7183 = vsel %vm1124, %v7167, %v5005
    %v7184 = vsel %vm1124, %v7168, %v5007
    %v7185 = vsel %vm1124, %v7169, %v5009
    %v7186 = vsel %vm1124, %v7170, %v5011
    %v7187 = vsel %vm1124, %v7171, %v5013
    %v7188 = vsel %vm1124, %v7172, %v5015
    %v7189 = vsel %vm1124, %v7173, %v5017
    %v7190 = vsel %vm1124, %v7174, %v5019
    %v7191 = vsel %vm1124, %v7175, %v5021
    %v7192 = vsel %vm1124, %v7176, %v5023
    %v7193 = vsel %vm1124, %v7177, %v5025
    %v7194 = vsel %vm1124, %v7178, %v5027
    %v7195 = vsel %vm1124, %v7179, %v5029
    %v7196 = vsel %vm1141, %v7180, %v5047
    %v7197 = vsel %vm1141, %v7181, %v5049
    %v7198 = vsel %vm1141, %v7182, %v5051
    %v7199 = vsel %vm1141, %v7183, %v5053
    %v7200 = vsel %vm1141, %v7184, %v5055
    %v7201 = vsel %vm1141, %v7185, %v5057
    %v7202 = vsel %vm1141, %v7186, %v5059
    %v7203 = vsel %vm1141, %v7187, %v5061
    %v7204 = vsel %vm1141, %v7188, %v5063
    %v7205 = vsel %vm1141, %v7189, %v5065
    %v7206 = vsel %vm1141, %v7190, %v5067
    %v7207 = vsel %vm1141, %v7191, %v5069
    %v7208 = vsel %vm1141, %v7192, %v5071
    %v7209 = vsel %vm1141, %v7193, %v5073
    %v7210 = vsel %vm1141, %v7194, %v5075
    %v7211 = vsel %vm1141, %v7195, %v5077
    %v7212 = vsel %vm1158, %v7196, %v5095
    %v7213 = vsel %vm1158, %v7197, %v5097
    %v7214 = vsel %vm1158, %v7198, %v5099
    %v7215 = vsel %vm1158, %v7199, %v5101
    %v7216 = vsel %vm1158, %v7200, %v5103
    %v7217 = vsel %vm1158, %v7201, %v5105
    %v7218 = vsel %vm1158, %v7202, %v5107
    %v7219 = vsel %vm1158, %v7203, %v5109
    %v7220 = vsel %vm1158, %v7204, %v5111
    %v7221 = vsel %vm1158, %v7205, %v5113
    %v7222 = vsel %vm1158, %v7206, %v5115
    %v7223 = vsel %vm1158, %v7207, %v5117
    %v7224 = vsel %vm1158, %v7208, %v5119
    %v7225 = vsel %vm1158, %v7209, %v5121
    %v7226 = vsel %vm1158, %v7210, %v5123
    %v7227 = vsel %vm1158, %v7211, %v5125
    %v7228 = vadd.f32 %v7100, %v7212
    %v7229 = vadd.f32 %v7101, %v7213
    %v7230 = vadd.f32 %v7102, %v7214
    %v7231 = vadd.f32 %v7103, %v7215
    %v7232 = vadd.f32 %v7104, %v7216
    %v7233 = vadd.f32 %v7105, %v7217
    %v7234 = vadd.f32 %v7106, %v7218
    %v7235 = vadd.f32 %v7107, %v7219
    %v7236 = vadd.f32 %v7108, %v7220
    %v7237 = vadd.f32 %v7109, %v7221
    %v7238 = vadd.f32 %v7110, %v7222
    %v7239 = vadd.f32 %v7111, %v7223
    %v7240 = vadd.f32 %v7112, %v7224
    %v7241 = vadd.f32 %v7113, %v7225
    %v7242 = vadd.f32 %v7114, %v7226
    %v7243 = vadd.f32 %v7115, %v7227
    %v7244 = vadd.f32 %v7228, %v47
    %v7245 = vadd.f32 %v7229, %v48
    %v7246 = vadd.f32 %v7230, %v49
    %v7247 = vadd.f32 %v7231, %v50
    %v7248 = vadd.f32 %v7232, %v51
    %v7249 = vadd.f32 %v7233, %v52
    %v7250 = vadd.f32 %v7234, %v53
    %v7251 = vadd.f32 %v7235, %v54
    %v7252 = vadd.f32 %v7236, %v55
    %v7253 = vadd.f32 %v7237, %v56
    %v7254 = vadd.f32 %v7238, %v57
    %v7255 = vadd.f32 %v7239, %v58
    %v7256 = vadd.f32 %v7240, %v59
    %v7257 = vadd.f32 %v7241, %v60
    %v7258 = vadd.f32 %v7242, %v61
    %v7259 = vadd.f32 %v7243, %v62
    %7260 = vmax.xlane.f32.xlu0 %v7244
    %v7261 = vpop.xlane.xlu0 %7260
    %7262 = vmax.xlane.f32.xlu0 %v7245
    %v7263 = vpop.xlane.xlu0 %7262
    %7264 = vmax.xlane.f32.xlu0 %v7246
    %v7265 = vpop.xlane.xlu0 %7264
    %7266 = vmax.xlane.f32.xlu0 %v7247
    %v7267 = vpop.xlane.xlu0 %7266
    %7268 = vmax.xlane.f32.xlu0 %v7248
    %v7269 = vpop.xlane.xlu0 %7268
    %7270 = vmax.xlane.f32.xlu0 %v7249
    %v7271 = vpop.xlane.xlu0 %7270
    %7272 = vmax.xlane.f32.xlu0 %v7250
    %v7273 = vpop.xlane.xlu0 %7272
    %7274 = vmax.xlane.f32.xlu0 %v7251
    %v7275 = vpop.xlane.xlu0 %7274
    %7276 = vmax.xlane.f32.xlu0 %v7252
    %v7277 = vpop.xlane.xlu0 %7276
    %7278 = vmax.xlane.f32.xlu0 %v7253
    %v7279 = vpop.xlane.xlu0 %7278
    %7280 = vmax.xlane.f32.xlu0 %v7254
    %v7281 = vpop.xlane.xlu0 %7280
    %7282 = vmax.xlane.f32.xlu0 %v7255
    %v7283 = vpop.xlane.xlu0 %7282
    %7284 = vmax.xlane.f32.xlu0 %v7256
    %v7285 = vpop.xlane.xlu0 %7284
    %7286 = vmax.xlane.f32.xlu0 %v7257
    %v7287 = vpop.xlane.xlu0 %7286
    %7288 = vmax.xlane.f32.xlu0 %v7258
    %v7289 = vpop.xlane.xlu0 %7288
    %7290 = vmax.xlane.f32.xlu0 %v7259
    %v7291 = vpop.xlane.xlu0 %7290
    %v7292 = vsub.f32 %v7244, %v7261
    %v7293 = vsub.f32 %v7245, %v7263
    %v7294 = vsub.f32 %v7246, %v7265
    %v7295 = vsub.f32 %v7247, %v7267
    %v7296 = vsub.f32 %v7248, %v7269
    %v7297 = vsub.f32 %v7249, %v7271
    %v7298 = vsub.f32 %v7250, %v7273
    %v7299 = vsub.f32 %v7251, %v7275
    %v7300 = vsub.f32 %v7252, %v7277
    %v7301 = vsub.f32 %v7253, %v7279
    %v7302 = vsub.f32 %v7254, %v7281
    %v7303 = vsub.f32 %v7255, %v7283
    %v7304 = vsub.f32 %v7256, %v7285
    %v7305 = vsub.f32 %v7257, %v7287
    %v7306 = vsub.f32 %v7258, %v7289
    %v7307 = vsub.f32 %v7259, %v7291
    %v7308 = vmul.f32 %v7292, 1.442695
    %v7309 = vpow.pop %v7308
    %v7310 = vmul.f32 %v7293, 1.442695
    %v7311 = vpow.pop %v7310
    %v7312 = vmul.f32 %v7294, 1.442695
    %v7313 = vpow.pop %v7312
    %v7314 = vmul.f32 %v7295, 1.442695
    %v7315 = vpow.pop %v7314
    %v7316 = vmul.f32 %v7296, 1.442695
    %v7317 = vpow.pop %v7316
    %v7318 = vmul.f32 %v7297, 1.442695
    %v7319 = vpow.pop %v7318
    %v7320 = vmul.f32 %v7298, 1.442695
    %v7321 = vpow.pop %v7320
    %v7322 = vmul.f32 %v7299, 1.442695
    %v7323 = vpow.pop %v7322
    %v7324 = vmul.f32 %v7300, 1.442695
    %v7325 = vpow.pop %v7324
    %v7326 = vmul.f32 %v7301, 1.442695
    %v7327 = vpow.pop %v7326
    %v7328 = vmul.f32 %v7302, 1.442695
    %v7329 = vpow.pop %v7328
    %v7330 = vmul.f32 %v7303, 1.442695
    %v7331 = vpow.pop %v7330
    %v7332 = vmul.f32 %v7304, 1.442695
    %v7333 = vpow.pop %v7332
    %v7334 = vmul.f32 %v7305, 1.442695
    %v7335 = vpow.pop %v7334
    %v7336 = vmul.f32 %v7306, 1.442695
    %v7337 = vpow.pop %v7336
    %v7338 = vmul.f32 %v7307, 1.442695
    %v7339 = vpow.pop %v7338
    %7340 = vadd.xlane.f32.xlu0 %v7309
    %v7341 = vpop.xlane.xlu0 %7340
    %7342 = vadd.xlane.f32.xlu0 %v7311
    %v7343 = vpop.xlane.xlu0 %7342
    %7344 = vadd.xlane.f32.xlu0 %v7313
    %v7345 = vpop.xlane.xlu0 %7344
    %7346 = vadd.xlane.f32.xlu0 %v7315
    %v7347 = vpop.xlane.xlu0 %7346
    %7348 = vadd.xlane.f32.xlu0 %v7317
    %v7349 = vpop.xlane.xlu0 %7348
    %7350 = vadd.xlane.f32.xlu0 %v7319
    %v7351 = vpop.xlane.xlu0 %7350
    %7352 = vadd.xlane.f32.xlu0 %v7321
    %v7353 = vpop.xlane.xlu0 %7352
    %7354 = vadd.xlane.f32.xlu0 %v7323
    %v7355 = vpop.xlane.xlu0 %7354
    %7356 = vadd.xlane.f32.xlu0 %v7325
    %v7357 = vpop.xlane.xlu0 %7356
    %7358 = vadd.xlane.f32.xlu0 %v7327
    %v7359 = vpop.xlane.xlu0 %7358
    %7360 = vadd.xlane.f32.xlu0 %v7329
    %v7361 = vpop.xlane.xlu0 %7360
    %7362 = vadd.xlane.f32.xlu0 %v7331
    %v7363 = vpop.xlane.xlu0 %7362
    %7364 = vadd.xlane.f32.xlu0 %v7333
    %v7365 = vpop.xlane.xlu0 %7364
    %7366 = vadd.xlane.f32.xlu0 %v7335
    %v7367 = vpop.xlane.xlu0 %7366
    %7368 = vadd.xlane.f32.xlu0 %v7337
    %v7369 = vpop.xlane.xlu0 %7368
    %7370 = vadd.xlane.f32.xlu0 %v7339
    %v7371 = vpop.xlane.xlu0 %7370
    %v7372 = vrcp.pop %v7341
    %v7373 = vrcp.pop %v7343
    %v7374 = vrcp.pop %v7345
    %v7375 = vrcp.pop %v7347
    %v7376 = vrcp.pop %v7349
    %v7377 = vrcp.pop %v7351
    %v7378 = vrcp.pop %v7353
    %v7379 = vrcp.pop %v7355
    %v7380 = vrcp.pop %v7357
    %v7381 = vrcp.pop %v7359
    %v7382 = vrcp.pop %v7361
    %v7383 = vrcp.pop %v7363
    %v7384 = vrcp.pop %v7365
    %v7385 = vrcp.pop %v7367
    %v7386 = vrcp.pop %v7369
    %v7387 = vrcp.pop %v7371
    %v7388 = vmul.f32 %v7309, %v7372
    %v7389 = vmul.f32 %v7311, %v7373
    %v7390 = vmul.f32 %v7313, %v7374
    %v7391 = vmul.f32 %v7315, %v7375
    %v7392 = vmul.f32 %v7317, %v7376
    %v7393 = vmul.f32 %v7319, %v7377
    %v7394 = vmul.f32 %v7321, %v7378
    %v7395 = vmul.f32 %v7323, %v7379
    %v7396 = vmul.f32 %v7325, %v7380
    %v7397 = vmul.f32 %v7327, %v7381
    %v7398 = vmul.f32 %v7329, %v7382
    %v7399 = vmul.f32 %v7331, %v7383
    %v7400 = vmul.f32 %v7333, %v7384
    %v7401 = vmul.f32 %v7335, %v7385
    %v7402 = vmul.f32 %v7337, %v7386
    %v7403 = vmul.f32 %v7339, %v7387
    %v7404 = vpack.c.bf16 %v7389, %v7388
    %v7405 = vpack.c.bf16 %v7391, %v7390
    %v7406 = vpack.c.bf16 %v7393, %v7392
    %v7407 = vpack.c.bf16 %v7395, %v7394
    %v7408 = vpack.c.bf16 %v7397, %v7396
    %v7409 = vpack.c.bf16 %v7399, %v7398
    %v7410 = vpack.c.bf16 %v7401, %v7400
    %v7411 = vpack.c.bf16 %v7403, %v7402
    %7412 = vrot.lane.b32.xlu0 %v4741, 40
    %v7413 = vpop.permute.xlu0 %7412
    %7414 = vrot.lane.b32.xlu0 %v4742, 40
    %v7415 = vpop.permute.xlu0 %7414
    %7416 = vrot.lane.b32.xlu0 %v4743, 40
    %v7417 = vpop.permute.xlu0 %7416
    %7418 = vrot.lane.b32.xlu0 %v4744, 40
    %v7419 = vpop.permute.xlu0 %7418
    %7420 = vrot.lane.b32.xlu0 %v4745, 40
    %v7421 = vpop.permute.xlu0 %7420
    %7422 = vrot.lane.b32.xlu0 %v4746, 40
    %v7423 = vpop.permute.xlu0 %7422
    %7424 = vrot.lane.b32.xlu0 %v4747, 40
    %v7425 = vpop.permute.xlu0 %7424
    %7426 = vrot.lane.b32.xlu0 %v4748, 40
    %v7427 = vpop.permute.xlu0 %7426
    %7436 = vmatprep.subr.bf16.mxu0 0
    %7437 = vmatpush1.bf16.msra.mxu0 %v7413
    %7438 = vmatprep.subr.bf16.mxu0 0
    %7439 = vmatpush1.bf16.msra.mxu0 %v7415
    %7440 = vmatprep.subr.bf16.mxu0 0
    %7441 = vmatpush1.bf16.msra.mxu0 %v7417
    %7442 = vmatprep.subr.bf16.mxu0 0
    %7443 = vmatpush1.bf16.msra.mxu0 %v7419
    %7444 = vmatprep.subr.bf16.mxu0 0
    %7445 = vmatpush1.bf16.msra.mxu0 %v7421
    %7446 = vmatprep.subr.bf16.mxu0 0
    %7447 = vmatpush1.bf16.msra.mxu0 %v7423
    %7448 = vmatprep.subr.bf16.mxu0 0
    %7449 = vmatpush1.bf16.msra.mxu0 %v7425
    %7450 = vmatprep.subr.bf16.mxu0 0
    %7451 = vmatpush1.bf16.msra.mxu0 %v7427
    %7452 = vmatprep.subr.bf16.mxu0 0
    %7453 = vmatpush1.bf16.msra.mxu0 0
    %7454 = vmatprep.subr.bf16.mxu0 0
    %7455 = vmatpush1.bf16.msra.mxu0 0
    %7456 = vmatprep.subr.bf16.mxu0 0
    %7457 = vmatpush1.bf16.msra.mxu0 0
    %7458 = vmatprep.subr.bf16.mxu0 0
    %7459 = vmatpush1.bf16.msra.mxu0 0
    %7460 = vmatprep.subr.bf16.mxu0 0
    %7461 = vmatpush1.bf16.msra.mxu0 0
    %7462 = vmatprep.subr.bf16.mxu0 0
    %7463 = vmatpush1.bf16.msra.mxu0 0
    %7464 = vmatprep.subr.bf16.mxu0 0
    %7465 = vmatpush1.bf16.msra.mxu0 0
    %7466 = vmatprep.subr.bf16.mxu0 0
    %7467 = vmatpush1.bf16.msra.mxu0 0
    %7468 = vmatprep.mubr.bf16.mxu0 0
    %7469 = vmatmul.mubr.bf16.gmra.mrb[0].mxu0 %v7404
    %v7470 = vpop.f32.mrb[0].mxu0
    %v7471 = vadd.f32 0.0, %v7470
    %v7472 = vpop.f32.mrb[0].mxu0
    %v7473 = vpop.f32.mrb[0].mxu0
    %v7474 = vadd.f32 0.0, %v7473
    %v7475 = vpop.f32.mrb[0].mxu0
    %7476 = vmatprep.mubr.bf16.mxu0 0
    %7477 = vmatmul.mubr.bf16.gmra.mrb[0].mxu0 %v7405
    %v7478 = vpop.f32.mrb[0].mxu0
    %v7479 = vadd.f32 0.0, %v7478
    %v7480 = vpop.f32.mrb[0].mxu0
    %v7481 = vpop.f32.mrb[0].mxu0
    %v7482 = vadd.f32 0.0, %v7481
    %v7483 = vpop.f32.mrb[0].mxu0
    %7484 = vmatprep.mubr.bf16.mxu0 0
    %7485 = vmatmul.mubr.bf16.gmra.mrb[0].mxu0 %v7406
    %v7486 = vpop.f32.mrb[0].mxu0
    %v7487 = vadd.f32 0.0, %v7486
    %v7488 = vpop.f32.mrb[0].mxu0
    %v7489 = vpop.f32.mrb[0].mxu0
    %v7490 = vadd.f32 0.0, %v7489
    %v7491 = vpop.f32.mrb[0].mxu0
    %7492 = vmatprep.mubr.bf16.mxu0 0
    %7493 = vmatmul.mubr.bf16.gmra.mrb[0].mxu0 %v7407
    %v7494 = vpop.f32.mrb[0].mxu0
    %v7495 = vadd.f32 0.0, %v7494
    %v7496 = vpop.f32.mrb[0].mxu0
    %v7497 = vpop.f32.mrb[0].mxu0
    %v7498 = vadd.f32 0.0, %v7497
    %v7499 = vpop.f32.mrb[0].mxu0
    %7500 = vmatprep.mubr.bf16.mxu0 0
    %7501 = vmatmul.mubr.bf16.gmra.mrb[0].mxu0 %v7408
    %v7502 = vpop.f32.mrb[0].mxu0
    %v7503 = vadd.f32 0.0, %v7502
    %v7504 = vpop.f32.mrb[0].mxu0
    %v7505 = vpop.f32.mrb[0].mxu0
    %v7506 = vadd.f32 0.0, %v7505
    %v7507 = vpop.f32.mrb[0].mxu0
    %7508 = vmatprep.mubr.bf16.mxu0 0
    %7509 = vmatmul.mubr.bf16.gmra.mrb[0].mxu0 %v7409
    %v7510 = vpop.f32.mrb[0].mxu0
    %v7511 = vadd.f32 0.0, %v7510
    %v7512 = vpop.f32.mrb[0].mxu0
    %v7513 = vpop.f32.mrb[0].mxu0
    %v7514 = vadd.f32 0.0, %v7513
    %v7515 = vpop.f32.mrb[0].mxu0
    %7516 = vmatprep.mubr.bf16.mxu0 0
    %7517 = vmatmul.mubr.bf16.gmra.mrb[0].mxu0 %v7410
    %v7518 = vpop.f32.mrb[0].mxu0
    %v7519 = vadd.f32 0.0, %v7518
    %v7520 = vpop.f32.mrb[0].mxu0
    %v7521 = vpop.f32.mrb[0].mxu0
    %v7522 = vadd.f32 0.0, %v7521
    %v7523 = vpop.f32.mrb[0].mxu0
    %7524 = vmatprep.mubr.bf16.mxu0 0
    %7525 = vmatmul.mubr.bf16.gmra.mrb[0].mxu0 %v7411
    %v7526 = vpop.f32.mrb[0].mxu0
    %v7527 = vadd.f32 0.0, %v7526
    %v7528 = vpop.f32.mrb[0].mxu0
    %v7529 = vpop.f32.mrb[0].mxu0
    %v7530 = vadd.f32 0.0, %v7529
    %v7531 = vpop.f32.mrb[0].mxu0
    %7532 = vdwg.mxu0
    %7549 = vrot.lane.b32.xlu0 %v6251, 8
    %v7550 = vpop.permute.xlu0 %7549
    %7551 = vrot.lane.b32.xlu0 %v6254, 8
    %v7552 = vpop.permute.xlu0 %7551
    %7553 = vrot.lane.b32.xlu0 %v6259, 8
    %v7554 = vpop.permute.xlu0 %7553
    %7555 = vrot.lane.b32.xlu0 %v6262, 8
    %v7556 = vpop.permute.xlu0 %7555
    %7557 = vrot.lane.b32.xlu0 %v6267, 8
    %v7558 = vpop.permute.xlu0 %7557
    %7559 = vrot.lane.b32.xlu0 %v6270, 8
    %v7560 = vpop.permute.xlu0 %7559
    %7561 = vrot.lane.b32.xlu0 %v6275, 8
    %v7562 = vpop.permute.xlu0 %7561
    %7563 = vrot.lane.b32.xlu0 %v6278, 8
    %v7564 = vpop.permute.xlu0 %7563
    %7565 = vrot.lane.b32.xlu0 %v6283, 8
    %v7566 = vpop.permute.xlu0 %7565
    %7567 = vrot.lane.b32.xlu0 %v6286, 8
    %v7568 = vpop.permute.xlu0 %7567
    %7569 = vrot.lane.b32.xlu0 %v6291, 8
    %v7570 = vpop.permute.xlu0 %7569
    %7571 = vrot.lane.b32.xlu0 %v6294, 8
    %v7572 = vpop.permute.xlu0 %7571
    %7573 = vrot.lane.b32.xlu0 %v6299, 8
    %v7574 = vpop.permute.xlu0 %7573
    %7575 = vrot.lane.b32.xlu0 %v6302, 8
    %v7576 = vpop.permute.xlu0 %7575
    %7577 = vrot.lane.b32.xlu0 %v6307, 8
    %v7578 = vpop.permute.xlu0 %7577
    %7579 = vrot.lane.b32.xlu0 %v6310, 8
    %v7580 = vpop.permute.xlu0 %7579
    %7613 = vrot.lane.b32.xlu0 %v6861, 16
    %v7614 = vpop.permute.xlu0 %7613
    %7615 = vrot.lane.b32.xlu0 %v6864, 16
    %v7616 = vpop.permute.xlu0 %7615
    %7617 = vrot.lane.b32.xlu0 %v6869, 16
    %v7618 = vpop.permute.xlu0 %7617
    %7619 = vrot.lane.b32.xlu0 %v6872, 16
    %v7620 = vpop.permute.xlu0 %7619
    %7621 = vrot.lane.b32.xlu0 %v6877, 16
    %v7622 = vpop.permute.xlu0 %7621
    %7623 = vrot.lane.b32.xlu0 %v6880, 16
    %v7624 = vpop.permute.xlu0 %7623
    %7625 = vrot.lane.b32.xlu0 %v6885, 16
    %v7626 = vpop.permute.xlu0 %7625
    %7627 = vrot.lane.b32.xlu0 %v6888, 16
    %v7628 = vpop.permute.xlu0 %7627
    %7629 = vrot.lane.b32.xlu0 %v6893, 16
    %v7630 = vpop.permute.xlu0 %7629
    %7631 = vrot.lane.b32.xlu0 %v6896, 16
    %v7632 = vpop.permute.xlu0 %7631
    %7633 = vrot.lane.b32.xlu0 %v6901, 16
    %v7634 = vpop.permute.xlu0 %7633
    %7635 = vrot.lane.b32.xlu0 %v6904, 16
    %v7636 = vpop.permute.xlu0 %7635
    %7637 = vrot.lane.b32.xlu0 %v6909, 16
    %v7638 = vpop.permute.xlu0 %7637
    %7639 = vrot.lane.b32.xlu0 %v6912, 16
    %v7640 = vpop.permute.xlu0 %7639
    %7641 = vrot.lane.b32.xlu0 %v6917, 16
    %v7642 = vpop.permute.xlu0 %7641
    %7643 = vrot.lane.b32.xlu0 %v6920, 16
    %v7644 = vpop.permute.xlu0 %7643
    %7677 = vrot.lane.b32.xlu0 %v7471, 24
    %v7678 = vpop.permute.xlu0 %7677
    %7679 = vrot.lane.b32.xlu0 %v7474, 24
    %v7680 = vpop.permute.xlu0 %7679
    %7681 = vrot.lane.b32.xlu0 %v7479, 24
    %v7682 = vpop.permute.xlu0 %7681
    %7683 = vrot.lane.b32.xlu0 %v7482, 24
    %v7684 = vpop.permute.xlu0 %7683
    %7685 = vrot.lane.b32.xlu0 %v7487, 24
    %v7686 = vpop.permute.xlu0 %7685
    %7687 = vrot.lane.b32.xlu0 %v7490, 24
    %v7688 = vpop.permute.xlu0 %7687
    %7689 = vrot.lane.b32.xlu0 %v7495, 24
    %v7690 = vpop.permute.xlu0 %7689
    %7691 = vrot.lane.b32.xlu0 %v7498, 24
    %v7692 = vpop.permute.xlu0 %7691
    %7693 = vrot.lane.b32.xlu0 %v7503, 24
    %v7694 = vpop.permute.xlu0 %7693
    %7695 = vrot.lane.b32.xlu0 %v7506, 24
    %v7696 = vpop.permute.xlu0 %7695
    %7697 = vrot.lane.b32.xlu0 %v7511, 24
    %v7698 = vpop.permute.xlu0 %7697
    %7699 = vrot.lane.b32.xlu0 %v7514, 24
    %v7700 = vpop.permute.xlu0 %7699
    %7701 = vrot.lane.b32.xlu0 %v7519, 24
    %v7702 = vpop.permute.xlu0 %7701
    %7703 = vrot.lane.b32.xlu0 %v7522, 24
    %v7704 = vpop.permute.xlu0 %7703
    %7705 = vrot.lane.b32.xlu0 %v7527, 24
    %v7706 = vpop.permute.xlu0 %7705
    %7707 = vrot.lane.b32.xlu0 %v7530, 24
    %v7708 = vpop.permute.xlu0 %7707
    %v7725 = vsel %vm543, %v5641, %v7550
    %v7726 = vsel %vm543, %v5644, %v7552
    %v7727 = vsel %vm543, %v5649, %v7554
    %v7728 = vsel %vm543, %v5652, %v7556
    %v7729 = vsel %vm543, %v5657, %v7558
    %v7730 = vsel %vm543, %v5660, %v7560
    %v7731 = vsel %vm543, %v5665, %v7562
    %v7732 = vsel %vm543, %v5668, %v7564
    %v7733 = vsel %vm543, %v5673, %v7566
    %v7734 = vsel %vm543, %v5676, %v7568
    %v7735 = vsel %vm543, %v5681, %v7570
    %v7736 = vsel %vm543, %v5684, %v7572
    %v7737 = vsel %vm543, %v5689, %v7574
    %v7738 = vsel %vm543, %v5692, %v7576
    %v7739 = vsel %vm543, %v5697, %v7578
    %v7740 = vsel %vm543, %v5700, %v7580
    %v7741 = vsel %vm1057, %v7725, %v7614
    %v7742 = vsel %vm1057, %v7726, %v7616
    %v7743 = vsel %vm1057, %v7727, %v7618
    %v7744 = vsel %vm1057, %v7728, %v7620
    %v7745 = vsel %vm1057, %v7729, %v7622
    %v7746 = vsel %vm1057, %v7730, %v7624
    %v7747 = vsel %vm1057, %v7731, %v7626
    %v7748 = vsel %vm1057, %v7732, %v7628
    %v7749 = vsel %vm1057, %v7733, %v7630
    %v7750 = vsel %vm1057, %v7734, %v7632
    %v7751 = vsel %vm1057, %v7735, %v7634
    %v7752 = vsel %vm1057, %v7736, %v7636
    %v7753 = vsel %vm1057, %v7737, %v7638
    %v7754 = vsel %vm1057, %v7738, %v7640
    %v7755 = vsel %vm1057, %v7739, %v7642
    %v7756 = vsel %vm1057, %v7740, %v7644
    %v7757 = vsel %vm3534, %v7741, %v7678
    %v7758 = vsel %vm3534, %v7742, %v7680
    %v7759 = vsel %vm3534, %v7743, %v7682
    %v7760 = vsel %vm3534, %v7744, %v7684
    %v7761 = vsel %vm3534, %v7745, %v7686
    %v7762 = vsel %vm3534, %v7746, %v7688
    %v7763 = vsel %vm3534, %v7747, %v7690
    %v7764 = vsel %vm3534, %v7748, %v7692
    %v7765 = vsel %vm3534, %v7749, %v7694
    %v7766 = vsel %vm3534, %v7750, %v7696
    %v7767 = vsel %vm3534, %v7751, %v7698
    %v7768 = vsel %vm3534, %v7752, %v7700
    %v7769 = vsel %vm3534, %v7753, %v7702
    %v7770 = vsel %vm3534, %v7754, %v7704
    %v7771 = vsel %vm3534, %v7755, %v7706
    %v7772 = vsel %vm3534, %v7756, %v7708
    %v7773 = vpack.c.bf16 %v7758, %v7757
    %v7774 = vpack.c.bf16 %v7760, %v7759
    %v7775 = vpack.c.bf16 %v7762, %v7761
    %v7776 = vpack.c.bf16 %v7764, %v7763
    %v7777 = vpack.c.bf16 %v7766, %v7765
    %v7778 = vpack.c.bf16 %v7768, %v7767
    %v7779 = vpack.c.bf16 %v7770, %v7769
    %v7780 = vpack.c.bf16 %v7772, %v7771
    %7781 = vrot.lane.b32.xlu0 %v4616, 32
    %v7782 = vpop.permute.xlu0 %7781
    %7783 = vrot.lane.b32.xlu0 %v4617, 32
    %v7784 = vpop.permute.xlu0 %7783
    %v7788 = vsel %vm88, %v7773, 0
    %v7791 = vsel %vm88, %v7774, 0
    %v7794 = vsel %vm88, %v7775, 0
    %v7797 = vsel %vm88, %v7776, 0
    %v7800 = vsel %vm88, %v7777, 0
    %v7803 = vsel %vm88, %v7778, 0
    %v7806 = vsel %vm88, %v7779, 0
    %v7809 = vsel %vm88, %v7780, 0
    %7811 = vmatprep.subr.bf16.mxu0 0
    %7812 = vmatpush1.bf16.msra.mxu0 %v7782
    %7813 = vmatprep.subr.bf16.mxu0 0
    %7814 = vmatpush1.bf16.msra.mxu0 %v7784
    %7815 = vmatprep.subr.bf16.mxu0 0
    %7816 = vmatpush1.bf16.msra.mxu0 0
    %7817 = vmatprep.subr.bf16.mxu0 0
    %7818 = vmatpush1.bf16.msra.mxu0 0
    %7819 = vmatprep.subr.bf16.mxu0 0
    %7820 = vmatpush1.bf16.msra.mxu0 0
    %7821 = vmatprep.subr.bf16.mxu0 0
    %7822 = vmatpush1.bf16.msra.mxu0 0
    %7823 = vmatprep.subr.bf16.mxu0 0
    %7824 = vmatpush1.bf16.msra.mxu0 0
    %7825 = vmatprep.subr.bf16.mxu0 0
    %7826 = vmatpush1.bf16.msra.mxu0 0
    %7827 = vmatprep.subr.bf16.mxu0 0
    %7828 = vmatpush1.bf16.msra.mxu0 0
    %7829 = vmatprep.subr.bf16.mxu0 0
    %7830 = vmatpush1.bf16.msra.mxu0 0
    %7831 = vmatprep.subr.bf16.mxu0 0
    %7832 = vmatpush1.bf16.msra.mxu0 0
    %7833 = vmatprep.subr.bf16.mxu0 0
    %7834 = vmatpush1.bf16.msra.mxu0 0
    %7835 = vmatprep.subr.bf16.mxu0 0
    %7836 = vmatpush1.bf16.msra.mxu0 0
    %7837 = vmatprep.subr.bf16.mxu0 0
    %7838 = vmatpush1.bf16.msra.mxu0 0
    %7839 = vmatprep.subr.bf16.mxu0 0
    %7840 = vmatpush1.bf16.msra.mxu0 0
    %7841 = vmatprep.subr.bf16.mxu0 0
    %7842 = vmatpush1.bf16.msra.mxu0 0
    %7843 = vmatprep.mubr.bf16.mxu0 0
    %7844 = vmatmul.mubr.bf16.gmra.mrb[0].mxu0 %v7788
    %v7845 = vpop.f32.mrb[0].mxu0
    %v7846 = vadd.f32 0.0, %v7845
    %v7847 = vpop.f32.mrb[0].mxu0
    %v7848 = vpop.f32.mrb[0].mxu0
    %v7849 = vadd.f32 0.0, %v7848
    %v7850 = vpop.f32.mrb[0].mxu0
    %7851 = vmatprep.mubr.bf16.mxu0 0
    %7852 = vmatmul.mubr.bf16.gmra.mrb[0].mxu0 %v7791
    %v7853 = vpop.f32.mrb[0].mxu0
    %v7854 = vadd.f32 0.0, %v7853
    %v7855 = vpop.f32.mrb[0].mxu0
    %v7856 = vpop.f32.mrb[0].mxu0
    %v7857 = vadd.f32 0.0, %v7856
    %v7858 = vpop.f32.mrb[0].mxu0
    %7859 = vmatprep.mubr.bf16.mxu0 0
    %7860 = vmatmul.mubr.bf16.gmra.mrb[0].mxu0 %v7794
    %v7861 = vpop.f32.mrb[0].mxu0
    %v7862 = vadd.f32 0.0, %v7861
    %v7863 = vpop.f32.mrb[0].mxu0
    %v7864 = vpop.f32.mrb[0].mxu0
    %v7865 = vadd.f32 0.0, %v7864
    %v7866 = vpop.f32.mrb[0].mxu0
    %7867 = vmatprep.mubr.bf16.mxu0 0
    %7868 = vmatmul.mubr.bf16.gmra.mrb[0].mxu0 %v7797
    %v7869 = vpop.f32.mrb[0].mxu0
    %v7870 = vadd.f32 0.0, %v7869
    %v7871 = vpop.f32.mrb[0].mxu0
    %v7872 = vpop.f32.mrb[0].mxu0
    %v7873 = vadd.f32 0.0, %v7872
    %v7874 = vpop.f32.mrb[0].mxu0
    %7875 = vmatprep.mubr.bf16.mxu0 0
    %7876 = vmatmul.mubr.bf16.gmra.mrb[0].mxu0 %v7800
    %v7877 = vpop.f32.mrb[0].mxu0
    %v7878 = vadd.f32 0.0, %v7877
    %v7879 = vpop.f32.mrb[0].mxu0
    %v7880 = vpop.f32.mrb[0].mxu0
    %v7881 = vadd.f32 0.0, %v7880
    %v7882 = vpop.f32.mrb[0].mxu0
    %7883 = vmatprep.mubr.bf16.mxu0 0
    %7884 = vmatmul.mubr.bf16.gmra.mrb[0].mxu0 %v7803
    %v7885 = vpop.f32.mrb[0].mxu0
    %v7886 = vadd.f32 0.0, %v7885
    %v7887 = vpop.f32.mrb[0].mxu0
    %v7888 = vpop.f32.mrb[0].mxu0
    %v7889 = vadd.f32 0.0, %v7888
    %v7890 = vpop.f32.mrb[0].mxu0
    %7891 = vmatprep.mubr.bf16.mxu0 0
    %7892 = vmatmul.mubr.bf16.gmra.mrb[0].mxu0 %v7806
    %v7893 = vpop.f32.mrb[0].mxu0
    %v7894 = vadd.f32 0.0, %v7893
    %v7895 = vpop.f32.mrb[0].mxu0
    %v7896 = vpop.f32.mrb[0].mxu0
    %v7897 = vadd.f32 0.0, %v7896
    %v7898 = vpop.f32.mrb[0].mxu0
    %7899 = vmatprep.mubr.bf16.mxu0 0
    %7900 = vmatmul.mubr.bf16.gmra.mrb[0].mxu0 %v7809
    %v7901 = vpop.f32.mrb[0].mxu0
    %v7902 = vadd.f32 0.0, %v7901
    %v7903 = vpop.f32.mrb[0].mxu0
    %v7904 = vpop.f32.mrb[0].mxu0
    %v7905 = vadd.f32 0.0, %v7904
    %v7906 = vpop.f32.mrb[0].mxu0
    %7907 = vdwg.mxu0
    %v7908 = vadd.f32 %v4276, %v7846
    %v7909 = vadd.f32 %v4277, %v7849
    %v7910 = vadd.f32 %v4278, %v7854
    %v7911 = vadd.f32 %v4279, %v7857
    %v7912 = vadd.f32 %v4280, %v7862
    %v7913 = vadd.f32 %v4281, %v7865
    %v7914 = vadd.f32 %v4282, %v7870
    %v7915 = vadd.f32 %v4283, %v7873
    %v7916 = vadd.f32 %v4284, %v7878
    %v7917 = vadd.f32 %v4285, %v7881
    %v7918 = vadd.f32 %v4286, %v7886
    %v7919 = vadd.f32 %v4287, %v7889
    %v7920 = vadd.f32 %v4288, %v7894
    %v7921 = vadd.f32 %v4289, %v7897
    %v7922 = vadd.f32 %v4290, %v7902
    %v7923 = vadd.f32 %v4291, %v7905
    %v7924 = vsel %vm88, %v7908, 0.0
    %7925 = vadd.xlane.f32.xlu0 %v7924
    %v7926 = vpop.xlane.xlu0 %7925
    %v7927 = vsel %vm88, %v7909, 0.0
    %7928 = vadd.xlane.f32.xlu0 %v7927
    %v7929 = vpop.xlane.xlu0 %7928
    %v7930 = vsel %vm88, %v7910, 0.0
    %7931 = vadd.xlane.f32.xlu0 %v7930
    %v7932 = vpop.xlane.xlu0 %7931
    %v7933 = vsel %vm88, %v7911, 0.0
    %7934 = vadd.xlane.f32.xlu0 %v7933
    %v7935 = vpop.xlane.xlu0 %7934
    %v7936 = vsel %vm88, %v7912, 0.0
    %7937 = vadd.xlane.f32.xlu0 %v7936
    %v7938 = vpop.xlane.xlu0 %7937
    %v7939 = vsel %vm88, %v7913, 0.0
    %7940 = vadd.xlane.f32.xlu0 %v7939
    %v7941 = vpop.xlane.xlu0 %7940
    %v7942 = vsel %vm88, %v7914, 0.0
    %7943 = vadd.xlane.f32.xlu0 %v7942
    %v7944 = vpop.xlane.xlu0 %7943
    %v7945 = vsel %vm88, %v7915, 0.0
    %7946 = vadd.xlane.f32.xlu0 %v7945
    %v7947 = vpop.xlane.xlu0 %7946
    %v7948 = vsel %vm88, %v7916, 0.0
    %7949 = vadd.xlane.f32.xlu0 %v7948
    %v7950 = vpop.xlane.xlu0 %7949
    %v7951 = vsel %vm88, %v7917, 0.0
    %7952 = vadd.xlane.f32.xlu0 %v7951
    %v7953 = vpop.xlane.xlu0 %7952
    %v7954 = vsel %vm88, %v7918, 0.0
    %7955 = vadd.xlane.f32.xlu0 %v7954
    %v7956 = vpop.xlane.xlu0 %7955
    %v7957 = vsel %vm88, %v7919, 0.0
    %7958 = vadd.xlane.f32.xlu0 %v7957
    %v7959 = vpop.xlane.xlu0 %7958
    %v7960 = vsel %vm88, %v7920, 0.0
    %7961 = vadd.xlane.f32.xlu0 %v7960
    %v7962 = vpop.xlane.xlu0 %7961
    %v7963 = vsel %vm88, %v7921, 0.0
    %7964 = vadd.xlane.f32.xlu0 %v7963
    %v7965 = vpop.xlane.xlu0 %7964
    %v7966 = vsel %vm88, %v7922, 0.0
    %7967 = vadd.xlane.f32.xlu0 %v7966
    %v7968 = vpop.xlane.xlu0 %7967
    %v7969 = vsel %vm88, %v7923, 0.0
    %7970 = vadd.xlane.f32.xlu0 %v7969
    %v7971 = vpop.xlane.xlu0 %7970
    %v7972 = vmul.f32 %v7926, %v137
    %v7973 = vmul.f32 %v7929, %v137
    %v7974 = vmul.f32 %v7932, %v137
    %v7975 = vmul.f32 %v7935, %v137
    %v7976 = vmul.f32 %v7938, %v137
    %v7977 = vmul.f32 %v7941, %v137
    %v7978 = vmul.f32 %v7944, %v137
    %v7979 = vmul.f32 %v7947, %v137
    %v7980 = vmul.f32 %v7950, %v137
    %v7981 = vmul.f32 %v7953, %v137
    %v7982 = vmul.f32 %v7956, %v137
    %v7983 = vmul.f32 %v7959, %v137
    %v7984 = vmul.f32 %v7962, %v137
    %v7985 = vmul.f32 %v7965, %v137
    %v7986 = vmul.f32 %v7968, %v137
    %v7987 = vmul.f32 %v7971, %v137
    %v7988 = vmul.f32 %v7908, %v7908
    %v7989 = vmul.f32 %v7909, %v7909
    %v7990 = vmul.f32 %v7910, %v7910
    %v7991 = vmul.f32 %v7911, %v7911
    %v7992 = vmul.f32 %v7912, %v7912
    %v7993 = vmul.f32 %v7913, %v7913
    %v7994 = vmul.f32 %v7914, %v7914
    %v7995 = vmul.f32 %v7915, %v7915
    %v7996 = vmul.f32 %v7916, %v7916
    %v7997 = vmul.f32 %v7917, %v7917
    %v7998 = vmul.f32 %v7918, %v7918
    %v7999 = vmul.f32 %v7919, %v7919
    %v8000 = vmul.f32 %v7920, %v7920
    %v8001 = vmul.f32 %v7921, %v7921
    %v8002 = vmul.f32 %v7922, %v7922
    %v8003 = vmul.f32 %v7923, %v7923
    %v8004 = vsel %vm88, %v7988, 0.0
    %8005 = vadd.xlane.f32.xlu0 %v8004
    %v8006 = vpop.xlane.xlu0 %8005
    %v8007 = vsel %vm88, %v7989, 0.0
    %8008 = vadd.xlane.f32.xlu0 %v8007
    %v8009 = vpop.xlane.xlu0 %8008
    %v8010 = vsel %vm88, %v7990, 0.0
    %8011 = vadd.xlane.f32.xlu0 %v8010
    %v8012 = vpop.xlane.xlu0 %8011
    %v8013 = vsel %vm88, %v7991, 0.0
    %8014 = vadd.xlane.f32.xlu0 %v8013
    %v8015 = vpop.xlane.xlu0 %8014
    %v8016 = vsel %vm88, %v7992, 0.0
    %8017 = vadd.xlane.f32.xlu0 %v8016
    %v8018 = vpop.xlane.xlu0 %8017
    %v8019 = vsel %vm88, %v7993, 0.0
    %8020 = vadd.xlane.f32.xlu0 %v8019
    %v8021 = vpop.xlane.xlu0 %8020
    %v8022 = vsel %vm88, %v7994, 0.0
    %8023 = vadd.xlane.f32.xlu0 %v8022
    %v8024 = vpop.xlane.xlu0 %8023
    %v8025 = vsel %vm88, %v7995, 0.0
    %8026 = vadd.xlane.f32.xlu0 %v8025
    %v8027 = vpop.xlane.xlu0 %8026
    %v8028 = vsel %vm88, %v7996, 0.0
    %8029 = vadd.xlane.f32.xlu0 %v8028
    %v8030 = vpop.xlane.xlu0 %8029
    %v8031 = vsel %vm88, %v7997, 0.0
    %8032 = vadd.xlane.f32.xlu0 %v8031
    %v8033 = vpop.xlane.xlu0 %8032
    %v8034 = vsel %vm88, %v7998, 0.0
    %8035 = vadd.xlane.f32.xlu0 %v8034
    %v8036 = vpop.xlane.xlu0 %8035
    %v8037 = vsel %vm88, %v7999, 0.0
    %8038 = vadd.xlane.f32.xlu0 %v8037
    %v8039 = vpop.xlane.xlu0 %8038
    %v8040 = vsel %vm88, %v8000, 0.0
    %8041 = vadd.xlane.f32.xlu0 %v8040
    %v8042 = vpop.xlane.xlu0 %8041
    %v8043 = vsel %vm88, %v8001, 0.0
    %8044 = vadd.xlane.f32.xlu0 %v8043
    %v8045 = vpop.xlane.xlu0 %8044
    %v8046 = vsel %vm88, %v8002, 0.0
    %8047 = vadd.xlane.f32.xlu0 %v8046
    %v8048 = vpop.xlane.xlu0 %8047
    %v8049 = vsel %vm88, %v8003, 0.0
    %8050 = vadd.xlane.f32.xlu0 %v8049
    %v8051 = vpop.xlane.xlu0 %8050
    %v8052 = vmul.f32 %v8006, %v137
    %v8053 = vmul.f32 %v8009, %v137
    %v8054 = vmul.f32 %v8012, %v137
    %v8055 = vmul.f32 %v8015, %v137
    %v8056 = vmul.f32 %v8018, %v137
    %v8057 = vmul.f32 %v8021, %v137
    %v8058 = vmul.f32 %v8024, %v137
    %v8059 = vmul.f32 %v8027, %v137
    %v8060 = vmul.f32 %v8030, %v137
    %v8061 = vmul.f32 %v8033, %v137
    %v8062 = vmul.f32 %v8036, %v137
    %v8063 = vmul.f32 %v8039, %v137
    %v8064 = vmul.f32 %v8042, %v137
    %v8065 = vmul.f32 %v8045, %v137
    %v8066 = vmul.f32 %v8048, %v137
    %v8067 = vmul.f32 %v8051, %v137
    %v8068 = vmul.f32 %v7972, %v7972
    %v8069 = vmul.f32 %v7973, %v7973
    %v8070 = vmul.f32 %v7974, %v7974
    %v8071 = vmul.f32 %v7975, %v7975
    %v8072 = vmul.f32 %v7976, %v7976
    %v8073 = vmul.f32 %v7977, %v7977
    %v8074 = vmul.f32 %v7978, %v7978
    %v8075 = vmul.f32 %v7979, %v7979
    %v8076 = vmul.f32 %v7980, %v7980
    %v8077 = vmul.f32 %v7981, %v7981
    %v8078 = vmul.f32 %v7982, %v7982
    %v8079 = vmul.f32 %v7983, %v7983
    %v8080 = vmul.f32 %v7984, %v7984
    %v8081 = vmul.f32 %v7985, %v7985
    %v8082 = vmul.f32 %v7986, %v7986
    %v8083 = vmul.f32 %v7987, %v7987
    %v8084 = vsub.f32 %v8052, %v8068
    %v8085 = vsub.f32 %v8053, %v8069
    %v8086 = vsub.f32 %v8054, %v8070
    %v8087 = vsub.f32 %v8055, %v8071
    %v8088 = vsub.f32 %v8056, %v8072
    %v8089 = vsub.f32 %v8057, %v8073
    %v8090 = vsub.f32 %v8058, %v8074
    %v8091 = vsub.f32 %v8059, %v8075
    %v8092 = vsub.f32 %v8060, %v8076
    %v8093 = vsub.f32 %v8061, %v8077
    %v8094 = vsub.f32 %v8062, %v8078
    %v8095 = vsub.f32 %v8063, %v8079
    %v8096 = vsub.f32 %v8064, %v8080
    %v8097 = vsub.f32 %v8065, %v8081
    %v8098 = vsub.f32 %v8066, %v8082
    %v8099 = vsub.f32 %v8067, %v8083
    %v8100 = vsub.f32 %v7908, %v7972
    %v8101 = vsub.f32 %v7909, %v7973
    %v8102 = vsub.f32 %v7910, %v7974
    %v8103 = vsub.f32 %v7911, %v7975
    %v8104 = vsub.f32 %v7912, %v7976
    %v8105 = vsub.f32 %v7913, %v7977
    %v8106 = vsub.f32 %v7914, %v7978
    %v8107 = vsub.f32 %v7915, %v7979
    %v8108 = vsub.f32 %v7916, %v7980
    %v8109 = vsub.f32 %v7917, %v7981
    %v8110 = vsub.f32 %v7918, %v7982
    %v8111 = vsub.f32 %v7919, %v7983
    %v8112 = vsub.f32 %v7920, %v7984
    %v8113 = vsub.f32 %v7921, %v7985
    %v8114 = vsub.f32 %v7922, %v7986
    %v8115 = vsub.f32 %v7923, %v7987
    %v8116 = vadd.f32 %v8084, 1e-05
    %v8117 = vadd.f32 %v8085, 1e-05
    %v8118 = vadd.f32 %v8086, 1e-05
    %v8119 = vadd.f32 %v8087, 1e-05
    %v8120 = vadd.f32 %v8088, 1e-05
    %v8121 = vadd.f32 %v8089, 1e-05
    %v8122 = vadd.f32 %v8090, 1e-05
    %v8123 = vadd.f32 %v8091, 1e-05
    %v8124 = vadd.f32 %v8092, 1e-05
    %v8125 = vadd.f32 %v8093, 1e-05
    %v8126 = vadd.f32 %v8094, 1e-05
    %v8127 = vadd.f32 %v8095, 1e-05
    %v8128 = vadd.f32 %v8096, 1e-05
    %v8129 = vadd.f32 %v8097, 1e-05
    %v8130 = vadd.f32 %v8098, 1e-05
    %v8131 = vadd.f32 %v8099, 1e-05
    %v8132 = vrsqrt.pop %v8116
    %v8133 = vrsqrt.pop %v8117
    %v8134 = vrsqrt.pop %v8118
    %v8135 = vrsqrt.pop %v8119
    %v8136 = vrsqrt.pop %v8120
    %v8137 = vrsqrt.pop %v8121
    %v8138 = vrsqrt.pop %v8122
    %v8139 = vrsqrt.pop %v8123
    %v8140 = vrsqrt.pop %v8124
    %v8141 = vrsqrt.pop %v8125
    %v8142 = vrsqrt.pop %v8126
    %v8143 = vrsqrt.pop %v8127
    %v8144 = vrsqrt.pop %v8128
    %v8145 = vrsqrt.pop %v8129
    %v8146 = vrsqrt.pop %v8130
    %v8147 = vrsqrt.pop %v8131
    %v8148 = vmul.f32 %v8100, %v8132
    %v8149 = vmul.f32 %v8101, %v8133
    %v8150 = vmul.f32 %v8102, %v8134
    %v8151 = vmul.f32 %v8103, %v8135
    %v8152 = vmul.f32 %v8104, %v8136
    %v8153 = vmul.f32 %v8105, %v8137
    %v8154 = vmul.f32 %v8106, %v8138
    %v8155 = vmul.f32 %v8107, %v8139
    %v8156 = vmul.f32 %v8108, %v8140
    %v8157 = vmul.f32 %v8109, %v8141
    %v8158 = vmul.f32 %v8110, %v8142
    %v8159 = vmul.f32 %v8111, %v8143
    %v8160 = vmul.f32 %v8112, %v8144
    %v8161 = vmul.f32 %v8113, %v8145
    %v8162 = vmul.f32 %v8114, %v8146
    %v8163 = vmul.f32 %v8115, %v8147
    %v8164 = vlaneseq
    %v8165 = vshrl.u32 %v8164, 7
    %v8166 = vsub.s32 2, %v8165
    %v8167 = vrot.slane %v4302, %v8166
    %v8168 = vmul.f32 %v8148, %v8167
    %v8169 = vmul.f32 %v8149, %v8167
    %v8170 = vmul.f32 %v8150, %v8167
    %v8171 = vmul.f32 %v8151, %v8167
    %v8172 = vmul.f32 %v8152, %v8167
    %v8173 = vmul.f32 %v8153, %v8167
    %v8174 = vmul.f32 %v8154, %v8167
    %v8175 = vmul.f32 %v8155, %v8167
    %v8176 = vmul.f32 %v8156, %v8167
    %v8177 = vmul.f32 %v8157, %v8167
    %v8178 = vmul.f32 %v8158, %v8167
    %v8179 = vmul.f32 %v8159, %v8167
    %v8180 = vmul.f32 %v8160, %v8167
    %v8181 = vmul.f32 %v8161, %v8167
    %v8182 = vmul.f32 %v8162, %v8167
    %v8183 = vmul.f32 %v8163, %v8167
    %v8184 = vlaneseq
    %v8185 = vshrl.u32 %v8184, 7
    %v8186 = vsub.s32 3, %v8185
    %v8187 = vrot.slane %v4302, %v8186
    %v8188 = vadd.f32 %v8168, %v8187
    %v8189 = vadd.f32 %v8169, %v8187
    %v8190 = vadd.f32 %v8170, %v8187
    %v8191 = vadd.f32 %v8171, %v8187
    %v8192 = vadd.f32 %v8172, %v8187
    %v8193 = vadd.f32 %v8173, %v8187
    %v8194 = vadd.f32 %v8174, %v8187
    %v8195 = vadd.f32 %v8175, %v8187
    %v8196 = vadd.f32 %v8176, %v8187
    %v8197 = vadd.f32 %v8177, %v8187
    %v8198 = vadd.f32 %v8178, %v8187
    %v8199 = vadd.f32 %v8179, %v8187
    %v8200 = vadd.f32 %v8180, %v8187
    %v8201 = vadd.f32 %v8181, %v8187
    %v8202 = vadd.f32 %v8182, %v8187
    %v8203 = vadd.f32 %v8183, %v8187
    %v8204 = vpack.c.bf16 %v8189, %v8188
    %v8205 = vpack.c.bf16 %v8191, %v8190
    %v8206 = vpack.c.bf16 %v8193, %v8192
    %v8207 = vpack.c.bf16 %v8195, %v8194
    %v8208 = vpack.c.bf16 %v8197, %v8196
    %v8209 = vpack.c.bf16 %v8199, %v8198
    %v8210 = vpack.c.bf16 %v8201, %v8200
    %v8211 = vpack.c.bf16 %v8203, %v8202
    %v8212 = vlaneseq
    %v8213 = vshrl.u32 %v8212, 7
    %v8214 = vsub.s32 4, %v8213
    %v8215 = vrot.slane %v4302, %v8214
    %v8216 = vunpack.c.h.b16 %v4293
    %v8217 = vunpack.c.h.b16 %v4295
    %v8218 = vunpack.c.h.b16 %v4297
    %v8219 = vunpack.c.h.b16 %v4299
    %v8220 = vpack.c.b16 %v8217, %v8216
    %v8221 = vpack.c.b16 %v8219, %v8218
    %v8225 = vsel %vm88, %v8204, 0
    %v8228 = vsel %vm88, %v8205, 0
    %v8231 = vsel %vm88, %v8206, 0
    %v8234 = vsel %vm88, %v8207, 0
    %v8237 = vsel %vm88, %v8208, 0
    %v8240 = vsel %vm88, %v8209, 0
    %v8243 = vsel %vm88, %v8210, 0
    %v8246 = vsel %vm88, %v8211, 0
    %8248 = vmatprep.subr.bf16.mxu0 0
    %8249 = vmatpush1.bf16.msra.mxu0 %v8220
    %8250 = vmatprep.subr.bf16.mxu0 0
    %8251 = vmatpush1.bf16.msra.mxu0 %v8221
    %8252 = vmatprep.subr.bf16.mxu0 0
    %8253 = vmatpush1.bf16.msra.mxu0 0
    %8254 = vmatprep.subr.bf16.mxu0 0
    %8255 = vmatpush1.bf16.msra.mxu0 0
    %8256 = vmatprep.subr.bf16.mxu0 0
    %8257 = vmatpush1.bf16.msra.mxu0 0
    %8258 = vmatprep.subr.bf16.mxu0 0
    %8259 = vmatpush1.bf16.msra.mxu0 0
    %8260 = vmatprep.subr.bf16.mxu0 0
    %8261 = vmatpush1.bf16.msra.mxu0 0
    %8262 = vmatprep.subr.bf16.mxu0 0
    %8263 = vmatpush1.bf16.msra.mxu0 0
    %8264 = vmatprep.subr.bf16.mxu0 0
    %8265 = vmatpush1.bf16.msra.mxu0 0
    %8266 = vmatprep.subr.bf16.mxu0 0
    %8267 = vmatpush1.bf16.msra.mxu0 0
    %8268 = vmatprep.subr.bf16.mxu0 0
    %8269 = vmatpush1.bf16.msra.mxu0 0
    %8270 = vmatprep.subr.bf16.mxu0 0
    %8271 = vmatpush1.bf16.msra.mxu0 0
    %8272 = vmatprep.subr.bf16.mxu0 0
    %8273 = vmatpush1.bf16.msra.mxu0 0
    %8274 = vmatprep.subr.bf16.mxu0 0
    %8275 = vmatpush1.bf16.msra.mxu0 0
    %8276 = vmatprep.subr.bf16.mxu0 0
    %8277 = vmatpush1.bf16.msra.mxu0 0
    %8278 = vmatprep.subr.bf16.mxu0 0
    %8279 = vmatpush1.bf16.msra.mxu0 0
    %8280 = vmatprep.mubr.bf16.mxu0 0
    %8281 = vmatmul.mubr.bf16.gmra.mrb[0].mxu0 %v8225
    %v8282 = vpop.f32.mrb[0].mxu0
    %v8283 = vadd.f32 %v8215, %v8282
    %v8284 = vpop.f32.mrb[0].mxu0
    %v8285 = vpop.f32.mrb[0].mxu0
    %v8286 = vadd.f32 %v8215, %v8285
    %v8287 = vpop.f32.mrb[0].mxu0
    %8288 = vmatprep.mubr.bf16.mxu0 0
    %8289 = vmatmul.mubr.bf16.gmra.mrb[0].mxu0 %v8228
    %v8290 = vpop.f32.mrb[0].mxu0
    %v8291 = vadd.f32 %v8215, %v8290
    %v8292 = vpop.f32.mrb[0].mxu0
    %v8293 = vpop.f32.mrb[0].mxu0
    %v8294 = vadd.f32 %v8215, %v8293
    %v8295 = vpop.f32.mrb[0].mxu0
    %8296 = vmatprep.mubr.bf16.mxu0 0
    %8297 = vmatmul.mubr.bf16.gmra.mrb[0].mxu0 %v8231
    %v8298 = vpop.f32.mrb[0].mxu0
    %v8299 = vadd.f32 %v8215, %v8298
    %v8300 = vpop.f32.mrb[0].mxu0
    %v8301 = vpop.f32.mrb[0].mxu0
    %v8302 = vadd.f32 %v8215, %v8301
    %v8303 = vpop.f32.mrb[0].mxu0
    %8304 = vmatprep.mubr.bf16.mxu0 0
    %8305 = vmatmul.mubr.bf16.gmra.mrb[0].mxu0 %v8234
    %v8306 = vpop.f32.mrb[0].mxu0
    %v8307 = vadd.f32 %v8215, %v8306
    %v8308 = vpop.f32.mrb[0].mxu0
    %v8309 = vpop.f32.mrb[0].mxu0
    %v8310 = vadd.f32 %v8215, %v8309
    %v8311 = vpop.f32.mrb[0].mxu0
    %8312 = vmatprep.mubr.bf16.mxu0 0
    %8313 = vmatmul.mubr.bf16.gmra.mrb[0].mxu0 %v8237
    %v8314 = vpop.f32.mrb[0].mxu0
    %v8315 = vadd.f32 %v8215, %v8314
    %v8316 = vpop.f32.mrb[0].mxu0
    %v8317 = vpop.f32.mrb[0].mxu0
    %v8318 = vadd.f32 %v8215, %v8317
    %v8319 = vpop.f32.mrb[0].mxu0
    %8320 = vmatprep.mubr.bf16.mxu0 0
    %8321 = vmatmul.mubr.bf16.gmra.mrb[0].mxu0 %v8240
    %v8322 = vpop.f32.mrb[0].mxu0
    %v8323 = vadd.f32 %v8215, %v8322
    %v8324 = vpop.f32.mrb[0].mxu0
    %v8325 = vpop.f32.mrb[0].mxu0
    %v8326 = vadd.f32 %v8215, %v8325
    %v8327 = vpop.f32.mrb[0].mxu0
    %8328 = vmatprep.mubr.bf16.mxu0 0
    %8329 = vmatmul.mubr.bf16.gmra.mrb[0].mxu0 %v8243
    %v8330 = vpop.f32.mrb[0].mxu0
    %v8331 = vadd.f32 %v8215, %v8330
    %v8332 = vpop.f32.mrb[0].mxu0
    %v8333 = vpop.f32.mrb[0].mxu0
    %v8334 = vadd.f32 %v8215, %v8333
    %v8335 = vpop.f32.mrb[0].mxu0
    %8336 = vmatprep.mubr.bf16.mxu0 0
    %8337 = vmatmul.mubr.bf16.gmra.mrb[0].mxu0 %v8246
    %v8338 = vpop.f32.mrb[0].mxu0
    %v8339 = vadd.f32 %v8215, %v8338
    %v8340 = vpop.f32.mrb[0].mxu0
    %v8341 = vpop.f32.mrb[0].mxu0
    %v8342 = vadd.f32 %v8215, %v8341
    %v8343 = vpop.f32.mrb[0].mxu0
    %8344 = vdwg.mxu0
    %v8345 = vmax.f32 %v8283, 0.0
    %v8346 = vmax.f32 %v8286, 0.0
    %v8347 = vmax.f32 %v8291, 0.0
    %v8348 = vmax.f32 %v8294, 0.0
    %v8349 = vmax.f32 %v8299, 0.0
    %v8350 = vmax.f32 %v8302, 0.0
    %v8351 = vmax.f32 %v8307, 0.0
    %v8352 = vmax.f32 %v8310, 0.0
    %v8353 = vmax.f32 %v8315, 0.0
    %v8354 = vmax.f32 %v8318, 0.0
    %v8355 = vmax.f32 %v8323, 0.0
    %v8356 = vmax.f32 %v8326, 0.0
    %v8357 = vmax.f32 %v8331, 0.0
    %v8358 = vmax.f32 %v8334, 0.0
    %v8359 = vmax.f32 %v8339, 0.0
    %v8360 = vmax.f32 %v8342, 0.0
    %v8361 = vpack.c.bf16 %v8346, %v8345
    %v8362 = vpack.c.bf16 %v8348, %v8347
    %v8363 = vpack.c.bf16 %v8350, %v8349
    %v8364 = vpack.c.bf16 %v8352, %v8351
    %v8365 = vpack.c.bf16 %v8354, %v8353
    %v8366 = vpack.c.bf16 %v8356, %v8355
    %v8367 = vpack.c.bf16 %v8358, %v8357
    %v8368 = vpack.c.bf16 %v8360, %v8359
    %v8373 = vunpack.c.l.b16 %v4294
    %v8374 = vunpack.c.l.b16 %v4296
    %v8375 = vunpack.c.l.b16 %v4298
    %v8376 = vunpack.c.l.b16 %v4300
    %v8377 = vpack.c.b16 %v8374, %v8373
    %v8378 = vpack.c.b16 %v8376, %v8375
    %8381 = vmatprep.subr.bf16.mxu0 0
    %8382 = vmatpush1.bf16.xpose.msra.mxu0 %v8377
    %8383 = vmatprep.subr.bf16.mxu0 0
    %8384 = vmatpush1.bf16.xpose.msra.mxu0 %v8378
    %8385 = vmatprep.subr.bf16.mxu0 0
    %8386 = vmatpush1.bf16.xpose.msra.mxu0 0
    %8387 = vmatprep.subr.bf16.mxu0 0
    %8388 = vmatpush1.bf16.xpose.msra.mxu0 0
    %8389 = vmatprep.subr.bf16.mxu0 0
    %8390 = vmatpush1.bf16.xpose.msra.mxu0 0
    %8391 = vmatprep.subr.bf16.mxu0 0
    %8392 = vmatpush1.bf16.xpose.msra.mxu0 0
    %8393 = vmatprep.subr.bf16.mxu0 0
    %8394 = vmatpush1.bf16.xpose.msra.mxu0 0
    %8395 = vmatprep.subr.bf16.mxu0 0
    %8396 = vmatpush1.bf16.xpose.msra.mxu0 0
    %8397 = vmatprep.subr.bf16.mxu0 0
    %8398 = vmatpush1.bf16.xpose.msra.mxu0 0
    %8399 = vmatprep.subr.bf16.mxu0 0
    %8400 = vmatpush1.bf16.xpose.msra.mxu0 0
    %8401 = vmatprep.subr.bf16.mxu0 0
    %8402 = vmatpush1.bf16.xpose.msra.mxu0 0
    %8403 = vmatprep.subr.bf16.mxu0 0
    %8404 = vmatpush1.bf16.xpose.msra.mxu0 0
    %8405 = vmatprep.subr.bf16.mxu0 0
    %8406 = vmatpush1.bf16.xpose.msra.mxu0 0
    %8407 = vmatprep.subr.bf16.mxu0 0
    %8408 = vmatpush1.bf16.xpose.msra.mxu0 0
    %8409 = vmatprep.subr.bf16.mxu0 0
    %8410 = vmatpush1.bf16.xpose.msra.mxu0 0
    %8411 = vmatprep.subr.bf16.mxu0 0
    %8412 = vmatpush1.bf16.xpose.msra.mxu0 0
    %8413 = vmatprep.mubr.bf16.mxu0 0
    %8414 = vmatmul.mubr.bf16.gmra.mrb[0].mxu0 %v8361
    %v8415 = vpop.f32.mrb[0].mxu0
    %v8416 = vadd.f32 0.0, %v8415
    %v8417 = vpop.f32.mrb[0].mxu0
    %v8418 = vpop.f32.mrb[0].mxu0
    %v8419 = vadd.f32 0.0, %v8418
    %v8420 = vpop.f32.mrb[0].mxu0
    %8421 = vmatprep.mubr.bf16.mxu0 0
    %8422 = vmatmul.mubr.bf16.gmra.mrb[0].mxu0 %v8362
    %v8423 = vpop.f32.mrb[0].mxu0
    %v8424 = vadd.f32 0.0, %v8423
    %v8425 = vpop.f32.mrb[0].mxu0
    %v8426 = vpop.f32.mrb[0].mxu0
    %v8427 = vadd.f32 0.0, %v8426
    %v8428 = vpop.f32.mrb[0].mxu0
    %8429 = vmatprep.mubr.bf16.mxu0 0
    %8430 = vmatmul.mubr.bf16.gmra.mrb[0].mxu0 %v8363
    %v8431 = vpop.f32.mrb[0].mxu0
    %v8432 = vadd.f32 0.0, %v8431
    %v8433 = vpop.f32.mrb[0].mxu0
    %v8434 = vpop.f32.mrb[0].mxu0
    %v8435 = vadd.f32 0.0, %v8434
    %v8436 = vpop.f32.mrb[0].mxu0
    %8437 = vmatprep.mubr.bf16.mxu0 0
    %8438 = vmatmul.mubr.bf16.gmra.mrb[0].mxu0 %v8364
    %v8439 = vpop.f32.mrb[0].mxu0
    %v8440 = vadd.f32 0.0, %v8439
    %v8441 = vpop.f32.mrb[0].mxu0
    %v8442 = vpop.f32.mrb[0].mxu0
    %v8443 = vadd.f32 0.0, %v8442
    %v8444 = vpop.f32.mrb[0].mxu0
    %8445 = vmatprep.mubr.bf16.mxu0 0
    %8446 = vmatmul.mubr.bf16.gmra.mrb[0].mxu0 %v8365
    %v8447 = vpop.f32.mrb[0].mxu0
    %v8448 = vadd.f32 0.0, %v8447
    %v8449 = vpop.f32.mrb[0].mxu0
    %v8450 = vpop.f32.mrb[0].mxu0
    %v8451 = vadd.f32 0.0, %v8450
    %v8452 = vpop.f32.mrb[0].mxu0
    %8453 = vmatprep.mubr.bf16.mxu0 0
    %8454 = vmatmul.mubr.bf16.gmra.mrb[0].mxu0 %v8366
    %v8455 = vpop.f32.mrb[0].mxu0
    %v8456 = vadd.f32 0.0, %v8455
    %v8457 = vpop.f32.mrb[0].mxu0
    %v8458 = vpop.f32.mrb[0].mxu0
    %v8459 = vadd.f32 0.0, %v8458
    %v8460 = vpop.f32.mrb[0].mxu0
    %8461 = vmatprep.mubr.bf16.mxu0 0
    %8462 = vmatmul.mubr.bf16.gmra.mrb[0].mxu0 %v8367
    %v8463 = vpop.f32.mrb[0].mxu0
    %v8464 = vadd.f32 0.0, %v8463
    %v8465 = vpop.f32.mrb[0].mxu0
    %v8466 = vpop.f32.mrb[0].mxu0
    %v8467 = vadd.f32 0.0, %v8466
    %v8468 = vpop.f32.mrb[0].mxu0
    %8469 = vmatprep.mubr.bf16.mxu0 0
    %8470 = vmatmul.mubr.bf16.gmra.mrb[0].mxu0 %v8368
    %v8471 = vpop.f32.mrb[0].mxu0
    %v8472 = vadd.f32 0.0, %v8471
    %v8473 = vpop.f32.mrb[0].mxu0
    %v8474 = vpop.f32.mrb[0].mxu0
    %v8475 = vadd.f32 0.0, %v8474
    %v8476 = vpop.f32.mrb[0].mxu0
    %8477 = vdwg.mxu0
    %v8478 = vadd.f32 %v7908, %v8416
    %v8479 = vadd.f32 %v7909, %v8419
    %v8480 = vadd.f32 %v7910, %v8424
    %v8481 = vadd.f32 %v7911, %v8427
    %v8482 = vadd.f32 %v7912, %v8432
    %v8483 = vadd.f32 %v7913, %v8435
    %v8484 = vadd.f32 %v7914, %v8440
    %v8485 = vadd.f32 %v7915, %v8443
    %v8486 = vadd.f32 %v7916, %v8448
    %v8487 = vadd.f32 %v7917, %v8451
    %v8488 = vadd.f32 %v7918, %v8456
    %v8489 = vadd.f32 %v7919, %v8459
    %v8490 = vadd.f32 %v7920, %v8464
    %v8491 = vadd.f32 %v7921, %v8467
    %v8492 = vadd.f32 %v7922, %v8472
    %v8493 = vadd.f32 %v7923, %v8475
    %v8494 = vlaneseq
    %v8495 = vshrl.u32 %v8494, 7
    %v8496 = vsub.s32 5, %v8495
    %v8497 = vrot.slane %v4302, %v8496
    %v8498 = vadd.f32 %v8478, %v8497
    %v8499 = vadd.f32 %v8479, %v8497
    %v8500 = vadd.f32 %v8480, %v8497
    %v8501 = vadd.f32 %v8481, %v8497
    %v8502 = vadd.f32 %v8482, %v8497
    %v8503 = vadd.f32 %v8483, %v8497
    %v8504 = vadd.f32 %v8484, %v8497
    %v8505 = vadd.f32 %v8485, %v8497
    %v8506 = vadd.f32 %v8486, %v8497
    %v8507 = vadd.f32 %v8487, %v8497
    %v8508 = vadd.f32 %v8488, %v8497
    %v8509 = vadd.f32 %v8489, %v8497
    %v8510 = vadd.f32 %v8490, %v8497
    %v8511 = vadd.f32 %v8491, %v8497
    %v8512 = vadd.f32 %v8492, %v8497
    %v8513 = vadd.f32 %v8493, %v8497
    %v8514 = vld [vmem:[%s6] sm:$0xff]
    %v8515 = vld [vmem:[%s6 + $0x8] sm:$0xff]
    %v8516 = vld [vmem:[%s6 + $0x10] sm:$0xff]
    %v8517 = vld [vmem:[%s6 + $0x18] sm:$0xff]
    %v8518 = vld [vmem:[%s6 + $0x20] sm:$0xff]
    %v8519 = vld [vmem:[%s6 + $0x28] sm:$0xff]
    %v8520 = vld [vmem:[%s1] sm:$0xff]
    %v8521 = vld [vmem:[%s1 + $0x8] sm:$0xff]
    %v8522 = vld [vmem:[%s1 + $0x10] sm:$0xff]
    %v8523 = vld [vmem:[%s1 + $0x18] sm:$0xff]
    %v8524 = vld [vmem:[%s1 + $0x20] sm:$0xff]
    %v8525 = vld [vmem:[%s1 + $0x28] sm:$0xff]
    %v8526 = vld [vmem:[%s1 + $0x30] sm:$0xff]
    %v8527 = vld [vmem:[%s1 + $0x38] sm:$0xff]
    %v8528 = vld [vmem:[%s1 + $0x40] sm:$0xff]
    %v8529 = vld [vmem:[%s1 + $0x48] sm:$0xff]
    %v8530 = vld [vmem:[%s1 + $0x50] sm:$0xff]
    %v8531 = vld [vmem:[%s1 + $0x58] sm:$0xff]
    %v8532 = vld [vmem:[%s1 + $0x60] sm:$0xff]
    %v8533 = vld [vmem:[%s1 + $0x68] sm:$0xff]
    %v8534 = vld [vmem:[%s1 + $0x70] sm:$0xff]
    %v8535 = vld [vmem:[%s1 + $0x78] sm:$0xff]
    %8537 = vset.pattern.permute.xlu0 0
    %8538 = vperm.xlu0 %8537, %v8520
    %v8539 = vpop.permute.xlu0 %8538
    %8542 = vset.pattern.permute.xlu0 0
    %8543 = vperm.xlu0 %8542, %v8521
    %v8544 = vpop.permute.xlu0 %8543
    %8547 = vset.pattern.permute.xlu0 0
    %8548 = vperm.xlu0 %8547, %v8522
    %v8549 = vpop.permute.xlu0 %8548
    %8552 = vset.pattern.permute.xlu0 0
    %8553 = vperm.xlu0 %8552, %v8523
    %v8554 = vpop.permute.xlu0 %8553
    %8557 = vset.pattern.permute.xlu0 0
    %8558 = vperm.xlu0 %8557, %v8524
    %v8559 = vpop.permute.xlu0 %8558
    %8562 = vset.pattern.permute.xlu0 0
    %8563 = vperm.xlu0 %8562, %v8525
    %v8564 = vpop.permute.xlu0 %8563
    %8567 = vset.pattern.permute.xlu0 0
    %8568 = vperm.xlu0 %8567, %v8526
    %v8569 = vpop.permute.xlu0 %8568
    %8572 = vset.pattern.permute.xlu0 0
    %8573 = vperm.xlu0 %8572, %v8527
    %v8574 = vpop.permute.xlu0 %8573
    %8577 = vset.pattern.permute.xlu0 0
    %8578 = vperm.xlu0 %8577, %v8528
    %v8579 = vpop.permute.xlu0 %8578
    %8582 = vset.pattern.permute.xlu0 0
    %8583 = vperm.xlu0 %8582, %v8529
    %v8584 = vpop.permute.xlu0 %8583
    %8587 = vset.pattern.permute.xlu0 0
    %8588 = vperm.xlu0 %8587, %v8530
    %v8589 = vpop.permute.xlu0 %8588
    %8592 = vset.pattern.permute.xlu0 0
    %8593 = vperm.xlu0 %8592, %v8531
    %v8594 = vpop.permute.xlu0 %8593
    %8597 = vset.pattern.permute.xlu0 0
    %8598 = vperm.xlu0 %8597, %v8532
    %v8599 = vpop.permute.xlu0 %8598
    %8602 = vset.pattern.permute.xlu0 0
    %8603 = vperm.xlu0 %8602, %v8533
    %v8604 = vpop.permute.xlu0 %8603
    %8607 = vset.pattern.permute.xlu0 0
    %8608 = vperm.xlu0 %8607, %v8534
    %v8609 = vpop.permute.xlu0 %8608
    %8612 = vset.pattern.permute.xlu0 0
    %8613 = vperm.xlu0 %8612, %v8535
    %v8614 = vpop.permute.xlu0 %8613
    %v8616 = vmul.f32 %v8498, %v8539
    %v8617 = vmul.f32 %v8499, %v8544
    %v8618 = vmul.f32 %v8500, %v8549
    %v8619 = vmul.f32 %v8501, %v8554
    %v8620 = vmul.f32 %v8502, %v8559
    %v8621 = vmul.f32 %v8503, %v8564
    %v8622 = vmul.f32 %v8504, %v8569
    %v8623 = vmul.f32 %v8505, %v8574
    %v8624 = vmul.f32 %v8506, %v8579
    %v8625 = vmul.f32 %v8507, %v8584
    %v8626 = vmul.f32 %v8508, %v8589
    %v8627 = vmul.f32 %v8509, %v8594
    %v8628 = vmul.f32 %v8510, %v8599
    %v8629 = vmul.f32 %v8511, %v8604
    %v8630 = vmul.f32 %v8512, %v8609
    %v8631 = vmul.f32 %v8513, %v8614
    %v8632 = vlaneseq
    %v8633 = vshrl.u32 %v8632, 7
    %v8634 = vsub.s32 0, %v8633
    %v8635 = vrot.slane %v8518, %v8634
    %v8637 = vsel %vm88, %v8616, 0
    %v8640 = vsel %vm88, %v8617, 0
    %v8643 = vsel %vm88, %v8618, 0
    %v8646 = vsel %vm88, %v8619, 0
    %v8649 = vsel %vm88, %v8620, 0
    %v8652 = vsel %vm88, %v8621, 0
    %v8655 = vsel %vm88, %v8622, 0
    %v8658 = vsel %vm88, %v8623, 0
    %v8661 = vsel %vm88, %v8624, 0
    %v8664 = vsel %vm88, %v8625, 0
    %v8667 = vsel %vm88, %v8626, 0
    %v8670 = vsel %vm88, %v8627, 0
    %v8673 = vsel %vm88, %v8628, 0
    %v8676 = vsel %vm88, %v8629, 0
    %v8679 = vsel %vm88, %v8630, 0
    %v8682 = vsel %vm88, %v8631, 0
    %8684 = vmatprep.subr.mxu0 0.0
    %8685 = vmatpush1.msra.mxu0 %v8514
    %8686 = vmatprep.subr.mxu0 0.0
    %8687 = vmatpush1.msra.mxu0 %v8515
    %8688 = vmatprep.subr.mxu0 0.0
    %8689 = vmatpush1.msra.mxu0 %v8516
    %8690 = vmatprep.subr.mxu0 0.0
    %8691 = vmatpush1.msra.mxu0 %v8517
    %8692 = vmatprep.subr.mxu0 0.0
    %8693 = vmatpush1.msra.mxu0 0.0
    %8694 = vmatprep.subr.mxu0 0.0
    %8695 = vmatpush1.msra.mxu0 0.0
    %8696 = vmatprep.subr.mxu0 0.0
    %8697 = vmatpush1.msra.mxu0 0.0
    %8698 = vmatprep.subr.mxu0 0.0
    %8699 = vmatpush1.msra.mxu0 0.0
    %8700 = vmatprep.subr.mxu0 0.0
    %8701 = vmatpush1.msra.mxu0 0.0
    %8702 = vmatprep.subr.mxu0 0.0
    %8703 = vmatpush1.msra.mxu0 0.0
    %8704 = vmatprep.subr.mxu0 0.0
    %8705 = vmatpush1.msra.mxu0 0.0
    %8706 = vmatprep.subr.mxu0 0.0
    %8707 = vmatpush1.msra.mxu0 0.0
    %8708 = vmatprep.subr.mxu0 0.0
    %8709 = vmatpush1.msra.mxu0 0.0
    %8710 = vmatprep.subr.mxu0 0.0
    %8711 = vmatpush1.msra.mxu0 0.0
    %8712 = vmatprep.subr.mxu0 0.0
    %8713 = vmatpush1.msra.mxu0 0.0
    %8714 = vmatprep.subr.mxu0 0.0
    %8715 = vmatpush1.msra.mxu0 0.0
    %8716 = vmatprep.subr.mxu0 0.0
    %8717 = vmatpush1.msra.mxu0 0.0
    %8718 = vmatprep.subr.mxu0 0.0
    %8719 = vmatpush1.msra.mxu0 0.0
    %8720 = vmatprep.subr.mxu0 0.0
    %8721 = vmatpush1.msra.mxu0 0.0
    %8722 = vmatprep.subr.mxu0 0.0
    %8723 = vmatpush1.msra.mxu0 0.0
    %8724 = vmatprep.subr.mxu0 0.0
    %8725 = vmatpush1.msra.mxu0 0.0
    %8726 = vmatprep.subr.mxu0 0.0
    %8727 = vmatpush1.msra.mxu0 0.0
    %8728 = vmatprep.subr.mxu0 0.0
    %8729 = vmatpush1.msra.mxu0 0.0
    %8730 = vmatprep.subr.mxu0 0.0
    %8731 = vmatpush1.msra.mxu0 0.0
    %8732 = vmatprep.subr.mxu0 0.0
    %8733 = vmatpush1.msra.mxu0 0.0
    %8734 = vmatprep.subr.mxu0 0.0
    %8735 = vmatpush1.msra.mxu0 0.0
    %8736 = vmatprep.subr.mxu0 0.0
    %8737 = vmatpush1.msra.mxu0 0.0
    %8738 = vmatprep.subr.mxu0 0.0
    %8739 = vmatpush1.msra.mxu0 0.0
    %8740 = vmatprep.subr.mxu0 0.0
    %8741 = vmatpush1.msra.mxu0 0.0
    %8742 = vmatprep.subr.mxu0 0.0
    %8743 = vmatpush1.msra.mxu0 0.0
    %8744 = vmatprep.subr.mxu0 0.0
    %8745 = vmatpush1.msra.mxu0 0.0
    %8746 = vmatprep.subr.mxu0 0.0
    %8747 = vmatpush1.msra.mxu0 0.0
    %8748 = vmatprep.mubr.f32.mxu0 0.0
    %8749 = vmatmul.mubr.f32.gmra.mrb[0].mxu0 %v8637
    %v8750 = vpop.f32.mrb[0].mxu0
    %v8751 = vadd.f32 %v8635, %v8750
    %v8752 = vpop.f32.mrb[0].mxu0
    %8753 = vmatprep.mubr.f32.mxu0 0.0
    %8754 = vmatmul.mubr.f32.gmra.mrb[0].mxu0 %v8640
    %v8755 = vpop.f32.mrb[0].mxu0
    %v8756 = vadd.f32 %v8635, %v8755
    %v8757 = vpop.f32.mrb[0].mxu0
    %8758 = vmatprep.mubr.f32.mxu0 0.0
    %8759 = vmatmul.mubr.f32.gmra.mrb[0].mxu0 %v8643
    %v8760 = vpop.f32.mrb[0].mxu0
    %v8761 = vadd.f32 %v8635, %v8760
    %v8762 = vpop.f32.mrb[0].mxu0
    %8763 = vmatprep.mubr.f32.mxu0 0.0
    %8764 = vmatmul.mubr.f32.gmra.mrb[0].mxu0 %v8646
    %v8765 = vpop.f32.mrb[0].mxu0
    %v8766 = vadd.f32 %v8635, %v8765
    %v8767 = vpop.f32.mrb[0].mxu0
    %8768 = vmatprep.mubr.f32.mxu0 0.0
    %8769 = vmatmul.mubr.f32.gmra.mrb[0].mxu0 %v8649
    %v8770 = vpop.f32.mrb[0].mxu0
    %v8771 = vadd.f32 %v8635, %v8770
    %v8772 = vpop.f32.mrb[0].mxu0
    %8773 = vmatprep.mubr.f32.mxu0 0.0
    %8774 = vmatmul.mubr.f32.gmra.mrb[0].mxu0 %v8652
    %v8775 = vpop.f32.mrb[0].mxu0
    %v8776 = vadd.f32 %v8635, %v8775
    %v8777 = vpop.f32.mrb[0].mxu0
    %8778 = vmatprep.mubr.f32.mxu0 0.0
    %8779 = vmatmul.mubr.f32.gmra.mrb[0].mxu0 %v8655
    %v8780 = vpop.f32.mrb[0].mxu0
    %v8781 = vadd.f32 %v8635, %v8780
    %v8782 = vpop.f32.mrb[0].mxu0
    %8783 = vmatprep.mubr.f32.mxu0 0.0
    %8784 = vmatmul.mubr.f32.gmra.mrb[0].mxu0 %v8658
    %v8785 = vpop.f32.mrb[0].mxu0
    %v8786 = vadd.f32 %v8635, %v8785
    %v8787 = vpop.f32.mrb[0].mxu0
    %8788 = vmatprep.mubr.f32.mxu0 0.0
    %8789 = vmatmul.mubr.f32.gmra.mrb[0].mxu0 %v8661
    %v8790 = vpop.f32.mrb[0].mxu0
    %v8791 = vadd.f32 %v8635, %v8790
    %v8792 = vpop.f32.mrb[0].mxu0
    %8793 = vmatprep.mubr.f32.mxu0 0.0
    %8794 = vmatmul.mubr.f32.gmra.mrb[0].mxu0 %v8664
    %v8795 = vpop.f32.mrb[0].mxu0
    %v8796 = vadd.f32 %v8635, %v8795
    %v8797 = vpop.f32.mrb[0].mxu0
    %8798 = vmatprep.mubr.f32.mxu0 0.0
    %8799 = vmatmul.mubr.f32.gmra.mrb[0].mxu0 %v8667
    %v8800 = vpop.f32.mrb[0].mxu0
    %v8801 = vadd.f32 %v8635, %v8800
    %v8802 = vpop.f32.mrb[0].mxu0
    %8803 = vmatprep.mubr.f32.mxu0 0.0
    %8804 = vmatmul.mubr.f32.gmra.mrb[0].mxu0 %v8670
    %v8805 = vpop.f32.mrb[0].mxu0
    %v8806 = vadd.f32 %v8635, %v8805
    %v8807 = vpop.f32.mrb[0].mxu0
    %8808 = vmatprep.mubr.f32.mxu0 0.0
    %8809 = vmatmul.mubr.f32.gmra.mrb[0].mxu0 %v8673
    %v8810 = vpop.f32.mrb[0].mxu0
    %v8811 = vadd.f32 %v8635, %v8810
    %v8812 = vpop.f32.mrb[0].mxu0
    %8813 = vmatprep.mubr.f32.mxu0 0.0
    %8814 = vmatmul.mubr.f32.gmra.mrb[0].mxu0 %v8676
    %v8815 = vpop.f32.mrb[0].mxu0
    %v8816 = vadd.f32 %v8635, %v8815
    %v8817 = vpop.f32.mrb[0].mxu0
    %8818 = vmatprep.mubr.f32.mxu0 0.0
    %8819 = vmatmul.mubr.f32.gmra.mrb[0].mxu0 %v8679
    %v8820 = vpop.f32.mrb[0].mxu0
    %v8821 = vadd.f32 %v8635, %v8820
    %v8822 = vpop.f32.mrb[0].mxu0
    %8823 = vmatprep.mubr.f32.mxu0 0.0
    %8824 = vmatmul.mubr.f32.gmra.mrb[0].mxu0 %v8682
    %v8825 = vpop.f32.mrb[0].mxu0
    %v8826 = vadd.f32 %v8635, %v8825
    %v8827 = vpop.f32.mrb[0].mxu0
    %8828 = vdwg.mxu0
    %v8829 = vand.u32 2147483647, %v8751
    %v8830 = vand.u32 2147483647, %v8756
    %v8831 = vand.u32 2147483647, %v8761
    %v8832 = vand.u32 2147483647, %v8766
    %v8833 = vand.u32 2147483647, %v8771
    %v8834 = vand.u32 2147483647, %v8776
    %v8835 = vand.u32 2147483647, %v8781
    %v8836 = vand.u32 2147483647, %v8786
    %v8837 = vand.u32 2147483647, %v8791
    %v8838 = vand.u32 2147483647, %v8796
    %v8839 = vand.u32 2147483647, %v8801
    %v8840 = vand.u32 2147483647, %v8806
    %v8841 = vand.u32 2147483647, %v8811
    %v8842 = vand.u32 2147483647, %v8816
    %v8843 = vand.u32 2147483647, %v8821
    %v8844 = vand.u32 2147483647, %v8826
    %v8845 = vsub.f32 0.0, %v8829
    %v8846 = vsub.f32 0.0, %v8830
    %v8847 = vsub.f32 0.0, %v8831
    %v8848 = vsub.f32 0.0, %v8832
    %v8849 = vsub.f32 0.0, %v8833
    %v8850 = vsub.f32 0.0, %v8834
    %v8851 = vsub.f32 0.0, %v8835
    %v8852 = vsub.f32 0.0, %v8836
    %v8853 = vsub.f32 0.0, %v8837
    %v8854 = vsub.f32 0.0, %v8838
    %v8855 = vsub.f32 0.0, %v8839
    %v8856 = vsub.f32 0.0, %v8840
    %v8857 = vsub.f32 0.0, %v8841
    %v8858 = vsub.f32 0.0, %v8842
    %v8859 = vsub.f32 0.0, %v8843
    %v8860 = vsub.f32 0.0, %v8844
    %v8861 = vmul.f32 %v8845, 1.442695
    %v8862 = vpow.pop %v8861
    %v8863 = vmul.f32 %v8846, 1.442695
    %v8864 = vpow.pop %v8863
    %v8865 = vmul.f32 %v8847, 1.442695
    %v8866 = vpow.pop %v8865
    %v8867 = vmul.f32 %v8848, 1.442695
    %v8868 = vpow.pop %v8867
    %v8869 = vmul.f32 %v8849, 1.442695
    %v8870 = vpow.pop %v8869
    %v8871 = vmul.f32 %v8850, 1.442695
    %v8872 = vpow.pop %v8871
    %v8873 = vmul.f32 %v8851, 1.442695
    %v8874 = vpow.pop %v8873
    %v8875 = vmul.f32 %v8852, 1.442695
    %v8876 = vpow.pop %v8875
    %v8877 = vmul.f32 %v8853, 1.442695
    %v8878 = vpow.pop %v8877
    %v8879 = vmul.f32 %v8854, 1.442695
    %v8880 = vpow.pop %v8879
    %v8881 = vmul.f32 %v8855, 1.442695
    %v8882 = vpow.pop %v8881
    %v8883 = vmul.f32 %v8856, 1.442695
    %v8884 = vpow.pop %v8883
    %v8885 = vmul.f32 %v8857, 1.442695
    %v8886 = vpow.pop %v8885
    %v8887 = vmul.f32 %v8858, 1.442695
    %v8888 = vpow.pop %v8887
    %v8889 = vmul.f32 %v8859, 1.442695
    %v8890 = vpow.pop %v8889
    %v8891 = vmul.f32 %v8860, 1.442695
    %v8892 = vpow.pop %v8891
    %v8893 = vadd.f32 %v8862, 1.0
    %v8894 = vadd.f32 %v8864, 1.0
    %v8895 = vadd.f32 %v8866, 1.0
    %v8896 = vadd.f32 %v8868, 1.0
    %v8897 = vadd.f32 %v8870, 1.0
    %v8898 = vadd.f32 %v8872, 1.0
    %v8899 = vadd.f32 %v8874, 1.0
    %v8900 = vadd.f32 %v8876, 1.0
    %v8901 = vadd.f32 %v8878, 1.0
    %v8902 = vadd.f32 %v8880, 1.0
    %v8903 = vadd.f32 %v8882, 1.0
    %v8904 = vadd.f32 %v8884, 1.0
    %v8905 = vadd.f32 %v8886, 1.0
    %v8906 = vadd.f32 %v8888, 1.0
    %v8907 = vadd.f32 %v8890, 1.0
    %v8908 = vadd.f32 %v8892, 1.0
    %v8909 = vrcp.pop %v8893
    %v8910 = vrcp.pop %v8894
    %v8911 = vrcp.pop %v8895
    %v8912 = vrcp.pop %v8896
    %v8913 = vrcp.pop %v8897
    %v8914 = vrcp.pop %v8898
    %v8915 = vrcp.pop %v8899
    %v8916 = vrcp.pop %v8900
    %v8917 = vrcp.pop %v8901
    %v8918 = vrcp.pop %v8902
    %v8919 = vrcp.pop %v8903
    %v8920 = vrcp.pop %v8904
    %v8921 = vrcp.pop %v8905
    %v8922 = vrcp.pop %v8906
    %v8923 = vrcp.pop %v8907
    %v8924 = vrcp.pop %v8908
    %vm8925 = vcmp.ge.f32.partialorder %v8751, 0.0
    %vm8926 = vcmp.ge.f32.partialorder %v8756, 0.0
    %vm8927 = vcmp.ge.f32.partialorder %v8761, 0.0
    %vm8928 = vcmp.ge.f32.partialorder %v8766, 0.0
    %vm8929 = vcmp.ge.f32.partialorder %v8771, 0.0
    %vm8930 = vcmp.ge.f32.partialorder %v8776, 0.0
    %vm8931 = vcmp.ge.f32.partialorder %v8781, 0.0
    %vm8932 = vcmp.ge.f32.partialorder %v8786, 0.0
    %vm8933 = vcmp.ge.f32.partialorder %v8791, 0.0
    %vm8934 = vcmp.ge.f32.partialorder %v8796, 0.0
    %vm8935 = vcmp.ge.f32.partialorder %v8801, 0.0
    %vm8936 = vcmp.ge.f32.partialorder %v8806, 0.0
    %vm8937 = vcmp.ge.f32.partialorder %v8811, 0.0
    %vm8938 = vcmp.ge.f32.partialorder %v8816, 0.0
    %vm8939 = vcmp.ge.f32.partialorder %v8821, 0.0
    %vm8940 = vcmp.ge.f32.partialorder %v8826, 0.0
    %v8941 = vmul.f32 %v8862, %v8909
    %v8942 = vmul.f32 %v8864, %v8910
    %v8943 = vmul.f32 %v8866, %v8911
    %v8944 = vmul.f32 %v8868, %v8912
    %v8945 = vmul.f32 %v8870, %v8913
    %v8946 = vmul.f32 %v8872, %v8914
    %v8947 = vmul.f32 %v8874, %v8915
    %v8948 = vmul.f32 %v8876, %v8916
    %v8949 = vmul.f32 %v8878, %v8917
    %v8950 = vmul.f32 %v8880, %v8918
    %v8951 = vmul.f32 %v8882, %v8919
    %v8952 = vmul.f32 %v8884, %v8920
    %v8953 = vmul.f32 %v8886, %v8921
    %v8954 = vmul.f32 %v8888, %v8922
    %v8955 = vmul.f32 %v8890, %v8923
    %v8956 = vmul.f32 %v8892, %v8924
    %v8957 = vsel %vm8925, %v8909, %v8941
    %v8958 = vsel %vm8926, %v8910, %v8942
    %v8959 = vsel %vm8927, %v8911, %v8943
    %v8960 = vsel %vm8928, %v8912, %v8944
    %v8961 = vsel %vm8929, %v8913, %v8945
    %v8962 = vsel %vm8930, %v8914, %v8946
    %v8963 = vsel %vm8931, %v8915, %v8947
    %v8964 = vsel %vm8932, %v8916, %v8948
    %v8965 = vsel %vm8933, %v8917, %v8949
    %v8966 = vsel %vm8934, %v8918, %v8950
    %v8967 = vsel %vm8935, %v8919, %v8951
    %v8968 = vsel %vm8936, %v8920, %v8952
    %v8969 = vsel %vm8937, %v8921, %v8953
    %v8970 = vsel %vm8938, %v8922, %v8954
    %v8971 = vsel %vm8939, %v8923, %v8955
    %v8972 = vsel %vm8940, %v8924, %v8956
    %v8973 = vld [vmem:[%s7] sm:$0xff]
    %8975 = vset.pattern.permute.xlu0 0
    %8976 = vperm.xlu0 %8975, %v8957
    %v8977 = vpop.permute.xlu0 %8976
    %8980 = vset.pattern.permute.xlu0 0
    %8981 = vperm.xlu0 %8980, %v8958
    %v8982 = vpop.permute.xlu0 %8981
    %8985 = vset.pattern.permute.xlu0 0
    %8986 = vperm.xlu0 %8985, %v8959
    %v8987 = vpop.permute.xlu0 %8986
    %8990 = vset.pattern.permute.xlu0 0
    %8991 = vperm.xlu0 %8990, %v8960
    %v8992 = vpop.permute.xlu0 %8991
    %8995 = vset.pattern.permute.xlu0 0
    %8996 = vperm.xlu0 %8995, %v8961
    %v8997 = vpop.permute.xlu0 %8996
    %9000 = vset.pattern.permute.xlu0 0
    %9001 = vperm.xlu0 %9000, %v8962
    %v9002 = vpop.permute.xlu0 %9001
    %9005 = vset.pattern.permute.xlu0 0
    %9006 = vperm.xlu0 %9005, %v8963
    %v9007 = vpop.permute.xlu0 %9006
    %9010 = vset.pattern.permute.xlu0 0
    %9011 = vperm.xlu0 %9010, %v8964
    %v9012 = vpop.permute.xlu0 %9011
    %9015 = vset.pattern.permute.xlu0 0
    %9016 = vperm.xlu0 %9015, %v8965
    %v9017 = vpop.permute.xlu0 %9016
    %9020 = vset.pattern.permute.xlu0 0
    %9021 = vperm.xlu0 %9020, %v8966
    %v9022 = vpop.permute.xlu0 %9021
    %9025 = vset.pattern.permute.xlu0 0
    %9026 = vperm.xlu0 %9025, %v8967
    %v9027 = vpop.permute.xlu0 %9026
    %9030 = vset.pattern.permute.xlu0 0
    %9031 = vperm.xlu0 %9030, %v8968
    %v9032 = vpop.permute.xlu0 %9031
    %9035 = vset.pattern.permute.xlu0 0
    %9036 = vperm.xlu0 %9035, %v8969
    %v9037 = vpop.permute.xlu0 %9036
    %9040 = vset.pattern.permute.xlu0 0
    %9041 = vperm.xlu0 %9040, %v8970
    %v9042 = vpop.permute.xlu0 %9041
    %9045 = vset.pattern.permute.xlu0 0
    %9046 = vperm.xlu0 %9045, %v8971
    %v9047 = vpop.permute.xlu0 %9046
    %9050 = vset.pattern.permute.xlu0 0
    %9051 = vperm.xlu0 %9050, %v8972
    %v9052 = vpop.permute.xlu0 %9051
    %v9054 = vmul.f32 %v8977, %v8616
    %v9055 = vmul.f32 %v8982, %v8617
    %v9056 = vmul.f32 %v8987, %v8618
    %v9057 = vmul.f32 %v8992, %v8619
    %v9058 = vmul.f32 %v8997, %v8620
    %v9059 = vmul.f32 %v9002, %v8621
    %v9060 = vmul.f32 %v9007, %v8622
    %v9061 = vmul.f32 %v9012, %v8623
    %v9062 = vmul.f32 %v9017, %v8624
    %v9063 = vmul.f32 %v9022, %v8625
    %v9064 = vmul.f32 %v9027, %v8626
    %v9065 = vmul.f32 %v9032, %v8627
    %v9066 = vmul.f32 %v9037, %v8628
    %v9067 = vmul.f32 %v9042, %v8629
    %v9068 = vmul.f32 %v9047, %v8630
    %v9069 = vmul.f32 %v9052, %v8631
    %9070 = vmatprep.subr.mxu0 0.0
    %9071 = vmatpush1.msra.mxu0 %v9054
    %9072 = vmatprep.subr.mxu0 0.0
    %9073 = vmatpush1.msra.mxu0 %v9055
    %9074 = vmatprep.subr.mxu0 0.0
    %9075 = vmatpush1.msra.mxu0 %v9056
    %9076 = vmatprep.subr.mxu0 0.0
    %9077 = vmatpush1.msra.mxu0 %v9057
    %9078 = vmatprep.subr.mxu0 0.0
    %9079 = vmatpush1.msra.mxu0 %v9058
    %9080 = vmatprep.subr.mxu0 0.0
    %9081 = vmatpush1.msra.mxu0 %v9059
    %9082 = vmatprep.subr.mxu0 0.0
    %9083 = vmatpush1.msra.mxu0 %v9060
    %9084 = vmatprep.subr.mxu0 0.0
    %9085 = vmatpush1.msra.mxu0 %v9061
    %9086 = vmatprep.subr.mxu0 0.0
    %9087 = vmatpush1.msra.mxu0 %v9062
    %9088 = vmatprep.subr.mxu0 0.0
    %9089 = vmatpush1.msra.mxu0 %v9063
    %9090 = vmatprep.subr.mxu0 0.0
    %9091 = vmatpush1.msra.mxu0 %v9064
    %9092 = vmatprep.subr.mxu0 0.0
    %9093 = vmatpush1.msra.mxu0 %v9065
    %9094 = vmatprep.subr.mxu0 0.0
    %9095 = vmatpush1.msra.mxu0 %v9066
    %9096 = vmatprep.subr.mxu0 0.0
    %9097 = vmatpush1.msra.mxu0 %v9067
    %9098 = vmatprep.subr.mxu0 0.0
    %9099 = vmatpush1.msra.mxu0 %v9068
    %9100 = vmatprep.subr.mxu0 0.0
    %9101 = vmatpush1.msra.mxu0 %v9069
    %9102 = vmatprep.subr.mxu0 0.0
    %9103 = vmatpush1.msra.mxu0 0.0
    %9104 = vmatprep.subr.mxu0 0.0
    %9105 = vmatpush1.msra.mxu0 0.0
    %9106 = vmatprep.subr.mxu0 0.0
    %9107 = vmatpush1.msra.mxu0 0.0
    %9108 = vmatprep.subr.mxu0 0.0
    %9109 = vmatpush1.msra.mxu0 0.0
    %9110 = vmatprep.subr.mxu0 0.0
    %9111 = vmatpush1.msra.mxu0 0.0
    %9112 = vmatprep.subr.mxu0 0.0
    %9113 = vmatpush1.msra.mxu0 0.0
    %9114 = vmatprep.subr.mxu0 0.0
    %9115 = vmatpush1.msra.mxu0 0.0
    %9116 = vmatprep.subr.mxu0 0.0
    %9117 = vmatpush1.msra.mxu0 0.0
    %9118 = vmatprep.subr.mxu0 0.0
    %9119 = vmatpush1.msra.mxu0 0.0
    %9120 = vmatprep.subr.mxu0 0.0
    %9121 = vmatpush1.msra.mxu0 0.0
    %9122 = vmatprep.subr.mxu0 0.0
    %9123 = vmatpush1.msra.mxu0 0.0
    %9124 = vmatprep.subr.mxu0 0.0
    %9125 = vmatpush1.msra.mxu0 0.0
    %9126 = vmatprep.subr.mxu0 0.0
    %9127 = vmatpush1.msra.mxu0 0.0
    %9128 = vmatprep.subr.mxu0 0.0
    %9129 = vmatpush1.msra.mxu0 0.0
    %9130 = vmatprep.subr.mxu0 0.0
    %9131 = vmatpush1.msra.mxu0 0.0
    %9132 = vmatprep.subr.mxu0 0.0
    %9133 = vmatpush1.msra.mxu0 0.0
    %9134 = vmatprep.mubr.f32.mxu0 0.0
    %9135 = vmatmul.mubr.f32.gmra.mrb[0].mxu0 %v8973
    %v9136 = vpop.f32.mrb[0].mxu0
    %v9137 = vadd.f32 0.0, %v9136
    %v9138 = vpop.f32.mrb[0].mxu0
    %9139 = vdwg.mxu0
    %9144 = vrot.lane.b32.xlu0 %v8514, 127
    %v9145 = vpop.permute.xlu0 %9144
    %9146 = vrot.lane.b32.xlu0 %v8515, 127
    %v9147 = vpop.permute.xlu0 %9146
    %9148 = vrot.lane.b32.xlu0 %v8516, 127
    %v9149 = vpop.permute.xlu0 %9148
    %9150 = vrot.lane.b32.xlu0 %v8517, 127
    %v9151 = vpop.permute.xlu0 %9150
    %9157 = vrot.lane.b32.xlu0 %v8635, 127
    %v9158 = vpop.permute.xlu0 %9157
    %v9161 = vsel %vm88, %v9137, 0
    %9163 = vmatprep.subr.mxu0 0.0
    %9164 = vmatpush1.msra.mxu0 %v9145
    %9165 = vmatprep.subr.mxu0 0.0
    %9166 = vmatpush1.msra.mxu0 %v9147
    %9167 = vmatprep.subr.mxu0 0.0
    %9168 = vmatpush1.msra.mxu0 %v9149
    %9169 = vmatprep.subr.mxu0 0.0
    %9170 = vmatpush1.msra.mxu0 %v9151
    %9171 = vmatprep.subr.mxu0 0.0
    %9172 = vmatpush1.msra.mxu0 0.0
    %9173 = vmatprep.subr.mxu0 0.0
    %9174 = vmatpush1.msra.mxu0 0.0
    %9175 = vmatprep.subr.mxu0 0.0
    %9176 = vmatpush1.msra.mxu0 0.0
    %9177 = vmatprep.subr.mxu0 0.0
    %9178 = vmatpush1.msra.mxu0 0.0
    %9179 = vmatprep.subr.mxu0 0.0
    %9180 = vmatpush1.msra.mxu0 0.0
    %9181 = vmatprep.subr.mxu0 0.0
    %9182 = vmatpush1.msra.mxu0 0.0
    %9183 = vmatprep.subr.mxu0 0.0
    %9184 = vmatpush1.msra.mxu0 0.0
    %9185 = vmatprep.subr.mxu0 0.0
    %9186 = vmatpush1.msra.mxu0 0.0
    %9187 = vmatprep.subr.mxu0 0.0
    %9188 = vmatpush1.msra.mxu0 0.0
    %9189 = vmatprep.subr.mxu0 0.0
    %9190 = vmatpush1.msra.mxu0 0.0
    %9191 = vmatprep.subr.mxu0 0.0
    %9192 = vmatpush1.msra.mxu0 0.0
    %9193 = vmatprep.subr.mxu0 0.0
    %9194 = vmatpush1.msra.mxu0 0.0
    %9195 = vmatprep.subr.mxu0 0.0
    %9196 = vmatpush1.msra.mxu0 0.0
    %9197 = vmatprep.subr.mxu0 0.0
    %9198 = vmatpush1.msra.mxu0 0.0
    %9199 = vmatprep.subr.mxu0 0.0
    %9200 = vmatpush1.msra.mxu0 0.0
    %9201 = vmatprep.subr.mxu0 0.0
    %9202 = vmatpush1.msra.mxu0 0.0
    %9203 = vmatprep.subr.mxu0 0.0
    %9204 = vmatpush1.msra.mxu0 0.0
    %9205 = vmatprep.subr.mxu0 0.0
    %9206 = vmatpush1.msra.mxu0 0.0
    %9207 = vmatprep.subr.mxu0 0.0
    %9208 = vmatpush1.msra.mxu0 0.0
    %9209 = vmatprep.subr.mxu0 0.0
    %9210 = vmatpush1.msra.mxu0 0.0
    %9211 = vmatprep.subr.mxu0 0.0
    %9212 = vmatpush1.msra.mxu0 0.0
    %9213 = vmatprep.subr.mxu0 0.0
    %9214 = vmatpush1.msra.mxu0 0.0
    %9215 = vmatprep.subr.mxu0 0.0
    %9216 = vmatpush1.msra.mxu0 0.0
    %9217 = vmatprep.subr.mxu0 0.0
    %9218 = vmatpush1.msra.mxu0 0.0
    %9219 = vmatprep.subr.mxu0 0.0
    %9220 = vmatpush1.msra.mxu0 0.0
    %9221 = vmatprep.subr.mxu0 0.0
    %9222 = vmatpush1.msra.mxu0 0.0
    %9223 = vmatprep.subr.mxu0 0.0
    %9224 = vmatpush1.msra.mxu0 0.0
    %9225 = vmatprep.subr.mxu0 0.0
    %9226 = vmatpush1.msra.mxu0 0.0
    %9227 = vmatprep.mubr.f32.mxu0 0.0
    %9228 = vmatmul.mubr.f32.gmra.mrb[0].mxu0 %v9161
    %v9229 = vpop.f32.mrb[0].mxu0
    %v9230 = vadd.f32 %v9158, %v9229
    %v9231 = vpop.f32.mrb[0].mxu0
    %9232 = vdwg.mxu0
    %v9233 = vmax.f32 %v9230, 0.0
    %9234 = vrot.lane.b32.xlu0 %v8514, 111
    %v9235 = vpop.permute.xlu0 %9234
    %9236 = vrot.lane.b32.xlu0 %v8515, 111
    %v9237 = vpop.permute.xlu0 %9236
    %9240 = vrot.lane.b32.xlu0 %v8635, 111
    %v9241 = vpop.permute.xlu0 %9240
    %v9244 = vsel %vm1057, %v9233, 0
    %9246 = vmatprep.subr.mxu0 0.0
    %9247 = vmatpush1.msra.mxu0 %v9235
    %9248 = vmatprep.subr.mxu0 0.0
    %9249 = vmatpush1.msra.mxu0 %v9237
    %9250 = vmatprep.subr.mxu0 0.0
    %9251 = vmatpush1.msra.mxu0 0.0
    %9252 = vmatprep.subr.mxu0 0.0
    %9253 = vmatpush1.msra.mxu0 0.0
    %9254 = vmatprep.subr.mxu0 0.0
    %9255 = vmatpush1.msra.mxu0 0.0
    %9256 = vmatprep.subr.mxu0 0.0
    %9257 = vmatpush1.msra.mxu0 0.0
    %9258 = vmatprep.subr.mxu0 0.0
    %9259 = vmatpush1.msra.mxu0 0.0
    %9260 = vmatprep.subr.mxu0 0.0
    %9261 = vmatpush1.msra.mxu0 0.0
    %9262 = vmatprep.subr.mxu0 0.0
    %9263 = vmatpush1.msra.mxu0 0.0
    %9264 = vmatprep.subr.mxu0 0.0
    %9265 = vmatpush1.msra.mxu0 0.0
    %9266 = vmatprep.subr.mxu0 0.0
    %9267 = vmatpush1.msra.mxu0 0.0
    %9268 = vmatprep.subr.mxu0 0.0
    %9269 = vmatpush1.msra.mxu0 0.0
    %9270 = vmatprep.subr.mxu0 0.0
    %9271 = vmatpush1.msra.mxu0 0.0
    %9272 = vmatprep.subr.mxu0 0.0
    %9273 = vmatpush1.msra.mxu0 0.0
    %9274 = vmatprep.subr.mxu0 0.0
    %9275 = vmatpush1.msra.mxu0 0.0
    %9276 = vmatprep.subr.mxu0 0.0
    %9277 = vmatpush1.msra.mxu0 0.0
    %9278 = vmatprep.subr.mxu0 0.0
    %9279 = vmatpush1.msra.mxu0 0.0
    %9280 = vmatprep.subr.mxu0 0.0
    %9281 = vmatpush1.msra.mxu0 0.0
    %9282 = vmatprep.subr.mxu0 0.0
    %9283 = vmatpush1.msra.mxu0 0.0
    %9284 = vmatprep.subr.mxu0 0.0
    %9285 = vmatpush1.msra.mxu0 0.0
    %9286 = vmatprep.subr.mxu0 0.0
    %9287 = vmatpush1.msra.mxu0 0.0
    %9288 = vmatprep.subr.mxu0 0.0
    %9289 = vmatpush1.msra.mxu0 0.0
    %9290 = vmatprep.subr.mxu0 0.0
    %9291 = vmatpush1.msra.mxu0 0.0
    %9292 = vmatprep.subr.mxu0 0.0
    %9293 = vmatpush1.msra.mxu0 0.0
    %9294 = vmatprep.subr.mxu0 0.0
    %9295 = vmatpush1.msra.mxu0 0.0
    %9296 = vmatprep.subr.mxu0 0.0
    %9297 = vmatpush1.msra.mxu0 0.0
    %9298 = vmatprep.subr.mxu0 0.0
    %9299 = vmatpush1.msra.mxu0 0.0
    %9300 = vmatprep.subr.mxu0 0.0
    %9301 = vmatpush1.msra.mxu0 0.0
    %9302 = vmatprep.subr.mxu0 0.0
    %9303 = vmatpush1.msra.mxu0 0.0
    %9304 = vmatprep.subr.mxu0 0.0
    %9305 = vmatpush1.msra.mxu0 0.0
    %9306 = vmatprep.subr.mxu0 0.0
    %9307 = vmatpush1.msra.mxu0 0.0
    %9308 = vmatprep.subr.mxu0 0.0
    %9309 = vmatpush1.msra.mxu0 0.0
    %9310 = vmatprep.mubr.f32.mxu0 0.0
    %9311 = vmatmul.mubr.f32.gmra.mrb[0].mxu0 %v9244
    %v9312 = vpop.f32.mrb[0].mxu0
    %v9313 = vadd.f32 %v9241, %v9312
    %v9314 = vpop.f32.mrb[0].mxu0
    %9315 = vdwg.mxu0
    %v9316 = vmax.f32 %v9313, 0.0
    %9318 = vset.pattern.permute.xlu0 25
    %9319 = vperm.xlu0 %9318, %v8518
    %v9320 = vpop.permute.xlu0 %9319
    %v9323 = vsel %vm543, %v8519, 0
    %v9326 = vsel %vm543, %v9316, 0
    %9328 = vmatprep.subr.mxu0 0.0
    %9329 = vmatpush1.xpose.msra.mxu0 %v9326
    %9330 = vmatprep.subr.mxu0 0.0
    %9331 = vmatpush1.xpose.msra.mxu0 0.0
    %9332 = vmatprep.subr.mxu0 0.0
    %9333 = vmatpush1.xpose.msra.mxu0 0.0
    %9334 = vmatprep.subr.mxu0 0.0
    %9335 = vmatpush1.xpose.msra.mxu0 0.0
    %9336 = vmatprep.subr.mxu0 0.0
    %9337 = vmatpush1.xpose.msra.mxu0 0.0
    %9338 = vmatprep.subr.mxu0 0.0
    %9339 = vmatpush1.xpose.msra.mxu0 0.0
    %9340 = vmatprep.subr.mxu0 0.0
    %9341 = vmatpush1.xpose.msra.mxu0 0.0
    %9342 = vmatprep.subr.mxu0 0.0
    %9343 = vmatpush1.xpose.msra.mxu0 0.0
    %9344 = vmatprep.subr.mxu0 0.0
    %9345 = vmatpush1.xpose.msra.mxu0 0.0
    %9346 = vmatprep.subr.mxu0 0.0
    %9347 = vmatpush1.xpose.msra.mxu0 0.0
    %9348 = vmatprep.subr.mxu0 0.0
    %9349 = vmatpush1.xpose.msra.mxu0 0.0
    %9350 = vmatprep.subr.mxu0 0.0
    %9351 = vmatpush1.xpose.msra.mxu0 0.0
    %9352 = vmatprep.subr.mxu0 0.0
    %9353 = vmatpush1.xpose.msra.mxu0 0.0
    %9354 = vmatprep.subr.mxu0 0.0
    %9355 = vmatpush1.xpose.msra.mxu0 0.0
    %9356 = vmatprep.subr.mxu0 0.0
    %9357 = vmatpush1.xpose.msra.mxu0 0.0
    %9358 = vmatprep.subr.mxu0 0.0
    %9359 = vmatpush1.xpose.msra.mxu0 0.0
    %9360 = vmatprep.subr.mxu0 0.0
    %9361 = vmatpush1.xpose.msra.mxu0 0.0
    %9362 = vmatprep.subr.mxu0 0.0
    %9363 = vmatpush1.xpose.msra.mxu0 0.0
    %9364 = vmatprep.subr.mxu0 0.0
    %9365 = vmatpush1.xpose.msra.mxu0 0.0
    %9366 = vmatprep.subr.mxu0 0.0
    %9367 = vmatpush1.xpose.msra.mxu0 0.0
    %9368 = vmatprep.subr.mxu0 0.0
    %9369 = vmatpush1.xpose.msra.mxu0 0.0
    %9370 = vmatprep.subr.mxu0 0.0
    %9371 = vmatpush1.xpose.msra.mxu0 0.0
    %9372 = vmatprep.subr.mxu0 0.0
    %9373 = vmatpush1.xpose.msra.mxu0 0.0
    %9374 = vmatprep.subr.mxu0 0.0
    %9375 = vmatpush1.xpose.msra.mxu0 0.0
    %9376 = vmatprep.subr.mxu0 0.0
    %9377 = vmatpush1.xpose.msra.mxu0 0.0
    %9378 = vmatprep.subr.mxu0 0.0
    %9379 = vmatpush1.xpose.msra.mxu0 0.0
    %9380 = vmatprep.subr.mxu0 0.0
    %9381 = vmatpush1.xpose.msra.mxu0 0.0
    %9382 = vmatprep.subr.mxu0 0.0
    %9383 = vmatpush1.xpose.msra.mxu0 0.0
    %9384 = vmatprep.subr.mxu0 0.0
    %9385 = vmatpush1.xpose.msra.mxu0 0.0
    %9386 = vmatprep.subr.mxu0 0.0
    %9387 = vmatpush1.xpose.msra.mxu0 0.0
    %9388 = vmatprep.subr.mxu0 0.0
    %9389 = vmatpush1.xpose.msra.mxu0 0.0
    %9390 = vmatprep.subr.mxu0 0.0
    %9391 = vmatpush1.xpose.msra.mxu0 0.0
    %9392 = vmatprep.mubr.f32.mxu0 0.0
    %9393 = vmatmul.mubr.f32.gmra.mrb[0].mxu0 %v9323
    %v9394 = vpop.f32.mrb[0].mxu0
    %v9395 = vadd.f32 %v9320, %v9394
    %v9396 = vpop.f32.mrb[0].mxu0
    %9397 = vdwg.mxu0
    %vm9398 = vcmask 57344
    %9399 = vst.msk [vmem:[#allocation2] sm:$0x1] %vm9398, %v9395
    // Predicated region
    $region34: #{equiscore_forward.1} parent=1 // pred_check
      _
    $region35: #{equiscore_forward.1} parent=1 // pred_check_branch
      %9401 = sbr.rel (0) target = $region37
    $region36: #{equiscore_forward.1} parent=1 // pred_region
      %s9403 = ssub.s32 16, 16
      %9404 = vsyncadd [#allocation3], %s9403
      %s9406 = sshll.u32 [#allocation2], 4
      %s9407 = int_to_ptr.vmem [resolvable:$true] %s9406
      %9409 = dma.vmem_to_hbm [thread:$0]  %s9407, 16, %s8, [#allocation3]
    $region37: #{equiscore_forward.1} parent=1 // pred_fallthru
      _
    // Predicated region
    $region38: #{equiscore_forward.1} parent=1 // pred_check
      _
    $region39: #{equiscore_forward.1} parent=1 // pred_check_branch
      %9411 = sbr.rel (0) target = $region41
    $region40: #{equiscore_forward.1} parent=1 // pred_region
      %9412 = dma.done [#allocation3], 16
    $region41: #{equiscore_forward.1} parent=1 // pred_fallthru
      _
    %9413 = vsyncpa [#allocation3], 1

</llo_original>
